<compile_context>
chip_gen: v7x
topology: tpu7x:2x2x1
jax: 0.10.0
libtpu: 0.0.40
codegen_flags: <defaults>
</compile_context>

<pallas_src>
import jax
import jax.numpy as jnp
from jax import lax
from jax.experimental import pallas as pl
from jax.experimental.pallas import tpu as pltpu


def _round_up(x, m):
    return (x + m - 1) // m * m


def _padded_tile_bytes(shape, dtype, nbuf):
    """Approx. VMEM footprint of one block after (sublane, lane) layout padding."""
    lead = 1
    for d in shape[:-2]:
        lead *= int(d)
    sub = _round_up(int(shape[-2]), 8)
    lane = _round_up(int(shape[-1]), 128)
    return lead * sub * lane * jnp.dtype(dtype).itemsize * nbuf


def basic_conv_bn_relu(x_nchw, weight_oihw, bias, gamma, beta,
                       running_mean, running_var, *,
                       stride=1, padding=0, dilation=1, groups=1, eps=1e-5,
                       compute_dtype=None, out_dtype=None):
    """Forward of BasicConv: Conv2d (stride=1, groups=1) + eval-mode BN + ReLU."""
    # Explicit guards (review): configurations we do not implement are rejected
    # loudly instead of producing silently wrong results.
    assert stride == 1 and dilation == 1 and groups == 1, \
        "only stride=1, dilation=1, groups=1 are implemented"

    N, Cin, H, W = x_nchw.shape
    Cout, Cin_w, KH, KW = weight_oihw.shape
    assert Cin_w == Cin

    Hp, Wp = H + 2 * padding, W + 2 * padding
    Ho, Wo = Hp - KH + 1, Wp - KW + 1
    T = KH * KW

    out_dtype = jnp.dtype(x_nchw.dtype) if out_dtype is None else jnp.dtype(out_dtype)
    cdt = jnp.dtype(x_nchw.dtype) if compute_dtype is None else jnp.dtype(compute_dtype)
    # 2-byte operands pack two rows per sublane -> 16-row granule, else 8.
    granule = 16 if (cdt.itemsize == 2 or out_dtype.itemsize == 2) else 8

    # ---- wrapper glue (plain JAX): NHWC, spatial zero-pad, flatten to rows ----
    # No im2col in HBM.  With output rows indexed on the padded-width grid
    # (r = ho*Wp + wo_p), tap (kh, kw) of row r is simply slab row r + kh*Wp + kw,
    # so the kernel only needs contiguous row-shifted slices of the slab.
    x_nhwc = jnp.transpose(x_nchw, (0, 2, 3, 1))
    x_pad = jnp.pad(x_nhwc,
                    ((0, 0), (padding, padding), (padding, padding), (0, 0)))

    M_img = Ho * Wp                              # output rows per image (padded-width grid)
    M_pad = _round_up(M_img, granule)
    max_off = (KH - 1) * Wp + (KW - 1)
    R = _round_up(M_pad + max_off, granule)      # slab rows incl. shift headroom
    X = x_pad.reshape(N, Hp * Wp, Cin)
    X = jnp.pad(X, ((0, 0), (0, R - Hp * Wp), (0, 0)))

    # ---- fold eval-mode BN (+ optional conv bias) into weights / bias ----
    inv_std = 1.0 / jnp.sqrt(running_var + eps)
    scale = gamma * inv_std                      # (Cout,)
    shift = beta - running_mean * scale          # (Cout,)
    b_folded = shift if bias is None else shift + bias * scale

    CP = _round_up(Cout, 128)                    # lane-dense store; 256 for 128<Cout<=256
    w_taps = jnp.transpose(weight_oihw, (2, 3, 1, 0)) * scale[None, None, None, :]
    w_taps = w_taps.reshape(T, Cin, Cout)        # per-tap (Cin, Cout) blocks
    w_taps = jnp.pad(w_taps, ((0, 0), (0, 0), (0, CP - Cout)))
    b_row = jnp.pad(b_folded.reshape(1, Cout), ((0, 0), (0, CP - Cout)))
    b_row = b_row.astype(jnp.float32)

    # bf16 feed halves image/weight DMA bytes.  Valid on v5e too (bf16 MXU,
    # f32 accumulation + f32 epilogue), not just v6e/v7x.
    X = X.astype(cdt)
    w_taps = w_taps.astype(cdt)

    # ---- kernel: KH*KW row-shifted slices -> MXU dots -> f32 acc -> bias+ReLU ----
    def kernel(x_ref, w_ref, b_ref, o_ref):
        # x_ref: (1, R, Cin)  one image slab      w_ref: (T, Cin, CP) BN-folded taps
        # b_ref: (1, CP)      folded bias row     o_ref: (M_pad, CP)  lane-dense tile
        acc = None
        for kh in range(KH):
            for kw in range(KW):
                off = kh * Wp + kw                        # static shift for this tap
                lhs = x_ref[0, pl.ds(off, M_pad), :]      # contiguous (M_pad, Cin) rows
                part = jnp.dot(lhs, w_ref[kh * KW + kw],
                               preferred_element_type=jnp.float32)
                acc = part if acc is None else acc + part
        y = acc + b_ref[...]                              # folded conv-bias + BN shift
        o_ref[...] = jnp.maximum(y, 0.0).astype(o_ref.dtype)   # ReLU

    # VMEM budget: streamed image/output blocks double-buffered; weight/bias
    # single-buffered (counted as 2 here for a conservative limit).
    vmem_need = (_padded_tile_bytes((1, R, Cin), cdt, 2)
                 + _padded_tile_bytes((T, Cin, CP), cdt, 2)
                 + _padded_tile_bytes((1, CP), jnp.float32, 2)
                 + _padded_tile_bytes((M_pad, CP), out_dtype, 2))
    vmem_limit = int(min(64 << 20, max(32 << 20, 2 * vmem_need)))

    # Advisory cost from the TRUE problem (un-padded M, K, Cout).
    cost = pl.CostEstimate(
        flops=2 * N * Ho * Wo * Cout * KH * KW * Cin,
        transcendentals=0,
        bytes_accessed=int(x_nchw.size * cdt.itemsize
                           + weight_oihw.size * cdt.itemsize
                           + N * Ho * Wo * Cout * out_dtype.itemsize))

    def call(single_buffer_consts):
        const_kw = ({"pipeline_mode": pl.Buffered(1)} if single_buffer_consts else {})
        grid_spec = pltpu.PrefetchScalarGridSpec(
            num_scalar_prefetch=0,
            grid=(N,),                                    # extent >= 2: both v7x TCs busy
            in_specs=[
                pl.BlockSpec((1, R, Cin), lambda n: (n, 0, 0)),
                pl.BlockSpec((T, Cin, CP), lambda n: (0, 0, 0), **const_kw),
                pl.BlockSpec((1, CP), lambda n: (0, 0), **const_kw),
            ],
            out_specs=pl.BlockSpec((M_pad, CP), lambda n: (n, 0)),
        )
        return pl.pallas_call(
            kernel,
            out_shape=jax.ShapeDtypeStruct((N * M_pad, CP), out_dtype),
            grid_spec=grid_spec,
            compiler_params=pltpu.CompilerParams(
                dimension_semantics=("parallel",),
                vmem_limit_bytes=vmem_limit),
            cost_estimate=cost,
        )(X, w_taps, b_row)

    try:
        out2d = call(True)      # constant blocks single-buffered (review item)
    except Exception:           # jax without Buffered(1) support -> default buffering
        out2d = call(False)

    # Drop row padding, the padded-width "garbage" columns and the CP channel pad.
    out = out2d.reshape(N, M_pad, CP)[:, :M_img, :Cout]
    out = out.reshape(N, Ho, Wp, Cout)[:, :, :Wo, :]
    return jnp.transpose(out, (0, 3, 1, 2))               # back to NCHW


def _reference(x_nchw, weight_oihw, bias, gamma, beta,
               running_mean, running_var, *, padding=0, eps=1e-5):
    y = lax.conv_general_dilated(
        x_nchw, weight_oihw,
        window_strides=(1, 1),
        padding=((padding, padding), (padding, padding)),
        dimension_numbers=("NCHW", "OIHW", "NCHW"))
    if bias is not None:
        y = y + bias.reshape(1, -1, 1, 1)
    inv_std = 1.0 / jnp.sqrt(running_var + eps)
    y = (y - running_mean.reshape(1, -1, 1, 1)) \
        * (gamma * inv_std).reshape(1, -1, 1, 1) + beta.reshape(1, -1, 1, 1)
    return jnp.maximum(y, 0.0)


if __name__ == "__main__":
    key = jax.random.PRNGKey(0)
    kx, kw_, kg, kbe, krm, krv = jax.random.split(key, 6)

    # BasicConv(in_planes=4, out_planes=8, kernel_size=3, padding=1)
    N, Cin, H, W = 2, 4, 16, 16
    Cout, KH, KW = 8, 3, 3

    x = jax.random.normal(kx, (N, Cin, H, W), dtype=jnp.float32)
    weight = jax.random.normal(kw_, (Cout, Cin, KH, KW), dtype=jnp.float32) * 0.1
    gamma = jax.random.normal(kg, (Cout,), dtype=jnp.float32) * 0.1 + 1.0
    beta = jax.random.normal(kbe, (Cout,), dtype=jnp.float32) * 0.1
    running_mean = jax.random.normal(krm, (Cout,), dtype=jnp.float32) * 0.1
    running_var = jax.random.uniform(krv, (Cout,), dtype=jnp.float32,
                                     minval=0.5, maxval=1.5)

    ref = _reference(x, weight, None, gamma, beta,
                     running_mean, running_var, padding=1)

    # f32 path: eval-mode semantics of the PyTorch module.
    out = basic_conv_bn_relu(x, weight, None, gamma, beta,
                             running_mean, running_var, padding=1)
    out = jax.block_until_ready(out)
    assert out.shape == (N, Cout, H, W)
    assert jnp.allclose(out, ref, atol=2e-3, rtol=2e-3), "f32 mismatch vs reference"

    # bf16 compute path (valid on v5e/v6e/v7x): bf16 operands, f32 accumulation.
    out_bf16 = basic_conv_bn_relu(x, weight, None, gamma, beta,
                                  running_mean, running_var, padding=1,
                                  compute_dtype=jnp.bfloat16)
    out_bf16 = jax.block_until_ready(out_bf16)
    assert jnp.allclose(out_bf16, ref, atol=5e-2, rtol=5e-2), "bf16 mismatch vs reference"

    # bf16 activations out: halves HBM writeback when downstream tolerates bf16.
    out_bf16_act = basic_conv_bn_relu(x, weight, None, gamma, beta,
                                      running_mean, running_var, padding=1,
                                      compute_dtype=jnp.bfloat16,
                                      out_dtype=jnp.bfloat16)
    out_bf16_act = jax.block_until_ready(out_bf16_act)
    assert out_bf16_act.dtype == jnp.bfloat16
    assert jnp.allclose(out_bf16_act.astype(jnp.float32), ref,
                        atol=5e-2, rtol=5e-2), "bf16-out mismatch vs reference"

    print("KERNEL_OK")
</pallas_src>

<mosaic_0001>
module attributes {stable_mosaic.version = 11 : i64} {
  func.func @kernel(%arg0: i32, %arg1: memref<1x328x4xf32, #tpu.memory_space<vmem>>, %arg2: memref<9x4x128xf32, #tpu.memory_space<vmem>>, %arg3: memref<1x128xf32, #tpu.memory_space<vmem>>, %arg4: memref<288x128xf32, #tpu.memory_space<vmem>>) attributes {dimension_semantics = [#tpu.dimension_semantics<parallel>], iteration_bounds = array<i64: 2>, scalar_prefetch = 0 : i64, scratch_operands = 0 : i64, tpu.core_type = #tpu.core_type<tc>, window_params = [{transform_indices = @transform_0, window_bounds = array<i64: 1, 328, 4>}, {pipeline_mode = #tpu.pipeline_mode<synchronous>, transform_indices = @transform_1, window_bounds = array<i64: 9, 4, 128>}, {pipeline_mode = #tpu.pipeline_mode<synchronous>, transform_indices = @transform_2, window_bounds = array<i64: 1, 128>}, {transform_indices = @transform_3, window_bounds = array<i64: 288, 128>}]} {
    %c0 = arith.constant 0 : index
    %c0_0 = arith.constant 0 : index
    %c0_1 = arith.constant 0 : index
    %0 = vector.load %arg1[%c0, %c0_0, %c0_1] : memref<1x328x4xf32, #tpu.memory_space<vmem>>, vector<1x288x4xf32>
    %1 = vector.shape_cast %0 : vector<1x288x4xf32> to vector<288x4xf32>
    %c0_2 = arith.constant 0 : index
    %c0_3 = arith.constant 0 : index
    %c0_4 = arith.constant 0 : index
    %2 = vector.load %arg2[%c0_2, %c0_3, %c0_4] : memref<9x4x128xf32, #tpu.memory_space<vmem>>, vector<1x4x128xf32>
    %3 = vector.shape_cast %2 : vector<1x4x128xf32> to vector<4x128xf32>
    %cst = arith.constant dense<0.000000e+00> : vector<288x128xf32>
    %4 = tpu.matmul %1, %3, %cst {dimension_numbers = #tpu.dot_dimension_numbers<[1], [0], [0], [1], [0, 0, 1, 1], [], []>} : vector<288x4xf32>, vector<4x128xf32>, vector<288x128xf32> -> vector<288x128xf32>
    %c0_5 = arith.constant 0 : index
    %c1 = arith.constant 1 : index
    %c0_6 = arith.constant 0 : index
    %5 = vector.load %arg1[%c0_5, %c1, %c0_6] : memref<1x328x4xf32, #tpu.memory_space<vmem>>, vector<1x288x4xf32>
    %6 = vector.shape_cast %5 : vector<1x288x4xf32> to vector<288x4xf32>
    %c1_7 = arith.constant 1 : index
    %c0_8 = arith.constant 0 : index
    %c0_9 = arith.constant 0 : index
    %7 = vector.load %arg2[%c1_7, %c0_8, %c0_9] : memref<9x4x128xf32, #tpu.memory_space<vmem>>, vector<1x4x128xf32>
    %8 = vector.shape_cast %7 : vector<1x4x128xf32> to vector<4x128xf32>
    %cst_10 = arith.constant dense<0.000000e+00> : vector<288x128xf32>
    %9 = tpu.matmul %6, %8, %cst_10 {dimension_numbers = #tpu.dot_dimension_numbers<[1], [0], [0], [1], [0, 0, 1, 1], [], []>} : vector<288x4xf32>, vector<4x128xf32>, vector<288x128xf32> -> vector<288x128xf32>
    %10 = arith.addf %4, %9 : vector<288x128xf32>
    %c0_11 = arith.constant 0 : index
    %c2 = arith.constant 2 : index
    %c0_12 = arith.constant 0 : index
    %11 = vector.load %arg1[%c0_11, %c2, %c0_12] : memref<1x328x4xf32, #tpu.memory_space<vmem>>, vector<1x288x4xf32>
    %12 = vector.shape_cast %11 : vector<1x288x4xf32> to vector<288x4xf32>
    %c2_13 = arith.constant 2 : index
    %c0_14 = arith.constant 0 : index
    %c0_15 = arith.constant 0 : index
    %13 = vector.load %arg2[%c2_13, %c0_14, %c0_15] : memref<9x4x128xf32, #tpu.memory_space<vmem>>, vector<1x4x128xf32>
    %14 = vector.shape_cast %13 : vector<1x4x128xf32> to vector<4x128xf32>
    %cst_16 = arith.constant dense<0.000000e+00> : vector<288x128xf32>
    %15 = tpu.matmul %12, %14, %cst_16 {dimension_numbers = #tpu.dot_dimension_numbers<[1], [0], [0], [1], [0, 0, 1, 1], [], []>} : vector<288x4xf32>, vector<4x128xf32>, vector<288x128xf32> -> vector<288x128xf32>
    %16 = arith.addf %10, %15 : vector<288x128xf32>
    %c0_17 = arith.constant 0 : index
    %c18 = arith.constant 18 : index
    %c0_18 = arith.constant 0 : index
    %17 = vector.load %arg1[%c0_17, %c18, %c0_18] : memref<1x328x4xf32, #tpu.memory_space<vmem>>, vector<1x288x4xf32>
    %18 = vector.shape_cast %17 : vector<1x288x4xf32> to vector<288x4xf32>
    %c3 = arith.constant 3 : index
    %c0_19 = arith.constant 0 : index
    %c0_20 = arith.constant 0 : index
    %19 = vector.load %arg2[%c3, %c0_19, %c0_20] : memref<9x4x128xf32, #tpu.memory_space<vmem>>, vector<1x4x128xf32>
    %20 = vector.shape_cast %19 : vector<1x4x128xf32> to vector<4x128xf32>
    %cst_21 = arith.constant dense<0.000000e+00> : vector<288x128xf32>
    %21 = tpu.matmul %18, %20, %cst_21 {dimension_numbers = #tpu.dot_dimension_numbers<[1], [0], [0], [1], [0, 0, 1, 1], [], []>} : vector<288x4xf32>, vector<4x128xf32>, vector<288x128xf32> -> vector<288x128xf32>
    %22 = arith.addf %16, %21 : vector<288x128xf32>
    %c0_22 = arith.constant 0 : index
    %c19 = arith.constant 19 : index
    %c0_23 = arith.constant 0 : index
    %23 = vector.load %arg1[%c0_22, %c19, %c0_23] : memref<1x328x4xf32, #tpu.memory_space<vmem>>, vector<1x288x4xf32>
    %24 = vector.shape_cast %23 : vector<1x288x4xf32> to vector<288x4xf32>
    %c4 = arith.constant 4 : index
    %c0_24 = arith.constant 0 : index
    %c0_25 = arith.constant 0 : index
    %25 = vector.load %arg2[%c4, %c0_24, %c0_25] : memref<9x4x128xf32, #tpu.memory_space<vmem>>, vector<1x4x128xf32>
    %26 = vector.shape_cast %25 : vector<1x4x128xf32> to vector<4x128xf32>
    %cst_26 = arith.constant dense<0.000000e+00> : vector<288x128xf32>
    %27 = tpu.matmul %24, %26, %cst_26 {dimension_numbers = #tpu.dot_dimension_numbers<[1], [0], [0], [1], [0, 0, 1, 1], [], []>} : vector<288x4xf32>, vector<4x128xf32>, vector<288x128xf32> -> vector<288x128xf32>
    %28 = arith.addf %22, %27 : vector<288x128xf32>
    %c0_27 = arith.constant 0 : index
    %c20 = arith.constant 20 : index
    %c0_28 = arith.constant 0 : index
    %29 = vector.load %arg1[%c0_27, %c20, %c0_28] : memref<1x328x4xf32, #tpu.memory_space<vmem>>, vector<1x288x4xf32>
    %30 = vector.shape_cast %29 : vector<1x288x4xf32> to vector<288x4xf32>
    %c5 = arith.constant 5 : index
    %c0_29 = arith.constant 0 : index
    %c0_30 = arith.constant 0 : index
    %31 = vector.load %arg2[%c5, %c0_29, %c0_30] : memref<9x4x128xf32, #tpu.memory_space<vmem>>, vector<1x4x128xf32>
    %32 = vector.shape_cast %31 : vector<1x4x128xf32> to vector<4x128xf32>
    %cst_31 = arith.constant dense<0.000000e+00> : vector<288x128xf32>
    %33 = tpu.matmul %30, %32, %cst_31 {dimension_numbers = #tpu.dot_dimension_numbers<[1], [0], [0], [1], [0, 0, 1, 1], [], []>} : vector<288x4xf32>, vector<4x128xf32>, vector<288x128xf32> -> vector<288x128xf32>
    %34 = arith.addf %28, %33 : vector<288x128xf32>
    %c0_32 = arith.constant 0 : index
    %c36 = arith.constant 36 : index
    %c0_33 = arith.constant 0 : index
    %35 = vector.load %arg1[%c0_32, %c36, %c0_33] : memref<1x328x4xf32, #tpu.memory_space<vmem>>, vector<1x288x4xf32>
    %36 = vector.shape_cast %35 : vector<1x288x4xf32> to vector<288x4xf32>
    %c6 = arith.constant 6 : index
    %c0_34 = arith.constant 0 : index
    %c0_35 = arith.constant 0 : index
    %37 = vector.load %arg2[%c6, %c0_34, %c0_35] : memref<9x4x128xf32, #tpu.memory_space<vmem>>, vector<1x4x128xf32>
    %38 = vector.shape_cast %37 : vector<1x4x128xf32> to vector<4x128xf32>
    %cst_36 = arith.constant dense<0.000000e+00> : vector<288x128xf32>
    %39 = tpu.matmul %36, %38, %cst_36 {dimension_numbers = #tpu.dot_dimension_numbers<[1], [0], [0], [1], [0, 0, 1, 1], [], []>} : vector<288x4xf32>, vector<4x128xf32>, vector<288x128xf32> -> vector<288x128xf32>
    %40 = arith.addf %34, %39 : vector<288x128xf32>
    %c0_37 = arith.constant 0 : index
    %c37 = arith.constant 37 : index
    %c0_38 = arith.constant 0 : index
    %41 = vector.load %arg1[%c0_37, %c37, %c0_38] : memref<1x328x4xf32, #tpu.memory_space<vmem>>, vector<1x288x4xf32>
    %42 = vector.shape_cast %41 : vector<1x288x4xf32> to vector<288x4xf32>
    %c7 = arith.constant 7 : index
    %c0_39 = arith.constant 0 : index
    %c0_40 = arith.constant 0 : index
    %43 = vector.load %arg2[%c7, %c0_39, %c0_40] : memref<9x4x128xf32, #tpu.memory_space<vmem>>, vector<1x4x128xf32>
    %44 = vector.shape_cast %43 : vector<1x4x128xf32> to vector<4x128xf32>
    %cst_41 = arith.constant dense<0.000000e+00> : vector<288x128xf32>
    %45 = tpu.matmul %42, %44, %cst_41 {dimension_numbers = #tpu.dot_dimension_numbers<[1], [0], [0], [1], [0, 0, 1, 1], [], []>} : vector<288x4xf32>, vector<4x128xf32>, vector<288x128xf32> -> vector<288x128xf32>
    %46 = arith.addf %40, %45 : vector<288x128xf32>
    %c0_42 = arith.constant 0 : index
    %c38 = arith.constant 38 : index
    %c0_43 = arith.constant 0 : index
    %47 = vector.load %arg1[%c0_42, %c38, %c0_43] : memref<1x328x4xf32, #tpu.memory_space<vmem>>, vector<1x288x4xf32>
    %48 = vector.shape_cast %47 : vector<1x288x4xf32> to vector<288x4xf32>
    %c8 = arith.constant 8 : index
    %c0_44 = arith.constant 0 : index
    %c0_45 = arith.constant 0 : index
    %49 = vector.load %arg2[%c8, %c0_44, %c0_45] : memref<9x4x128xf32, #tpu.memory_space<vmem>>, vector<1x4x128xf32>
    %50 = vector.shape_cast %49 : vector<1x4x128xf32> to vector<4x128xf32>
    %cst_46 = arith.constant dense<0.000000e+00> : vector<288x128xf32>
    %51 = tpu.matmul %48, %50, %cst_46 {dimension_numbers = #tpu.dot_dimension_numbers<[1], [0], [0], [1], [0, 0, 1, 1], [], []>} : vector<288x4xf32>, vector<4x128xf32>, vector<288x128xf32> -> vector<288x128xf32>
    %52 = arith.addf %46, %51 : vector<288x128xf32>
    %c0_47 = arith.constant 0 : index
    %c0_48 = arith.constant 0 : index
    %53 = vector.load %arg3[%c0_47, %c0_48] : memref<1x128xf32, #tpu.memory_space<vmem>>, vector<1x128xf32>
    %54 = vector.broadcast %53 : vector<1x128xf32> to vector<288x128xf32>
    %55 = arith.addf %52, %54 : vector<288x128xf32>
    %cst_49 = arith.constant 0.000000e+00 : f32
    %56 = vector.broadcast %cst_49 : f32 to vector<288x128xf32>
    %57 = arith.maximumf %55, %56 : vector<288x128xf32>
    %c0_50 = arith.constant 0 : index
    %c0_51 = arith.constant 0 : index
    %58 = vector.load %arg4[%c0_50, %c0_51] : memref<288x128xf32, #tpu.memory_space<vmem>>, vector<288x128xf32>
    tpu.vector_store %arg4[%c0_50, %c0_51], %57 {strides = array<i32>} : memref<288x128xf32, #tpu.memory_space<vmem>>, vector<288x128xf32>,
    return
  }
  func.func @transform_0(%arg0: i32) -> (i32, i32, i32) {
    %c0_i32 = arith.constant 0 : i32
    %c0_i32_0 = arith.constant 0 : i32
    %c0_i32_1 = arith.constant 0 : i32
    return %arg0, %c0_i32, %c0_i32_0 : i32, i32, i32
  }
  func.func @transform_1(%arg0: i32) -> (i32, i32, i32) {
    %c0_i32 = arith.constant 0 : i32
    %c0_i32_0 = arith.constant 0 : i32
    %c0_i32_1 = arith.constant 0 : i32
    %c0_i32_2 = arith.constant 0 : i32
    return %c0_i32, %c0_i32_0, %c0_i32_1 : i32, i32, i32
  }
  func.func @transform_2(%arg0: i32) -> (i32, i32) {
    %c0_i32 = arith.constant 0 : i32
    %c0_i32_0 = arith.constant 0 : i32
    %c0_i32_1 = arith.constant 0 : i32
    return %c0_i32, %c0_i32_0 : i32, i32
  }
  func.func @transform_3(%arg0: i32) -> (i32, i32) {
    %c0_i32 = arith.constant 0 : i32
    %c0_i32_0 = arith.constant 0 : i32
    return %arg0, %c0_i32 : i32, i32
  }
}

module attributes {stable_mosaic.version = 11 : i64} {
  func.func @kernel(%arg0: i32, %arg1: memref<1x328x4xf32, #tpu.memory_space<vmem>>, %arg2: memref<9x4x128xf32, #tpu.memory_space<vmem>>, %arg3: memref<1x128xf32, #tpu.memory_space<vmem>>, %arg4: memref<288x128xf32, #tpu.memory_space<vmem>>) attributes {dimension_semantics = [#tpu.dimension_semantics<parallel>], iteration_bounds = array<i64: 2>, scalar_prefetch = 0 : i64, scratch_operands = 0 : i64, tpu.core_type = #tpu.core_type<tc>, window_params = [{transform_indices = @transform_0, window_bounds = array<i64: 1, 328, 4>}, {pipeline_mode = #tpu.pipeline_mode<synchronous>, transform_indices = @transform_1, window_bounds = array<i64: 9, 4, 128>}, {pipeline_mode = #tpu.pipeline_mode<synchronous>, transform_indices = @transform_2, window_bounds = array<i64: 1, 128>}, {transform_indices = @transform_3, window_bounds = array<i64: 288, 128>}]} {
    %c0 = arith.constant 0 : index
    %c0_0 = arith.constant 0 : index
    %c0_1 = arith.constant 0 : index
    %0 = vector.load %arg1[%c0, %c0_0, %c0_1] : memref<1x328x4xf32, #tpu.memory_space<vmem>>, vector<1x288x4xf32>
    %1 = vector.shape_cast %0 : vector<1x288x4xf32> to vector<288x4xf32>
    %c0_2 = arith.constant 0 : index
    %c0_3 = arith.constant 0 : index
    %c0_4 = arith.constant 0 : index
    %2 = vector.load %arg2[%c0_2, %c0_3, %c0_4] : memref<9x4x128xf32, #tpu.memory_space<vmem>>, vector<1x4x128xf32>
    %3 = vector.shape_cast %2 : vector<1x4x128xf32> to vector<4x128xf32>
    %cst = arith.constant dense<0.000000e+00> : vector<288x128xf32>
    %4 = tpu.matmul %1, %3, %cst {dimension_numbers = #tpu.dot_dimension_numbers<[1], [0], [0], [1], [0, 0, 1, 1], [], []>} : vector<288x4xf32>, vector<4x128xf32>, vector<288x128xf32> -> vector<288x128xf32>
    %c0_5 = arith.constant 0 : index
    %c1 = arith.constant 1 : index
    %c0_6 = arith.constant 0 : index
    %5 = vector.load %arg1[%c0_5, %c1, %c0_6] : memref<1x328x4xf32, #tpu.memory_space<vmem>>, vector<1x288x4xf32>
    %6 = vector.shape_cast %5 : vector<1x288x4xf32> to vector<288x4xf32>
    %c1_7 = arith.constant 1 : index
    %c0_8 = arith.constant 0 : index
    %c0_9 = arith.constant 0 : index
    %7 = vector.load %arg2[%c1_7, %c0_8, %c0_9] : memref<9x4x128xf32, #tpu.memory_space<vmem>>, vector<1x4x128xf32>
    %8 = vector.shape_cast %7 : vector<1x4x128xf32> to vector<4x128xf32>
    %cst_10 = arith.constant dense<0.000000e+00> : vector<288x128xf32>
    %9 = tpu.matmul %6, %8, %cst_10 {dimension_numbers = #tpu.dot_dimension_numbers<[1], [0], [0], [1], [0, 0, 1, 1], [], []>} : vector<288x4xf32>, vector<4x128xf32>, vector<288x128xf32> -> vector<288x128xf32>
    %10 = arith.addf %4, %9 : vector<288x128xf32>
    %c0_11 = arith.constant 0 : index
    %c2 = arith.constant 2 : index
    %c0_12 = arith.constant 0 : index
    %11 = vector.load %arg1[%c0_11, %c2, %c0_12] : memref<1x328x4xf32, #tpu.memory_space<vmem>>, vector<1x288x4xf32>
    %12 = vector.shape_cast %11 : vector<1x288x4xf32> to vector<288x4xf32>
    %c2_13 = arith.constant 2 : index
    %c0_14 = arith.constant 0 : index
    %c0_15 = arith.constant 0 : index
    %13 = vector.load %arg2[%c2_13, %c0_14, %c0_15] : memref<9x4x128xf32, #tpu.memory_space<vmem>>, vector<1x4x128xf32>
    %14 = vector.shape_cast %13 : vector<1x4x128xf32> to vector<4x128xf32>
    %cst_16 = arith.constant dense<0.000000e+00> : vector<288x128xf32>
    %15 = tpu.matmul %12, %14, %cst_16 {dimension_numbers = #tpu.dot_dimension_numbers<[1], [0], [0], [1], [0, 0, 1, 1], [], []>} : vector<288x4xf32>, vector<4x128xf32>, vector<288x128xf32> -> vector<288x128xf32>
    %16 = arith.addf %10, %15 : vector<288x128xf32>
    %c0_17 = arith.constant 0 : index
    %c18 = arith.constant 18 : index
    %c0_18 = arith.constant 0 : index
    %17 = vector.load %arg1[%c0_17, %c18, %c0_18] : memref<1x328x4xf32, #tpu.memory_space<vmem>>, vector<1x288x4xf32>
    %18 = vector.shape_cast %17 : vector<1x288x4xf32> to vector<288x4xf32>
    %c3 = arith.constant 3 : index
    %c0_19 = arith.constant 0 : index
    %c0_20 = arith.constant 0 : index
    %19 = vector.load %arg2[%c3, %c0_19, %c0_20] : memref<9x4x128xf32, #tpu.memory_space<vmem>>, vector<1x4x128xf32>
    %20 = vector.shape_cast %19 : vector<1x4x128xf32> to vector<4x128xf32>
    %cst_21 = arith.constant dense<0.000000e+00> : vector<288x128xf32>
    %21 = tpu.matmul %18, %20, %cst_21 {dimension_numbers = #tpu.dot_dimension_numbers<[1], [0], [0], [1], [0, 0, 1, 1], [], []>} : vector<288x4xf32>, vector<4x128xf32>, vector<288x128xf32> -> vector<288x128xf32>
    %22 = arith.addf %16, %21 : vector<288x128xf32>
    %c0_22 = arith.constant 0 : index
    %c19 = arith.constant 19 : index
    %c0_23 = arith.constant 0 : index
    %23 = vector.load %arg1[%c0_22, %c19, %c0_23] : memref<1x328x4xf32, #tpu.memory_space<vmem>>, vector<1x288x4xf32>
    %24 = vector.shape_cast %23 : vector<1x288x4xf32> to vector<288x4xf32>
    %c4 = arith.constant 4 : index
    %c0_24 = arith.constant 0 : index
    %c0_25 = arith.constant 0 : index
    %25 = vector.load %arg2[%c4, %c0_24, %c0_25] : memref<9x4x128xf32, #tpu.memory_space<vmem>>, vector<1x4x128xf32>
    %26 = vector.shape_cast %25 : vector<1x4x128xf32> to vector<4x128xf32>
    %cst_26 = arith.constant dense<0.000000e+00> : vector<288x128xf32>
    %27 = tpu.matmul %24, %26, %cst_26 {dimension_numbers = #tpu.dot_dimension_numbers<[1], [0], [0], [1], [0, 0, 1, 1], [], []>} : vector<288x4xf32>, vector<4x128xf32>, vector<288x128xf32> -> vector<288x128xf32>
    %28 = arith.addf %22, %27 : vector<288x128xf32>
    %c0_27 = arith.constant 0 : index
    %c20 = arith.constant 20 : index
    %c0_28 = arith.constant 0 : index
    %29 = vector.load %arg1[%c0_27, %c20, %c0_28] : memref<1x328x4xf32, #tpu.memory_space<vmem>>, vector<1x288x4xf32>
    %30 = vector.shape_cast %29 : vector<1x288x4xf32> to vector<288x4xf32>
    %c5 = arith.constant 5 : index
    %c0_29 = arith.constant 0 : index
    %c0_30 = arith.constant 0 : index
    %31 = vector.load %arg2[%c5, %c0_29, %c0_30] : memref<9x4x128xf32, #tpu.memory_space<vmem>>, vector<1x4x128xf32>
    %32 = vector.shape_cast %31 : vector<1x4x128xf32> to vector<4x128xf32>
    %cst_31 = arith.constant dense<0.000000e+00> : vector<288x128xf32>
    %33 = tpu.matmul %30, %32, %cst_31 {dimension_numbers = #tpu.dot_dimension_numbers<[1], [0], [0], [1], [0, 0, 1, 1], [], []>} : vector<288x4xf32>, vector<4x128xf32>, vector<288x128xf32> -> vector<288x128xf32>
    %34 = arith.addf %28, %33 : vector<288x128xf32>
    %c0_32 = arith.constant 0 : index
    %c36 = arith.constant 36 : index
    %c0_33 = arith.constant 0 : index
    %35 = vector.load %arg1[%c0_32, %c36, %c0_33] : memref<1x328x4xf32, #tpu.memory_space<vmem>>, vector<1x288x4xf32>
    %36 = vector.shape_cast %35 : vector<1x288x4xf32> to vector<288x4xf32>
    %c6 = arith.constant 6 : index
    %c0_34 = arith.constant 0 : index
    %c0_35 = arith.constant 0 : index
    %37 = vector.load %arg2[%c6, %c0_34, %c0_35] : memref<9x4x128xf32, #tpu.memory_space<vmem>>, vector<1x4x128xf32>
    %38 = vector.shape_cast %37 : vector<1x4x128xf32> to vector<4x128xf32>
    %cst_36 = arith.constant dense<0.000000e+00> : vector<288x128xf32>
    %39 = tpu.matmul %36, %38, %cst_36 {dimension_numbers = #tpu.dot_dimension_numbers<[1], [0], [0], [1], [0, 0, 1, 1], [], []>} : vector<288x4xf32>, vector<4x128xf32>, vector<288x128xf32> -> vector<288x128xf32>
    %40 = arith.addf %34, %39 : vector<288x128xf32>
    %c0_37 = arith.constant 0 : index
    %c37 = arith.constant 37 : index
    %c0_38 = arith.constant 0 : index
    %41 = vector.load %arg1[%c0_37, %c37, %c0_38] : memref<1x328x4xf32, #tpu.memory_space<vmem>>, vector<1x288x4xf32>
    %42 = vector.shape_cast %41 : vector<1x288x4xf32> to vector<288x4xf32>
    %c7 = arith.constant 7 : index
    %c0_39 = arith.constant 0 : index
    %c0_40 = arith.constant 0 : index
    %43 = vector.load %arg2[%c7, %c0_39, %c0_40] : memref<9x4x128xf32, #tpu.memory_space<vmem>>, vector<1x4x128xf32>
    %44 = vector.shape_cast %43 : vector<1x4x128xf32> to vector<4x128xf32>
    %cst_41 = arith.constant dense<0.000000e+00> : vector<288x128xf32>
    %45 = tpu.matmul %42, %44, %cst_41 {dimension_numbers = #tpu.dot_dimension_numbers<[1], [0], [0], [1], [0, 0, 1, 1], [], []>} : vector<288x4xf32>, vector<4x128xf32>, vector<288x128xf32> -> vector<288x128xf32>
    %46 = arith.addf %40, %45 : vector<288x128xf32>
    %c0_42 = arith.constant 0 : index
    %c38 = arith.constant 38 : index
    %c0_43 = arith.constant 0 : index
    %47 = vector.load %arg1[%c0_42, %c38, %c0_43] : memref<1x328x4xf32, #tpu.memory_space<vmem>>, vector<1x288x4xf32>
    %48 = vector.shape_cast %47 : vector<1x288x4xf32> to vector<288x4xf32>
    %c8 = arith.constant 8 : index
    %c0_44 = arith.constant 0 : index
    %c0_45 = arith.constant 0 : index
    %49 = vector.load %arg2[%c8, %c0_44, %c0_45] : memref<9x4x128xf32, #tpu.memory_space<vmem>>, vector<1x4x128xf32>
    %50 = vector.shape_cast %49 : vector<1x4x128xf32> to vector<4x128xf32>
    %cst_46 = arith.constant dense<0.000000e+00> : vector<288x128xf32>
    %51 = tpu.matmul %48, %50, %cst_46 {dimension_numbers = #tpu.dot_dimension_numbers<[1], [0], [0], [1], [0, 0, 1, 1], [], []>} : vector<288x4xf32>, vector<4x128xf32>, vector<288x128xf32> -> vector<288x128xf32>
    %52 = arith.addf %46, %51 : vector<288x128xf32>
    %c0_47 = arith.constant 0 : index
    %c0_48 = arith.constant 0 : index
    %53 = vector.load %arg3[%c0_47, %c0_48] : memref<1x128xf32, #tpu.memory_space<vmem>>, vector<1x128xf32>
    %54 = vector.broadcast %53 : vector<1x128xf32> to vector<288x128xf32>
    %55 = arith.addf %52, %54 : vector<288x128xf32>
    %cst_49 = arith.constant 0.000000e+00 : f32
    %56 = vector.broadcast %cst_49 : f32 to vector<288x128xf32>
    %57 = arith.maximumf %55, %56 : vector<288x128xf32>
    %c0_50 = arith.constant 0 : index
    %c0_51 = arith.constant 0 : index
    %58 = vector.load %arg4[%c0_50, %c0_51] : memref<288x128xf32, #tpu.memory_space<vmem>>, vector<288x128xf32>
    tpu.vector_store %arg4[%c0_50, %c0_51], %57 {strides = array<i32>} : memref<288x128xf32, #tpu.memory_space<vmem>>, vector<288x128xf32>,
    return
  }
  func.func @transform_0(%arg0: i32) -> (i32, i32, i32) {
    %c0_i32 = arith.constant 0 : i32
    %c0_i32_0 = arith.constant 0 : i32
    %c0_i32_1 = arith.constant 0 : i32
    return %arg0, %c0_i32, %c0_i32_0 : i32, i32, i32
  }
  func.func @transform_1(%arg0: i32) -> (i32, i32, i32) {
    %c0_i32 = arith.constant 0 : i32
    %c0_i32_0 = arith.constant 0 : i32
    %c0_i32_1 = arith.constant 0 : i32
    %c0_i32_2 = arith.constant 0 : i32
    return %c0_i32, %c0_i32_0, %c0_i32_1 : i32, i32, i32
  }
  func.func @transform_2(%arg0: i32) -> (i32, i32) {
    %c0_i32 = arith.constant 0 : i32
    %c0_i32_0 = arith.constant 0 : i32
    %c0_i32_1 = arith.constant 0 : i32
    return %c0_i32, %c0_i32_0 : i32, i32
  }
  func.func @transform_3(%arg0: i32) -> (i32, i32) {
    %c0_i32 = arith.constant 0 : i32
    %c0_i32_0 = arith.constant 0 : i32
    return %arg0, %c0_i32 : i32, i32
  }
}

</mosaic_0001>

<llo_original>
// kernel: tpu_custom_call.1
$region0: #{tpu_custom_call.1}
  #allocation0 [shape = 'u32[]', space=smem, size = 0x4, offset = 0x4, fixed_abs, tag = 'smem constant byte address 0x4 - core index']
  #allocation1 [shape = 'u32[144,128]{1,0:T(1,128)}', space=vmem, size = 0x12000, scoped, tag = 'internal scratch']
  %s0 = inlined_call_operand.vmem [shape: f32[2,328,4], index: 0, kind: input, shape index: {}]
  %s1 = inlined_call_operand.vmem [shape: f32[9,4,128], index: 1, kind: input, shape index: {}]
  %s2 = inlined_call_operand.vmem [shape: f32[1,128], index: 2, kind: input, shape index: {}]
  %s3 = inlined_call_operand.hbm [shape: f32[576,128], index: 3, kind: output, shape index: {}]
  %s4 = sld [smem:[#allocation0]]
  $region45: #{tpu_custom_call.1} parent=0
    _
  %s6 = ssub.s32 1, %s4
  %s7 = scalar_select 0, %s6, %s4
  $region1: #{tpu_custom_call.1} parent=0
    #allocation2 [shape = 'u8[294912]{0}', space=vmem, size = 0x48000, scoped, tag = 'output window, operand 0']
    #allocation3 [shape = 's32[2]{0}', space=sflag, size = 0x8, scoped, tag = 'scoped memory for tpu_custom_call.1']
    %8 = vsyncpa [#allocation3], 0
    %s9 = scalar_lea.sflag [#allocation3], 1
    %10 = vsyncpa %s9, 0
    loop: start=0, step=1, limit=4
    $region2: #{tpu_custom_call.1} parent=1 // loop_pre_header
      _
    $region3: #{tpu_custom_call.1} parent=1 // loop_header
      %s12 = sphi 0, %s16
      %p13 = scmp.ge.s32.totalorder %s12, 4
      %s22 = sphi 0, %s24
      %s25 = sphi 0, %s22
      %s26 = sphi 0, %s25
      %s42 = sphi 0, %s26
      %s46 = sphi 0, %s46
      %s48 = sphi 0, %s46
      %s49 = sphi 0, %s48
      %s63 = sphi 0, %s49
      %s67 = sphi 0, %s67
      %s69 = sphi 0, %s67
      %s70 = sphi 0, %s69
      %s84 = sphi 0, %s70
      %s90 = sphi 0, %s92
      %s93 = sphi 0, %s90
      %s94 = sphi 0, %s93
      %s110 = sphi 0, %s94
    $region4: #{tpu_custom_call.1} parent=1 // loop_header_branch
      %15 = sbr.rel (%p13) target = $region8
    $region5: #{tpu_custom_call.1} parent=1 // loop_body
      %s17 = ssub.s32 %s12, 1
      %s18 = ssub.s32 %s12, 2
      %s19 = sadd.s32 %s12, 1
      %s20 = ssub.s32 %s12, %s19
      %p21 = scmp.eq.s32.totalorder %s20, 0
      %s23 = sadd.s32 %s22, 1
      %s24 = scalar_select %p21, %s22, %s23
      %p27 = pneg %p21
      %p28 = scmp.eq.s32.totalorder %s12, 1
      %p29 = por %p27, %p28
      %p30 = scmp.ne.s32.totalorder %s22, %s25
      %p31 = scmp.eq.s32.totalorder %s12, 0
      %p32 = por %p30, %p31
      %p33 = scmp.ne.s32.totalorder %s22, %s25
      %p34 = scmp.eq.s32.totalorder %s17, 1
      %p35 = por %p33, %p34
      %p36 = scmp.ne.s32.totalorder %s25, %s26
      %p37 = scmp.eq.s32.totalorder %s17, 0
      %p38 = por %p36, %p37
      %p39 = scmp.ne.s32.totalorder %s25, %s26
      %p40 = scmp.eq.s32.totalorder %s18, 1
      %p41 = por %p39, %p40
      %p43 = scmp.ne.s32.totalorder %s26, %s42
      %p44 = scmp.eq.s32.totalorder %s18, 0
      %p45 = por %p43, %p44
      %s47 = sadd.s32 %s46, 1
      %p50 = scmp.eq.s32.totalorder %s12, 1
      %p51 = scmp.ne.s32.totalorder %s46, %s48
      %p52 = scmp.eq.s32.totalorder %s12, 0
      %p53 = por %p51, %p52
      %p54 = scmp.ne.s32.totalorder %s46, %s48
      %p55 = scmp.eq.s32.totalorder %s17, 1
      %p56 = por %p54, %p55
      %p57 = scmp.ne.s32.totalorder %s48, %s49
      %p58 = scmp.eq.s32.totalorder %s17, 0
      %p59 = por %p57, %p58
      %p60 = scmp.ne.s32.totalorder %s48, %s49
      %p61 = scmp.eq.s32.totalorder %s18, 1
      %p62 = por %p60, %p61
      %p64 = scmp.ne.s32.totalorder %s49, %s63
      %p65 = scmp.eq.s32.totalorder %s18, 0
      %p66 = por %p64, %p65
      %s68 = sadd.s32 %s67, 1
      %p71 = scmp.eq.s32.totalorder %s12, 1
      %p72 = scmp.ne.s32.totalorder %s67, %s69
      %p73 = scmp.eq.s32.totalorder %s12, 0
      %p74 = por %p72, %p73
      %p75 = scmp.ne.s32.totalorder %s67, %s69
      %p76 = scmp.eq.s32.totalorder %s17, 1
      %p77 = por %p75, %p76
      %p78 = scmp.ne.s32.totalorder %s69, %s70
      %p79 = scmp.eq.s32.totalorder %s17, 0
      %p80 = por %p78, %p79
      %p81 = scmp.ne.s32.totalorder %s69, %s70
      %p82 = scmp.eq.s32.totalorder %s18, 1
      %p83 = por %p81, %p82
      %p85 = scmp.ne.s32.totalorder %s70, %s84
      %p86 = scmp.eq.s32.totalorder %s18, 0
      %p87 = por %p85, %p86
      %s88 = ssub.s32 %s12, %s19
      %p89 = scmp.eq.s32.totalorder %s88, 0
      %s91 = sadd.s32 %s90, 1
      %s92 = scalar_select %p89, %s90, %s91
      %p95 = pneg %p89
      %p96 = scmp.eq.s32.totalorder %s12, 1
      %p97 = por %p95, %p96
      %p98 = scmp.ne.s32.totalorder %s90, %s93
      %p99 = scmp.eq.s32.totalorder %s12, 0
      %p100 = por %p98, %p99
      %p101 = scmp.ne.s32.totalorder %s90, %s93
      %p102 = scmp.eq.s32.totalorder %s17, 1
      %p103 = por %p101, %p102
      %p104 = scmp.ne.s32.totalorder %s93, %s94
      %p105 = scmp.eq.s32.totalorder %s17, 0
      %p106 = por %p104, %p105
      %p107 = scmp.ne.s32.totalorder %s93, %s94
      %p108 = scmp.eq.s32.totalorder %s18, 1
      %p109 = por %p107, %p108
      %p111 = scmp.ne.s32.totalorder %s94, %s110
      %p112 = scmp.eq.s32.totalorder %s18, 0
      %p113 = por %p111, %p112
      %p114 = scmp.le.s32.totalorder 1, %s12
      %p115 = scmp.lt.s32.totalorder %s12, 3
      %p116 = pnand %p114, %p115
      %p117 = pneg %p116
      // Predicated region
      $region9: #{tpu_custom_call.1} parent=5 // pred_check
        _
      $region10: #{tpu_custom_call.1} parent=5 // pred_check_branch
        %119 = sbr.rel (%p116) target = $region12
      $region11: #{tpu_custom_call.1} parent=5 // pred_region
        %s120 = ssub.s32 %s12, 1
        // Predicated region
        $region13: #{tpu_custom_call.1} parent=11 // pred_check
          %p121 = pneg %p59
        $region14: #{tpu_custom_call.1} parent=11 // pred_check_branch
          %123 = sbr.rel (%p121) target = $region16
        $region15: #{tpu_custom_call.1} parent=11 // pred_region
          _
        $region16: #{tpu_custom_call.1} parent=11 // pred_fallthru
          _
        // Predicated region
        $region17: #{tpu_custom_call.1} parent=11 // pred_check
          %p124 = pneg %p80
        $region18: #{tpu_custom_call.1} parent=11 // pred_check_branch
          %126 = sbr.rel (%p124) target = $region20
        $region19: #{tpu_custom_call.1} parent=11 // pred_region
          _
        $region20: #{tpu_custom_call.1} parent=11 // pred_fallthru
          _
      $region12: #{tpu_custom_call.1} parent=5 // pred_fallthru
        _
      %p127 = scmp.lt.s32.totalorder %s12, 2
      // Predicated region
      $region21: #{tpu_custom_call.1} parent=5 // pred_check
        %p128 = pneg %p127
      $region22: #{tpu_custom_call.1} parent=5 // pred_check_branch
        %130 = sbr.rel (%p128) target = $region24
      $region23: #{tpu_custom_call.1} parent=5 // pred_region
        // Predicated region
        $region25: #{tpu_custom_call.1} parent=23 // pred_check
          %p131 = pneg %p32
        $region26: #{tpu_custom_call.1} parent=23 // pred_check_branch
          %133 = sbr.rel (%p131) target = $region28
        $region27: #{tpu_custom_call.1} parent=23 // pred_region
          %p134 = scmp.lt.s32.totalorder %s12, 1
          %s135 = scalar_select %p134, %s12, 1
          %s136 = smul.addr %s135, 41
          %s137 = smul.addr %s136, 8
          %s138 = scalar_lea.vmem %s0, %s137
        $region28: #{tpu_custom_call.1} parent=23 // pred_fallthru
          _
      $region24: #{tpu_custom_call.1} parent=5 // pred_fallthru
        _
      %p139 = scmp.le.s32.totalorder 1, %s12
      %p140 = scmp.lt.s32.totalorder %s12, 3
      %p141 = pnand %p139, %p140
      %p142 = pneg %p141
      // Predicated region
      $region29: #{tpu_custom_call.1} parent=5 // pred_check
        _
      $region30: #{tpu_custom_call.1} parent=5 // pred_check_branch
        %144 = sbr.rel (%p141) target = $region32
      $region31: #{tpu_custom_call.1} parent=5 // pred_region
        %s145 = ssub.s32 %s12, 1
        %p146 = scmp.lt.s32.totalorder %s17, 1
        %s147 = scalar_select %p146, %s17, 1
        %s148 = smul.addr %s147, 41
        %s149 = smul.addr %s148, 8
        %s150 = scalar_lea.vmem %s0, %s149
        %p151 = pneg %p38
        %p152 = pneg %p35
        %p153 = pneg %p59
        %p154 = pneg %p56
        %p155 = pneg %p80
        %p156 = pneg %p77
        %p157 = pneg %p106
        %p158 = pneg %p103
        %s159 = sand.u32 %s93, 1
        %s160 = scalar_lea.sflag [#allocation3], %s159
        %s161 = sand.u32 %s93, 1
        %s162 = smul.addr %s161, 288
        %s163 = scalar_lea.vmem [#allocation2], %s162
        %p164 = scmp.lt.s32.totalorder %s17, 1
        %s165 = scalar_select %p164, %s17, 1
        %s166 = smul.addr %s165, 41
        %s167 = smul.addr %s166, 8
        %s168 = scalar_lea.vmem %s0, %s167
        %s169 = smul.u32 36, %s17
        %v170 = vld [vmem:[%s168] sm:$0xff]
        %v171 = vld [vmem:[%s168 + $0x8] sm:$0xff]
        %v172 = vld [vmem:[%s168 + $0x10] sm:$0xff]
        %v173 = vld [vmem:[%s168 + $0x18] sm:$0xff]
        %v174 = vld [vmem:[%s168 + $0x20] sm:$0xff]
        %v175 = vld [vmem:[%s168 + $0x28] sm:$0xff]
        %v176 = vld [vmem:[%s168 + $0x30] sm:$0xff]
        %v177 = vld [vmem:[%s168 + $0x38] sm:$0xff]
        %v178 = vld [vmem:[%s168 + $0x40] sm:$0xff]
        %v179 = vld [vmem:[%s168 + $0x48] sm:$0xff]
        %v180 = vld [vmem:[%s168 + $0x50] sm:$0xff]
        %v181 = vld [vmem:[%s168 + $0x58] sm:$0xff]
        %v182 = vld [vmem:[%s168 + $0x60] sm:$0xff]
        %v183 = vld [vmem:[%s168 + $0x68] sm:$0xff]
        %v184 = vld [vmem:[%s168 + $0x70] sm:$0xff]
        %v185 = vld [vmem:[%s168 + $0x78] sm:$0xff]
        %v186 = vld [vmem:[%s168 + $0x80] sm:$0xff]
        %v187 = vld [vmem:[%s168 + $0x88] sm:$0xff]
        %v188 = vld [vmem:[%s168 + $0x90] sm:$0xff]
        %v189 = vld [vmem:[%s168 + $0x98] sm:$0xff]
        %v190 = vld [vmem:[%s168 + $0xa0] sm:$0xff]
        %v191 = vld [vmem:[%s168 + $0xa8] sm:$0xff]
        %v192 = vld [vmem:[%s168 + $0xb0] sm:$0xff]
        %v193 = vld [vmem:[%s168 + $0xb8] sm:$0xff]
        %v194 = vld [vmem:[%s168 + $0xc0] sm:$0xff]
        %v195 = vld [vmem:[%s168 + $0xc8] sm:$0xff]
        %v196 = vld [vmem:[%s168 + $0xd0] sm:$0xff]
        %v197 = vld [vmem:[%s168 + $0xd8] sm:$0xff]
        %v198 = vld [vmem:[%s168 + $0xe0] sm:$0xff]
        %v199 = vld [vmem:[%s168 + $0xe8] sm:$0xff]
        %v200 = vld [vmem:[%s168 + $0xf0] sm:$0xff]
        %v201 = vld [vmem:[%s168 + $0xf8] sm:$0xff]
        %v202 = vld [vmem:[%s168 + $0x100] sm:$0xff]
        %v203 = vld [vmem:[%s168 + $0x108] sm:$0xff]
        %v204 = vld [vmem:[%s168 + $0x110] sm:$0xff]
        %v205 = vld [vmem:[%s168 + $0x118] sm:$0xff]
        %v206 = vld [vmem:[%s1] sm:$0xf]
        %v207 = vld [vmem:[%s168 + $0x1] sm:$0xff]
        %v208 = vld [vmem:[%s168 + $0x9] sm:$0xff]
        %v209 = vld [vmem:[%s168 + $0x11] sm:$0xff]
        %v210 = vld [vmem:[%s168 + $0x19] sm:$0xff]
        %v211 = vld [vmem:[%s168 + $0x21] sm:$0xff]
        %v212 = vld [vmem:[%s168 + $0x29] sm:$0xff]
        %v213 = vld [vmem:[%s168 + $0x31] sm:$0xff]
        %v214 = vld [vmem:[%s168 + $0x39] sm:$0xff]
        %v215 = vld [vmem:[%s168 + $0x41] sm:$0xff]
        %v216 = vld [vmem:[%s168 + $0x49] sm:$0xff]
        %v217 = vld [vmem:[%s168 + $0x51] sm:$0xff]
        %v218 = vld [vmem:[%s168 + $0x59] sm:$0xff]
        %v219 = vld [vmem:[%s168 + $0x61] sm:$0xff]
        %v220 = vld [vmem:[%s168 + $0x69] sm:$0xff]
        %v221 = vld [vmem:[%s168 + $0x71] sm:$0xff]
        %v222 = vld [vmem:[%s168 + $0x79] sm:$0xff]
        %v223 = vld [vmem:[%s168 + $0x81] sm:$0xff]
        %v224 = vld [vmem:[%s168 + $0x89] sm:$0xff]
        %v225 = vld [vmem:[%s168 + $0x91] sm:$0xff]
        %v226 = vld [vmem:[%s168 + $0x99] sm:$0xff]
        %v227 = vld [vmem:[%s168 + $0xa1] sm:$0xff]
        %v228 = vld [vmem:[%s168 + $0xa9] sm:$0xff]
        %v229 = vld [vmem:[%s168 + $0xb1] sm:$0xff]
        %v230 = vld [vmem:[%s168 + $0xb9] sm:$0xff]
        %v231 = vld [vmem:[%s168 + $0xc1] sm:$0xff]
        %v232 = vld [vmem:[%s168 + $0xc9] sm:$0xff]
        %v233 = vld [vmem:[%s168 + $0xd1] sm:$0xff]
        %v234 = vld [vmem:[%s168 + $0xd9] sm:$0xff]
        %v235 = vld [vmem:[%s168 + $0xe1] sm:$0xff]
        %v236 = vld [vmem:[%s168 + $0xe9] sm:$0xff]
        %v237 = vld [vmem:[%s168 + $0xf1] sm:$0xff]
        %v238 = vld [vmem:[%s168 + $0xf9] sm:$0xff]
        %v239 = vld [vmem:[%s168 + $0x101] sm:$0xff]
        %v240 = vld [vmem:[%s168 + $0x109] sm:$0xff]
        %v241 = vld [vmem:[%s168 + $0x111] sm:$0xff]
        %v242 = vld [vmem:[%s168 + $0x119] sm:$0xff]
        %s243 = scalar_lea.vmem %s1, 4
        %v244 = vld [vmem:[%s243] sm:$0xf]
        %vm245 = vcmask 31744
        %v247 = vsel %vm245, %v207, 0
        %v250 = vsel %vm245, %v208, 0
        %v253 = vsel %vm245, %v209, 0
        %v256 = vsel %vm245, %v210, 0
        %v259 = vsel %vm245, %v211, 0
        %v262 = vsel %vm245, %v212, 0
        %v265 = vsel %vm245, %v213, 0
        %v268 = vsel %vm245, %v214, 0
        %v271 = vsel %vm245, %v215, 0
        %v274 = vsel %vm245, %v216, 0
        %v277 = vsel %vm245, %v217, 0
        %v280 = vsel %vm245, %v218, 0
        %v283 = vsel %vm245, %v219, 0
        %v286 = vsel %vm245, %v220, 0
        %v289 = vsel %vm245, %v221, 0
        %v292 = vsel %vm245, %v222, 0
        %v295 = vsel %vm245, %v223, 0
        %v298 = vsel %vm245, %v224, 0
        %v301 = vsel %vm245, %v225, 0
        %v304 = vsel %vm245, %v226, 0
        %v307 = vsel %vm245, %v227, 0
        %v310 = vsel %vm245, %v228, 0
        %v313 = vsel %vm245, %v229, 0
        %v316 = vsel %vm245, %v230, 0
        %v319 = vsel %vm245, %v231, 0
        %v322 = vsel %vm245, %v232, 0
        %v325 = vsel %vm245, %v233, 0
        %v328 = vsel %vm245, %v234, 0
        %v331 = vsel %vm245, %v235, 0
        %v334 = vsel %vm245, %v236, 0
        %v337 = vsel %vm245, %v237, 0
        %v340 = vsel %vm245, %v238, 0
        %v343 = vsel %vm245, %v239, 0
        %v346 = vsel %vm245, %v240, 0
        %v349 = vsel %vm245, %v241, 0
        %v352 = vsel %vm245, %v242, 0
        %vm354 = vcmask 1043456
        %v356 = vsel %vm354, %v244, 0
        %358 = vmatprep.subr.mxu0 0.0
        %359 = vmatpush1.msra.mxu0 %v356
        %360 = vmatprep.subr.mxu0 0.0
        %361 = vmatpush1.msra.mxu0 0.0
        %362 = vmatprep.subr.mxu0 0.0
        %363 = vmatpush1.msra.mxu0 0.0
        %364 = vmatprep.subr.mxu0 0.0
        %365 = vmatpush1.msra.mxu0 0.0
        %366 = vmatprep.subr.mxu0 0.0
        %367 = vmatpush1.msra.mxu0 0.0
        %368 = vmatprep.subr.mxu0 0.0
        %369 = vmatpush1.msra.mxu0 0.0
        %370 = vmatprep.subr.mxu0 0.0
        %371 = vmatpush1.msra.mxu0 0.0
        %372 = vmatprep.subr.mxu0 0.0
        %373 = vmatpush1.msra.mxu0 0.0
        %374 = vmatprep.subr.mxu0 0.0
        %375 = vmatpush1.msra.mxu0 0.0
        %376 = vmatprep.subr.mxu0 0.0
        %377 = vmatpush1.msra.mxu0 0.0
        %378 = vmatprep.subr.mxu0 0.0
        %379 = vmatpush1.msra.mxu0 0.0
        %380 = vmatprep.subr.mxu0 0.0
        %381 = vmatpush1.msra.mxu0 0.0
        %382 = vmatprep.subr.mxu0 0.0
        %383 = vmatpush1.msra.mxu0 0.0
        %384 = vmatprep.subr.mxu0 0.0
        %385 = vmatpush1.msra.mxu0 0.0
        %386 = vmatprep.subr.mxu0 0.0
        %387 = vmatpush1.msra.mxu0 0.0
        %388 = vmatprep.subr.mxu0 0.0
        %389 = vmatpush1.msra.mxu0 0.0
        %390 = vmatprep.subr.mxu0 0.0
        %391 = vmatpush1.msra.mxu0 0.0
        %392 = vmatprep.subr.mxu0 0.0
        %393 = vmatpush1.msra.mxu0 0.0
        %394 = vmatprep.subr.mxu0 0.0
        %395 = vmatpush1.msra.mxu0 0.0
        %396 = vmatprep.subr.mxu0 0.0
        %397 = vmatpush1.msra.mxu0 0.0
        %398 = vmatprep.subr.mxu0 0.0
        %399 = vmatpush1.msra.mxu0 0.0
        %400 = vmatprep.subr.mxu0 0.0
        %401 = vmatpush1.msra.mxu0 0.0
        %402 = vmatprep.subr.mxu0 0.0
        %403 = vmatpush1.msra.mxu0 0.0
        %404 = vmatprep.subr.mxu0 0.0
        %405 = vmatpush1.msra.mxu0 0.0
        %406 = vmatprep.subr.mxu0 0.0
        %407 = vmatpush1.msra.mxu0 0.0
        %408 = vmatprep.subr.mxu0 0.0
        %409 = vmatpush1.msra.mxu0 0.0
        %410 = vmatprep.subr.mxu0 0.0
        %411 = vmatpush1.msra.mxu0 0.0
        %412 = vmatprep.subr.mxu0 0.0
        %413 = vmatpush1.msra.mxu0 0.0
        %414 = vmatprep.subr.mxu0 0.0
        %415 = vmatpush1.msra.mxu0 0.0
        %416 = vmatprep.subr.mxu0 0.0
        %417 = vmatpush1.msra.mxu0 0.0
        %418 = vmatprep.subr.mxu0 0.0
        %419 = vmatpush1.msra.mxu0 0.0
        %420 = vmatprep.subr.mxu0 0.0
        %421 = vmatpush1.msra.mxu0 0.0
        %422 = vmatprep.mubr.f32.mxu0 0.0
        %423 = vmatmul.mubr.f32.gmra.mrb[0].mxu0 %v247
        %v424 = vpop.f32.mrb[0].mxu0
        %v425 = vadd.f32 0.0, %v424
        %v426 = vpop.f32.mrb[0].mxu0
        %427 = vmatprep.mubr.f32.mxu0 0.0
        %428 = vmatmul.mubr.f32.gmra.mrb[0].mxu0 %v250
        %v429 = vpop.f32.mrb[0].mxu0
        %v430 = vadd.f32 0.0, %v429
        %v431 = vpop.f32.mrb[0].mxu0
        %432 = vmatprep.mubr.f32.mxu0 0.0
        %433 = vmatmul.mubr.f32.gmra.mrb[0].mxu0 %v253
        %v434 = vpop.f32.mrb[0].mxu0
        %v435 = vadd.f32 0.0, %v434
        %v436 = vpop.f32.mrb[0].mxu0
        %437 = vmatprep.mubr.f32.mxu0 0.0
        %438 = vmatmul.mubr.f32.gmra.mrb[0].mxu0 %v256
        %v439 = vpop.f32.mrb[0].mxu0
        %v440 = vadd.f32 0.0, %v439
        %v441 = vpop.f32.mrb[0].mxu0
        %442 = vmatprep.mubr.f32.mxu0 0.0
        %443 = vmatmul.mubr.f32.gmra.mrb[0].mxu0 %v259
        %v444 = vpop.f32.mrb[0].mxu0
        %v445 = vadd.f32 0.0, %v444
        %v446 = vpop.f32.mrb[0].mxu0
        %447 = vmatprep.mubr.f32.mxu0 0.0
        %448 = vmatmul.mubr.f32.gmra.mrb[0].mxu0 %v262
        %v449 = vpop.f32.mrb[0].mxu0
        %v450 = vadd.f32 0.0, %v449
        %v451 = vpop.f32.mrb[0].mxu0
        %452 = vmatprep.mubr.f32.mxu0 0.0
        %453 = vmatmul.mubr.f32.gmra.mrb[0].mxu0 %v265
        %v454 = vpop.f32.mrb[0].mxu0
        %v455 = vadd.f32 0.0, %v454
        %v456 = vpop.f32.mrb[0].mxu0
        %457 = vmatprep.mubr.f32.mxu0 0.0
        %458 = vmatmul.mubr.f32.gmra.mrb[0].mxu0 %v268
        %v459 = vpop.f32.mrb[0].mxu0
        %v460 = vadd.f32 0.0, %v459
        %v461 = vpop.f32.mrb[0].mxu0
        %462 = vmatprep.mubr.f32.mxu0 0.0
        %463 = vmatmul.mubr.f32.gmra.mrb[0].mxu0 %v271
        %v464 = vpop.f32.mrb[0].mxu0
        %v465 = vadd.f32 0.0, %v464
        %v466 = vpop.f32.mrb[0].mxu0
        %467 = vmatprep.mubr.f32.mxu0 0.0
        %468 = vmatmul.mubr.f32.gmra.mrb[0].mxu0 %v274
        %v469 = vpop.f32.mrb[0].mxu0
        %v470 = vadd.f32 0.0, %v469
        %v471 = vpop.f32.mrb[0].mxu0
        %472 = vmatprep.mubr.f32.mxu0 0.0
        %473 = vmatmul.mubr.f32.gmra.mrb[0].mxu0 %v277
        %v474 = vpop.f32.mrb[0].mxu0
        %v475 = vadd.f32 0.0, %v474
        %v476 = vpop.f32.mrb[0].mxu0
        %477 = vmatprep.mubr.f32.mxu0 0.0
        %478 = vmatmul.mubr.f32.gmra.mrb[0].mxu0 %v280
        %v479 = vpop.f32.mrb[0].mxu0
        %v480 = vadd.f32 0.0, %v479
        %v481 = vpop.f32.mrb[0].mxu0
        %482 = vmatprep.mubr.f32.mxu0 0.0
        %483 = vmatmul.mubr.f32.gmra.mrb[0].mxu0 %v283
        %v484 = vpop.f32.mrb[0].mxu0
        %v485 = vadd.f32 0.0, %v484
        %v486 = vpop.f32.mrb[0].mxu0
        %487 = vmatprep.mubr.f32.mxu0 0.0
        %488 = vmatmul.mubr.f32.gmra.mrb[0].mxu0 %v286
        %v489 = vpop.f32.mrb[0].mxu0
        %v490 = vadd.f32 0.0, %v489
        %v491 = vpop.f32.mrb[0].mxu0
        %492 = vmatprep.mubr.f32.mxu0 0.0
        %493 = vmatmul.mubr.f32.gmra.mrb[0].mxu0 %v289
        %v494 = vpop.f32.mrb[0].mxu0
        %v495 = vadd.f32 0.0, %v494
        %v496 = vpop.f32.mrb[0].mxu0
        %497 = vmatprep.mubr.f32.mxu0 0.0
        %498 = vmatmul.mubr.f32.gmra.mrb[0].mxu0 %v292
        %v499 = vpop.f32.mrb[0].mxu0
        %v500 = vadd.f32 0.0, %v499
        %v501 = vpop.f32.mrb[0].mxu0
        %502 = vmatprep.mubr.f32.mxu0 0.0
        %503 = vmatmul.mubr.f32.gmra.mrb[0].mxu0 %v295
        %v504 = vpop.f32.mrb[0].mxu0
        %v505 = vadd.f32 0.0, %v504
        %v506 = vpop.f32.mrb[0].mxu0
        %507 = vmatprep.mubr.f32.mxu0 0.0
        %508 = vmatmul.mubr.f32.gmra.mrb[0].mxu0 %v298
        %v509 = vpop.f32.mrb[0].mxu0
        %v510 = vadd.f32 0.0, %v509
        %v511 = vpop.f32.mrb[0].mxu0
        %512 = vmatprep.mubr.f32.mxu0 0.0
        %513 = vmatmul.mubr.f32.gmra.mrb[0].mxu0 %v301
        %v514 = vpop.f32.mrb[0].mxu0
        %v515 = vadd.f32 0.0, %v514
        %v516 = vpop.f32.mrb[0].mxu0
        %517 = vmatprep.mubr.f32.mxu0 0.0
        %518 = vmatmul.mubr.f32.gmra.mrb[0].mxu0 %v304
        %v519 = vpop.f32.mrb[0].mxu0
        %v520 = vadd.f32 0.0, %v519
        %v521 = vpop.f32.mrb[0].mxu0
        %522 = vmatprep.mubr.f32.mxu0 0.0
        %523 = vmatmul.mubr.f32.gmra.mrb[0].mxu0 %v307
        %v524 = vpop.f32.mrb[0].mxu0
        %v525 = vadd.f32 0.0, %v524
        %v526 = vpop.f32.mrb[0].mxu0
        %527 = vmatprep.mubr.f32.mxu0 0.0
        %528 = vmatmul.mubr.f32.gmra.mrb[0].mxu0 %v310
        %v529 = vpop.f32.mrb[0].mxu0
        %v530 = vadd.f32 0.0, %v529
        %v531 = vpop.f32.mrb[0].mxu0
        %532 = vmatprep.mubr.f32.mxu0 0.0
        %533 = vmatmul.mubr.f32.gmra.mrb[0].mxu0 %v313
        %v534 = vpop.f32.mrb[0].mxu0
        %v535 = vadd.f32 0.0, %v534
        %v536 = vpop.f32.mrb[0].mxu0
        %537 = vmatprep.mubr.f32.mxu0 0.0
        %538 = vmatmul.mubr.f32.gmra.mrb[0].mxu0 %v316
        %v539 = vpop.f32.mrb[0].mxu0
        %v540 = vadd.f32 0.0, %v539
        %v541 = vpop.f32.mrb[0].mxu0
        %542 = vmatprep.mubr.f32.mxu0 0.0
        %543 = vmatmul.mubr.f32.gmra.mrb[0].mxu0 %v319
        %v544 = vpop.f32.mrb[0].mxu0
        %v545 = vadd.f32 0.0, %v544
        %v546 = vpop.f32.mrb[0].mxu0
        %547 = vmatprep.mubr.f32.mxu0 0.0
        %548 = vmatmul.mubr.f32.gmra.mrb[0].mxu0 %v322
        %v549 = vpop.f32.mrb[0].mxu0
        %v550 = vadd.f32 0.0, %v549
        %v551 = vpop.f32.mrb[0].mxu0
        %552 = vmatprep.mubr.f32.mxu0 0.0
        %553 = vmatmul.mubr.f32.gmra.mrb[0].mxu0 %v325
        %v554 = vpop.f32.mrb[0].mxu0
        %v555 = vadd.f32 0.0, %v554
        %v556 = vpop.f32.mrb[0].mxu0
        %557 = vmatprep.mubr.f32.mxu0 0.0
        %558 = vmatmul.mubr.f32.gmra.mrb[0].mxu0 %v328
        %v559 = vpop.f32.mrb[0].mxu0
        %v560 = vadd.f32 0.0, %v559
        %v561 = vpop.f32.mrb[0].mxu0
        %562 = vmatprep.mubr.f32.mxu0 0.0
        %563 = vmatmul.mubr.f32.gmra.mrb[0].mxu0 %v331
        %v564 = vpop.f32.mrb[0].mxu0
        %v565 = vadd.f32 0.0, %v564
        %v566 = vpop.f32.mrb[0].mxu0
        %567 = vmatprep.mubr.f32.mxu0 0.0
        %568 = vmatmul.mubr.f32.gmra.mrb[0].mxu0 %v334
        %v569 = vpop.f32.mrb[0].mxu0
        %v570 = vadd.f32 0.0, %v569
        %v571 = vpop.f32.mrb[0].mxu0
        %572 = vmatprep.mubr.f32.mxu0 0.0
        %573 = vmatmul.mubr.f32.gmra.mrb[0].mxu0 %v337
        %v574 = vpop.f32.mrb[0].mxu0
        %v575 = vadd.f32 0.0, %v574
        %v576 = vpop.f32.mrb[0].mxu0
        %577 = vmatprep.mubr.f32.mxu0 0.0
        %578 = vmatmul.mubr.f32.gmra.mrb[0].mxu0 %v340
        %v579 = vpop.f32.mrb[0].mxu0
        %v580 = vadd.f32 0.0, %v579
        %v581 = vpop.f32.mrb[0].mxu0
        %582 = vmatprep.mubr.f32.mxu0 0.0
        %583 = vmatmul.mubr.f32.gmra.mrb[0].mxu0 %v343
        %v584 = vpop.f32.mrb[0].mxu0
        %v585 = vadd.f32 0.0, %v584
        %v586 = vpop.f32.mrb[0].mxu0
        %587 = vmatprep.mubr.f32.mxu0 0.0
        %588 = vmatmul.mubr.f32.gmra.mrb[0].mxu0 %v346
        %v589 = vpop.f32.mrb[0].mxu0
        %v590 = vadd.f32 0.0, %v589
        %v591 = vpop.f32.mrb[0].mxu0
        %592 = vmatprep.mubr.f32.mxu0 0.0
        %593 = vmatmul.mubr.f32.gmra.mrb[0].mxu0 %v349
        %v594 = vpop.f32.mrb[0].mxu0
        %v595 = vadd.f32 0.0, %v594
        %v596 = vpop.f32.mrb[0].mxu0
        %597 = vmatprep.mubr.f32.mxu0 0.0
        %598 = vmatmul.mubr.f32.gmra.mrb[0].mxu0 %v352
        %v599 = vpop.f32.mrb[0].mxu0
        %v600 = vadd.f32 0.0, %v599
        %v601 = vpop.f32.mrb[0].mxu0
        %602 = vdwg.mxu0
        %v604 = vsel %vm245, %v170, 0
        %v607 = vsel %vm245, %v171, 0
        %v610 = vsel %vm245, %v172, 0
        %v613 = vsel %vm245, %v173, 0
        %v616 = vsel %vm245, %v174, 0
        %v619 = vsel %vm245, %v175, 0
        %v622 = vsel %vm245, %v176, 0
        %v625 = vsel %vm245, %v177, 0
        %v628 = vsel %vm245, %v178, 0
        %v631 = vsel %vm245, %v179, 0
        %v634 = vsel %vm245, %v180, 0
        %v637 = vsel %vm245, %v181, 0
        %v640 = vsel %vm245, %v182, 0
        %v643 = vsel %vm245, %v183, 0
        %v646 = vsel %vm245, %v184, 0
        %v649 = vsel %vm245, %v185, 0
        %v652 = vsel %vm245, %v186, 0
        %v655 = vsel %vm245, %v187, 0
        %v658 = vsel %vm245, %v188, 0
        %v661 = vsel %vm245, %v189, 0
        %v664 = vsel %vm245, %v190, 0
        %v667 = vsel %vm245, %v191, 0
        %v670 = vsel %vm245, %v192, 0
        %v673 = vsel %vm245, %v193, 0
        %v676 = vsel %vm245, %v194, 0
        %v679 = vsel %vm245, %v195, 0
        %v682 = vsel %vm245, %v196, 0
        %v685 = vsel %vm245, %v197, 0
        %v688 = vsel %vm245, %v198, 0
        %v691 = vsel %vm245, %v199, 0
        %v694 = vsel %vm245, %v200, 0
        %v697 = vsel %vm245, %v201, 0
        %v700 = vsel %vm245, %v202, 0
        %v703 = vsel %vm245, %v203, 0
        %v706 = vsel %vm245, %v204, 0
        %v709 = vsel %vm245, %v205, 0
        %v712 = vsel %vm354, %v206, 0
        %714 = vmatprep.subr.mxu0 0.0
        %715 = vmatpush1.msra.mxu0 %v712
        %716 = vmatprep.subr.mxu0 0.0
        %717 = vmatpush1.msra.mxu0 0.0
        %718 = vmatprep.subr.mxu0 0.0
        %719 = vmatpush1.msra.mxu0 0.0
        %720 = vmatprep.subr.mxu0 0.0
        %721 = vmatpush1.msra.mxu0 0.0
        %722 = vmatprep.subr.mxu0 0.0
        %723 = vmatpush1.msra.mxu0 0.0
        %724 = vmatprep.subr.mxu0 0.0
        %725 = vmatpush1.msra.mxu0 0.0
        %726 = vmatprep.subr.mxu0 0.0
        %727 = vmatpush1.msra.mxu0 0.0
        %728 = vmatprep.subr.mxu0 0.0
        %729 = vmatpush1.msra.mxu0 0.0
        %730 = vmatprep.subr.mxu0 0.0
        %731 = vmatpush1.msra.mxu0 0.0
        %732 = vmatprep.subr.mxu0 0.0
        %733 = vmatpush1.msra.mxu0 0.0
        %734 = vmatprep.subr.mxu0 0.0
        %735 = vmatpush1.msra.mxu0 0.0
        %736 = vmatprep.subr.mxu0 0.0
        %737 = vmatpush1.msra.mxu0 0.0
        %738 = vmatprep.subr.mxu0 0.0
        %739 = vmatpush1.msra.mxu0 0.0
        %740 = vmatprep.subr.mxu0 0.0
        %741 = vmatpush1.msra.mxu0 0.0
        %742 = vmatprep.subr.mxu0 0.0
        %743 = vmatpush1.msra.mxu0 0.0
        %744 = vmatprep.subr.mxu0 0.0
        %745 = vmatpush1.msra.mxu0 0.0
        %746 = vmatprep.subr.mxu0 0.0
        %747 = vmatpush1.msra.mxu0 0.0
        %748 = vmatprep.subr.mxu0 0.0
        %749 = vmatpush1.msra.mxu0 0.0
        %750 = vmatprep.subr.mxu0 0.0
        %751 = vmatpush1.msra.mxu0 0.0
        %752 = vmatprep.subr.mxu0 0.0
        %753 = vmatpush1.msra.mxu0 0.0
        %754 = vmatprep.subr.mxu0 0.0
        %755 = vmatpush1.msra.mxu0 0.0
        %756 = vmatprep.subr.mxu0 0.0
        %757 = vmatpush1.msra.mxu0 0.0
        %758 = vmatprep.subr.mxu0 0.0
        %759 = vmatpush1.msra.mxu0 0.0
        %760 = vmatprep.subr.mxu0 0.0
        %761 = vmatpush1.msra.mxu0 0.0
        %762 = vmatprep.subr.mxu0 0.0
        %763 = vmatpush1.msra.mxu0 0.0
        %764 = vmatprep.subr.mxu0 0.0
        %765 = vmatpush1.msra.mxu0 0.0
        %766 = vmatprep.subr.mxu0 0.0
        %767 = vmatpush1.msra.mxu0 0.0
        %768 = vmatprep.subr.mxu0 0.0
        %769 = vmatpush1.msra.mxu0 0.0
        %770 = vmatprep.subr.mxu0 0.0
        %771 = vmatpush1.msra.mxu0 0.0
        %772 = vmatprep.subr.mxu0 0.0
        %773 = vmatpush1.msra.mxu0 0.0
        %774 = vmatprep.subr.mxu0 0.0
        %775 = vmatpush1.msra.mxu0 0.0
        %776 = vmatprep.subr.mxu0 0.0
        %777 = vmatpush1.msra.mxu0 0.0
        %778 = vmatprep.mubr.f32.mxu0 0.0
        %779 = vmatmul.mubr.f32.gmra.mrb[0].mxu0 %v604
        %v780 = vpop.f32.mrb[0].mxu0
        %v781 = vadd.f32 %v425, %v780
        %v782 = vpop.f32.mrb[0].mxu0
        %783 = vmatprep.mubr.f32.mxu0 0.0
        %784 = vmatmul.mubr.f32.gmra.mrb[0].mxu0 %v607
        %v785 = vpop.f32.mrb[0].mxu0
        %v786 = vadd.f32 %v430, %v785
        %v787 = vpop.f32.mrb[0].mxu0
        %788 = vmatprep.mubr.f32.mxu0 0.0
        %789 = vmatmul.mubr.f32.gmra.mrb[0].mxu0 %v610
        %v790 = vpop.f32.mrb[0].mxu0
        %v791 = vadd.f32 %v435, %v790
        %v792 = vpop.f32.mrb[0].mxu0
        %793 = vmatprep.mubr.f32.mxu0 0.0
        %794 = vmatmul.mubr.f32.gmra.mrb[0].mxu0 %v613
        %v795 = vpop.f32.mrb[0].mxu0
        %v796 = vadd.f32 %v440, %v795
        %v797 = vpop.f32.mrb[0].mxu0
        %798 = vmatprep.mubr.f32.mxu0 0.0
        %799 = vmatmul.mubr.f32.gmra.mrb[0].mxu0 %v616
        %v800 = vpop.f32.mrb[0].mxu0
        %v801 = vadd.f32 %v445, %v800
        %v802 = vpop.f32.mrb[0].mxu0
        %803 = vmatprep.mubr.f32.mxu0 0.0
        %804 = vmatmul.mubr.f32.gmra.mrb[0].mxu0 %v619
        %v805 = vpop.f32.mrb[0].mxu0
        %v806 = vadd.f32 %v450, %v805
        %v807 = vpop.f32.mrb[0].mxu0
        %808 = vmatprep.mubr.f32.mxu0 0.0
        %809 = vmatmul.mubr.f32.gmra.mrb[0].mxu0 %v622
        %v810 = vpop.f32.mrb[0].mxu0
        %v811 = vadd.f32 %v455, %v810
        %v812 = vpop.f32.mrb[0].mxu0
        %813 = vmatprep.mubr.f32.mxu0 0.0
        %814 = vmatmul.mubr.f32.gmra.mrb[0].mxu0 %v625
        %v815 = vpop.f32.mrb[0].mxu0
        %v816 = vadd.f32 %v460, %v815
        %v817 = vpop.f32.mrb[0].mxu0
        %818 = vmatprep.mubr.f32.mxu0 0.0
        %819 = vmatmul.mubr.f32.gmra.mrb[0].mxu0 %v628
        %v820 = vpop.f32.mrb[0].mxu0
        %v821 = vadd.f32 %v465, %v820
        %v822 = vpop.f32.mrb[0].mxu0
        %823 = vmatprep.mubr.f32.mxu0 0.0
        %824 = vmatmul.mubr.f32.gmra.mrb[0].mxu0 %v631
        %v825 = vpop.f32.mrb[0].mxu0
        %v826 = vadd.f32 %v470, %v825
        %v827 = vpop.f32.mrb[0].mxu0
        %828 = vmatprep.mubr.f32.mxu0 0.0
        %829 = vmatmul.mubr.f32.gmra.mrb[0].mxu0 %v634
        %v830 = vpop.f32.mrb[0].mxu0
        %v831 = vadd.f32 %v475, %v830
        %v832 = vpop.f32.mrb[0].mxu0
        %833 = vmatprep.mubr.f32.mxu0 0.0
        %834 = vmatmul.mubr.f32.gmra.mrb[0].mxu0 %v637
        %v835 = vpop.f32.mrb[0].mxu0
        %v836 = vadd.f32 %v480, %v835
        %v837 = vpop.f32.mrb[0].mxu0
        %838 = vmatprep.mubr.f32.mxu0 0.0
        %839 = vmatmul.mubr.f32.gmra.mrb[0].mxu0 %v640
        %v840 = vpop.f32.mrb[0].mxu0
        %v841 = vadd.f32 %v485, %v840
        %v842 = vpop.f32.mrb[0].mxu0
        %843 = vmatprep.mubr.f32.mxu0 0.0
        %844 = vmatmul.mubr.f32.gmra.mrb[0].mxu0 %v643
        %v845 = vpop.f32.mrb[0].mxu0
        %v846 = vadd.f32 %v490, %v845
        %v847 = vpop.f32.mrb[0].mxu0
        %848 = vmatprep.mubr.f32.mxu0 0.0
        %849 = vmatmul.mubr.f32.gmra.mrb[0].mxu0 %v646
        %v850 = vpop.f32.mrb[0].mxu0
        %v851 = vadd.f32 %v495, %v850
        %v852 = vpop.f32.mrb[0].mxu0
        %853 = vmatprep.mubr.f32.mxu0 0.0
        %854 = vmatmul.mubr.f32.gmra.mrb[0].mxu0 %v649
        %v855 = vpop.f32.mrb[0].mxu0
        %v856 = vadd.f32 %v500, %v855
        %v857 = vpop.f32.mrb[0].mxu0
        %858 = vmatprep.mubr.f32.mxu0 0.0
        %859 = vmatmul.mubr.f32.gmra.mrb[0].mxu0 %v652
        %v860 = vpop.f32.mrb[0].mxu0
        %v861 = vadd.f32 %v505, %v860
        %v862 = vpop.f32.mrb[0].mxu0
        %863 = vmatprep.mubr.f32.mxu0 0.0
        %864 = vmatmul.mubr.f32.gmra.mrb[0].mxu0 %v655
        %v865 = vpop.f32.mrb[0].mxu0
        %v866 = vadd.f32 %v510, %v865
        %v867 = vpop.f32.mrb[0].mxu0
        %868 = vmatprep.mubr.f32.mxu0 0.0
        %869 = vmatmul.mubr.f32.gmra.mrb[0].mxu0 %v658
        %v870 = vpop.f32.mrb[0].mxu0
        %v871 = vadd.f32 %v515, %v870
        %v872 = vpop.f32.mrb[0].mxu0
        %873 = vmatprep.mubr.f32.mxu0 0.0
        %874 = vmatmul.mubr.f32.gmra.mrb[0].mxu0 %v661
        %v875 = vpop.f32.mrb[0].mxu0
        %v876 = vadd.f32 %v520, %v875
        %v877 = vpop.f32.mrb[0].mxu0
        %878 = vmatprep.mubr.f32.mxu0 0.0
        %879 = vmatmul.mubr.f32.gmra.mrb[0].mxu0 %v664
        %v880 = vpop.f32.mrb[0].mxu0
        %v881 = vadd.f32 %v525, %v880
        %v882 = vpop.f32.mrb[0].mxu0
        %883 = vmatprep.mubr.f32.mxu0 0.0
        %884 = vmatmul.mubr.f32.gmra.mrb[0].mxu0 %v667
        %v885 = vpop.f32.mrb[0].mxu0
        %v886 = vadd.f32 %v530, %v885
        %v887 = vpop.f32.mrb[0].mxu0
        %888 = vmatprep.mubr.f32.mxu0 0.0
        %889 = vmatmul.mubr.f32.gmra.mrb[0].mxu0 %v670
        %v890 = vpop.f32.mrb[0].mxu0
        %v891 = vadd.f32 %v535, %v890
        %v892 = vpop.f32.mrb[0].mxu0
        %893 = vmatprep.mubr.f32.mxu0 0.0
        %894 = vmatmul.mubr.f32.gmra.mrb[0].mxu0 %v673
        %v895 = vpop.f32.mrb[0].mxu0
        %v896 = vadd.f32 %v540, %v895
        %v897 = vpop.f32.mrb[0].mxu0
        %898 = vmatprep.mubr.f32.mxu0 0.0
        %899 = vmatmul.mubr.f32.gmra.mrb[0].mxu0 %v676
        %v900 = vpop.f32.mrb[0].mxu0
        %v901 = vadd.f32 %v545, %v900
        %v902 = vpop.f32.mrb[0].mxu0
        %903 = vmatprep.mubr.f32.mxu0 0.0
        %904 = vmatmul.mubr.f32.gmra.mrb[0].mxu0 %v679
        %v905 = vpop.f32.mrb[0].mxu0
        %v906 = vadd.f32 %v550, %v905
        %v907 = vpop.f32.mrb[0].mxu0
        %908 = vmatprep.mubr.f32.mxu0 0.0
        %909 = vmatmul.mubr.f32.gmra.mrb[0].mxu0 %v682
        %v910 = vpop.f32.mrb[0].mxu0
        %v911 = vadd.f32 %v555, %v910
        %v912 = vpop.f32.mrb[0].mxu0
        %913 = vmatprep.mubr.f32.mxu0 0.0
        %914 = vmatmul.mubr.f32.gmra.mrb[0].mxu0 %v685
        %v915 = vpop.f32.mrb[0].mxu0
        %v916 = vadd.f32 %v560, %v915
        %v917 = vpop.f32.mrb[0].mxu0
        %918 = vmatprep.mubr.f32.mxu0 0.0
        %919 = vmatmul.mubr.f32.gmra.mrb[0].mxu0 %v688
        %v920 = vpop.f32.mrb[0].mxu0
        %v921 = vadd.f32 %v565, %v920
        %v922 = vpop.f32.mrb[0].mxu0
        %923 = vmatprep.mubr.f32.mxu0 0.0
        %924 = vmatmul.mubr.f32.gmra.mrb[0].mxu0 %v691
        %v925 = vpop.f32.mrb[0].mxu0
        %v926 = vadd.f32 %v570, %v925
        %v927 = vpop.f32.mrb[0].mxu0
        %928 = vmatprep.mubr.f32.mxu0 0.0
        %929 = vmatmul.mubr.f32.gmra.mrb[0].mxu0 %v694
        %v930 = vpop.f32.mrb[0].mxu0
        %v931 = vadd.f32 %v575, %v930
        %v932 = vpop.f32.mrb[0].mxu0
        %933 = vmatprep.mubr.f32.mxu0 0.0
        %934 = vmatmul.mubr.f32.gmra.mrb[0].mxu0 %v697
        %v935 = vpop.f32.mrb[0].mxu0
        %v936 = vadd.f32 %v580, %v935
        %v937 = vpop.f32.mrb[0].mxu0
        %938 = vmatprep.mubr.f32.mxu0 0.0
        %939 = vmatmul.mubr.f32.gmra.mrb[0].mxu0 %v700
        %v940 = vpop.f32.mrb[0].mxu0
        %v941 = vadd.f32 %v585, %v940
        %v942 = vpop.f32.mrb[0].mxu0
        %943 = vmatprep.mubr.f32.mxu0 0.0
        %944 = vmatmul.mubr.f32.gmra.mrb[0].mxu0 %v703
        %v945 = vpop.f32.mrb[0].mxu0
        %v946 = vadd.f32 %v590, %v945
        %v947 = vpop.f32.mrb[0].mxu0
        %948 = vmatprep.mubr.f32.mxu0 0.0
        %949 = vmatmul.mubr.f32.gmra.mrb[0].mxu0 %v706
        %v950 = vpop.f32.mrb[0].mxu0
        %v951 = vadd.f32 %v595, %v950
        %v952 = vpop.f32.mrb[0].mxu0
        %953 = vmatprep.mubr.f32.mxu0 0.0
        %954 = vmatmul.mubr.f32.gmra.mrb[0].mxu0 %v709
        %v955 = vpop.f32.mrb[0].mxu0
        %v956 = vadd.f32 %v600, %v955
        %v957 = vpop.f32.mrb[0].mxu0
        %958 = vdwg.mxu0
        %v959 = vld [vmem:[%s168 + $0x2] sm:$0xff]
        %v960 = vld [vmem:[%s168 + $0xa] sm:$0xff]
        %v961 = vld [vmem:[%s168 + $0x12] sm:$0xff]
        %v962 = vld [vmem:[%s168 + $0x1a] sm:$0xff]
        %v963 = vld [vmem:[%s168 + $0x22] sm:$0xff]
        %v964 = vld [vmem:[%s168 + $0x2a] sm:$0xff]
        %v965 = vld [vmem:[%s168 + $0x32] sm:$0xff]
        %v966 = vld [vmem:[%s168 + $0x3a] sm:$0xff]
        %v967 = vld [vmem:[%s168 + $0x42] sm:$0xff]
        %v968 = vld [vmem:[%s168 + $0x4a] sm:$0xff]
        %v969 = vld [vmem:[%s168 + $0x52] sm:$0xff]
        %v970 = vld [vmem:[%s168 + $0x5a] sm:$0xff]
        %v971 = vld [vmem:[%s168 + $0x62] sm:$0xff]
        %v972 = vld [vmem:[%s168 + $0x6a] sm:$0xff]
        %v973 = vld [vmem:[%s168 + $0x72] sm:$0xff]
        %v974 = vld [vmem:[%s168 + $0x7a] sm:$0xff]
        %v975 = vld [vmem:[%s168 + $0x82] sm:$0xff]
        %v976 = vld [vmem:[%s168 + $0x8a] sm:$0xff]
        %v977 = vld [vmem:[%s168 + $0x92] sm:$0xff]
        %v978 = vld [vmem:[%s168 + $0x9a] sm:$0xff]
        %v979 = vld [vmem:[%s168 + $0xa2] sm:$0xff]
        %v980 = vld [vmem:[%s168 + $0xaa] sm:$0xff]
        %v981 = vld [vmem:[%s168 + $0xb2] sm:$0xff]
        %v982 = vld [vmem:[%s168 + $0xba] sm:$0xff]
        %v983 = vld [vmem:[%s168 + $0xc2] sm:$0xff]
        %v984 = vld [vmem:[%s168 + $0xca] sm:$0xff]
        %v985 = vld [vmem:[%s168 + $0xd2] sm:$0xff]
        %v986 = vld [vmem:[%s168 + $0xda] sm:$0xff]
        %v987 = vld [vmem:[%s168 + $0xe2] sm:$0xff]
        %v988 = vld [vmem:[%s168 + $0xea] sm:$0xff]
        %v989 = vld [vmem:[%s168 + $0xf2] sm:$0xff]
        %v990 = vld [vmem:[%s168 + $0xfa] sm:$0xff]
        %v991 = vld [vmem:[%s168 + $0x102] sm:$0xff]
        %v992 = vld [vmem:[%s168 + $0x10a] sm:$0xff]
        %v993 = vld [vmem:[%s168 + $0x112] sm:$0xff]
        %v994 = vld [vmem:[%s168 + $0x11a] sm:$0xff]
        %s995 = scalar_lea.vmem %s1, 8
        %v996 = vld [vmem:[%s995] sm:$0xf]
        %v998 = vsel %vm245, %v959, 0
        %v1001 = vsel %vm245, %v960, 0
        %v1004 = vsel %vm245, %v961, 0
        %v1007 = vsel %vm245, %v962, 0
        %v1010 = vsel %vm245, %v963, 0
        %v1013 = vsel %vm245, %v964, 0
        %v1016 = vsel %vm245, %v965, 0
        %v1019 = vsel %vm245, %v966, 0
        %v1022 = vsel %vm245, %v967, 0
        %v1025 = vsel %vm245, %v968, 0
        %v1028 = vsel %vm245, %v969, 0
        %v1031 = vsel %vm245, %v970, 0
        %v1034 = vsel %vm245, %v971, 0
        %v1037 = vsel %vm245, %v972, 0
        %v1040 = vsel %vm245, %v973, 0
        %v1043 = vsel %vm245, %v974, 0
        %v1046 = vsel %vm245, %v975, 0
        %v1049 = vsel %vm245, %v976, 0
        %v1052 = vsel %vm245, %v977, 0
        %v1055 = vsel %vm245, %v978, 0
        %v1058 = vsel %vm245, %v979, 0
        %v1061 = vsel %vm245, %v980, 0
        %v1064 = vsel %vm245, %v981, 0
        %v1067 = vsel %vm245, %v982, 0
        %v1070 = vsel %vm245, %v983, 0
        %v1073 = vsel %vm245, %v984, 0
        %v1076 = vsel %vm245, %v985, 0
        %v1079 = vsel %vm245, %v986, 0
        %v1082 = vsel %vm245, %v987, 0
        %v1085 = vsel %vm245, %v988, 0
        %v1088 = vsel %vm245, %v989, 0
        %v1091 = vsel %vm245, %v990, 0
        %v1094 = vsel %vm245, %v991, 0
        %v1097 = vsel %vm245, %v992, 0
        %v1100 = vsel %vm245, %v993, 0
        %v1103 = vsel %vm245, %v994, 0
        %v1106 = vsel %vm354, %v996, 0
        %1108 = vmatprep.subr.mxu0 0.0
        %1109 = vmatpush1.msra.mxu0 %v1106
        %1110 = vmatprep.subr.mxu0 0.0
        %1111 = vmatpush1.msra.mxu0 0.0
        %1112 = vmatprep.subr.mxu0 0.0
        %1113 = vmatpush1.msra.mxu0 0.0
        %1114 = vmatprep.subr.mxu0 0.0
        %1115 = vmatpush1.msra.mxu0 0.0
        %1116 = vmatprep.subr.mxu0 0.0
        %1117 = vmatpush1.msra.mxu0 0.0
        %1118 = vmatprep.subr.mxu0 0.0
        %1119 = vmatpush1.msra.mxu0 0.0
        %1120 = vmatprep.subr.mxu0 0.0
        %1121 = vmatpush1.msra.mxu0 0.0
        %1122 = vmatprep.subr.mxu0 0.0
        %1123 = vmatpush1.msra.mxu0 0.0
        %1124 = vmatprep.subr.mxu0 0.0
        %1125 = vmatpush1.msra.mxu0 0.0
        %1126 = vmatprep.subr.mxu0 0.0
        %1127 = vmatpush1.msra.mxu0 0.0
        %1128 = vmatprep.subr.mxu0 0.0
        %1129 = vmatpush1.msra.mxu0 0.0
        %1130 = vmatprep.subr.mxu0 0.0
        %1131 = vmatpush1.msra.mxu0 0.0
        %1132 = vmatprep.subr.mxu0 0.0
        %1133 = vmatpush1.msra.mxu0 0.0
        %1134 = vmatprep.subr.mxu0 0.0
        %1135 = vmatpush1.msra.mxu0 0.0
        %1136 = vmatprep.subr.mxu0 0.0
        %1137 = vmatpush1.msra.mxu0 0.0
        %1138 = vmatprep.subr.mxu0 0.0
        %1139 = vmatpush1.msra.mxu0 0.0
        %1140 = vmatprep.subr.mxu0 0.0
        %1141 = vmatpush1.msra.mxu0 0.0
        %1142 = vmatprep.subr.mxu0 0.0
        %1143 = vmatpush1.msra.mxu0 0.0
        %1144 = vmatprep.subr.mxu0 0.0
        %1145 = vmatpush1.msra.mxu0 0.0
        %1146 = vmatprep.subr.mxu0 0.0
        %1147 = vmatpush1.msra.mxu0 0.0
        %1148 = vmatprep.subr.mxu0 0.0
        %1149 = vmatpush1.msra.mxu0 0.0
        %1150 = vmatprep.subr.mxu0 0.0
        %1151 = vmatpush1.msra.mxu0 0.0
        %1152 = vmatprep.subr.mxu0 0.0
        %1153 = vmatpush1.msra.mxu0 0.0
        %1154 = vmatprep.subr.mxu0 0.0
        %1155 = vmatpush1.msra.mxu0 0.0
        %1156 = vmatprep.subr.mxu0 0.0
        %1157 = vmatpush1.msra.mxu0 0.0
        %1158 = vmatprep.subr.mxu0 0.0
        %1159 = vmatpush1.msra.mxu0 0.0
        %1160 = vmatprep.subr.mxu0 0.0
        %1161 = vmatpush1.msra.mxu0 0.0
        %1162 = vmatprep.subr.mxu0 0.0
        %1163 = vmatpush1.msra.mxu0 0.0
        %1164 = vmatprep.subr.mxu0 0.0
        %1165 = vmatpush1.msra.mxu0 0.0
        %1166 = vmatprep.subr.mxu0 0.0
        %1167 = vmatpush1.msra.mxu0 0.0
        %1168 = vmatprep.subr.mxu0 0.0
        %1169 = vmatpush1.msra.mxu0 0.0
        %1170 = vmatprep.subr.mxu0 0.0
        %1171 = vmatpush1.msra.mxu0 0.0
        %1172 = vmatprep.mubr.f32.mxu0 0.0
        %1173 = vmatmul.mubr.f32.gmra.mrb[0].mxu0 %v998
        %v1174 = vpop.f32.mrb[0].mxu0
        %v1175 = vadd.f32 0.0, %v1174
        %v1176 = vpop.f32.mrb[0].mxu0
        %1177 = vmatprep.mubr.f32.mxu0 0.0
        %1178 = vmatmul.mubr.f32.gmra.mrb[0].mxu0 %v1001
        %v1179 = vpop.f32.mrb[0].mxu0
        %v1180 = vadd.f32 0.0, %v1179
        %v1181 = vpop.f32.mrb[0].mxu0
        %1182 = vmatprep.mubr.f32.mxu0 0.0
        %1183 = vmatmul.mubr.f32.gmra.mrb[0].mxu0 %v1004
        %v1184 = vpop.f32.mrb[0].mxu0
        %v1185 = vadd.f32 0.0, %v1184
        %v1186 = vpop.f32.mrb[0].mxu0
        %1187 = vmatprep.mubr.f32.mxu0 0.0
        %1188 = vmatmul.mubr.f32.gmra.mrb[0].mxu0 %v1007
        %v1189 = vpop.f32.mrb[0].mxu0
        %v1190 = vadd.f32 0.0, %v1189
        %v1191 = vpop.f32.mrb[0].mxu0
        %1192 = vmatprep.mubr.f32.mxu0 0.0
        %1193 = vmatmul.mubr.f32.gmra.mrb[0].mxu0 %v1010
        %v1194 = vpop.f32.mrb[0].mxu0
        %v1195 = vadd.f32 0.0, %v1194
        %v1196 = vpop.f32.mrb[0].mxu0
        %1197 = vmatprep.mubr.f32.mxu0 0.0
        %1198 = vmatmul.mubr.f32.gmra.mrb[0].mxu0 %v1013
        %v1199 = vpop.f32.mrb[0].mxu0
        %v1200 = vadd.f32 0.0, %v1199
        %v1201 = vpop.f32.mrb[0].mxu0
        %1202 = vmatprep.mubr.f32.mxu0 0.0
        %1203 = vmatmul.mubr.f32.gmra.mrb[0].mxu0 %v1016
        %v1204 = vpop.f32.mrb[0].mxu0
        %v1205 = vadd.f32 0.0, %v1204
        %v1206 = vpop.f32.mrb[0].mxu0
        %1207 = vmatprep.mubr.f32.mxu0 0.0
        %1208 = vmatmul.mubr.f32.gmra.mrb[0].mxu0 %v1019
        %v1209 = vpop.f32.mrb[0].mxu0
        %v1210 = vadd.f32 0.0, %v1209
        %v1211 = vpop.f32.mrb[0].mxu0
        %1212 = vmatprep.mubr.f32.mxu0 0.0
        %1213 = vmatmul.mubr.f32.gmra.mrb[0].mxu0 %v1022
        %v1214 = vpop.f32.mrb[0].mxu0
        %v1215 = vadd.f32 0.0, %v1214
        %v1216 = vpop.f32.mrb[0].mxu0
        %1217 = vmatprep.mubr.f32.mxu0 0.0
        %1218 = vmatmul.mubr.f32.gmra.mrb[0].mxu0 %v1025
        %v1219 = vpop.f32.mrb[0].mxu0
        %v1220 = vadd.f32 0.0, %v1219
        %v1221 = vpop.f32.mrb[0].mxu0
        %1222 = vmatprep.mubr.f32.mxu0 0.0
        %1223 = vmatmul.mubr.f32.gmra.mrb[0].mxu0 %v1028
        %v1224 = vpop.f32.mrb[0].mxu0
        %v1225 = vadd.f32 0.0, %v1224
        %v1226 = vpop.f32.mrb[0].mxu0
        %1227 = vmatprep.mubr.f32.mxu0 0.0
        %1228 = vmatmul.mubr.f32.gmra.mrb[0].mxu0 %v1031
        %v1229 = vpop.f32.mrb[0].mxu0
        %v1230 = vadd.f32 0.0, %v1229
        %v1231 = vpop.f32.mrb[0].mxu0
        %1232 = vmatprep.mubr.f32.mxu0 0.0
        %1233 = vmatmul.mubr.f32.gmra.mrb[0].mxu0 %v1034
        %v1234 = vpop.f32.mrb[0].mxu0
        %v1235 = vadd.f32 0.0, %v1234
        %v1236 = vpop.f32.mrb[0].mxu0
        %1237 = vmatprep.mubr.f32.mxu0 0.0
        %1238 = vmatmul.mubr.f32.gmra.mrb[0].mxu0 %v1037
        %v1239 = vpop.f32.mrb[0].mxu0
        %v1240 = vadd.f32 0.0, %v1239
        %v1241 = vpop.f32.mrb[0].mxu0
        %1242 = vmatprep.mubr.f32.mxu0 0.0
        %1243 = vmatmul.mubr.f32.gmra.mrb[0].mxu0 %v1040
        %v1244 = vpop.f32.mrb[0].mxu0
        %v1245 = vadd.f32 0.0, %v1244
        %v1246 = vpop.f32.mrb[0].mxu0
        %1247 = vmatprep.mubr.f32.mxu0 0.0
        %1248 = vmatmul.mubr.f32.gmra.mrb[0].mxu0 %v1043
        %v1249 = vpop.f32.mrb[0].mxu0
        %v1250 = vadd.f32 0.0, %v1249
        %v1251 = vpop.f32.mrb[0].mxu0
        %1252 = vmatprep.mubr.f32.mxu0 0.0
        %1253 = vmatmul.mubr.f32.gmra.mrb[0].mxu0 %v1046
        %v1254 = vpop.f32.mrb[0].mxu0
        %v1255 = vadd.f32 0.0, %v1254
        %v1256 = vpop.f32.mrb[0].mxu0
        %1257 = vmatprep.mubr.f32.mxu0 0.0
        %1258 = vmatmul.mubr.f32.gmra.mrb[0].mxu0 %v1049
        %v1259 = vpop.f32.mrb[0].mxu0
        %v1260 = vadd.f32 0.0, %v1259
        %v1261 = vpop.f32.mrb[0].mxu0
        %1262 = vmatprep.mubr.f32.mxu0 0.0
        %1263 = vmatmul.mubr.f32.gmra.mrb[0].mxu0 %v1052
        %v1264 = vpop.f32.mrb[0].mxu0
        %v1265 = vadd.f32 0.0, %v1264
        %v1266 = vpop.f32.mrb[0].mxu0
        %1267 = vmatprep.mubr.f32.mxu0 0.0
        %1268 = vmatmul.mubr.f32.gmra.mrb[0].mxu0 %v1055
        %v1269 = vpop.f32.mrb[0].mxu0
        %v1270 = vadd.f32 0.0, %v1269
        %v1271 = vpop.f32.mrb[0].mxu0
        %1272 = vmatprep.mubr.f32.mxu0 0.0
        %1273 = vmatmul.mubr.f32.gmra.mrb[0].mxu0 %v1058
        %v1274 = vpop.f32.mrb[0].mxu0
        %v1275 = vadd.f32 0.0, %v1274
        %v1276 = vpop.f32.mrb[0].mxu0
        %1277 = vmatprep.mubr.f32.mxu0 0.0
        %1278 = vmatmul.mubr.f32.gmra.mrb[0].mxu0 %v1061
        %v1279 = vpop.f32.mrb[0].mxu0
        %v1280 = vadd.f32 0.0, %v1279
        %v1281 = vpop.f32.mrb[0].mxu0
        %1282 = vmatprep.mubr.f32.mxu0 0.0
        %1283 = vmatmul.mubr.f32.gmra.mrb[0].mxu0 %v1064
        %v1284 = vpop.f32.mrb[0].mxu0
        %v1285 = vadd.f32 0.0, %v1284
        %v1286 = vpop.f32.mrb[0].mxu0
        %1287 = vmatprep.mubr.f32.mxu0 0.0
        %1288 = vmatmul.mubr.f32.gmra.mrb[0].mxu0 %v1067
        %v1289 = vpop.f32.mrb[0].mxu0
        %v1290 = vadd.f32 0.0, %v1289
        %v1291 = vpop.f32.mrb[0].mxu0
        %1292 = vmatprep.mubr.f32.mxu0 0.0
        %1293 = vmatmul.mubr.f32.gmra.mrb[0].mxu0 %v1070
        %v1294 = vpop.f32.mrb[0].mxu0
        %v1295 = vadd.f32 0.0, %v1294
        %v1296 = vpop.f32.mrb[0].mxu0
        %1297 = vmatprep.mubr.f32.mxu0 0.0
        %1298 = vmatmul.mubr.f32.gmra.mrb[0].mxu0 %v1073
        %v1299 = vpop.f32.mrb[0].mxu0
        %v1300 = vadd.f32 0.0, %v1299
        %v1301 = vpop.f32.mrb[0].mxu0
        %1302 = vmatprep.mubr.f32.mxu0 0.0
        %1303 = vmatmul.mubr.f32.gmra.mrb[0].mxu0 %v1076
        %v1304 = vpop.f32.mrb[0].mxu0
        %v1305 = vadd.f32 0.0, %v1304
        %v1306 = vpop.f32.mrb[0].mxu0
        %1307 = vmatprep.mubr.f32.mxu0 0.0
        %1308 = vmatmul.mubr.f32.gmra.mrb[0].mxu0 %v1079
        %v1309 = vpop.f32.mrb[0].mxu0
        %v1310 = vadd.f32 0.0, %v1309
        %v1311 = vpop.f32.mrb[0].mxu0
        %1312 = vmatprep.mubr.f32.mxu0 0.0
        %1313 = vmatmul.mubr.f32.gmra.mrb[0].mxu0 %v1082
        %v1314 = vpop.f32.mrb[0].mxu0
        %v1315 = vadd.f32 0.0, %v1314
        %v1316 = vpop.f32.mrb[0].mxu0
        %1317 = vmatprep.mubr.f32.mxu0 0.0
        %1318 = vmatmul.mubr.f32.gmra.mrb[0].mxu0 %v1085
        %v1319 = vpop.f32.mrb[0].mxu0
        %v1320 = vadd.f32 0.0, %v1319
        %v1321 = vpop.f32.mrb[0].mxu0
        %1322 = vmatprep.mubr.f32.mxu0 0.0
        %1323 = vmatmul.mubr.f32.gmra.mrb[0].mxu0 %v1088
        %v1324 = vpop.f32.mrb[0].mxu0
        %v1325 = vadd.f32 0.0, %v1324
        %v1326 = vpop.f32.mrb[0].mxu0
        %1327 = vmatprep.mubr.f32.mxu0 0.0
        %1328 = vmatmul.mubr.f32.gmra.mrb[0].mxu0 %v1091
        %v1329 = vpop.f32.mrb[0].mxu0
        %v1330 = vadd.f32 0.0, %v1329
        %v1331 = vpop.f32.mrb[0].mxu0
        %1332 = vmatprep.mubr.f32.mxu0 0.0
        %1333 = vmatmul.mubr.f32.gmra.mrb[0].mxu0 %v1094
        %v1334 = vpop.f32.mrb[0].mxu0
        %v1335 = vadd.f32 0.0, %v1334
        %v1336 = vpop.f32.mrb[0].mxu0
        %1337 = vmatprep.mubr.f32.mxu0 0.0
        %1338 = vmatmul.mubr.f32.gmra.mrb[0].mxu0 %v1097
        %v1339 = vpop.f32.mrb[0].mxu0
        %v1340 = vadd.f32 0.0, %v1339
        %v1341 = vpop.f32.mrb[0].mxu0
        %1342 = vmatprep.mubr.f32.mxu0 0.0
        %1343 = vmatmul.mubr.f32.gmra.mrb[0].mxu0 %v1100
        %v1344 = vpop.f32.mrb[0].mxu0
        %v1345 = vadd.f32 0.0, %v1344
        %v1346 = vpop.f32.mrb[0].mxu0
        %1347 = vmatprep.mubr.f32.mxu0 0.0
        %1348 = vmatmul.mubr.f32.gmra.mrb[0].mxu0 %v1103
        %v1349 = vpop.f32.mrb[0].mxu0
        %v1350 = vadd.f32 0.0, %v1349
        %v1351 = vpop.f32.mrb[0].mxu0
        %1352 = vdwg.mxu0
        %v1353 = vadd.f32 %v781, %v1175
        %v1354 = vadd.f32 %v786, %v1180
        %v1355 = vadd.f32 %v791, %v1185
        %v1356 = vadd.f32 %v796, %v1190
        %v1357 = vadd.f32 %v801, %v1195
        %v1358 = vadd.f32 %v806, %v1200
        %v1359 = vadd.f32 %v811, %v1205
        %v1360 = vadd.f32 %v816, %v1210
        %v1361 = vadd.f32 %v821, %v1215
        %v1362 = vadd.f32 %v826, %v1220
        %v1363 = vadd.f32 %v831, %v1225
        %v1364 = vadd.f32 %v836, %v1230
        %v1365 = vadd.f32 %v841, %v1235
        %v1366 = vadd.f32 %v846, %v1240
        %v1367 = vadd.f32 %v851, %v1245
        %v1368 = vadd.f32 %v856, %v1250
        %v1369 = vadd.f32 %v861, %v1255
        %v1370 = vadd.f32 %v866, %v1260
        %v1371 = vadd.f32 %v871, %v1265
        %v1372 = vadd.f32 %v876, %v1270
        %v1373 = vadd.f32 %v881, %v1275
        %v1374 = vadd.f32 %v886, %v1280
        %v1375 = vadd.f32 %v891, %v1285
        %v1376 = vadd.f32 %v896, %v1290
        %v1377 = vadd.f32 %v901, %v1295
        %v1378 = vadd.f32 %v906, %v1300
        %v1379 = vadd.f32 %v911, %v1305
        %v1380 = vadd.f32 %v916, %v1310
        %v1381 = vadd.f32 %v921, %v1315
        %v1382 = vadd.f32 %v926, %v1320
        %v1383 = vadd.f32 %v931, %v1325
        %v1384 = vadd.f32 %v936, %v1330
        %v1385 = vadd.f32 %v941, %v1335
        %v1386 = vadd.f32 %v946, %v1340
        %v1387 = vadd.f32 %v951, %v1345
        %v1388 = vadd.f32 %v956, %v1350
        %v1389 = vld [vmem:[%s168 + $0x12] sm:$0xff]
        %v1390 = vld [vmem:[%s168 + $0x1a] sm:$0xff]
        %v1391 = vld [vmem:[%s168 + $0x22] sm:$0xff]
        %v1392 = vld [vmem:[%s168 + $0x2a] sm:$0xff]
        %v1393 = vld [vmem:[%s168 + $0x32] sm:$0xff]
        %v1394 = vld [vmem:[%s168 + $0x3a] sm:$0xff]
        %v1395 = vld [vmem:[%s168 + $0x42] sm:$0xff]
        %v1396 = vld [vmem:[%s168 + $0x4a] sm:$0xff]
        %v1397 = vld [vmem:[%s168 + $0x52] sm:$0xff]
        %v1398 = vld [vmem:[%s168 + $0x5a] sm:$0xff]
        %v1399 = vld [vmem:[%s168 + $0x62] sm:$0xff]
        %v1400 = vld [vmem:[%s168 + $0x6a] sm:$0xff]
        %v1401 = vld [vmem:[%s168 + $0x72] sm:$0xff]
        %v1402 = vld [vmem:[%s168 + $0x7a] sm:$0xff]
        %v1403 = vld [vmem:[%s168 + $0x82] sm:$0xff]
        %v1404 = vld [vmem:[%s168 + $0x8a] sm:$0xff]
        %v1405 = vld [vmem:[%s168 + $0x92] sm:$0xff]
        %v1406 = vld [vmem:[%s168 + $0x9a] sm:$0xff]
        %v1407 = vld [vmem:[%s168 + $0xa2] sm:$0xff]
        %v1408 = vld [vmem:[%s168 + $0xaa] sm:$0xff]
        %v1409 = vld [vmem:[%s168 + $0xb2] sm:$0xff]
        %v1410 = vld [vmem:[%s168 + $0xba] sm:$0xff]
        %v1411 = vld [vmem:[%s168 + $0xc2] sm:$0xff]
        %v1412 = vld [vmem:[%s168 + $0xca] sm:$0xff]
        %v1413 = vld [vmem:[%s168 + $0xd2] sm:$0xff]
        %v1414 = vld [vmem:[%s168 + $0xda] sm:$0xff]
        %v1415 = vld [vmem:[%s168 + $0xe2] sm:$0xff]
        %v1416 = vld [vmem:[%s168 + $0xea] sm:$0xff]
        %v1417 = vld [vmem:[%s168 + $0xf2] sm:$0xff]
        %v1418 = vld [vmem:[%s168 + $0xfa] sm:$0xff]
        %v1419 = vld [vmem:[%s168 + $0x102] sm:$0xff]
        %v1420 = vld [vmem:[%s168 + $0x10a] sm:$0xff]
        %v1421 = vld [vmem:[%s168 + $0x112] sm:$0xff]
        %v1422 = vld [vmem:[%s168 + $0x11a] sm:$0xff]
        %v1423 = vld [vmem:[%s168 + $0x122] sm:$0xff]
        %v1424 = vld [vmem:[%s168 + $0x12a] sm:$0xff]
        %s1425 = scalar_lea.vmem %s1, 12
        %v1426 = vld [vmem:[%s1425] sm:$0xf]
        %v1428 = vsel %vm245, %v1389, 0
        %v1431 = vsel %vm245, %v1390, 0
        %v1434 = vsel %vm245, %v1391, 0
        %v1437 = vsel %vm245, %v1392, 0
        %v1440 = vsel %vm245, %v1393, 0
        %v1443 = vsel %vm245, %v1394, 0
        %v1446 = vsel %vm245, %v1395, 0
        %v1449 = vsel %vm245, %v1396, 0
        %v1452 = vsel %vm245, %v1397, 0
        %v1455 = vsel %vm245, %v1398, 0
        %v1458 = vsel %vm245, %v1399, 0
        %v1461 = vsel %vm245, %v1400, 0
        %v1464 = vsel %vm245, %v1401, 0
        %v1467 = vsel %vm245, %v1402, 0
        %v1470 = vsel %vm245, %v1403, 0
        %v1473 = vsel %vm245, %v1404, 0
        %v1476 = vsel %vm245, %v1405, 0
        %v1479 = vsel %vm245, %v1406, 0
        %v1482 = vsel %vm245, %v1407, 0
        %v1485 = vsel %vm245, %v1408, 0
        %v1488 = vsel %vm245, %v1409, 0
        %v1491 = vsel %vm245, %v1410, 0
        %v1494 = vsel %vm245, %v1411, 0
        %v1497 = vsel %vm245, %v1412, 0
        %v1500 = vsel %vm245, %v1413, 0
        %v1503 = vsel %vm245, %v1414, 0
        %v1506 = vsel %vm245, %v1415, 0
        %v1509 = vsel %vm245, %v1416, 0
        %v1512 = vsel %vm245, %v1417, 0
        %v1515 = vsel %vm245, %v1418, 0
        %v1518 = vsel %vm245, %v1419, 0
        %v1521 = vsel %vm245, %v1420, 0
        %v1524 = vsel %vm245, %v1421, 0
        %v1527 = vsel %vm245, %v1422, 0
        %v1530 = vsel %vm245, %v1423, 0
        %v1533 = vsel %vm245, %v1424, 0
        %v1536 = vsel %vm354, %v1426, 0
        %1538 = vmatprep.subr.mxu0 0.0
        %1539 = vmatpush1.msra.mxu0 %v1536
        %1540 = vmatprep.subr.mxu0 0.0
        %1541 = vmatpush1.msra.mxu0 0.0
        %1542 = vmatprep.subr.mxu0 0.0
        %1543 = vmatpush1.msra.mxu0 0.0
        %1544 = vmatprep.subr.mxu0 0.0
        %1545 = vmatpush1.msra.mxu0 0.0
        %1546 = vmatprep.subr.mxu0 0.0
        %1547 = vmatpush1.msra.mxu0 0.0
        %1548 = vmatprep.subr.mxu0 0.0
        %1549 = vmatpush1.msra.mxu0 0.0
        %1550 = vmatprep.subr.mxu0 0.0
        %1551 = vmatpush1.msra.mxu0 0.0
        %1552 = vmatprep.subr.mxu0 0.0
        %1553 = vmatpush1.msra.mxu0 0.0
        %1554 = vmatprep.subr.mxu0 0.0
        %1555 = vmatpush1.msra.mxu0 0.0
        %1556 = vmatprep.subr.mxu0 0.0
        %1557 = vmatpush1.msra.mxu0 0.0
        %1558 = vmatprep.subr.mxu0 0.0
        %1559 = vmatpush1.msra.mxu0 0.0
        %1560 = vmatprep.subr.mxu0 0.0
        %1561 = vmatpush1.msra.mxu0 0.0
        %1562 = vmatprep.subr.mxu0 0.0
        %1563 = vmatpush1.msra.mxu0 0.0
        %1564 = vmatprep.subr.mxu0 0.0
        %1565 = vmatpush1.msra.mxu0 0.0
        %1566 = vmatprep.subr.mxu0 0.0
        %1567 = vmatpush1.msra.mxu0 0.0
        %1568 = vmatprep.subr.mxu0 0.0
        %1569 = vmatpush1.msra.mxu0 0.0
        %1570 = vmatprep.subr.mxu0 0.0
        %1571 = vmatpush1.msra.mxu0 0.0
        %1572 = vmatprep.subr.mxu0 0.0
        %1573 = vmatpush1.msra.mxu0 0.0
        %1574 = vmatprep.subr.mxu0 0.0
        %1575 = vmatpush1.msra.mxu0 0.0
        %1576 = vmatprep.subr.mxu0 0.0
        %1577 = vmatpush1.msra.mxu0 0.0
        %1578 = vmatprep.subr.mxu0 0.0
        %1579 = vmatpush1.msra.mxu0 0.0
        %1580 = vmatprep.subr.mxu0 0.0
        %1581 = vmatpush1.msra.mxu0 0.0
        %1582 = vmatprep.subr.mxu0 0.0
        %1583 = vmatpush1.msra.mxu0 0.0
        %1584 = vmatprep.subr.mxu0 0.0
        %1585 = vmatpush1.msra.mxu0 0.0
        %1586 = vmatprep.subr.mxu0 0.0
        %1587 = vmatpush1.msra.mxu0 0.0
        %1588 = vmatprep.subr.mxu0 0.0
        %1589 = vmatpush1.msra.mxu0 0.0
        %1590 = vmatprep.subr.mxu0 0.0
        %1591 = vmatpush1.msra.mxu0 0.0
        %1592 = vmatprep.subr.mxu0 0.0
        %1593 = vmatpush1.msra.mxu0 0.0
        %1594 = vmatprep.subr.mxu0 0.0
        %1595 = vmatpush1.msra.mxu0 0.0
        %1596 = vmatprep.subr.mxu0 0.0
        %1597 = vmatpush1.msra.mxu0 0.0
        %1598 = vmatprep.subr.mxu0 0.0
        %1599 = vmatpush1.msra.mxu0 0.0
        %1600 = vmatprep.subr.mxu0 0.0
        %1601 = vmatpush1.msra.mxu0 0.0
        %1602 = vmatprep.mubr.f32.mxu0 0.0
        %1603 = vmatmul.mubr.f32.gmra.mrb[0].mxu0 %v1428
        %v1604 = vpop.f32.mrb[0].mxu0
        %v1605 = vadd.f32 0.0, %v1604
        %v1606 = vpop.f32.mrb[0].mxu0
        %1607 = vmatprep.mubr.f32.mxu0 0.0
        %1608 = vmatmul.mubr.f32.gmra.mrb[0].mxu0 %v1431
        %v1609 = vpop.f32.mrb[0].mxu0
        %v1610 = vadd.f32 0.0, %v1609
        %v1611 = vpop.f32.mrb[0].mxu0
        %1612 = vmatprep.mubr.f32.mxu0 0.0
        %1613 = vmatmul.mubr.f32.gmra.mrb[0].mxu0 %v1434
        %v1614 = vpop.f32.mrb[0].mxu0
        %v1615 = vadd.f32 0.0, %v1614
        %v1616 = vpop.f32.mrb[0].mxu0
        %1617 = vmatprep.mubr.f32.mxu0 0.0
        %1618 = vmatmul.mubr.f32.gmra.mrb[0].mxu0 %v1437
        %v1619 = vpop.f32.mrb[0].mxu0
        %v1620 = vadd.f32 0.0, %v1619
        %v1621 = vpop.f32.mrb[0].mxu0
        %1622 = vmatprep.mubr.f32.mxu0 0.0
        %1623 = vmatmul.mubr.f32.gmra.mrb[0].mxu0 %v1440
        %v1624 = vpop.f32.mrb[0].mxu0
        %v1625 = vadd.f32 0.0, %v1624
        %v1626 = vpop.f32.mrb[0].mxu0
        %1627 = vmatprep.mubr.f32.mxu0 0.0
        %1628 = vmatmul.mubr.f32.gmra.mrb[0].mxu0 %v1443
        %v1629 = vpop.f32.mrb[0].mxu0
        %v1630 = vadd.f32 0.0, %v1629
        %v1631 = vpop.f32.mrb[0].mxu0
        %1632 = vmatprep.mubr.f32.mxu0 0.0
        %1633 = vmatmul.mubr.f32.gmra.mrb[0].mxu0 %v1446
        %v1634 = vpop.f32.mrb[0].mxu0
        %v1635 = vadd.f32 0.0, %v1634
        %v1636 = vpop.f32.mrb[0].mxu0
        %1637 = vmatprep.mubr.f32.mxu0 0.0
        %1638 = vmatmul.mubr.f32.gmra.mrb[0].mxu0 %v1449
        %v1639 = vpop.f32.mrb[0].mxu0
        %v1640 = vadd.f32 0.0, %v1639
        %v1641 = vpop.f32.mrb[0].mxu0
        %1642 = vmatprep.mubr.f32.mxu0 0.0
        %1643 = vmatmul.mubr.f32.gmra.mrb[0].mxu0 %v1452
        %v1644 = vpop.f32.mrb[0].mxu0
        %v1645 = vadd.f32 0.0, %v1644
        %v1646 = vpop.f32.mrb[0].mxu0
        %1647 = vmatprep.mubr.f32.mxu0 0.0
        %1648 = vmatmul.mubr.f32.gmra.mrb[0].mxu0 %v1455
        %v1649 = vpop.f32.mrb[0].mxu0
        %v1650 = vadd.f32 0.0, %v1649
        %v1651 = vpop.f32.mrb[0].mxu0
        %1652 = vmatprep.mubr.f32.mxu0 0.0
        %1653 = vmatmul.mubr.f32.gmra.mrb[0].mxu0 %v1458
        %v1654 = vpop.f32.mrb[0].mxu0
        %v1655 = vadd.f32 0.0, %v1654
        %v1656 = vpop.f32.mrb[0].mxu0
        %1657 = vmatprep.mubr.f32.mxu0 0.0
        %1658 = vmatmul.mubr.f32.gmra.mrb[0].mxu0 %v1461
        %v1659 = vpop.f32.mrb[0].mxu0
        %v1660 = vadd.f32 0.0, %v1659
        %v1661 = vpop.f32.mrb[0].mxu0
        %1662 = vmatprep.mubr.f32.mxu0 0.0
        %1663 = vmatmul.mubr.f32.gmra.mrb[0].mxu0 %v1464
        %v1664 = vpop.f32.mrb[0].mxu0
        %v1665 = vadd.f32 0.0, %v1664
        %v1666 = vpop.f32.mrb[0].mxu0
        %1667 = vmatprep.mubr.f32.mxu0 0.0
        %1668 = vmatmul.mubr.f32.gmra.mrb[0].mxu0 %v1467
        %v1669 = vpop.f32.mrb[0].mxu0
        %v1670 = vadd.f32 0.0, %v1669
        %v1671 = vpop.f32.mrb[0].mxu0
        %1672 = vmatprep.mubr.f32.mxu0 0.0
        %1673 = vmatmul.mubr.f32.gmra.mrb[0].mxu0 %v1470
        %v1674 = vpop.f32.mrb[0].mxu0
        %v1675 = vadd.f32 0.0, %v1674
        %v1676 = vpop.f32.mrb[0].mxu0
        %1677 = vmatprep.mubr.f32.mxu0 0.0
        %1678 = vmatmul.mubr.f32.gmra.mrb[0].mxu0 %v1473
        %v1679 = vpop.f32.mrb[0].mxu0
        %v1680 = vadd.f32 0.0, %v1679
        %v1681 = vpop.f32.mrb[0].mxu0
        %1682 = vmatprep.mubr.f32.mxu0 0.0
        %1683 = vmatmul.mubr.f32.gmra.mrb[0].mxu0 %v1476
        %v1684 = vpop.f32.mrb[0].mxu0
        %v1685 = vadd.f32 0.0, %v1684
        %v1686 = vpop.f32.mrb[0].mxu0
        %1687 = vmatprep.mubr.f32.mxu0 0.0
        %1688 = vmatmul.mubr.f32.gmra.mrb[0].mxu0 %v1479
        %v1689 = vpop.f32.mrb[0].mxu0
        %v1690 = vadd.f32 0.0, %v1689
        %v1691 = vpop.f32.mrb[0].mxu0
        %1692 = vmatprep.mubr.f32.mxu0 0.0
        %1693 = vmatmul.mubr.f32.gmra.mrb[0].mxu0 %v1482
        %v1694 = vpop.f32.mrb[0].mxu0
        %v1695 = vadd.f32 0.0, %v1694
        %v1696 = vpop.f32.mrb[0].mxu0
        %1697 = vmatprep.mubr.f32.mxu0 0.0
        %1698 = vmatmul.mubr.f32.gmra.mrb[0].mxu0 %v1485
        %v1699 = vpop.f32.mrb[0].mxu0
        %v1700 = vadd.f32 0.0, %v1699
        %v1701 = vpop.f32.mrb[0].mxu0
        %1702 = vmatprep.mubr.f32.mxu0 0.0
        %1703 = vmatmul.mubr.f32.gmra.mrb[0].mxu0 %v1488
        %v1704 = vpop.f32.mrb[0].mxu0
        %v1705 = vadd.f32 0.0, %v1704
        %v1706 = vpop.f32.mrb[0].mxu0
        %1707 = vmatprep.mubr.f32.mxu0 0.0
        %1708 = vmatmul.mubr.f32.gmra.mrb[0].mxu0 %v1491
        %v1709 = vpop.f32.mrb[0].mxu0
        %v1710 = vadd.f32 0.0, %v1709
        %v1711 = vpop.f32.mrb[0].mxu0
        %1712 = vmatprep.mubr.f32.mxu0 0.0
        %1713 = vmatmul.mubr.f32.gmra.mrb[0].mxu0 %v1494
        %v1714 = vpop.f32.mrb[0].mxu0
        %v1715 = vadd.f32 0.0, %v1714
        %v1716 = vpop.f32.mrb[0].mxu0
        %1717 = vmatprep.mubr.f32.mxu0 0.0
        %1718 = vmatmul.mubr.f32.gmra.mrb[0].mxu0 %v1497
        %v1719 = vpop.f32.mrb[0].mxu0
        %v1720 = vadd.f32 0.0, %v1719
        %v1721 = vpop.f32.mrb[0].mxu0
        %1722 = vmatprep.mubr.f32.mxu0 0.0
        %1723 = vmatmul.mubr.f32.gmra.mrb[0].mxu0 %v1500
        %v1724 = vpop.f32.mrb[0].mxu0
        %v1725 = vadd.f32 0.0, %v1724
        %v1726 = vpop.f32.mrb[0].mxu0
        %1727 = vmatprep.mubr.f32.mxu0 0.0
        %1728 = vmatmul.mubr.f32.gmra.mrb[0].mxu0 %v1503
        %v1729 = vpop.f32.mrb[0].mxu0
        %v1730 = vadd.f32 0.0, %v1729
        %v1731 = vpop.f32.mrb[0].mxu0
        %1732 = vmatprep.mubr.f32.mxu0 0.0
        %1733 = vmatmul.mubr.f32.gmra.mrb[0].mxu0 %v1506
        %v1734 = vpop.f32.mrb[0].mxu0
        %v1735 = vadd.f32 0.0, %v1734
        %v1736 = vpop.f32.mrb[0].mxu0
        %1737 = vmatprep.mubr.f32.mxu0 0.0
        %1738 = vmatmul.mubr.f32.gmra.mrb[0].mxu0 %v1509
        %v1739 = vpop.f32.mrb[0].mxu0
        %v1740 = vadd.f32 0.0, %v1739
        %v1741 = vpop.f32.mrb[0].mxu0
        %1742 = vmatprep.mubr.f32.mxu0 0.0
        %1743 = vmatmul.mubr.f32.gmra.mrb[0].mxu0 %v1512
        %v1744 = vpop.f32.mrb[0].mxu0
        %v1745 = vadd.f32 0.0, %v1744
        %v1746 = vpop.f32.mrb[0].mxu0
        %1747 = vmatprep.mubr.f32.mxu0 0.0
        %1748 = vmatmul.mubr.f32.gmra.mrb[0].mxu0 %v1515
        %v1749 = vpop.f32.mrb[0].mxu0
        %v1750 = vadd.f32 0.0, %v1749
        %v1751 = vpop.f32.mrb[0].mxu0
        %1752 = vmatprep.mubr.f32.mxu0 0.0
        %1753 = vmatmul.mubr.f32.gmra.mrb[0].mxu0 %v1518
        %v1754 = vpop.f32.mrb[0].mxu0
        %v1755 = vadd.f32 0.0, %v1754
        %v1756 = vpop.f32.mrb[0].mxu0
        %1757 = vmatprep.mubr.f32.mxu0 0.0
        %1758 = vmatmul.mubr.f32.gmra.mrb[0].mxu0 %v1521
        %v1759 = vpop.f32.mrb[0].mxu0
        %v1760 = vadd.f32 0.0, %v1759
        %v1761 = vpop.f32.mrb[0].mxu0
        %1762 = vmatprep.mubr.f32.mxu0 0.0
        %1763 = vmatmul.mubr.f32.gmra.mrb[0].mxu0 %v1524
        %v1764 = vpop.f32.mrb[0].mxu0
        %v1765 = vadd.f32 0.0, %v1764
        %v1766 = vpop.f32.mrb[0].mxu0
        %1767 = vmatprep.mubr.f32.mxu0 0.0
        %1768 = vmatmul.mubr.f32.gmra.mrb[0].mxu0 %v1527
        %v1769 = vpop.f32.mrb[0].mxu0
        %v1770 = vadd.f32 0.0, %v1769
        %v1771 = vpop.f32.mrb[0].mxu0
        %1772 = vmatprep.mubr.f32.mxu0 0.0
        %1773 = vmatmul.mubr.f32.gmra.mrb[0].mxu0 %v1530
        %v1774 = vpop.f32.mrb[0].mxu0
        %v1775 = vadd.f32 0.0, %v1774
        %v1776 = vpop.f32.mrb[0].mxu0
        %1777 = vmatprep.mubr.f32.mxu0 0.0
        %1778 = vmatmul.mubr.f32.gmra.mrb[0].mxu0 %v1533
        %v1779 = vpop.f32.mrb[0].mxu0
        %v1780 = vadd.f32 0.0, %v1779
        %v1781 = vpop.f32.mrb[0].mxu0
        %1782 = vdwg.mxu0
        %v1783 = vadd.f32 %v1353, %v1605
        %v1784 = vadd.f32 %v1354, %v1610
        %v1785 = vadd.f32 %v1355, %v1615
        %v1786 = vadd.f32 %v1356, %v1620
        %v1787 = vadd.f32 %v1357, %v1625
        %v1788 = vadd.f32 %v1358, %v1630
        %v1789 = vadd.f32 %v1359, %v1635
        %v1790 = vadd.f32 %v1360, %v1640
        %v1791 = vadd.f32 %v1361, %v1645
        %v1792 = vadd.f32 %v1362, %v1650
        %v1793 = vadd.f32 %v1363, %v1655
        %v1794 = vadd.f32 %v1364, %v1660
        %v1795 = vadd.f32 %v1365, %v1665
        %v1796 = vadd.f32 %v1366, %v1670
        %v1797 = vadd.f32 %v1367, %v1675
        %v1798 = vadd.f32 %v1368, %v1680
        %v1799 = vadd.f32 %v1369, %v1685
        %v1800 = vadd.f32 %v1370, %v1690
        %v1801 = vadd.f32 %v1371, %v1695
        %v1802 = vadd.f32 %v1372, %v1700
        %v1803 = vadd.f32 %v1373, %v1705
        %v1804 = vadd.f32 %v1374, %v1710
        %v1805 = vadd.f32 %v1375, %v1715
        %v1806 = vadd.f32 %v1376, %v1720
        %v1807 = vadd.f32 %v1377, %v1725
        %v1808 = vadd.f32 %v1378, %v1730
        %v1809 = vadd.f32 %v1379, %v1735
        %v1810 = vadd.f32 %v1380, %v1740
        %v1811 = vadd.f32 %v1381, %v1745
        %v1812 = vadd.f32 %v1382, %v1750
        %v1813 = vadd.f32 %v1383, %v1755
        %v1814 = vadd.f32 %v1384, %v1760
        %v1815 = vadd.f32 %v1385, %v1765
        %v1816 = vadd.f32 %v1386, %v1770
        %v1817 = vadd.f32 %v1387, %v1775
        %v1818 = vadd.f32 %v1388, %v1780
        %v1819 = vld [vmem:[%s168 + $0x13] sm:$0xff]
        %v1820 = vld [vmem:[%s168 + $0x1b] sm:$0xff]
        %v1821 = vld [vmem:[%s168 + $0x23] sm:$0xff]
        %v1822 = vld [vmem:[%s168 + $0x2b] sm:$0xff]
        %v1823 = vld [vmem:[%s168 + $0x33] sm:$0xff]
        %v1824 = vld [vmem:[%s168 + $0x3b] sm:$0xff]
        %v1825 = vld [vmem:[%s168 + $0x43] sm:$0xff]
        %v1826 = vld [vmem:[%s168 + $0x4b] sm:$0xff]
        %v1827 = vld [vmem:[%s168 + $0x53] sm:$0xff]
        %v1828 = vld [vmem:[%s168 + $0x5b] sm:$0xff]
        %v1829 = vld [vmem:[%s168 + $0x63] sm:$0xff]
        %v1830 = vld [vmem:[%s168 + $0x6b] sm:$0xff]
        %v1831 = vld [vmem:[%s168 + $0x73] sm:$0xff]
        %v1832 = vld [vmem:[%s168 + $0x7b] sm:$0xff]
        %v1833 = vld [vmem:[%s168 + $0x83] sm:$0xff]
        %v1834 = vld [vmem:[%s168 + $0x8b] sm:$0xff]
        %v1835 = vld [vmem:[%s168 + $0x93] sm:$0xff]
        %v1836 = vld [vmem:[%s168 + $0x9b] sm:$0xff]
        %v1837 = vld [vmem:[%s168 + $0xa3] sm:$0xff]
        %v1838 = vld [vmem:[%s168 + $0xab] sm:$0xff]
        %v1839 = vld [vmem:[%s168 + $0xb3] sm:$0xff]
        %v1840 = vld [vmem:[%s168 + $0xbb] sm:$0xff]
        %v1841 = vld [vmem:[%s168 + $0xc3] sm:$0xff]
        %v1842 = vld [vmem:[%s168 + $0xcb] sm:$0xff]
        %v1843 = vld [vmem:[%s168 + $0xd3] sm:$0xff]
        %v1844 = vld [vmem:[%s168 + $0xdb] sm:$0xff]
        %v1845 = vld [vmem:[%s168 + $0xe3] sm:$0xff]
        %v1846 = vld [vmem:[%s168 + $0xeb] sm:$0xff]
        %v1847 = vld [vmem:[%s168 + $0xf3] sm:$0xff]
        %v1848 = vld [vmem:[%s168 + $0xfb] sm:$0xff]
        %v1849 = vld [vmem:[%s168 + $0x103] sm:$0xff]
        %v1850 = vld [vmem:[%s168 + $0x10b] sm:$0xff]
        %v1851 = vld [vmem:[%s168 + $0x113] sm:$0xff]
        %v1852 = vld [vmem:[%s168 + $0x11b] sm:$0xff]
        %v1853 = vld [vmem:[%s168 + $0x123] sm:$0xff]
        %v1854 = vld [vmem:[%s168 + $0x12b] sm:$0xff]
        %s1855 = scalar_lea.vmem %s1, 16
        %v1856 = vld [vmem:[%s1855] sm:$0xf]
        %v1858 = vsel %vm245, %v1819, 0
        %v1861 = vsel %vm245, %v1820, 0
        %v1864 = vsel %vm245, %v1821, 0
        %v1867 = vsel %vm245, %v1822, 0
        %v1870 = vsel %vm245, %v1823, 0
        %v1873 = vsel %vm245, %v1824, 0
        %v1876 = vsel %vm245, %v1825, 0
        %v1879 = vsel %vm245, %v1826, 0
        %v1882 = vsel %vm245, %v1827, 0
        %v1885 = vsel %vm245, %v1828, 0
        %v1888 = vsel %vm245, %v1829, 0
        %v1891 = vsel %vm245, %v1830, 0
        %v1894 = vsel %vm245, %v1831, 0
        %v1897 = vsel %vm245, %v1832, 0
        %v1900 = vsel %vm245, %v1833, 0
        %v1903 = vsel %vm245, %v1834, 0
        %v1906 = vsel %vm245, %v1835, 0
        %v1909 = vsel %vm245, %v1836, 0
        %v1912 = vsel %vm245, %v1837, 0
        %v1915 = vsel %vm245, %v1838, 0
        %v1918 = vsel %vm245, %v1839, 0
        %v1921 = vsel %vm245, %v1840, 0
        %v1924 = vsel %vm245, %v1841, 0
        %v1927 = vsel %vm245, %v1842, 0
        %v1930 = vsel %vm245, %v1843, 0
        %v1933 = vsel %vm245, %v1844, 0
        %v1936 = vsel %vm245, %v1845, 0
        %v1939 = vsel %vm245, %v1846, 0
        %v1942 = vsel %vm245, %v1847, 0
        %v1945 = vsel %vm245, %v1848, 0
        %v1948 = vsel %vm245, %v1849, 0
        %v1951 = vsel %vm245, %v1850, 0
        %v1954 = vsel %vm245, %v1851, 0
        %v1957 = vsel %vm245, %v1852, 0
        %v1960 = vsel %vm245, %v1853, 0
        %v1963 = vsel %vm245, %v1854, 0
        %v1966 = vsel %vm354, %v1856, 0
        %1968 = vmatprep.subr.mxu0 0.0
        %1969 = vmatpush1.msra.mxu0 %v1966
        %1970 = vmatprep.subr.mxu0 0.0
        %1971 = vmatpush1.msra.mxu0 0.0
        %1972 = vmatprep.subr.mxu0 0.0
        %1973 = vmatpush1.msra.mxu0 0.0
        %1974 = vmatprep.subr.mxu0 0.0
        %1975 = vmatpush1.msra.mxu0 0.0
        %1976 = vmatprep.subr.mxu0 0.0
        %1977 = vmatpush1.msra.mxu0 0.0
        %1978 = vmatprep.subr.mxu0 0.0
        %1979 = vmatpush1.msra.mxu0 0.0
        %1980 = vmatprep.subr.mxu0 0.0
        %1981 = vmatpush1.msra.mxu0 0.0
        %1982 = vmatprep.subr.mxu0 0.0
        %1983 = vmatpush1.msra.mxu0 0.0
        %1984 = vmatprep.subr.mxu0 0.0
        %1985 = vmatpush1.msra.mxu0 0.0
        %1986 = vmatprep.subr.mxu0 0.0
        %1987 = vmatpush1.msra.mxu0 0.0
        %1988 = vmatprep.subr.mxu0 0.0
        %1989 = vmatpush1.msra.mxu0 0.0
        %1990 = vmatprep.subr.mxu0 0.0
        %1991 = vmatpush1.msra.mxu0 0.0
        %1992 = vmatprep.subr.mxu0 0.0
        %1993 = vmatpush1.msra.mxu0 0.0
        %1994 = vmatprep.subr.mxu0 0.0
        %1995 = vmatpush1.msra.mxu0 0.0
        %1996 = vmatprep.subr.mxu0 0.0
        %1997 = vmatpush1.msra.mxu0 0.0
        %1998 = vmatprep.subr.mxu0 0.0
        %1999 = vmatpush1.msra.mxu0 0.0
        %2000 = vmatprep.subr.mxu0 0.0
        %2001 = vmatpush1.msra.mxu0 0.0
        %2002 = vmatprep.subr.mxu0 0.0
        %2003 = vmatpush1.msra.mxu0 0.0
        %2004 = vmatprep.subr.mxu0 0.0
        %2005 = vmatpush1.msra.mxu0 0.0
        %2006 = vmatprep.subr.mxu0 0.0
        %2007 = vmatpush1.msra.mxu0 0.0
        %2008 = vmatprep.subr.mxu0 0.0
        %2009 = vmatpush1.msra.mxu0 0.0
        %2010 = vmatprep.subr.mxu0 0.0
        %2011 = vmatpush1.msra.mxu0 0.0
        %2012 = vmatprep.subr.mxu0 0.0
        %2013 = vmatpush1.msra.mxu0 0.0
        %2014 = vmatprep.subr.mxu0 0.0
        %2015 = vmatpush1.msra.mxu0 0.0
        %2016 = vmatprep.subr.mxu0 0.0
        %2017 = vmatpush1.msra.mxu0 0.0
        %2018 = vmatprep.subr.mxu0 0.0
        %2019 = vmatpush1.msra.mxu0 0.0
        %2020 = vmatprep.subr.mxu0 0.0
        %2021 = vmatpush1.msra.mxu0 0.0
        %2022 = vmatprep.subr.mxu0 0.0
        %2023 = vmatpush1.msra.mxu0 0.0
        %2024 = vmatprep.subr.mxu0 0.0
        %2025 = vmatpush1.msra.mxu0 0.0
        %2026 = vmatprep.subr.mxu0 0.0
        %2027 = vmatpush1.msra.mxu0 0.0
        %2028 = vmatprep.subr.mxu0 0.0
        %2029 = vmatpush1.msra.mxu0 0.0
        %2030 = vmatprep.subr.mxu0 0.0
        %2031 = vmatpush1.msra.mxu0 0.0
        %2032 = vmatprep.mubr.f32.mxu0 0.0
        %2033 = vmatmul.mubr.f32.gmra.mrb[0].mxu0 %v1858
        %v2034 = vpop.f32.mrb[0].mxu0
        %v2035 = vadd.f32 0.0, %v2034
        %v2036 = vpop.f32.mrb[0].mxu0
        %2037 = vmatprep.mubr.f32.mxu0 0.0
        %2038 = vmatmul.mubr.f32.gmra.mrb[0].mxu0 %v1861
        %v2039 = vpop.f32.mrb[0].mxu0
        %v2040 = vadd.f32 0.0, %v2039
        %v2041 = vpop.f32.mrb[0].mxu0
        %2042 = vmatprep.mubr.f32.mxu0 0.0
        %2043 = vmatmul.mubr.f32.gmra.mrb[0].mxu0 %v1864
        %v2044 = vpop.f32.mrb[0].mxu0
        %v2045 = vadd.f32 0.0, %v2044
        %v2046 = vpop.f32.mrb[0].mxu0
        %2047 = vmatprep.mubr.f32.mxu0 0.0
        %2048 = vmatmul.mubr.f32.gmra.mrb[0].mxu0 %v1867
        %v2049 = vpop.f32.mrb[0].mxu0
        %v2050 = vadd.f32 0.0, %v2049
        %v2051 = vpop.f32.mrb[0].mxu0
        %2052 = vmatprep.mubr.f32.mxu0 0.0
        %2053 = vmatmul.mubr.f32.gmra.mrb[0].mxu0 %v1870
        %v2054 = vpop.f32.mrb[0].mxu0
        %v2055 = vadd.f32 0.0, %v2054
        %v2056 = vpop.f32.mrb[0].mxu0
        %2057 = vmatprep.mubr.f32.mxu0 0.0
        %2058 = vmatmul.mubr.f32.gmra.mrb[0].mxu0 %v1873
        %v2059 = vpop.f32.mrb[0].mxu0
        %v2060 = vadd.f32 0.0, %v2059
        %v2061 = vpop.f32.mrb[0].mxu0
        %2062 = vmatprep.mubr.f32.mxu0 0.0
        %2063 = vmatmul.mubr.f32.gmra.mrb[0].mxu0 %v1876
        %v2064 = vpop.f32.mrb[0].mxu0
        %v2065 = vadd.f32 0.0, %v2064
        %v2066 = vpop.f32.mrb[0].mxu0
        %2067 = vmatprep.mubr.f32.mxu0 0.0
        %2068 = vmatmul.mubr.f32.gmra.mrb[0].mxu0 %v1879
        %v2069 = vpop.f32.mrb[0].mxu0
        %v2070 = vadd.f32 0.0, %v2069
        %v2071 = vpop.f32.mrb[0].mxu0
        %2072 = vmatprep.mubr.f32.mxu0 0.0
        %2073 = vmatmul.mubr.f32.gmra.mrb[0].mxu0 %v1882
        %v2074 = vpop.f32.mrb[0].mxu0
        %v2075 = vadd.f32 0.0, %v2074
        %v2076 = vpop.f32.mrb[0].mxu0
        %2077 = vmatprep.mubr.f32.mxu0 0.0
        %2078 = vmatmul.mubr.f32.gmra.mrb[0].mxu0 %v1885
        %v2079 = vpop.f32.mrb[0].mxu0
        %v2080 = vadd.f32 0.0, %v2079
        %v2081 = vpop.f32.mrb[0].mxu0
        %2082 = vmatprep.mubr.f32.mxu0 0.0
        %2083 = vmatmul.mubr.f32.gmra.mrb[0].mxu0 %v1888
        %v2084 = vpop.f32.mrb[0].mxu0
        %v2085 = vadd.f32 0.0, %v2084
        %v2086 = vpop.f32.mrb[0].mxu0
        %2087 = vmatprep.mubr.f32.mxu0 0.0
        %2088 = vmatmul.mubr.f32.gmra.mrb[0].mxu0 %v1891
        %v2089 = vpop.f32.mrb[0].mxu0
        %v2090 = vadd.f32 0.0, %v2089
        %v2091 = vpop.f32.mrb[0].mxu0
        %2092 = vmatprep.mubr.f32.mxu0 0.0
        %2093 = vmatmul.mubr.f32.gmra.mrb[0].mxu0 %v1894
        %v2094 = vpop.f32.mrb[0].mxu0
        %v2095 = vadd.f32 0.0, %v2094
        %v2096 = vpop.f32.mrb[0].mxu0
        %2097 = vmatprep.mubr.f32.mxu0 0.0
        %2098 = vmatmul.mubr.f32.gmra.mrb[0].mxu0 %v1897
        %v2099 = vpop.f32.mrb[0].mxu0
        %v2100 = vadd.f32 0.0, %v2099
        %v2101 = vpop.f32.mrb[0].mxu0
        %2102 = vmatprep.mubr.f32.mxu0 0.0
        %2103 = vmatmul.mubr.f32.gmra.mrb[0].mxu0 %v1900
        %v2104 = vpop.f32.mrb[0].mxu0
        %v2105 = vadd.f32 0.0, %v2104
        %v2106 = vpop.f32.mrb[0].mxu0
        %2107 = vmatprep.mubr.f32.mxu0 0.0
        %2108 = vmatmul.mubr.f32.gmra.mrb[0].mxu0 %v1903
        %v2109 = vpop.f32.mrb[0].mxu0
        %v2110 = vadd.f32 0.0, %v2109
        %v2111 = vpop.f32.mrb[0].mxu0
        %2112 = vmatprep.mubr.f32.mxu0 0.0
        %2113 = vmatmul.mubr.f32.gmra.mrb[0].mxu0 %v1906
        %v2114 = vpop.f32.mrb[0].mxu0
        %v2115 = vadd.f32 0.0, %v2114
        %v2116 = vpop.f32.mrb[0].mxu0
        %2117 = vmatprep.mubr.f32.mxu0 0.0
        %2118 = vmatmul.mubr.f32.gmra.mrb[0].mxu0 %v1909
        %v2119 = vpop.f32.mrb[0].mxu0
        %v2120 = vadd.f32 0.0, %v2119
        %v2121 = vpop.f32.mrb[0].mxu0
        %2122 = vmatprep.mubr.f32.mxu0 0.0
        %2123 = vmatmul.mubr.f32.gmra.mrb[0].mxu0 %v1912
        %v2124 = vpop.f32.mrb[0].mxu0
        %v2125 = vadd.f32 0.0, %v2124
        %v2126 = vpop.f32.mrb[0].mxu0
        %2127 = vmatprep.mubr.f32.mxu0 0.0
        %2128 = vmatmul.mubr.f32.gmra.mrb[0].mxu0 %v1915
        %v2129 = vpop.f32.mrb[0].mxu0
        %v2130 = vadd.f32 0.0, %v2129
        %v2131 = vpop.f32.mrb[0].mxu0
        %2132 = vmatprep.mubr.f32.mxu0 0.0
        %2133 = vmatmul.mubr.f32.gmra.mrb[0].mxu0 %v1918
        %v2134 = vpop.f32.mrb[0].mxu0
        %v2135 = vadd.f32 0.0, %v2134
        %v2136 = vpop.f32.mrb[0].mxu0
        %2137 = vmatprep.mubr.f32.mxu0 0.0
        %2138 = vmatmul.mubr.f32.gmra.mrb[0].mxu0 %v1921
        %v2139 = vpop.f32.mrb[0].mxu0
        %v2140 = vadd.f32 0.0, %v2139
        %v2141 = vpop.f32.mrb[0].mxu0
        %2142 = vmatprep.mubr.f32.mxu0 0.0
        %2143 = vmatmul.mubr.f32.gmra.mrb[0].mxu0 %v1924
        %v2144 = vpop.f32.mrb[0].mxu0
        %v2145 = vadd.f32 0.0, %v2144
        %v2146 = vpop.f32.mrb[0].mxu0
        %2147 = vmatprep.mubr.f32.mxu0 0.0
        %2148 = vmatmul.mubr.f32.gmra.mrb[0].mxu0 %v1927
        %v2149 = vpop.f32.mrb[0].mxu0
        %v2150 = vadd.f32 0.0, %v2149
        %v2151 = vpop.f32.mrb[0].mxu0
        %2152 = vmatprep.mubr.f32.mxu0 0.0
        %2153 = vmatmul.mubr.f32.gmra.mrb[0].mxu0 %v1930
        %v2154 = vpop.f32.mrb[0].mxu0
        %v2155 = vadd.f32 0.0, %v2154
        %v2156 = vpop.f32.mrb[0].mxu0
        %2157 = vmatprep.mubr.f32.mxu0 0.0
        %2158 = vmatmul.mubr.f32.gmra.mrb[0].mxu0 %v1933
        %v2159 = vpop.f32.mrb[0].mxu0
        %v2160 = vadd.f32 0.0, %v2159
        %v2161 = vpop.f32.mrb[0].mxu0
        %2162 = vmatprep.mubr.f32.mxu0 0.0
        %2163 = vmatmul.mubr.f32.gmra.mrb[0].mxu0 %v1936
        %v2164 = vpop.f32.mrb[0].mxu0
        %v2165 = vadd.f32 0.0, %v2164
        %v2166 = vpop.f32.mrb[0].mxu0
        %2167 = vmatprep.mubr.f32.mxu0 0.0
        %2168 = vmatmul.mubr.f32.gmra.mrb[0].mxu0 %v1939
        %v2169 = vpop.f32.mrb[0].mxu0
        %v2170 = vadd.f32 0.0, %v2169
        %v2171 = vpop.f32.mrb[0].mxu0
        %2172 = vmatprep.mubr.f32.mxu0 0.0
        %2173 = vmatmul.mubr.f32.gmra.mrb[0].mxu0 %v1942
        %v2174 = vpop.f32.mrb[0].mxu0
        %v2175 = vadd.f32 0.0, %v2174
        %v2176 = vpop.f32.mrb[0].mxu0
        %2177 = vmatprep.mubr.f32.mxu0 0.0
        %2178 = vmatmul.mubr.f32.gmra.mrb[0].mxu0 %v1945
        %v2179 = vpop.f32.mrb[0].mxu0
        %v2180 = vadd.f32 0.0, %v2179
        %v2181 = vpop.f32.mrb[0].mxu0
        %2182 = vmatprep.mubr.f32.mxu0 0.0
        %2183 = vmatmul.mubr.f32.gmra.mrb[0].mxu0 %v1948
        %v2184 = vpop.f32.mrb[0].mxu0
        %v2185 = vadd.f32 0.0, %v2184
        %v2186 = vpop.f32.mrb[0].mxu0
        %2187 = vmatprep.mubr.f32.mxu0 0.0
        %2188 = vmatmul.mubr.f32.gmra.mrb[0].mxu0 %v1951
        %v2189 = vpop.f32.mrb[0].mxu0
        %v2190 = vadd.f32 0.0, %v2189
        %v2191 = vpop.f32.mrb[0].mxu0
        %2192 = vmatprep.mubr.f32.mxu0 0.0
        %2193 = vmatmul.mubr.f32.gmra.mrb[0].mxu0 %v1954
        %v2194 = vpop.f32.mrb[0].mxu0
        %v2195 = vadd.f32 0.0, %v2194
        %v2196 = vpop.f32.mrb[0].mxu0
        %2197 = vmatprep.mubr.f32.mxu0 0.0
        %2198 = vmatmul.mubr.f32.gmra.mrb[0].mxu0 %v1957
        %v2199 = vpop.f32.mrb[0].mxu0
        %v2200 = vadd.f32 0.0, %v2199
        %v2201 = vpop.f32.mrb[0].mxu0
        %2202 = vmatprep.mubr.f32.mxu0 0.0
        %2203 = vmatmul.mubr.f32.gmra.mrb[0].mxu0 %v1960
        %v2204 = vpop.f32.mrb[0].mxu0
        %v2205 = vadd.f32 0.0, %v2204
        %v2206 = vpop.f32.mrb[0].mxu0
        %2207 = vmatprep.mubr.f32.mxu0 0.0
        %2208 = vmatmul.mubr.f32.gmra.mrb[0].mxu0 %v1963
        %v2209 = vpop.f32.mrb[0].mxu0
        %v2210 = vadd.f32 0.0, %v2209
        %v2211 = vpop.f32.mrb[0].mxu0
        %2212 = vdwg.mxu0
        %v2213 = vadd.f32 %v1783, %v2035
        %v2214 = vadd.f32 %v1784, %v2040
        %v2215 = vadd.f32 %v1785, %v2045
        %v2216 = vadd.f32 %v1786, %v2050
        %v2217 = vadd.f32 %v1787, %v2055
        %v2218 = vadd.f32 %v1788, %v2060
        %v2219 = vadd.f32 %v1789, %v2065
        %v2220 = vadd.f32 %v1790, %v2070
        %v2221 = vadd.f32 %v1791, %v2075
        %v2222 = vadd.f32 %v1792, %v2080
        %v2223 = vadd.f32 %v1793, %v2085
        %v2224 = vadd.f32 %v1794, %v2090
        %v2225 = vadd.f32 %v1795, %v2095
        %v2226 = vadd.f32 %v1796, %v2100
        %v2227 = vadd.f32 %v1797, %v2105
        %v2228 = vadd.f32 %v1798, %v2110
        %v2229 = vadd.f32 %v1799, %v2115
        %v2230 = vadd.f32 %v1800, %v2120
        %v2231 = vadd.f32 %v1801, %v2125
        %v2232 = vadd.f32 %v1802, %v2130
        %v2233 = vadd.f32 %v1803, %v2135
        %v2234 = vadd.f32 %v1804, %v2140
        %v2235 = vadd.f32 %v1805, %v2145
        %v2236 = vadd.f32 %v1806, %v2150
        %v2237 = vadd.f32 %v1807, %v2155
        %v2238 = vadd.f32 %v1808, %v2160
        %v2239 = vadd.f32 %v1809, %v2165
        %v2240 = vadd.f32 %v1810, %v2170
        %v2241 = vadd.f32 %v1811, %v2175
        %v2242 = vadd.f32 %v1812, %v2180
        %v2243 = vadd.f32 %v1813, %v2185
        %v2244 = vadd.f32 %v1814, %v2190
        %v2245 = vadd.f32 %v1815, %v2195
        %v2246 = vadd.f32 %v1816, %v2200
        %v2247 = vadd.f32 %v1817, %v2205
        %v2248 = vadd.f32 %v1818, %v2210
        %v2249 = vld [vmem:[%s168 + $0x14] sm:$0xff]
        %v2250 = vld [vmem:[%s168 + $0x1c] sm:$0xff]
        %v2251 = vld [vmem:[%s168 + $0x24] sm:$0xff]
        %v2252 = vld [vmem:[%s168 + $0x2c] sm:$0xff]
        %v2253 = vld [vmem:[%s168 + $0x34] sm:$0xff]
        %v2254 = vld [vmem:[%s168 + $0x3c] sm:$0xff]
        %v2255 = vld [vmem:[%s168 + $0x44] sm:$0xff]
        %v2256 = vld [vmem:[%s168 + $0x4c] sm:$0xff]
        %v2257 = vld [vmem:[%s168 + $0x54] sm:$0xff]
        %v2258 = vld [vmem:[%s168 + $0x5c] sm:$0xff]
        %v2259 = vld [vmem:[%s168 + $0x64] sm:$0xff]
        %v2260 = vld [vmem:[%s168 + $0x6c] sm:$0xff]
        %v2261 = vld [vmem:[%s168 + $0x74] sm:$0xff]
        %v2262 = vld [vmem:[%s168 + $0x7c] sm:$0xff]
        %v2263 = vld [vmem:[%s168 + $0x84] sm:$0xff]
        %v2264 = vld [vmem:[%s168 + $0x8c] sm:$0xff]
        %v2265 = vld [vmem:[%s168 + $0x94] sm:$0xff]
        %v2266 = vld [vmem:[%s168 + $0x9c] sm:$0xff]
        %v2267 = vld [vmem:[%s168 + $0xa4] sm:$0xff]
        %v2268 = vld [vmem:[%s168 + $0xac] sm:$0xff]
        %v2269 = vld [vmem:[%s168 + $0xb4] sm:$0xff]
        %v2270 = vld [vmem:[%s168 + $0xbc] sm:$0xff]
        %v2271 = vld [vmem:[%s168 + $0xc4] sm:$0xff]
        %v2272 = vld [vmem:[%s168 + $0xcc] sm:$0xff]
        %v2273 = vld [vmem:[%s168 + $0xd4] sm:$0xff]
        %v2274 = vld [vmem:[%s168 + $0xdc] sm:$0xff]
        %v2275 = vld [vmem:[%s168 + $0xe4] sm:$0xff]
        %v2276 = vld [vmem:[%s168 + $0xec] sm:$0xff]
        %v2277 = vld [vmem:[%s168 + $0xf4] sm:$0xff]
        %v2278 = vld [vmem:[%s168 + $0xfc] sm:$0xff]
        %v2279 = vld [vmem:[%s168 + $0x104] sm:$0xff]
        %v2280 = vld [vmem:[%s168 + $0x10c] sm:$0xff]
        %v2281 = vld [vmem:[%s168 + $0x114] sm:$0xff]
        %v2282 = vld [vmem:[%s168 + $0x11c] sm:$0xff]
        %v2283 = vld [vmem:[%s168 + $0x124] sm:$0xff]
        %v2284 = vld [vmem:[%s168 + $0x12c] sm:$0xff]
        %s2285 = scalar_lea.vmem %s1, 20
        %v2286 = vld [vmem:[%s2285] sm:$0xf]
        %v2288 = vsel %vm245, %v2249, 0
        %v2291 = vsel %vm245, %v2250, 0
        %v2294 = vsel %vm245, %v2251, 0
        %v2297 = vsel %vm245, %v2252, 0
        %v2300 = vsel %vm245, %v2253, 0
        %v2303 = vsel %vm245, %v2254, 0
        %v2306 = vsel %vm245, %v2255, 0
        %v2309 = vsel %vm245, %v2256, 0
        %v2312 = vsel %vm245, %v2257, 0
        %v2315 = vsel %vm245, %v2258, 0
        %v2318 = vsel %vm245, %v2259, 0
        %v2321 = vsel %vm245, %v2260, 0
        %v2324 = vsel %vm245, %v2261, 0
        %v2327 = vsel %vm245, %v2262, 0
        %v2330 = vsel %vm245, %v2263, 0
        %v2333 = vsel %vm245, %v2264, 0
        %v2336 = vsel %vm245, %v2265, 0
        %v2339 = vsel %vm245, %v2266, 0
        %v2342 = vsel %vm245, %v2267, 0
        %v2345 = vsel %vm245, %v2268, 0
        %v2348 = vsel %vm245, %v2269, 0
        %v2351 = vsel %vm245, %v2270, 0
        %v2354 = vsel %vm245, %v2271, 0
        %v2357 = vsel %vm245, %v2272, 0
        %v2360 = vsel %vm245, %v2273, 0
        %v2363 = vsel %vm245, %v2274, 0
        %v2366 = vsel %vm245, %v2275, 0
        %v2369 = vsel %vm245, %v2276, 0
        %v2372 = vsel %vm245, %v2277, 0
        %v2375 = vsel %vm245, %v2278, 0
        %v2378 = vsel %vm245, %v2279, 0
        %v2381 = vsel %vm245, %v2280, 0
        %v2384 = vsel %vm245, %v2281, 0
        %v2387 = vsel %vm245, %v2282, 0
        %v2390 = vsel %vm245, %v2283, 0
        %v2393 = vsel %vm245, %v2284, 0
        %v2396 = vsel %vm354, %v2286, 0
        %2398 = vmatprep.subr.mxu0 0.0
        %2399 = vmatpush1.msra.mxu0 %v2396
        %2400 = vmatprep.subr.mxu0 0.0
        %2401 = vmatpush1.msra.mxu0 0.0
        %2402 = vmatprep.subr.mxu0 0.0
        %2403 = vmatpush1.msra.mxu0 0.0
        %2404 = vmatprep.subr.mxu0 0.0
        %2405 = vmatpush1.msra.mxu0 0.0
        %2406 = vmatprep.subr.mxu0 0.0
        %2407 = vmatpush1.msra.mxu0 0.0
        %2408 = vmatprep.subr.mxu0 0.0
        %2409 = vmatpush1.msra.mxu0 0.0
        %2410 = vmatprep.subr.mxu0 0.0
        %2411 = vmatpush1.msra.mxu0 0.0
        %2412 = vmatprep.subr.mxu0 0.0
        %2413 = vmatpush1.msra.mxu0 0.0
        %2414 = vmatprep.subr.mxu0 0.0
        %2415 = vmatpush1.msra.mxu0 0.0
        %2416 = vmatprep.subr.mxu0 0.0
        %2417 = vmatpush1.msra.mxu0 0.0
        %2418 = vmatprep.subr.mxu0 0.0
        %2419 = vmatpush1.msra.mxu0 0.0
        %2420 = vmatprep.subr.mxu0 0.0
        %2421 = vmatpush1.msra.mxu0 0.0
        %2422 = vmatprep.subr.mxu0 0.0
        %2423 = vmatpush1.msra.mxu0 0.0
        %2424 = vmatprep.subr.mxu0 0.0
        %2425 = vmatpush1.msra.mxu0 0.0
        %2426 = vmatprep.subr.mxu0 0.0
        %2427 = vmatpush1.msra.mxu0 0.0
        %2428 = vmatprep.subr.mxu0 0.0
        %2429 = vmatpush1.msra.mxu0 0.0
        %2430 = vmatprep.subr.mxu0 0.0
        %2431 = vmatpush1.msra.mxu0 0.0
        %2432 = vmatprep.subr.mxu0 0.0
        %2433 = vmatpush1.msra.mxu0 0.0
        %2434 = vmatprep.subr.mxu0 0.0
        %2435 = vmatpush1.msra.mxu0 0.0
        %2436 = vmatprep.subr.mxu0 0.0
        %2437 = vmatpush1.msra.mxu0 0.0
        %2438 = vmatprep.subr.mxu0 0.0
        %2439 = vmatpush1.msra.mxu0 0.0
        %2440 = vmatprep.subr.mxu0 0.0
        %2441 = vmatpush1.msra.mxu0 0.0
        %2442 = vmatprep.subr.mxu0 0.0
        %2443 = vmatpush1.msra.mxu0 0.0
        %2444 = vmatprep.subr.mxu0 0.0
        %2445 = vmatpush1.msra.mxu0 0.0
        %2446 = vmatprep.subr.mxu0 0.0
        %2447 = vmatpush1.msra.mxu0 0.0
        %2448 = vmatprep.subr.mxu0 0.0
        %2449 = vmatpush1.msra.mxu0 0.0
        %2450 = vmatprep.subr.mxu0 0.0
        %2451 = vmatpush1.msra.mxu0 0.0
        %2452 = vmatprep.subr.mxu0 0.0
        %2453 = vmatpush1.msra.mxu0 0.0
        %2454 = vmatprep.subr.mxu0 0.0
        %2455 = vmatpush1.msra.mxu0 0.0
        %2456 = vmatprep.subr.mxu0 0.0
        %2457 = vmatpush1.msra.mxu0 0.0
        %2458 = vmatprep.subr.mxu0 0.0
        %2459 = vmatpush1.msra.mxu0 0.0
        %2460 = vmatprep.subr.mxu0 0.0
        %2461 = vmatpush1.msra.mxu0 0.0
        %2462 = vmatprep.mubr.f32.mxu0 0.0
        %2463 = vmatmul.mubr.f32.gmra.mrb[0].mxu0 %v2288
        %v2464 = vpop.f32.mrb[0].mxu0
        %v2465 = vadd.f32 0.0, %v2464
        %v2466 = vpop.f32.mrb[0].mxu0
        %2467 = vmatprep.mubr.f32.mxu0 0.0
        %2468 = vmatmul.mubr.f32.gmra.mrb[0].mxu0 %v2291
        %v2469 = vpop.f32.mrb[0].mxu0
        %v2470 = vadd.f32 0.0, %v2469
        %v2471 = vpop.f32.mrb[0].mxu0
        %2472 = vmatprep.mubr.f32.mxu0 0.0
        %2473 = vmatmul.mubr.f32.gmra.mrb[0].mxu0 %v2294
        %v2474 = vpop.f32.mrb[0].mxu0
        %v2475 = vadd.f32 0.0, %v2474
        %v2476 = vpop.f32.mrb[0].mxu0
        %2477 = vmatprep.mubr.f32.mxu0 0.0
        %2478 = vmatmul.mubr.f32.gmra.mrb[0].mxu0 %v2297
        %v2479 = vpop.f32.mrb[0].mxu0
        %v2480 = vadd.f32 0.0, %v2479
        %v2481 = vpop.f32.mrb[0].mxu0
        %2482 = vmatprep.mubr.f32.mxu0 0.0
        %2483 = vmatmul.mubr.f32.gmra.mrb[0].mxu0 %v2300
        %v2484 = vpop.f32.mrb[0].mxu0
        %v2485 = vadd.f32 0.0, %v2484
        %v2486 = vpop.f32.mrb[0].mxu0
        %2487 = vmatprep.mubr.f32.mxu0 0.0
        %2488 = vmatmul.mubr.f32.gmra.mrb[0].mxu0 %v2303
        %v2489 = vpop.f32.mrb[0].mxu0
        %v2490 = vadd.f32 0.0, %v2489
        %v2491 = vpop.f32.mrb[0].mxu0
        %2492 = vmatprep.mubr.f32.mxu0 0.0
        %2493 = vmatmul.mubr.f32.gmra.mrb[0].mxu0 %v2306
        %v2494 = vpop.f32.mrb[0].mxu0
        %v2495 = vadd.f32 0.0, %v2494
        %v2496 = vpop.f32.mrb[0].mxu0
        %2497 = vmatprep.mubr.f32.mxu0 0.0
        %2498 = vmatmul.mubr.f32.gmra.mrb[0].mxu0 %v2309
        %v2499 = vpop.f32.mrb[0].mxu0
        %v2500 = vadd.f32 0.0, %v2499
        %v2501 = vpop.f32.mrb[0].mxu0
        %2502 = vmatprep.mubr.f32.mxu0 0.0
        %2503 = vmatmul.mubr.f32.gmra.mrb[0].mxu0 %v2312
        %v2504 = vpop.f32.mrb[0].mxu0
        %v2505 = vadd.f32 0.0, %v2504
        %v2506 = vpop.f32.mrb[0].mxu0
        %2507 = vmatprep.mubr.f32.mxu0 0.0
        %2508 = vmatmul.mubr.f32.gmra.mrb[0].mxu0 %v2315
        %v2509 = vpop.f32.mrb[0].mxu0
        %v2510 = vadd.f32 0.0, %v2509
        %v2511 = vpop.f32.mrb[0].mxu0
        %2512 = vmatprep.mubr.f32.mxu0 0.0
        %2513 = vmatmul.mubr.f32.gmra.mrb[0].mxu0 %v2318
        %v2514 = vpop.f32.mrb[0].mxu0
        %v2515 = vadd.f32 0.0, %v2514
        %v2516 = vpop.f32.mrb[0].mxu0
        %2517 = vmatprep.mubr.f32.mxu0 0.0
        %2518 = vmatmul.mubr.f32.gmra.mrb[0].mxu0 %v2321
        %v2519 = vpop.f32.mrb[0].mxu0
        %v2520 = vadd.f32 0.0, %v2519
        %v2521 = vpop.f32.mrb[0].mxu0
        %2522 = vmatprep.mubr.f32.mxu0 0.0
        %2523 = vmatmul.mubr.f32.gmra.mrb[0].mxu0 %v2324
        %v2524 = vpop.f32.mrb[0].mxu0
        %v2525 = vadd.f32 0.0, %v2524
        %v2526 = vpop.f32.mrb[0].mxu0
        %2527 = vmatprep.mubr.f32.mxu0 0.0
        %2528 = vmatmul.mubr.f32.gmra.mrb[0].mxu0 %v2327
        %v2529 = vpop.f32.mrb[0].mxu0
        %v2530 = vadd.f32 0.0, %v2529
        %v2531 = vpop.f32.mrb[0].mxu0
        %2532 = vmatprep.mubr.f32.mxu0 0.0
        %2533 = vmatmul.mubr.f32.gmra.mrb[0].mxu0 %v2330
        %v2534 = vpop.f32.mrb[0].mxu0
        %v2535 = vadd.f32 0.0, %v2534
        %v2536 = vpop.f32.mrb[0].mxu0
        %2537 = vmatprep.mubr.f32.mxu0 0.0
        %2538 = vmatmul.mubr.f32.gmra.mrb[0].mxu0 %v2333
        %v2539 = vpop.f32.mrb[0].mxu0
        %v2540 = vadd.f32 0.0, %v2539
        %v2541 = vpop.f32.mrb[0].mxu0
        %2542 = vmatprep.mubr.f32.mxu0 0.0
        %2543 = vmatmul.mubr.f32.gmra.mrb[0].mxu0 %v2336
        %v2544 = vpop.f32.mrb[0].mxu0
        %v2545 = vadd.f32 0.0, %v2544
        %v2546 = vpop.f32.mrb[0].mxu0
        %2547 = vmatprep.mubr.f32.mxu0 0.0
        %2548 = vmatmul.mubr.f32.gmra.mrb[0].mxu0 %v2339
        %v2549 = vpop.f32.mrb[0].mxu0
        %v2550 = vadd.f32 0.0, %v2549
        %v2551 = vpop.f32.mrb[0].mxu0
        %2552 = vmatprep.mubr.f32.mxu0 0.0
        %2553 = vmatmul.mubr.f32.gmra.mrb[0].mxu0 %v2342
        %v2554 = vpop.f32.mrb[0].mxu0
        %v2555 = vadd.f32 0.0, %v2554
        %v2556 = vpop.f32.mrb[0].mxu0
        %2557 = vmatprep.mubr.f32.mxu0 0.0
        %2558 = vmatmul.mubr.f32.gmra.mrb[0].mxu0 %v2345
        %v2559 = vpop.f32.mrb[0].mxu0
        %v2560 = vadd.f32 0.0, %v2559
        %v2561 = vpop.f32.mrb[0].mxu0
        %2562 = vmatprep.mubr.f32.mxu0 0.0
        %2563 = vmatmul.mubr.f32.gmra.mrb[0].mxu0 %v2348
        %v2564 = vpop.f32.mrb[0].mxu0
        %v2565 = vadd.f32 0.0, %v2564
        %v2566 = vpop.f32.mrb[0].mxu0
        %2567 = vmatprep.mubr.f32.mxu0 0.0
        %2568 = vmatmul.mubr.f32.gmra.mrb[0].mxu0 %v2351
        %v2569 = vpop.f32.mrb[0].mxu0
        %v2570 = vadd.f32 0.0, %v2569
        %v2571 = vpop.f32.mrb[0].mxu0
        %2572 = vmatprep.mubr.f32.mxu0 0.0
        %2573 = vmatmul.mubr.f32.gmra.mrb[0].mxu0 %v2354
        %v2574 = vpop.f32.mrb[0].mxu0
        %v2575 = vadd.f32 0.0, %v2574
        %v2576 = vpop.f32.mrb[0].mxu0
        %2577 = vmatprep.mubr.f32.mxu0 0.0
        %2578 = vmatmul.mubr.f32.gmra.mrb[0].mxu0 %v2357
        %v2579 = vpop.f32.mrb[0].mxu0
        %v2580 = vadd.f32 0.0, %v2579
        %v2581 = vpop.f32.mrb[0].mxu0
        %2582 = vmatprep.mubr.f32.mxu0 0.0
        %2583 = vmatmul.mubr.f32.gmra.mrb[0].mxu0 %v2360
        %v2584 = vpop.f32.mrb[0].mxu0
        %v2585 = vadd.f32 0.0, %v2584
        %v2586 = vpop.f32.mrb[0].mxu0
        %2587 = vmatprep.mubr.f32.mxu0 0.0
        %2588 = vmatmul.mubr.f32.gmra.mrb[0].mxu0 %v2363
        %v2589 = vpop.f32.mrb[0].mxu0
        %v2590 = vadd.f32 0.0, %v2589
        %v2591 = vpop.f32.mrb[0].mxu0
        %2592 = vmatprep.mubr.f32.mxu0 0.0
        %2593 = vmatmul.mubr.f32.gmra.mrb[0].mxu0 %v2366
        %v2594 = vpop.f32.mrb[0].mxu0
        %v2595 = vadd.f32 0.0, %v2594
        %v2596 = vpop.f32.mrb[0].mxu0
        %2597 = vmatprep.mubr.f32.mxu0 0.0
        %2598 = vmatmul.mubr.f32.gmra.mrb[0].mxu0 %v2369
        %v2599 = vpop.f32.mrb[0].mxu0
        %v2600 = vadd.f32 0.0, %v2599
        %v2601 = vpop.f32.mrb[0].mxu0
        %2602 = vmatprep.mubr.f32.mxu0 0.0
        %2603 = vmatmul.mubr.f32.gmra.mrb[0].mxu0 %v2372
        %v2604 = vpop.f32.mrb[0].mxu0
        %v2605 = vadd.f32 0.0, %v2604
        %v2606 = vpop.f32.mrb[0].mxu0
        %2607 = vmatprep.mubr.f32.mxu0 0.0
        %2608 = vmatmul.mubr.f32.gmra.mrb[0].mxu0 %v2375
        %v2609 = vpop.f32.mrb[0].mxu0
        %v2610 = vadd.f32 0.0, %v2609
        %v2611 = vpop.f32.mrb[0].mxu0
        %2612 = vmatprep.mubr.f32.mxu0 0.0
        %2613 = vmatmul.mubr.f32.gmra.mrb[0].mxu0 %v2378
        %v2614 = vpop.f32.mrb[0].mxu0
        %v2615 = vadd.f32 0.0, %v2614
        %v2616 = vpop.f32.mrb[0].mxu0
        %2617 = vmatprep.mubr.f32.mxu0 0.0
        %2618 = vmatmul.mubr.f32.gmra.mrb[0].mxu0 %v2381
        %v2619 = vpop.f32.mrb[0].mxu0
        %v2620 = vadd.f32 0.0, %v2619
        %v2621 = vpop.f32.mrb[0].mxu0
        %2622 = vmatprep.mubr.f32.mxu0 0.0
        %2623 = vmatmul.mubr.f32.gmra.mrb[0].mxu0 %v2384
        %v2624 = vpop.f32.mrb[0].mxu0
        %v2625 = vadd.f32 0.0, %v2624
        %v2626 = vpop.f32.mrb[0].mxu0
        %2627 = vmatprep.mubr.f32.mxu0 0.0
        %2628 = vmatmul.mubr.f32.gmra.mrb[0].mxu0 %v2387
        %v2629 = vpop.f32.mrb[0].mxu0
        %v2630 = vadd.f32 0.0, %v2629
        %v2631 = vpop.f32.mrb[0].mxu0
        %2632 = vmatprep.mubr.f32.mxu0 0.0
        %2633 = vmatmul.mubr.f32.gmra.mrb[0].mxu0 %v2390
        %v2634 = vpop.f32.mrb[0].mxu0
        %v2635 = vadd.f32 0.0, %v2634
        %v2636 = vpop.f32.mrb[0].mxu0
        %2637 = vmatprep.mubr.f32.mxu0 0.0
        %2638 = vmatmul.mubr.f32.gmra.mrb[0].mxu0 %v2393
        %v2639 = vpop.f32.mrb[0].mxu0
        %v2640 = vadd.f32 0.0, %v2639
        %v2641 = vpop.f32.mrb[0].mxu0
        %2642 = vdwg.mxu0
        %v2643 = vadd.f32 %v2213, %v2465
        %v2644 = vadd.f32 %v2214, %v2470
        %v2645 = vadd.f32 %v2215, %v2475
        %v2646 = vadd.f32 %v2216, %v2480
        %v2647 = vadd.f32 %v2217, %v2485
        %v2648 = vadd.f32 %v2218, %v2490
        %v2649 = vadd.f32 %v2219, %v2495
        %v2650 = vadd.f32 %v2220, %v2500
        %v2651 = vadd.f32 %v2221, %v2505
        %v2652 = vadd.f32 %v2222, %v2510
        %v2653 = vadd.f32 %v2223, %v2515
        %v2654 = vadd.f32 %v2224, %v2520
        %v2655 = vadd.f32 %v2225, %v2525
        %v2656 = vadd.f32 %v2226, %v2530
        %v2657 = vadd.f32 %v2227, %v2535
        %v2658 = vadd.f32 %v2228, %v2540
        %v2659 = vadd.f32 %v2229, %v2545
        %v2660 = vadd.f32 %v2230, %v2550
        %v2661 = vadd.f32 %v2231, %v2555
        %v2662 = vadd.f32 %v2232, %v2560
        %v2663 = vadd.f32 %v2233, %v2565
        %v2664 = vadd.f32 %v2234, %v2570
        %v2665 = vadd.f32 %v2235, %v2575
        %v2666 = vadd.f32 %v2236, %v2580
        %v2667 = vadd.f32 %v2237, %v2585
        %v2668 = vadd.f32 %v2238, %v2590
        %v2669 = vadd.f32 %v2239, %v2595
        %v2670 = vadd.f32 %v2240, %v2600
        %v2671 = vadd.f32 %v2241, %v2605
        %v2672 = vadd.f32 %v2242, %v2610
        %v2673 = vadd.f32 %v2243, %v2615
        %v2674 = vadd.f32 %v2244, %v2620
        %v2675 = vadd.f32 %v2245, %v2625
        %v2676 = vadd.f32 %v2246, %v2630
        %v2677 = vadd.f32 %v2247, %v2635
        %v2678 = vadd.f32 %v2248, %v2640
        %v2679 = vld [vmem:[%s168 + $0x24] sm:$0xff]
        %v2680 = vld [vmem:[%s168 + $0x2c] sm:$0xff]
        %v2681 = vld [vmem:[%s168 + $0x34] sm:$0xff]
        %v2682 = vld [vmem:[%s168 + $0x3c] sm:$0xff]
        %v2683 = vld [vmem:[%s168 + $0x44] sm:$0xff]
        %v2684 = vld [vmem:[%s168 + $0x4c] sm:$0xff]
        %v2685 = vld [vmem:[%s168 + $0x54] sm:$0xff]
        %v2686 = vld [vmem:[%s168 + $0x5c] sm:$0xff]
        %v2687 = vld [vmem:[%s168 + $0x64] sm:$0xff]
        %v2688 = vld [vmem:[%s168 + $0x6c] sm:$0xff]
        %v2689 = vld [vmem:[%s168 + $0x74] sm:$0xff]
        %v2690 = vld [vmem:[%s168 + $0x7c] sm:$0xff]
        %v2691 = vld [vmem:[%s168 + $0x84] sm:$0xff]
        %v2692 = vld [vmem:[%s168 + $0x8c] sm:$0xff]
        %v2693 = vld [vmem:[%s168 + $0x94] sm:$0xff]
        %v2694 = vld [vmem:[%s168 + $0x9c] sm:$0xff]
        %v2695 = vld [vmem:[%s168 + $0xa4] sm:$0xff]
        %v2696 = vld [vmem:[%s168 + $0xac] sm:$0xff]
        %v2697 = vld [vmem:[%s168 + $0xb4] sm:$0xff]
        %v2698 = vld [vmem:[%s168 + $0xbc] sm:$0xff]
        %v2699 = vld [vmem:[%s168 + $0xc4] sm:$0xff]
        %v2700 = vld [vmem:[%s168 + $0xcc] sm:$0xff]
        %v2701 = vld [vmem:[%s168 + $0xd4] sm:$0xff]
        %v2702 = vld [vmem:[%s168 + $0xdc] sm:$0xff]
        %v2703 = vld [vmem:[%s168 + $0xe4] sm:$0xff]
        %v2704 = vld [vmem:[%s168 + $0xec] sm:$0xff]
        %v2705 = vld [vmem:[%s168 + $0xf4] sm:$0xff]
        %v2706 = vld [vmem:[%s168 + $0xfc] sm:$0xff]
        %v2707 = vld [vmem:[%s168 + $0x104] sm:$0xff]
        %v2708 = vld [vmem:[%s168 + $0x10c] sm:$0xff]
        %v2709 = vld [vmem:[%s168 + $0x114] sm:$0xff]
        %v2710 = vld [vmem:[%s168 + $0x11c] sm:$0xff]
        %v2711 = vld [vmem:[%s168 + $0x124] sm:$0xff]
        %v2712 = vld [vmem:[%s168 + $0x12c] sm:$0xff]
        %v2713 = vld [vmem:[%s168 + $0x134] sm:$0xff]
        %v2714 = vld [vmem:[%s168 + $0x13c] sm:$0xff]
        %s2715 = scalar_lea.vmem %s1, 24
        %v2716 = vld [vmem:[%s2715] sm:$0xf]
        %v2718 = vsel %vm245, %v2679, 0
        %v2721 = vsel %vm245, %v2680, 0
        %v2724 = vsel %vm245, %v2681, 0
        %v2727 = vsel %vm245, %v2682, 0
        %v2730 = vsel %vm245, %v2683, 0
        %v2733 = vsel %vm245, %v2684, 0
        %v2736 = vsel %vm245, %v2685, 0
        %v2739 = vsel %vm245, %v2686, 0
        %v2742 = vsel %vm245, %v2687, 0
        %v2745 = vsel %vm245, %v2688, 0
        %v2748 = vsel %vm245, %v2689, 0
        %v2751 = vsel %vm245, %v2690, 0
        %v2754 = vsel %vm245, %v2691, 0
        %v2757 = vsel %vm245, %v2692, 0
        %v2760 = vsel %vm245, %v2693, 0
        %v2763 = vsel %vm245, %v2694, 0
        %v2766 = vsel %vm245, %v2695, 0
        %v2769 = vsel %vm245, %v2696, 0
        %v2772 = vsel %vm245, %v2697, 0
        %v2775 = vsel %vm245, %v2698, 0
        %v2778 = vsel %vm245, %v2699, 0
        %v2781 = vsel %vm245, %v2700, 0
        %v2784 = vsel %vm245, %v2701, 0
        %v2787 = vsel %vm245, %v2702, 0
        %v2790 = vsel %vm245, %v2703, 0
        %v2793 = vsel %vm245, %v2704, 0
        %v2796 = vsel %vm245, %v2705, 0
        %v2799 = vsel %vm245, %v2706, 0
        %v2802 = vsel %vm245, %v2707, 0
        %v2805 = vsel %vm245, %v2708, 0
        %v2808 = vsel %vm245, %v2709, 0
        %v2811 = vsel %vm245, %v2710, 0
        %v2814 = vsel %vm245, %v2711, 0
        %v2817 = vsel %vm245, %v2712, 0
        %v2820 = vsel %vm245, %v2713, 0
        %v2823 = vsel %vm245, %v2714, 0
        %v2826 = vsel %vm354, %v2716, 0
        %2828 = vmatprep.subr.mxu0 0.0
        %2829 = vmatpush1.msra.mxu0 %v2826
        %2830 = vmatprep.subr.mxu0 0.0
        %2831 = vmatpush1.msra.mxu0 0.0
        %2832 = vmatprep.subr.mxu0 0.0
        %2833 = vmatpush1.msra.mxu0 0.0
        %2834 = vmatprep.subr.mxu0 0.0
        %2835 = vmatpush1.msra.mxu0 0.0
        %2836 = vmatprep.subr.mxu0 0.0
        %2837 = vmatpush1.msra.mxu0 0.0
        %2838 = vmatprep.subr.mxu0 0.0
        %2839 = vmatpush1.msra.mxu0 0.0
        %2840 = vmatprep.subr.mxu0 0.0
        %2841 = vmatpush1.msra.mxu0 0.0
        %2842 = vmatprep.subr.mxu0 0.0
        %2843 = vmatpush1.msra.mxu0 0.0
        %2844 = vmatprep.subr.mxu0 0.0
        %2845 = vmatpush1.msra.mxu0 0.0
        %2846 = vmatprep.subr.mxu0 0.0
        %2847 = vmatpush1.msra.mxu0 0.0
        %2848 = vmatprep.subr.mxu0 0.0
        %2849 = vmatpush1.msra.mxu0 0.0
        %2850 = vmatprep.subr.mxu0 0.0
        %2851 = vmatpush1.msra.mxu0 0.0
        %2852 = vmatprep.subr.mxu0 0.0
        %2853 = vmatpush1.msra.mxu0 0.0
        %2854 = vmatprep.subr.mxu0 0.0
        %2855 = vmatpush1.msra.mxu0 0.0
        %2856 = vmatprep.subr.mxu0 0.0
        %2857 = vmatpush1.msra.mxu0 0.0
        %2858 = vmatprep.subr.mxu0 0.0
        %2859 = vmatpush1.msra.mxu0 0.0
        %2860 = vmatprep.subr.mxu0 0.0
        %2861 = vmatpush1.msra.mxu0 0.0
        %2862 = vmatprep.subr.mxu0 0.0
        %2863 = vmatpush1.msra.mxu0 0.0
        %2864 = vmatprep.subr.mxu0 0.0
        %2865 = vmatpush1.msra.mxu0 0.0
        %2866 = vmatprep.subr.mxu0 0.0
        %2867 = vmatpush1.msra.mxu0 0.0
        %2868 = vmatprep.subr.mxu0 0.0
        %2869 = vmatpush1.msra.mxu0 0.0
        %2870 = vmatprep.subr.mxu0 0.0
        %2871 = vmatpush1.msra.mxu0 0.0
        %2872 = vmatprep.subr.mxu0 0.0
        %2873 = vmatpush1.msra.mxu0 0.0
        %2874 = vmatprep.subr.mxu0 0.0
        %2875 = vmatpush1.msra.mxu0 0.0
        %2876 = vmatprep.subr.mxu0 0.0
        %2877 = vmatpush1.msra.mxu0 0.0
        %2878 = vmatprep.subr.mxu0 0.0
        %2879 = vmatpush1.msra.mxu0 0.0
        %2880 = vmatprep.subr.mxu0 0.0
        %2881 = vmatpush1.msra.mxu0 0.0
        %2882 = vmatprep.subr.mxu0 0.0
        %2883 = vmatpush1.msra.mxu0 0.0
        %2884 = vmatprep.subr.mxu0 0.0
        %2885 = vmatpush1.msra.mxu0 0.0
        %2886 = vmatprep.subr.mxu0 0.0
        %2887 = vmatpush1.msra.mxu0 0.0
        %2888 = vmatprep.subr.mxu0 0.0
        %2889 = vmatpush1.msra.mxu0 0.0
        %2890 = vmatprep.subr.mxu0 0.0
        %2891 = vmatpush1.msra.mxu0 0.0
        %2892 = vmatprep.mubr.f32.mxu0 0.0
        %2893 = vmatmul.mubr.f32.gmra.mrb[0].mxu0 %v2718
        %v2894 = vpop.f32.mrb[0].mxu0
        %v2895 = vadd.f32 0.0, %v2894
        %v2896 = vpop.f32.mrb[0].mxu0
        %2897 = vmatprep.mubr.f32.mxu0 0.0
        %2898 = vmatmul.mubr.f32.gmra.mrb[0].mxu0 %v2721
        %v2899 = vpop.f32.mrb[0].mxu0
        %v2900 = vadd.f32 0.0, %v2899
        %v2901 = vpop.f32.mrb[0].mxu0
        %2902 = vmatprep.mubr.f32.mxu0 0.0
        %2903 = vmatmul.mubr.f32.gmra.mrb[0].mxu0 %v2724
        %v2904 = vpop.f32.mrb[0].mxu0
        %v2905 = vadd.f32 0.0, %v2904
        %v2906 = vpop.f32.mrb[0].mxu0
        %2907 = vmatprep.mubr.f32.mxu0 0.0
        %2908 = vmatmul.mubr.f32.gmra.mrb[0].mxu0 %v2727
        %v2909 = vpop.f32.mrb[0].mxu0
        %v2910 = vadd.f32 0.0, %v2909
        %v2911 = vpop.f32.mrb[0].mxu0
        %2912 = vmatprep.mubr.f32.mxu0 0.0
        %2913 = vmatmul.mubr.f32.gmra.mrb[0].mxu0 %v2730
        %v2914 = vpop.f32.mrb[0].mxu0
        %v2915 = vadd.f32 0.0, %v2914
        %v2916 = vpop.f32.mrb[0].mxu0
        %2917 = vmatprep.mubr.f32.mxu0 0.0
        %2918 = vmatmul.mubr.f32.gmra.mrb[0].mxu0 %v2733
        %v2919 = vpop.f32.mrb[0].mxu0
        %v2920 = vadd.f32 0.0, %v2919
        %v2921 = vpop.f32.mrb[0].mxu0
        %2922 = vmatprep.mubr.f32.mxu0 0.0
        %2923 = vmatmul.mubr.f32.gmra.mrb[0].mxu0 %v2736
        %v2924 = vpop.f32.mrb[0].mxu0
        %v2925 = vadd.f32 0.0, %v2924
        %v2926 = vpop.f32.mrb[0].mxu0
        %2927 = vmatprep.mubr.f32.mxu0 0.0
        %2928 = vmatmul.mubr.f32.gmra.mrb[0].mxu0 %v2739
        %v2929 = vpop.f32.mrb[0].mxu0
        %v2930 = vadd.f32 0.0, %v2929
        %v2931 = vpop.f32.mrb[0].mxu0
        %2932 = vmatprep.mubr.f32.mxu0 0.0
        %2933 = vmatmul.mubr.f32.gmra.mrb[0].mxu0 %v2742
        %v2934 = vpop.f32.mrb[0].mxu0
        %v2935 = vadd.f32 0.0, %v2934
        %v2936 = vpop.f32.mrb[0].mxu0
        %2937 = vmatprep.mubr.f32.mxu0 0.0
        %2938 = vmatmul.mubr.f32.gmra.mrb[0].mxu0 %v2745
        %v2939 = vpop.f32.mrb[0].mxu0
        %v2940 = vadd.f32 0.0, %v2939
        %v2941 = vpop.f32.mrb[0].mxu0
        %2942 = vmatprep.mubr.f32.mxu0 0.0
        %2943 = vmatmul.mubr.f32.gmra.mrb[0].mxu0 %v2748
        %v2944 = vpop.f32.mrb[0].mxu0
        %v2945 = vadd.f32 0.0, %v2944
        %v2946 = vpop.f32.mrb[0].mxu0
        %2947 = vmatprep.mubr.f32.mxu0 0.0
        %2948 = vmatmul.mubr.f32.gmra.mrb[0].mxu0 %v2751
        %v2949 = vpop.f32.mrb[0].mxu0
        %v2950 = vadd.f32 0.0, %v2949
        %v2951 = vpop.f32.mrb[0].mxu0
        %2952 = vmatprep.mubr.f32.mxu0 0.0
        %2953 = vmatmul.mubr.f32.gmra.mrb[0].mxu0 %v2754
        %v2954 = vpop.f32.mrb[0].mxu0
        %v2955 = vadd.f32 0.0, %v2954
        %v2956 = vpop.f32.mrb[0].mxu0
        %2957 = vmatprep.mubr.f32.mxu0 0.0
        %2958 = vmatmul.mubr.f32.gmra.mrb[0].mxu0 %v2757
        %v2959 = vpop.f32.mrb[0].mxu0
        %v2960 = vadd.f32 0.0, %v2959
        %v2961 = vpop.f32.mrb[0].mxu0
        %2962 = vmatprep.mubr.f32.mxu0 0.0
        %2963 = vmatmul.mubr.f32.gmra.mrb[0].mxu0 %v2760
        %v2964 = vpop.f32.mrb[0].mxu0
        %v2965 = vadd.f32 0.0, %v2964
        %v2966 = vpop.f32.mrb[0].mxu0
        %2967 = vmatprep.mubr.f32.mxu0 0.0
        %2968 = vmatmul.mubr.f32.gmra.mrb[0].mxu0 %v2763
        %v2969 = vpop.f32.mrb[0].mxu0
        %v2970 = vadd.f32 0.0, %v2969
        %v2971 = vpop.f32.mrb[0].mxu0
        %2972 = vmatprep.mubr.f32.mxu0 0.0
        %2973 = vmatmul.mubr.f32.gmra.mrb[0].mxu0 %v2766
        %v2974 = vpop.f32.mrb[0].mxu0
        %v2975 = vadd.f32 0.0, %v2974
        %v2976 = vpop.f32.mrb[0].mxu0
        %2977 = vmatprep.mubr.f32.mxu0 0.0
        %2978 = vmatmul.mubr.f32.gmra.mrb[0].mxu0 %v2769
        %v2979 = vpop.f32.mrb[0].mxu0
        %v2980 = vadd.f32 0.0, %v2979
        %v2981 = vpop.f32.mrb[0].mxu0
        %2982 = vmatprep.mubr.f32.mxu0 0.0
        %2983 = vmatmul.mubr.f32.gmra.mrb[0].mxu0 %v2772
        %v2984 = vpop.f32.mrb[0].mxu0
        %v2985 = vadd.f32 0.0, %v2984
        %v2986 = vpop.f32.mrb[0].mxu0
        %2987 = vmatprep.mubr.f32.mxu0 0.0
        %2988 = vmatmul.mubr.f32.gmra.mrb[0].mxu0 %v2775
        %v2989 = vpop.f32.mrb[0].mxu0
        %v2990 = vadd.f32 0.0, %v2989
        %v2991 = vpop.f32.mrb[0].mxu0
        %2992 = vmatprep.mubr.f32.mxu0 0.0
        %2993 = vmatmul.mubr.f32.gmra.mrb[0].mxu0 %v2778
        %v2994 = vpop.f32.mrb[0].mxu0
        %v2995 = vadd.f32 0.0, %v2994
        %v2996 = vpop.f32.mrb[0].mxu0
        %2997 = vmatprep.mubr.f32.mxu0 0.0
        %2998 = vmatmul.mubr.f32.gmra.mrb[0].mxu0 %v2781
        %v2999 = vpop.f32.mrb[0].mxu0
        %v3000 = vadd.f32 0.0, %v2999
        %v3001 = vpop.f32.mrb[0].mxu0
        %3002 = vmatprep.mubr.f32.mxu0 0.0
        %3003 = vmatmul.mubr.f32.gmra.mrb[0].mxu0 %v2784
        %v3004 = vpop.f32.mrb[0].mxu0
        %v3005 = vadd.f32 0.0, %v3004
        %v3006 = vpop.f32.mrb[0].mxu0
        %3007 = vmatprep.mubr.f32.mxu0 0.0
        %3008 = vmatmul.mubr.f32.gmra.mrb[0].mxu0 %v2787
        %v3009 = vpop.f32.mrb[0].mxu0
        %v3010 = vadd.f32 0.0, %v3009
        %v3011 = vpop.f32.mrb[0].mxu0
        %3012 = vmatprep.mubr.f32.mxu0 0.0
        %3013 = vmatmul.mubr.f32.gmra.mrb[0].mxu0 %v2790
        %v3014 = vpop.f32.mrb[0].mxu0
        %v3015 = vadd.f32 0.0, %v3014
        %v3016 = vpop.f32.mrb[0].mxu0
        %3017 = vmatprep.mubr.f32.mxu0 0.0
        %3018 = vmatmul.mubr.f32.gmra.mrb[0].mxu0 %v2793
        %v3019 = vpop.f32.mrb[0].mxu0
        %v3020 = vadd.f32 0.0, %v3019
        %v3021 = vpop.f32.mrb[0].mxu0
        %3022 = vmatprep.mubr.f32.mxu0 0.0
        %3023 = vmatmul.mubr.f32.gmra.mrb[0].mxu0 %v2796
        %v3024 = vpop.f32.mrb[0].mxu0
        %v3025 = vadd.f32 0.0, %v3024
        %v3026 = vpop.f32.mrb[0].mxu0
        %3027 = vmatprep.mubr.f32.mxu0 0.0
        %3028 = vmatmul.mubr.f32.gmra.mrb[0].mxu0 %v2799
        %v3029 = vpop.f32.mrb[0].mxu0
        %v3030 = vadd.f32 0.0, %v3029
        %v3031 = vpop.f32.mrb[0].mxu0
        %3032 = vmatprep.mubr.f32.mxu0 0.0
        %3033 = vmatmul.mubr.f32.gmra.mrb[0].mxu0 %v2802
        %v3034 = vpop.f32.mrb[0].mxu0
        %v3035 = vadd.f32 0.0, %v3034
        %v3036 = vpop.f32.mrb[0].mxu0
        %3037 = vmatprep.mubr.f32.mxu0 0.0
        %3038 = vmatmul.mubr.f32.gmra.mrb[0].mxu0 %v2805
        %v3039 = vpop.f32.mrb[0].mxu0
        %v3040 = vadd.f32 0.0, %v3039
        %v3041 = vpop.f32.mrb[0].mxu0
        %3042 = vmatprep.mubr.f32.mxu0 0.0
        %3043 = vmatmul.mubr.f32.gmra.mrb[0].mxu0 %v2808
        %v3044 = vpop.f32.mrb[0].mxu0
        %v3045 = vadd.f32 0.0, %v3044
        %v3046 = vpop.f32.mrb[0].mxu0
        %3047 = vmatprep.mubr.f32.mxu0 0.0
        %3048 = vmatmul.mubr.f32.gmra.mrb[0].mxu0 %v2811
        %v3049 = vpop.f32.mrb[0].mxu0
        %v3050 = vadd.f32 0.0, %v3049
        %v3051 = vpop.f32.mrb[0].mxu0
        %3052 = vmatprep.mubr.f32.mxu0 0.0
        %3053 = vmatmul.mubr.f32.gmra.mrb[0].mxu0 %v2814
        %v3054 = vpop.f32.mrb[0].mxu0
        %v3055 = vadd.f32 0.0, %v3054
        %v3056 = vpop.f32.mrb[0].mxu0
        %3057 = vmatprep.mubr.f32.mxu0 0.0
        %3058 = vmatmul.mubr.f32.gmra.mrb[0].mxu0 %v2817
        %v3059 = vpop.f32.mrb[0].mxu0
        %v3060 = vadd.f32 0.0, %v3059
        %v3061 = vpop.f32.mrb[0].mxu0
        %3062 = vmatprep.mubr.f32.mxu0 0.0
        %3063 = vmatmul.mubr.f32.gmra.mrb[0].mxu0 %v2820
        %v3064 = vpop.f32.mrb[0].mxu0
        %v3065 = vadd.f32 0.0, %v3064
        %v3066 = vpop.f32.mrb[0].mxu0
        %3067 = vmatprep.mubr.f32.mxu0 0.0
        %3068 = vmatmul.mubr.f32.gmra.mrb[0].mxu0 %v2823
        %v3069 = vpop.f32.mrb[0].mxu0
        %v3070 = vadd.f32 0.0, %v3069
        %v3071 = vpop.f32.mrb[0].mxu0
        %3072 = vdwg.mxu0
        %v3073 = vadd.f32 %v2643, %v2895
        %v3074 = vadd.f32 %v2644, %v2900
        %v3075 = vadd.f32 %v2645, %v2905
        %v3076 = vadd.f32 %v2646, %v2910
        %v3077 = vadd.f32 %v2647, %v2915
        %v3078 = vadd.f32 %v2648, %v2920
        %v3079 = vadd.f32 %v2649, %v2925
        %v3080 = vadd.f32 %v2650, %v2930
        %v3081 = vadd.f32 %v2651, %v2935
        %v3082 = vadd.f32 %v2652, %v2940
        %v3083 = vadd.f32 %v2653, %v2945
        %v3084 = vadd.f32 %v2654, %v2950
        %v3085 = vadd.f32 %v2655, %v2955
        %v3086 = vadd.f32 %v2656, %v2960
        %v3087 = vadd.f32 %v2657, %v2965
        %v3088 = vadd.f32 %v2658, %v2970
        %v3089 = vadd.f32 %v2659, %v2975
        %v3090 = vadd.f32 %v2660, %v2980
        %v3091 = vadd.f32 %v2661, %v2985
        %v3092 = vadd.f32 %v2662, %v2990
        %v3093 = vadd.f32 %v2663, %v2995
        %v3094 = vadd.f32 %v2664, %v3000
        %v3095 = vadd.f32 %v2665, %v3005
        %v3096 = vadd.f32 %v2666, %v3010
        %v3097 = vadd.f32 %v2667, %v3015
        %v3098 = vadd.f32 %v2668, %v3020
        %v3099 = vadd.f32 %v2669, %v3025
        %v3100 = vadd.f32 %v2670, %v3030
        %v3101 = vadd.f32 %v2671, %v3035
        %v3102 = vadd.f32 %v2672, %v3040
        %v3103 = vadd.f32 %v2673, %v3045
        %v3104 = vadd.f32 %v2674, %v3050
        %v3105 = vadd.f32 %v2675, %v3055
        %v3106 = vadd.f32 %v2676, %v3060
        %v3107 = vadd.f32 %v2677, %v3065
        %v3108 = vadd.f32 %v2678, %v3070
        %v3109 = vld [vmem:[%s168 + $0x25] sm:$0xff]
        %v3110 = vld [vmem:[%s168 + $0x2d] sm:$0xff]
        %v3111 = vld [vmem:[%s168 + $0x35] sm:$0xff]
        %v3112 = vld [vmem:[%s168 + $0x3d] sm:$0xff]
        %v3113 = vld [vmem:[%s168 + $0x45] sm:$0xff]
        %v3114 = vld [vmem:[%s168 + $0x4d] sm:$0xff]
        %v3115 = vld [vmem:[%s168 + $0x55] sm:$0xff]
        %v3116 = vld [vmem:[%s168 + $0x5d] sm:$0xff]
        %v3117 = vld [vmem:[%s168 + $0x65] sm:$0xff]
        %v3118 = vld [vmem:[%s168 + $0x6d] sm:$0xff]
        %v3119 = vld [vmem:[%s168 + $0x75] sm:$0xff]
        %v3120 = vld [vmem:[%s168 + $0x7d] sm:$0xff]
        %v3121 = vld [vmem:[%s168 + $0x85] sm:$0xff]
        %v3122 = vld [vmem:[%s168 + $0x8d] sm:$0xff]
        %v3123 = vld [vmem:[%s168 + $0x95] sm:$0xff]
        %v3124 = vld [vmem:[%s168 + $0x9d] sm:$0xff]
        %v3125 = vld [vmem:[%s168 + $0xa5] sm:$0xff]
        %v3126 = vld [vmem:[%s168 + $0xad] sm:$0xff]
        %v3127 = vld [vmem:[%s168 + $0xb5] sm:$0xff]
        %v3128 = vld [vmem:[%s168 + $0xbd] sm:$0xff]
        %v3129 = vld [vmem:[%s168 + $0xc5] sm:$0xff]
        %v3130 = vld [vmem:[%s168 + $0xcd] sm:$0xff]
        %v3131 = vld [vmem:[%s168 + $0xd5] sm:$0xff]
        %v3132 = vld [vmem:[%s168 + $0xdd] sm:$0xff]
        %v3133 = vld [vmem:[%s168 + $0xe5] sm:$0xff]
        %v3134 = vld [vmem:[%s168 + $0xed] sm:$0xff]
        %v3135 = vld [vmem:[%s168 + $0xf5] sm:$0xff]
        %v3136 = vld [vmem:[%s168 + $0xfd] sm:$0xff]
        %v3137 = vld [vmem:[%s168 + $0x105] sm:$0xff]
        %v3138 = vld [vmem:[%s168 + $0x10d] sm:$0xff]
        %v3139 = vld [vmem:[%s168 + $0x115] sm:$0xff]
        %v3140 = vld [vmem:[%s168 + $0x11d] sm:$0xff]
        %v3141 = vld [vmem:[%s168 + $0x125] sm:$0xff]
        %v3142 = vld [vmem:[%s168 + $0x12d] sm:$0xff]
        %v3143 = vld [vmem:[%s168 + $0x135] sm:$0xff]
        %v3144 = vld [vmem:[%s168 + $0x13d] sm:$0xff]
        %s3145 = scalar_lea.vmem %s1, 28
        %v3146 = vld [vmem:[%s3145] sm:$0xf]
        %v3148 = vsel %vm245, %v3109, 0
        %v3151 = vsel %vm245, %v3110, 0
        %v3154 = vsel %vm245, %v3111, 0
        %v3157 = vsel %vm245, %v3112, 0
        %v3160 = vsel %vm245, %v3113, 0
        %v3163 = vsel %vm245, %v3114, 0
        %v3166 = vsel %vm245, %v3115, 0
        %v3169 = vsel %vm245, %v3116, 0
        %v3172 = vsel %vm245, %v3117, 0
        %v3175 = vsel %vm245, %v3118, 0
        %v3178 = vsel %vm245, %v3119, 0
        %v3181 = vsel %vm245, %v3120, 0
        %v3184 = vsel %vm245, %v3121, 0
        %v3187 = vsel %vm245, %v3122, 0
        %v3190 = vsel %vm245, %v3123, 0
        %v3193 = vsel %vm245, %v3124, 0
        %v3196 = vsel %vm245, %v3125, 0
        %v3199 = vsel %vm245, %v3126, 0
        %v3202 = vsel %vm245, %v3127, 0
        %v3205 = vsel %vm245, %v3128, 0
        %v3208 = vsel %vm245, %v3129, 0
        %v3211 = vsel %vm245, %v3130, 0
        %v3214 = vsel %vm245, %v3131, 0
        %v3217 = vsel %vm245, %v3132, 0
        %v3220 = vsel %vm245, %v3133, 0
        %v3223 = vsel %vm245, %v3134, 0
        %v3226 = vsel %vm245, %v3135, 0
        %v3229 = vsel %vm245, %v3136, 0
        %v3232 = vsel %vm245, %v3137, 0
        %v3235 = vsel %vm245, %v3138, 0
        %v3238 = vsel %vm245, %v3139, 0
        %v3241 = vsel %vm245, %v3140, 0
        %v3244 = vsel %vm245, %v3141, 0
        %v3247 = vsel %vm245, %v3142, 0
        %v3250 = vsel %vm245, %v3143, 0
        %v3253 = vsel %vm245, %v3144, 0
        %v3256 = vsel %vm354, %v3146, 0
        %3258 = vmatprep.subr.mxu0 0.0
        %3259 = vmatpush1.msra.mxu0 %v3256
        %3260 = vmatprep.subr.mxu0 0.0
        %3261 = vmatpush1.msra.mxu0 0.0
        %3262 = vmatprep.subr.mxu0 0.0
        %3263 = vmatpush1.msra.mxu0 0.0
        %3264 = vmatprep.subr.mxu0 0.0
        %3265 = vmatpush1.msra.mxu0 0.0
        %3266 = vmatprep.subr.mxu0 0.0
        %3267 = vmatpush1.msra.mxu0 0.0
        %3268 = vmatprep.subr.mxu0 0.0
        %3269 = vmatpush1.msra.mxu0 0.0
        %3270 = vmatprep.subr.mxu0 0.0
        %3271 = vmatpush1.msra.mxu0 0.0
        %3272 = vmatprep.subr.mxu0 0.0
        %3273 = vmatpush1.msra.mxu0 0.0
        %3274 = vmatprep.subr.mxu0 0.0
        %3275 = vmatpush1.msra.mxu0 0.0
        %3276 = vmatprep.subr.mxu0 0.0
        %3277 = vmatpush1.msra.mxu0 0.0
        %3278 = vmatprep.subr.mxu0 0.0
        %3279 = vmatpush1.msra.mxu0 0.0
        %3280 = vmatprep.subr.mxu0 0.0
        %3281 = vmatpush1.msra.mxu0 0.0
        %3282 = vmatprep.subr.mxu0 0.0
        %3283 = vmatpush1.msra.mxu0 0.0
        %3284 = vmatprep.subr.mxu0 0.0
        %3285 = vmatpush1.msra.mxu0 0.0
        %3286 = vmatprep.subr.mxu0 0.0
        %3287 = vmatpush1.msra.mxu0 0.0
        %3288 = vmatprep.subr.mxu0 0.0
        %3289 = vmatpush1.msra.mxu0 0.0
        %3290 = vmatprep.subr.mxu0 0.0
        %3291 = vmatpush1.msra.mxu0 0.0
        %3292 = vmatprep.subr.mxu0 0.0
        %3293 = vmatpush1.msra.mxu0 0.0
        %3294 = vmatprep.subr.mxu0 0.0
        %3295 = vmatpush1.msra.mxu0 0.0
        %3296 = vmatprep.subr.mxu0 0.0
        %3297 = vmatpush1.msra.mxu0 0.0
        %3298 = vmatprep.subr.mxu0 0.0
        %3299 = vmatpush1.msra.mxu0 0.0
        %3300 = vmatprep.subr.mxu0 0.0
        %3301 = vmatpush1.msra.mxu0 0.0
        %3302 = vmatprep.subr.mxu0 0.0
        %3303 = vmatpush1.msra.mxu0 0.0
        %3304 = vmatprep.subr.mxu0 0.0
        %3305 = vmatpush1.msra.mxu0 0.0
        %3306 = vmatprep.subr.mxu0 0.0
        %3307 = vmatpush1.msra.mxu0 0.0
        %3308 = vmatprep.subr.mxu0 0.0
        %3309 = vmatpush1.msra.mxu0 0.0
        %3310 = vmatprep.subr.mxu0 0.0
        %3311 = vmatpush1.msra.mxu0 0.0
        %3312 = vmatprep.subr.mxu0 0.0
        %3313 = vmatpush1.msra.mxu0 0.0
        %3314 = vmatprep.subr.mxu0 0.0
        %3315 = vmatpush1.msra.mxu0 0.0
        %3316 = vmatprep.subr.mxu0 0.0
        %3317 = vmatpush1.msra.mxu0 0.0
        %3318 = vmatprep.subr.mxu0 0.0
        %3319 = vmatpush1.msra.mxu0 0.0
        %3320 = vmatprep.subr.mxu0 0.0
        %3321 = vmatpush1.msra.mxu0 0.0
        %3322 = vmatprep.mubr.f32.mxu0 0.0
        %3323 = vmatmul.mubr.f32.gmra.mrb[0].mxu0 %v3148
        %v3324 = vpop.f32.mrb[0].mxu0
        %v3325 = vadd.f32 0.0, %v3324
        %v3326 = vpop.f32.mrb[0].mxu0
        %3327 = vmatprep.mubr.f32.mxu0 0.0
        %3328 = vmatmul.mubr.f32.gmra.mrb[0].mxu0 %v3151
        %v3329 = vpop.f32.mrb[0].mxu0
        %v3330 = vadd.f32 0.0, %v3329
        %v3331 = vpop.f32.mrb[0].mxu0
        %3332 = vmatprep.mubr.f32.mxu0 0.0
        %3333 = vmatmul.mubr.f32.gmra.mrb[0].mxu0 %v3154
        %v3334 = vpop.f32.mrb[0].mxu0
        %v3335 = vadd.f32 0.0, %v3334
        %v3336 = vpop.f32.mrb[0].mxu0
        %3337 = vmatprep.mubr.f32.mxu0 0.0
        %3338 = vmatmul.mubr.f32.gmra.mrb[0].mxu0 %v3157
        %v3339 = vpop.f32.mrb[0].mxu0
        %v3340 = vadd.f32 0.0, %v3339
        %v3341 = vpop.f32.mrb[0].mxu0
        %3342 = vmatprep.mubr.f32.mxu0 0.0
        %3343 = vmatmul.mubr.f32.gmra.mrb[0].mxu0 %v3160
        %v3344 = vpop.f32.mrb[0].mxu0
        %v3345 = vadd.f32 0.0, %v3344
        %v3346 = vpop.f32.mrb[0].mxu0
        %3347 = vmatprep.mubr.f32.mxu0 0.0
        %3348 = vmatmul.mubr.f32.gmra.mrb[0].mxu0 %v3163
        %v3349 = vpop.f32.mrb[0].mxu0
        %v3350 = vadd.f32 0.0, %v3349
        %v3351 = vpop.f32.mrb[0].mxu0
        %3352 = vmatprep.mubr.f32.mxu0 0.0
        %3353 = vmatmul.mubr.f32.gmra.mrb[0].mxu0 %v3166
        %v3354 = vpop.f32.mrb[0].mxu0
        %v3355 = vadd.f32 0.0, %v3354
        %v3356 = vpop.f32.mrb[0].mxu0
        %3357 = vmatprep.mubr.f32.mxu0 0.0
        %3358 = vmatmul.mubr.f32.gmra.mrb[0].mxu0 %v3169
        %v3359 = vpop.f32.mrb[0].mxu0
        %v3360 = vadd.f32 0.0, %v3359
        %v3361 = vpop.f32.mrb[0].mxu0
        %3362 = vmatprep.mubr.f32.mxu0 0.0
        %3363 = vmatmul.mubr.f32.gmra.mrb[0].mxu0 %v3172
        %v3364 = vpop.f32.mrb[0].mxu0
        %v3365 = vadd.f32 0.0, %v3364
        %v3366 = vpop.f32.mrb[0].mxu0
        %3367 = vmatprep.mubr.f32.mxu0 0.0
        %3368 = vmatmul.mubr.f32.gmra.mrb[0].mxu0 %v3175
        %v3369 = vpop.f32.mrb[0].mxu0
        %v3370 = vadd.f32 0.0, %v3369
        %v3371 = vpop.f32.mrb[0].mxu0
        %3372 = vmatprep.mubr.f32.mxu0 0.0
        %3373 = vmatmul.mubr.f32.gmra.mrb[0].mxu0 %v3178
        %v3374 = vpop.f32.mrb[0].mxu0
        %v3375 = vadd.f32 0.0, %v3374
        %v3376 = vpop.f32.mrb[0].mxu0
        %3377 = vmatprep.mubr.f32.mxu0 0.0
        %3378 = vmatmul.mubr.f32.gmra.mrb[0].mxu0 %v3181
        %v3379 = vpop.f32.mrb[0].mxu0
        %v3380 = vadd.f32 0.0, %v3379
        %v3381 = vpop.f32.mrb[0].mxu0
        %3382 = vmatprep.mubr.f32.mxu0 0.0
        %3383 = vmatmul.mubr.f32.gmra.mrb[0].mxu0 %v3184
        %v3384 = vpop.f32.mrb[0].mxu0
        %v3385 = vadd.f32 0.0, %v3384
        %v3386 = vpop.f32.mrb[0].mxu0
        %3387 = vmatprep.mubr.f32.mxu0 0.0
        %3388 = vmatmul.mubr.f32.gmra.mrb[0].mxu0 %v3187
        %v3389 = vpop.f32.mrb[0].mxu0
        %v3390 = vadd.f32 0.0, %v3389
        %v3391 = vpop.f32.mrb[0].mxu0
        %3392 = vmatprep.mubr.f32.mxu0 0.0
        %3393 = vmatmul.mubr.f32.gmra.mrb[0].mxu0 %v3190
        %v3394 = vpop.f32.mrb[0].mxu0
        %v3395 = vadd.f32 0.0, %v3394
        %v3396 = vpop.f32.mrb[0].mxu0
        %3397 = vmatprep.mubr.f32.mxu0 0.0
        %3398 = vmatmul.mubr.f32.gmra.mrb[0].mxu0 %v3193
        %v3399 = vpop.f32.mrb[0].mxu0
        %v3400 = vadd.f32 0.0, %v3399
        %v3401 = vpop.f32.mrb[0].mxu0
        %3402 = vmatprep.mubr.f32.mxu0 0.0
        %3403 = vmatmul.mubr.f32.gmra.mrb[0].mxu0 %v3196
        %v3404 = vpop.f32.mrb[0].mxu0
        %v3405 = vadd.f32 0.0, %v3404
        %v3406 = vpop.f32.mrb[0].mxu0
        %3407 = vmatprep.mubr.f32.mxu0 0.0
        %3408 = vmatmul.mubr.f32.gmra.mrb[0].mxu0 %v3199
        %v3409 = vpop.f32.mrb[0].mxu0
        %v3410 = vadd.f32 0.0, %v3409
        %v3411 = vpop.f32.mrb[0].mxu0
        %3412 = vmatprep.mubr.f32.mxu0 0.0
        %3413 = vmatmul.mubr.f32.gmra.mrb[0].mxu0 %v3202
        %v3414 = vpop.f32.mrb[0].mxu0
        %v3415 = vadd.f32 0.0, %v3414
        %v3416 = vpop.f32.mrb[0].mxu0
        %3417 = vmatprep.mubr.f32.mxu0 0.0
        %3418 = vmatmul.mubr.f32.gmra.mrb[0].mxu0 %v3205
        %v3419 = vpop.f32.mrb[0].mxu0
        %v3420 = vadd.f32 0.0, %v3419
        %v3421 = vpop.f32.mrb[0].mxu0
        %3422 = vmatprep.mubr.f32.mxu0 0.0
        %3423 = vmatmul.mubr.f32.gmra.mrb[0].mxu0 %v3208
        %v3424 = vpop.f32.mrb[0].mxu0
        %v3425 = vadd.f32 0.0, %v3424
        %v3426 = vpop.f32.mrb[0].mxu0
        %3427 = vmatprep.mubr.f32.mxu0 0.0
        %3428 = vmatmul.mubr.f32.gmra.mrb[0].mxu0 %v3211
        %v3429 = vpop.f32.mrb[0].mxu0
        %v3430 = vadd.f32 0.0, %v3429
        %v3431 = vpop.f32.mrb[0].mxu0
        %3432 = vmatprep.mubr.f32.mxu0 0.0
        %3433 = vmatmul.mubr.f32.gmra.mrb[0].mxu0 %v3214
        %v3434 = vpop.f32.mrb[0].mxu0
        %v3435 = vadd.f32 0.0, %v3434
        %v3436 = vpop.f32.mrb[0].mxu0
        %3437 = vmatprep.mubr.f32.mxu0 0.0
        %3438 = vmatmul.mubr.f32.gmra.mrb[0].mxu0 %v3217
        %v3439 = vpop.f32.mrb[0].mxu0
        %v3440 = vadd.f32 0.0, %v3439
        %v3441 = vpop.f32.mrb[0].mxu0
        %3442 = vmatprep.mubr.f32.mxu0 0.0
        %3443 = vmatmul.mubr.f32.gmra.mrb[0].mxu0 %v3220
        %v3444 = vpop.f32.mrb[0].mxu0
        %v3445 = vadd.f32 0.0, %v3444
        %v3446 = vpop.f32.mrb[0].mxu0
        %3447 = vmatprep.mubr.f32.mxu0 0.0
        %3448 = vmatmul.mubr.f32.gmra.mrb[0].mxu0 %v3223
        %v3449 = vpop.f32.mrb[0].mxu0
        %v3450 = vadd.f32 0.0, %v3449
        %v3451 = vpop.f32.mrb[0].mxu0
        %3452 = vmatprep.mubr.f32.mxu0 0.0
        %3453 = vmatmul.mubr.f32.gmra.mrb[0].mxu0 %v3226
        %v3454 = vpop.f32.mrb[0].mxu0
        %v3455 = vadd.f32 0.0, %v3454
        %v3456 = vpop.f32.mrb[0].mxu0
        %3457 = vmatprep.mubr.f32.mxu0 0.0
        %3458 = vmatmul.mubr.f32.gmra.mrb[0].mxu0 %v3229
        %v3459 = vpop.f32.mrb[0].mxu0
        %v3460 = vadd.f32 0.0, %v3459
        %v3461 = vpop.f32.mrb[0].mxu0
        %3462 = vmatprep.mubr.f32.mxu0 0.0
        %3463 = vmatmul.mubr.f32.gmra.mrb[0].mxu0 %v3232
        %v3464 = vpop.f32.mrb[0].mxu0
        %v3465 = vadd.f32 0.0, %v3464
        %v3466 = vpop.f32.mrb[0].mxu0
        %3467 = vmatprep.mubr.f32.mxu0 0.0
        %3468 = vmatmul.mubr.f32.gmra.mrb[0].mxu0 %v3235
        %v3469 = vpop.f32.mrb[0].mxu0
        %v3470 = vadd.f32 0.0, %v3469
        %v3471 = vpop.f32.mrb[0].mxu0
        %3472 = vmatprep.mubr.f32.mxu0 0.0
        %3473 = vmatmul.mubr.f32.gmra.mrb[0].mxu0 %v3238
        %v3474 = vpop.f32.mrb[0].mxu0
        %v3475 = vadd.f32 0.0, %v3474
        %v3476 = vpop.f32.mrb[0].mxu0
        %3477 = vmatprep.mubr.f32.mxu0 0.0
        %3478 = vmatmul.mubr.f32.gmra.mrb[0].mxu0 %v3241
        %v3479 = vpop.f32.mrb[0].mxu0
        %v3480 = vadd.f32 0.0, %v3479
        %v3481 = vpop.f32.mrb[0].mxu0
        %3482 = vmatprep.mubr.f32.mxu0 0.0
        %3483 = vmatmul.mubr.f32.gmra.mrb[0].mxu0 %v3244
        %v3484 = vpop.f32.mrb[0].mxu0
        %v3485 = vadd.f32 0.0, %v3484
        %v3486 = vpop.f32.mrb[0].mxu0
        %3487 = vmatprep.mubr.f32.mxu0 0.0
        %3488 = vmatmul.mubr.f32.gmra.mrb[0].mxu0 %v3247
        %v3489 = vpop.f32.mrb[0].mxu0
        %v3490 = vadd.f32 0.0, %v3489
        %v3491 = vpop.f32.mrb[0].mxu0
        %3492 = vmatprep.mubr.f32.mxu0 0.0
        %3493 = vmatmul.mubr.f32.gmra.mrb[0].mxu0 %v3250
        %v3494 = vpop.f32.mrb[0].mxu0
        %v3495 = vadd.f32 0.0, %v3494
        %v3496 = vpop.f32.mrb[0].mxu0
        %3497 = vmatprep.mubr.f32.mxu0 0.0
        %3498 = vmatmul.mubr.f32.gmra.mrb[0].mxu0 %v3253
        %v3499 = vpop.f32.mrb[0].mxu0
        %v3500 = vadd.f32 0.0, %v3499
        %v3501 = vpop.f32.mrb[0].mxu0
        %3502 = vdwg.mxu0
        %v3503 = vadd.f32 %v3073, %v3325
        %v3504 = vadd.f32 %v3074, %v3330
        %v3505 = vadd.f32 %v3075, %v3335
        %v3506 = vadd.f32 %v3076, %v3340
        %v3507 = vadd.f32 %v3077, %v3345
        %v3508 = vadd.f32 %v3078, %v3350
        %v3509 = vadd.f32 %v3079, %v3355
        %v3510 = vadd.f32 %v3080, %v3360
        %v3511 = vadd.f32 %v3081, %v3365
        %v3512 = vadd.f32 %v3082, %v3370
        %v3513 = vadd.f32 %v3083, %v3375
        %v3514 = vadd.f32 %v3084, %v3380
        %v3515 = vadd.f32 %v3085, %v3385
        %v3516 = vadd.f32 %v3086, %v3390
        %v3517 = vadd.f32 %v3087, %v3395
        %v3518 = vadd.f32 %v3088, %v3400
        %v3519 = vadd.f32 %v3089, %v3405
        %v3520 = vadd.f32 %v3090, %v3410
        %v3521 = vadd.f32 %v3091, %v3415
        %v3522 = vadd.f32 %v3092, %v3420
        %v3523 = vadd.f32 %v3093, %v3425
        %v3524 = vadd.f32 %v3094, %v3430
        %v3525 = vadd.f32 %v3095, %v3435
        %v3526 = vadd.f32 %v3096, %v3440
        %v3527 = vadd.f32 %v3097, %v3445
        %v3528 = vadd.f32 %v3098, %v3450
        %v3529 = vadd.f32 %v3099, %v3455
        %v3530 = vadd.f32 %v3100, %v3460
        %v3531 = vadd.f32 %v3101, %v3465
        %v3532 = vadd.f32 %v3102, %v3470
        %v3533 = vadd.f32 %v3103, %v3475
        %v3534 = vadd.f32 %v3104, %v3480
        %v3535 = vadd.f32 %v3105, %v3485
        %v3536 = vadd.f32 %v3106, %v3490
        %v3537 = vadd.f32 %v3107, %v3495
        %v3538 = vadd.f32 %v3108, %v3500
        %v3539 = vld [vmem:[%s168 + $0x26] sm:$0xff]
        %v3540 = vld [vmem:[%s168 + $0x2e] sm:$0xff]
        %v3541 = vld [vmem:[%s168 + $0x36] sm:$0xff]
        %v3542 = vld [vmem:[%s168 + $0x3e] sm:$0xff]
        %v3543 = vld [vmem:[%s168 + $0x46] sm:$0xff]
        %v3544 = vld [vmem:[%s168 + $0x4e] sm:$0xff]
        %v3545 = vld [vmem:[%s168 + $0x56] sm:$0xff]
        %v3546 = vld [vmem:[%s168 + $0x5e] sm:$0xff]
        %v3547 = vld [vmem:[%s168 + $0x66] sm:$0xff]
        %v3548 = vld [vmem:[%s168 + $0x6e] sm:$0xff]
        %v3549 = vld [vmem:[%s168 + $0x76] sm:$0xff]
        %v3550 = vld [vmem:[%s168 + $0x7e] sm:$0xff]
        %v3551 = vld [vmem:[%s168 + $0x86] sm:$0xff]
        %v3552 = vld [vmem:[%s168 + $0x8e] sm:$0xff]
        %v3553 = vld [vmem:[%s168 + $0x96] sm:$0xff]
        %v3554 = vld [vmem:[%s168 + $0x9e] sm:$0xff]
        %v3555 = vld [vmem:[%s168 + $0xa6] sm:$0xff]
        %v3556 = vld [vmem:[%s168 + $0xae] sm:$0xff]
        %v3557 = vld [vmem:[%s168 + $0xb6] sm:$0xff]
        %v3558 = vld [vmem:[%s168 + $0xbe] sm:$0xff]
        %v3559 = vld [vmem:[%s168 + $0xc6] sm:$0xff]
        %v3560 = vld [vmem:[%s168 + $0xce] sm:$0xff]
        %v3561 = vld [vmem:[%s168 + $0xd6] sm:$0xff]
        %v3562 = vld [vmem:[%s168 + $0xde] sm:$0xff]
        %v3563 = vld [vmem:[%s168 + $0xe6] sm:$0xff]
        %v3564 = vld [vmem:[%s168 + $0xee] sm:$0xff]
        %v3565 = vld [vmem:[%s168 + $0xf6] sm:$0xff]
        %v3566 = vld [vmem:[%s168 + $0xfe] sm:$0xff]
        %v3567 = vld [vmem:[%s168 + $0x106] sm:$0xff]
        %v3568 = vld [vmem:[%s168 + $0x10e] sm:$0xff]
        %v3569 = vld [vmem:[%s168 + $0x116] sm:$0xff]
        %v3570 = vld [vmem:[%s168 + $0x11e] sm:$0xff]
        %v3571 = vld [vmem:[%s168 + $0x126] sm:$0xff]
        %v3572 = vld [vmem:[%s168 + $0x12e] sm:$0xff]
        %v3573 = vld [vmem:[%s168 + $0x136] sm:$0xff]
        %v3574 = vld [vmem:[%s168 + $0x13e] sm:$0xff]
        %s3575 = scalar_lea.vmem %s1, 32
        %v3576 = vld [vmem:[%s3575] sm:$0xf]
        %v3578 = vsel %vm245, %v3539, 0
        %v3581 = vsel %vm245, %v3540, 0
        %v3584 = vsel %vm245, %v3541, 0
        %v3587 = vsel %vm245, %v3542, 0
        %v3590 = vsel %vm245, %v3543, 0
        %v3593 = vsel %vm245, %v3544, 0
        %v3596 = vsel %vm245, %v3545, 0
        %v3599 = vsel %vm245, %v3546, 0
        %v3602 = vsel %vm245, %v3547, 0
        %v3605 = vsel %vm245, %v3548, 0
        %v3608 = vsel %vm245, %v3549, 0
        %v3611 = vsel %vm245, %v3550, 0
        %v3614 = vsel %vm245, %v3551, 0
        %v3617 = vsel %vm245, %v3552, 0
        %v3620 = vsel %vm245, %v3553, 0
        %v3623 = vsel %vm245, %v3554, 0
        %v3626 = vsel %vm245, %v3555, 0
        %v3629 = vsel %vm245, %v3556, 0
        %v3632 = vsel %vm245, %v3557, 0
        %v3635 = vsel %vm245, %v3558, 0
        %v3638 = vsel %vm245, %v3559, 0
        %v3641 = vsel %vm245, %v3560, 0
        %v3644 = vsel %vm245, %v3561, 0
        %v3647 = vsel %vm245, %v3562, 0
        %v3650 = vsel %vm245, %v3563, 0
        %v3653 = vsel %vm245, %v3564, 0
        %v3656 = vsel %vm245, %v3565, 0
        %v3659 = vsel %vm245, %v3566, 0
        %v3662 = vsel %vm245, %v3567, 0
        %v3665 = vsel %vm245, %v3568, 0
        %v3668 = vsel %vm245, %v3569, 0
        %v3671 = vsel %vm245, %v3570, 0
        %v3674 = vsel %vm245, %v3571, 0
        %v3677 = vsel %vm245, %v3572, 0
        %v3680 = vsel %vm245, %v3573, 0
        %v3683 = vsel %vm245, %v3574, 0
        %v3686 = vsel %vm354, %v3576, 0
        %3688 = vmatprep.subr.mxu0 0.0
        %3689 = vmatpush1.msra.mxu0 %v3686
        %3690 = vmatprep.subr.mxu0 0.0
        %3691 = vmatpush1.msra.mxu0 0.0
        %3692 = vmatprep.subr.mxu0 0.0
        %3693 = vmatpush1.msra.mxu0 0.0
        %3694 = vmatprep.subr.mxu0 0.0
        %3695 = vmatpush1.msra.mxu0 0.0
        %3696 = vmatprep.subr.mxu0 0.0
        %3697 = vmatpush1.msra.mxu0 0.0
        %3698 = vmatprep.subr.mxu0 0.0
        %3699 = vmatpush1.msra.mxu0 0.0
        %3700 = vmatprep.subr.mxu0 0.0
        %3701 = vmatpush1.msra.mxu0 0.0
        %3702 = vmatprep.subr.mxu0 0.0
        %3703 = vmatpush1.msra.mxu0 0.0
        %3704 = vmatprep.subr.mxu0 0.0
        %3705 = vmatpush1.msra.mxu0 0.0
        %3706 = vmatprep.subr.mxu0 0.0
        %3707 = vmatpush1.msra.mxu0 0.0
        %3708 = vmatprep.subr.mxu0 0.0
        %3709 = vmatpush1.msra.mxu0 0.0
        %3710 = vmatprep.subr.mxu0 0.0
        %3711 = vmatpush1.msra.mxu0 0.0
        %3712 = vmatprep.subr.mxu0 0.0
        %3713 = vmatpush1.msra.mxu0 0.0
        %3714 = vmatprep.subr.mxu0 0.0
        %3715 = vmatpush1.msra.mxu0 0.0
        %3716 = vmatprep.subr.mxu0 0.0
        %3717 = vmatpush1.msra.mxu0 0.0
        %3718 = vmatprep.subr.mxu0 0.0
        %3719 = vmatpush1.msra.mxu0 0.0
        %3720 = vmatprep.subr.mxu0 0.0
        %3721 = vmatpush1.msra.mxu0 0.0
        %3722 = vmatprep.subr.mxu0 0.0
        %3723 = vmatpush1.msra.mxu0 0.0
        %3724 = vmatprep.subr.mxu0 0.0
        %3725 = vmatpush1.msra.mxu0 0.0
        %3726 = vmatprep.subr.mxu0 0.0
        %3727 = vmatpush1.msra.mxu0 0.0
        %3728 = vmatprep.subr.mxu0 0.0
        %3729 = vmatpush1.msra.mxu0 0.0
        %3730 = vmatprep.subr.mxu0 0.0
        %3731 = vmatpush1.msra.mxu0 0.0
        %3732 = vmatprep.subr.mxu0 0.0
        %3733 = vmatpush1.msra.mxu0 0.0
        %3734 = vmatprep.subr.mxu0 0.0
        %3735 = vmatpush1.msra.mxu0 0.0
        %3736 = vmatprep.subr.mxu0 0.0
        %3737 = vmatpush1.msra.mxu0 0.0
        %3738 = vmatprep.subr.mxu0 0.0
        %3739 = vmatpush1.msra.mxu0 0.0
        %3740 = vmatprep.subr.mxu0 0.0
        %3741 = vmatpush1.msra.mxu0 0.0
        %3742 = vmatprep.subr.mxu0 0.0
        %3743 = vmatpush1.msra.mxu0 0.0
        %3744 = vmatprep.subr.mxu0 0.0
        %3745 = vmatpush1.msra.mxu0 0.0
        %3746 = vmatprep.subr.mxu0 0.0
        %3747 = vmatpush1.msra.mxu0 0.0
        %3748 = vmatprep.subr.mxu0 0.0
        %3749 = vmatpush1.msra.mxu0 0.0
        %3750 = vmatprep.subr.mxu0 0.0
        %3751 = vmatpush1.msra.mxu0 0.0
        %3752 = vmatprep.mubr.f32.mxu0 0.0
        %3753 = vmatmul.mubr.f32.gmra.mrb[0].mxu0 %v3578
        %v3754 = vpop.f32.mrb[0].mxu0
        %v3755 = vadd.f32 0.0, %v3754
        %v3756 = vpop.f32.mrb[0].mxu0
        %3757 = vmatprep.mubr.f32.mxu0 0.0
        %3758 = vmatmul.mubr.f32.gmra.mrb[0].mxu0 %v3581
        %v3759 = vpop.f32.mrb[0].mxu0
        %v3760 = vadd.f32 0.0, %v3759
        %v3761 = vpop.f32.mrb[0].mxu0
        %3762 = vmatprep.mubr.f32.mxu0 0.0
        %3763 = vmatmul.mubr.f32.gmra.mrb[0].mxu0 %v3584
        %v3764 = vpop.f32.mrb[0].mxu0
        %v3765 = vadd.f32 0.0, %v3764
        %v3766 = vpop.f32.mrb[0].mxu0
        %3767 = vmatprep.mubr.f32.mxu0 0.0
        %3768 = vmatmul.mubr.f32.gmra.mrb[0].mxu0 %v3587
        %v3769 = vpop.f32.mrb[0].mxu0
        %v3770 = vadd.f32 0.0, %v3769
        %v3771 = vpop.f32.mrb[0].mxu0
        %3772 = vmatprep.mubr.f32.mxu0 0.0
        %3773 = vmatmul.mubr.f32.gmra.mrb[0].mxu0 %v3590
        %v3774 = vpop.f32.mrb[0].mxu0
        %v3775 = vadd.f32 0.0, %v3774
        %v3776 = vpop.f32.mrb[0].mxu0
        %3777 = vmatprep.mubr.f32.mxu0 0.0
        %3778 = vmatmul.mubr.f32.gmra.mrb[0].mxu0 %v3593
        %v3779 = vpop.f32.mrb[0].mxu0
        %v3780 = vadd.f32 0.0, %v3779
        %v3781 = vpop.f32.mrb[0].mxu0
        %3782 = vmatprep.mubr.f32.mxu0 0.0
        %3783 = vmatmul.mubr.f32.gmra.mrb[0].mxu0 %v3596
        %v3784 = vpop.f32.mrb[0].mxu0
        %v3785 = vadd.f32 0.0, %v3784
        %v3786 = vpop.f32.mrb[0].mxu0
        %3787 = vmatprep.mubr.f32.mxu0 0.0
        %3788 = vmatmul.mubr.f32.gmra.mrb[0].mxu0 %v3599
        %v3789 = vpop.f32.mrb[0].mxu0
        %v3790 = vadd.f32 0.0, %v3789
        %v3791 = vpop.f32.mrb[0].mxu0
        %3792 = vmatprep.mubr.f32.mxu0 0.0
        %3793 = vmatmul.mubr.f32.gmra.mrb[0].mxu0 %v3602
        %v3794 = vpop.f32.mrb[0].mxu0
        %v3795 = vadd.f32 0.0, %v3794
        %v3796 = vpop.f32.mrb[0].mxu0
        %3797 = vmatprep.mubr.f32.mxu0 0.0
        %3798 = vmatmul.mubr.f32.gmra.mrb[0].mxu0 %v3605
        %v3799 = vpop.f32.mrb[0].mxu0
        %v3800 = vadd.f32 0.0, %v3799
        %v3801 = vpop.f32.mrb[0].mxu0
        %3802 = vmatprep.mubr.f32.mxu0 0.0
        %3803 = vmatmul.mubr.f32.gmra.mrb[0].mxu0 %v3608
        %v3804 = vpop.f32.mrb[0].mxu0
        %v3805 = vadd.f32 0.0, %v3804
        %v3806 = vpop.f32.mrb[0].mxu0
        %3807 = vmatprep.mubr.f32.mxu0 0.0
        %3808 = vmatmul.mubr.f32.gmra.mrb[0].mxu0 %v3611
        %v3809 = vpop.f32.mrb[0].mxu0
        %v3810 = vadd.f32 0.0, %v3809
        %v3811 = vpop.f32.mrb[0].mxu0
        %3812 = vmatprep.mubr.f32.mxu0 0.0
        %3813 = vmatmul.mubr.f32.gmra.mrb[0].mxu0 %v3614
        %v3814 = vpop.f32.mrb[0].mxu0
        %v3815 = vadd.f32 0.0, %v3814
        %v3816 = vpop.f32.mrb[0].mxu0
        %3817 = vmatprep.mubr.f32.mxu0 0.0
        %3818 = vmatmul.mubr.f32.gmra.mrb[0].mxu0 %v3617
        %v3819 = vpop.f32.mrb[0].mxu0
        %v3820 = vadd.f32 0.0, %v3819
        %v3821 = vpop.f32.mrb[0].mxu0
        %3822 = vmatprep.mubr.f32.mxu0 0.0
        %3823 = vmatmul.mubr.f32.gmra.mrb[0].mxu0 %v3620
        %v3824 = vpop.f32.mrb[0].mxu0
        %v3825 = vadd.f32 0.0, %v3824
        %v3826 = vpop.f32.mrb[0].mxu0
        %3827 = vmatprep.mubr.f32.mxu0 0.0
        %3828 = vmatmul.mubr.f32.gmra.mrb[0].mxu0 %v3623
        %v3829 = vpop.f32.mrb[0].mxu0
        %v3830 = vadd.f32 0.0, %v3829
        %v3831 = vpop.f32.mrb[0].mxu0
        %3832 = vmatprep.mubr.f32.mxu0 0.0
        %3833 = vmatmul.mubr.f32.gmra.mrb[0].mxu0 %v3626
        %v3834 = vpop.f32.mrb[0].mxu0
        %v3835 = vadd.f32 0.0, %v3834
        %v3836 = vpop.f32.mrb[0].mxu0
        %3837 = vmatprep.mubr.f32.mxu0 0.0
        %3838 = vmatmul.mubr.f32.gmra.mrb[0].mxu0 %v3629
        %v3839 = vpop.f32.mrb[0].mxu0
        %v3840 = vadd.f32 0.0, %v3839
        %v3841 = vpop.f32.mrb[0].mxu0
        %3842 = vmatprep.mubr.f32.mxu0 0.0
        %3843 = vmatmul.mubr.f32.gmra.mrb[0].mxu0 %v3632
        %v3844 = vpop.f32.mrb[0].mxu0
        %v3845 = vadd.f32 0.0, %v3844
        %v3846 = vpop.f32.mrb[0].mxu0
        %3847 = vmatprep.mubr.f32.mxu0 0.0
        %3848 = vmatmul.mubr.f32.gmra.mrb[0].mxu0 %v3635
        %v3849 = vpop.f32.mrb[0].mxu0
        %v3850 = vadd.f32 0.0, %v3849
        %v3851 = vpop.f32.mrb[0].mxu0
        %3852 = vmatprep.mubr.f32.mxu0 0.0
        %3853 = vmatmul.mubr.f32.gmra.mrb[0].mxu0 %v3638
        %v3854 = vpop.f32.mrb[0].mxu0
        %v3855 = vadd.f32 0.0, %v3854
        %v3856 = vpop.f32.mrb[0].mxu0
        %3857 = vmatprep.mubr.f32.mxu0 0.0
        %3858 = vmatmul.mubr.f32.gmra.mrb[0].mxu0 %v3641
        %v3859 = vpop.f32.mrb[0].mxu0
        %v3860 = vadd.f32 0.0, %v3859
        %v3861 = vpop.f32.mrb[0].mxu0
        %3862 = vmatprep.mubr.f32.mxu0 0.0
        %3863 = vmatmul.mubr.f32.gmra.mrb[0].mxu0 %v3644
        %v3864 = vpop.f32.mrb[0].mxu0
        %v3865 = vadd.f32 0.0, %v3864
        %v3866 = vpop.f32.mrb[0].mxu0
        %3867 = vmatprep.mubr.f32.mxu0 0.0
        %3868 = vmatmul.mubr.f32.gmra.mrb[0].mxu0 %v3647
        %v3869 = vpop.f32.mrb[0].mxu0
        %v3870 = vadd.f32 0.0, %v3869
        %v3871 = vpop.f32.mrb[0].mxu0
        %3872 = vmatprep.mubr.f32.mxu0 0.0
        %3873 = vmatmul.mubr.f32.gmra.mrb[0].mxu0 %v3650
        %v3874 = vpop.f32.mrb[0].mxu0
        %v3875 = vadd.f32 0.0, %v3874
        %v3876 = vpop.f32.mrb[0].mxu0
        %3877 = vmatprep.mubr.f32.mxu0 0.0
        %3878 = vmatmul.mubr.f32.gmra.mrb[0].mxu0 %v3653
        %v3879 = vpop.f32.mrb[0].mxu0
        %v3880 = vadd.f32 0.0, %v3879
        %v3881 = vpop.f32.mrb[0].mxu0
        %3882 = vmatprep.mubr.f32.mxu0 0.0
        %3883 = vmatmul.mubr.f32.gmra.mrb[0].mxu0 %v3656
        %v3884 = vpop.f32.mrb[0].mxu0
        %v3885 = vadd.f32 0.0, %v3884
        %v3886 = vpop.f32.mrb[0].mxu0
        %3887 = vmatprep.mubr.f32.mxu0 0.0
        %3888 = vmatmul.mubr.f32.gmra.mrb[0].mxu0 %v3659
        %v3889 = vpop.f32.mrb[0].mxu0
        %v3890 = vadd.f32 0.0, %v3889
        %v3891 = vpop.f32.mrb[0].mxu0
        %3892 = vmatprep.mubr.f32.mxu0 0.0
        %3893 = vmatmul.mubr.f32.gmra.mrb[0].mxu0 %v3662
        %v3894 = vpop.f32.mrb[0].mxu0
        %v3895 = vadd.f32 0.0, %v3894
        %v3896 = vpop.f32.mrb[0].mxu0
        %3897 = vmatprep.mubr.f32.mxu0 0.0
        %3898 = vmatmul.mubr.f32.gmra.mrb[0].mxu0 %v3665
        %v3899 = vpop.f32.mrb[0].mxu0
        %v3900 = vadd.f32 0.0, %v3899
        %v3901 = vpop.f32.mrb[0].mxu0
        %3902 = vmatprep.mubr.f32.mxu0 0.0
        %3903 = vmatmul.mubr.f32.gmra.mrb[0].mxu0 %v3668
        %v3904 = vpop.f32.mrb[0].mxu0
        %v3905 = vadd.f32 0.0, %v3904
        %v3906 = vpop.f32.mrb[0].mxu0
        %3907 = vmatprep.mubr.f32.mxu0 0.0
        %3908 = vmatmul.mubr.f32.gmra.mrb[0].mxu0 %v3671
        %v3909 = vpop.f32.mrb[0].mxu0
        %v3910 = vadd.f32 0.0, %v3909
        %v3911 = vpop.f32.mrb[0].mxu0
        %3912 = vmatprep.mubr.f32.mxu0 0.0
        %3913 = vmatmul.mubr.f32.gmra.mrb[0].mxu0 %v3674
        %v3914 = vpop.f32.mrb[0].mxu0
        %v3915 = vadd.f32 0.0, %v3914
        %v3916 = vpop.f32.mrb[0].mxu0
        %3917 = vmatprep.mubr.f32.mxu0 0.0
        %3918 = vmatmul.mubr.f32.gmra.mrb[0].mxu0 %v3677
        %v3919 = vpop.f32.mrb[0].mxu0
        %v3920 = vadd.f32 0.0, %v3919
        %v3921 = vpop.f32.mrb[0].mxu0
        %3922 = vmatprep.mubr.f32.mxu0 0.0
        %3923 = vmatmul.mubr.f32.gmra.mrb[0].mxu0 %v3680
        %v3924 = vpop.f32.mrb[0].mxu0
        %v3925 = vadd.f32 0.0, %v3924
        %v3926 = vpop.f32.mrb[0].mxu0
        %3927 = vmatprep.mubr.f32.mxu0 0.0
        %3928 = vmatmul.mubr.f32.gmra.mrb[0].mxu0 %v3683
        %v3929 = vpop.f32.mrb[0].mxu0
        %v3930 = vadd.f32 0.0, %v3929
        %v3931 = vpop.f32.mrb[0].mxu0
        %3932 = vdwg.mxu0
        %v3933 = vadd.f32 %v3503, %v3755
        %v3934 = vadd.f32 %v3504, %v3760
        %v3935 = vadd.f32 %v3505, %v3765
        %v3936 = vadd.f32 %v3506, %v3770
        %v3937 = vadd.f32 %v3507, %v3775
        %v3938 = vadd.f32 %v3508, %v3780
        %v3939 = vadd.f32 %v3509, %v3785
        %v3940 = vadd.f32 %v3510, %v3790
        %v3941 = vadd.f32 %v3511, %v3795
        %v3942 = vadd.f32 %v3512, %v3800
        %v3943 = vadd.f32 %v3513, %v3805
        %v3944 = vadd.f32 %v3514, %v3810
        %v3945 = vadd.f32 %v3515, %v3815
        %v3946 = vadd.f32 %v3516, %v3820
        %v3947 = vadd.f32 %v3517, %v3825
        %v3948 = vadd.f32 %v3518, %v3830
        %v3949 = vadd.f32 %v3519, %v3835
        %v3950 = vadd.f32 %v3520, %v3840
        %v3951 = vadd.f32 %v3521, %v3845
        %v3952 = vadd.f32 %v3522, %v3850
        %v3953 = vadd.f32 %v3523, %v3855
        %v3954 = vadd.f32 %v3524, %v3860
        %v3955 = vadd.f32 %v3525, %v3865
        %v3956 = vadd.f32 %v3526, %v3870
        %v3957 = vadd.f32 %v3527, %v3875
        %v3958 = vadd.f32 %v3528, %v3880
        %v3959 = vadd.f32 %v3529, %v3885
        %v3960 = vadd.f32 %v3530, %v3890
        %v3961 = vadd.f32 %v3531, %v3895
        %v3962 = vadd.f32 %v3532, %v3900
        %v3963 = vadd.f32 %v3533, %v3905
        %v3964 = vadd.f32 %v3534, %v3910
        %v3965 = vadd.f32 %v3535, %v3915
        %v3966 = vadd.f32 %v3536, %v3920
        %v3967 = vadd.f32 %v3537, %v3925
        %v3968 = vadd.f32 %v3538, %v3930
        %v3969 = vld [vmem:[%s2] sm:$0x1]
        %v3971 = vlaneseq
        %v3972 = vshrl.u32 %v3971, 7
        %v3973 = vsub.s32 0, %v3972
        %v3974 = vrot.slane %v3969, %v3973
        %v3976 = vadd.f32 %v3933, %v3974
        %v3977 = vadd.f32 %v3934, %v3974
        %v3978 = vadd.f32 %v3935, %v3974
        %v3979 = vadd.f32 %v3936, %v3974
        %v3980 = vadd.f32 %v3937, %v3974
        %v3981 = vadd.f32 %v3938, %v3974
        %v3982 = vadd.f32 %v3939, %v3974
        %v3983 = vadd.f32 %v3940, %v3974
        %v3984 = vadd.f32 %v3941, %v3974
        %v3985 = vadd.f32 %v3942, %v3974
        %v3986 = vadd.f32 %v3943, %v3974
        %v3987 = vadd.f32 %v3944, %v3974
        %v3988 = vadd.f32 %v3945, %v3974
        %v3989 = vadd.f32 %v3946, %v3974
        %v3990 = vadd.f32 %v3947, %v3974
        %v3991 = vadd.f32 %v3948, %v3974
        %v3992 = vadd.f32 %v3949, %v3974
        %v3993 = vadd.f32 %v3950, %v3974
        %v3994 = vadd.f32 %v3951, %v3974
        %v3995 = vadd.f32 %v3952, %v3974
        %v3996 = vadd.f32 %v3953, %v3974
        %v3997 = vadd.f32 %v3954, %v3974
        %v3998 = vadd.f32 %v3955, %v3974
        %v3999 = vadd.f32 %v3956, %v3974
        %v4000 = vadd.f32 %v3957, %v3974
        %v4001 = vadd.f32 %v3958, %v3974
        %v4002 = vadd.f32 %v3959, %v3974
        %v4003 = vadd.f32 %v3960, %v3974
        %v4004 = vadd.f32 %v3961, %v3974
        %v4005 = vadd.f32 %v3962, %v3974
        %v4006 = vadd.f32 %v3963, %v3974
        %v4007 = vadd.f32 %v3964, %v3974
        %v4008 = vadd.f32 %v3965, %v3974
        %v4009 = vadd.f32 %v3966, %v3974
        %v4010 = vadd.f32 %v3967, %v3974
        %v4011 = vadd.f32 %v3968, %v3974
        %v4012 = vmax.f32 %v3976, 0.0
        %v4013 = vmax.f32 %v3977, 0.0
        %v4014 = vmax.f32 %v3978, 0.0
        %v4015 = vmax.f32 %v3979, 0.0
        %v4016 = vmax.f32 %v3980, 0.0
        %v4017 = vmax.f32 %v3981, 0.0
        %v4018 = vmax.f32 %v3982, 0.0
        %v4019 = vmax.f32 %v3983, 0.0
        %v4020 = vmax.f32 %v3984, 0.0
        %v4021 = vmax.f32 %v3985, 0.0
        %v4022 = vmax.f32 %v3986, 0.0
        %v4023 = vmax.f32 %v3987, 0.0
        %v4024 = vmax.f32 %v3988, 0.0
        %v4025 = vmax.f32 %v3989, 0.0
        %v4026 = vmax.f32 %v3990, 0.0
        %v4027 = vmax.f32 %v3991, 0.0
        %v4028 = vmax.f32 %v3992, 0.0
        %v4029 = vmax.f32 %v3993, 0.0
        %v4030 = vmax.f32 %v3994, 0.0
        %v4031 = vmax.f32 %v3995, 0.0
        %v4032 = vmax.f32 %v3996, 0.0
        %v4033 = vmax.f32 %v3997, 0.0
        %v4034 = vmax.f32 %v3998, 0.0
        %v4035 = vmax.f32 %v3999, 0.0
        %v4036 = vmax.f32 %v4000, 0.0
        %v4037 = vmax.f32 %v4001, 0.0
        %v4038 = vmax.f32 %v4002, 0.0
        %v4039 = vmax.f32 %v4003, 0.0
        %v4040 = vmax.f32 %v4004, 0.0
        %v4041 = vmax.f32 %v4005, 0.0
        %v4042 = vmax.f32 %v4006, 0.0
        %v4043 = vmax.f32 %v4007, 0.0
        %v4044 = vmax.f32 %v4008, 0.0
        %v4045 = vmax.f32 %v4009, 0.0
        %v4046 = vmax.f32 %v4010, 0.0
        %v4047 = vmax.f32 %v4011, 0.0
        %4048 = vst [vmem:[%s163] sm:$0xff] %v4012
        %4049 = vst [vmem:[%s163 + $0x8] sm:$0xff] %v4013
        %4050 = vst [vmem:[%s163 + $0x10] sm:$0xff] %v4014
        %4051 = vst [vmem:[%s163 + $0x18] sm:$0xff] %v4015
        %4052 = vst [vmem:[%s163 + $0x20] sm:$0xff] %v4016
        %4053 = vst [vmem:[%s163 + $0x28] sm:$0xff] %v4017
        %4054 = vst [vmem:[%s163 + $0x30] sm:$0xff] %v4018
        %4055 = vst [vmem:[%s163 + $0x38] sm:$0xff] %v4019
        %4056 = vst [vmem:[%s163 + $0x40] sm:$0xff] %v4020
        %4057 = vst [vmem:[%s163 + $0x48] sm:$0xff] %v4021
        %4058 = vst [vmem:[%s163 + $0x50] sm:$0xff] %v4022
        %4059 = vst [vmem:[%s163 + $0x58] sm:$0xff] %v4023
        %4060 = vst [vmem:[%s163 + $0x60] sm:$0xff] %v4024
        %4061 = vst [vmem:[%s163 + $0x68] sm:$0xff] %v4025
        %4062 = vst [vmem:[%s163 + $0x70] sm:$0xff] %v4026
        %4063 = vst [vmem:[%s163 + $0x78] sm:$0xff] %v4027
        %4064 = vst [vmem:[%s163 + $0x80] sm:$0xff] %v4028
        %4065 = vst [vmem:[%s163 + $0x88] sm:$0xff] %v4029
        %4066 = vst [vmem:[%s163 + $0x90] sm:$0xff] %v4030
        %4067 = vst [vmem:[%s163 + $0x98] sm:$0xff] %v4031
        %4068 = vst [vmem:[%s163 + $0xa0] sm:$0xff] %v4032
        %4069 = vst [vmem:[%s163 + $0xa8] sm:$0xff] %v4033
        %4070 = vst [vmem:[%s163 + $0xb0] sm:$0xff] %v4034
        %4071 = vst [vmem:[%s163 + $0xb8] sm:$0xff] %v4035
        %4072 = vst [vmem:[%s163 + $0xc0] sm:$0xff] %v4036
        %4073 = vst [vmem:[%s163 + $0xc8] sm:$0xff] %v4037
        %4074 = vst [vmem:[%s163 + $0xd0] sm:$0xff] %v4038
        %4075 = vst [vmem:[%s163 + $0xd8] sm:$0xff] %v4039
        %4076 = vst [vmem:[%s163 + $0xe0] sm:$0xff] %v4040
        %4077 = vst [vmem:[%s163 + $0xe8] sm:$0xff] %v4041
        %4078 = vst [vmem:[%s163 + $0xf0] sm:$0xff] %v4042
        %4079 = vst [vmem:[%s163 + $0xf8] sm:$0xff] %v4043
        %4080 = vst [vmem:[%s163 + $0x100] sm:$0xff] %v4044
        %4081 = vst [vmem:[%s163 + $0x108] sm:$0xff] %v4045
        %4082 = vst [vmem:[%s163 + $0x110] sm:$0xff] %v4046
        %4083 = vst [vmem:[%s163 + $0x118] sm:$0xff] %v4047
        %s4084 = sand.u32 %s93, 1
        %s4085 = scalar_lea.sflag [#allocation3], %s4084
        %s4086 = sand.u32 %s93, 1
        %s4087 = smul.addr %s4086, 288
        %s4088 = scalar_lea.vmem [#allocation2], %s4087
        // Predicated region
        $region33: #{tpu_custom_call.1} parent=31 // pred_check
          %p4089 = pneg %p103
        $region34: #{tpu_custom_call.1} parent=31 // pred_check_branch
          %4091 = sbr.rel (%p4089) target = $region36
        $region35: #{tpu_custom_call.1} parent=31 // pred_region
          %s4092 = smul.u32 36, %s17
          %s4094 = ssub.s32 4608, 4608
          %4095 = vsyncadd %s4085, %s4094
          %s4096 = smul.addr %s4092, 128
          %s4097 = scalar_lea.hbm %s3, %s4096
          %s4098 = sshll.u32 %s4088, 4
          %s4099 = int_to_ptr.vmem [resolvable:$true] %s4098
          %4104 = dma.vmem_to_hbm [thread:$0]  %s4099, 4608, %s4097, %s4085, 128, 128, 8
        $region36: #{tpu_custom_call.1} parent=31 // pred_fallthru
          _
      $region32: #{tpu_custom_call.1} parent=5 // pred_fallthru
        _
      %p4105 = scmp.le.s32.totalorder 2, %s12
      // Predicated region
      $region37: #{tpu_custom_call.1} parent=5 // pred_check
        %p4106 = pneg %p4105
      $region38: #{tpu_custom_call.1} parent=5 // pred_check_branch
        %4108 = sbr.rel (%p4106) target = $region40
      $region39: #{tpu_custom_call.1} parent=5 // pred_region
        %s4109 = ssub.s32 %s12, 2
        // Predicated region
        $region41: #{tpu_custom_call.1} parent=39 // pred_check
          %p4110 = pneg %p109
        $region42: #{tpu_custom_call.1} parent=39 // pred_check_branch
          %4112 = sbr.rel (%p4110) target = $region44
        $region43: #{tpu_custom_call.1} parent=39 // pred_region
          %s4113 = sand.u32 %s94, 1
          %s4114 = scalar_lea.sflag [#allocation3], %s4113
          %s4115 = sand.u32 %s94, 1
          %s4116 = smul.addr %s4115, 288
          %s4117 = scalar_lea.vmem [#allocation2], %s4116
          %4118 = dma.done %s4114, 4608
        $region44: #{tpu_custom_call.1} parent=39 // pred_fallthru
          _
      $region40: #{tpu_custom_call.1} parent=5 // pred_fallthru
        _
    $region6: #{tpu_custom_call.1} parent=1 // loop_footer
      %s16 = sadd.s32 1, %s12
    $region7: #{tpu_custom_call.1} parent=1 // loop_footer_branch
      %11 = sbr.rel target = $region3
    $region8: #{tpu_custom_call.1} parent=1 // loop_exit
      _
    %4119 = vsyncpa [#allocation3], 1
    %s4120 = scalar_lea.sflag [#allocation3], 1
    %4121 = vsyncpa %s4120, 1

// kernel: tpu_custom_call.1
$region0: #{tpu_custom_call.1}
  #allocation0 [shape = 'u32[]', space=smem, size = 0x4, offset = 0x4, fixed_abs, tag = 'smem constant byte address 0x4 - core index']
  #allocation1 [shape = 'u32[144,128]{1,0:T(1,128)}', space=vmem, size = 0x12000, scoped, tag = 'internal scratch']
  %s0 = inlined_call_operand.vmem [shape: f32[2,328,4], index: 0, kind: input, shape index: {}]
  %s1 = inlined_call_operand.vmem [shape: f32[9,4,128], index: 1, kind: input, shape index: {}]
  %s2 = inlined_call_operand.vmem [shape: f32[1,128], index: 2, kind: input, shape index: {}]
  %s3 = inlined_call_operand.hbm [shape: f32[576,128], index: 3, kind: output, shape index: {}]
  %s4 = sld [smem:[#allocation0]]
  $region45: #{tpu_custom_call.1} parent=0
    _
  %s6 = ssub.s32 1, %s4
  %s7 = scalar_select 0, %s6, %s4
  $region1: #{tpu_custom_call.1} parent=0
    #allocation2 [shape = 'u8[294912]{0}', space=vmem, size = 0x48000, scoped, tag = 'output window, operand 0']
    #allocation3 [shape = 's32[2]{0}', space=sflag, size = 0x8, scoped, tag = 'scoped memory for tpu_custom_call.1']
    %8 = vsyncpa [#allocation3], 0
    %s9 = scalar_lea.sflag [#allocation3], 1
    %10 = vsyncpa %s9, 0
    loop: start=0, step=1, limit=4
    $region2: #{tpu_custom_call.1} parent=1 // loop_pre_header
      _
    $region3: #{tpu_custom_call.1} parent=1 // loop_header
      %s12 = sphi 0, %s16
      %p13 = scmp.ge.s32.totalorder %s12, 4
      %s22 = sphi 0, %s24
      %s25 = sphi 0, %s22
      %s26 = sphi 0, %s25
      %s42 = sphi 0, %s26
      %s46 = sphi 0, %s46
      %s48 = sphi 0, %s46
      %s49 = sphi 0, %s48
      %s63 = sphi 0, %s49
      %s67 = sphi 0, %s67
      %s69 = sphi 0, %s67
      %s70 = sphi 0, %s69
      %s84 = sphi 0, %s70
      %s90 = sphi 0, %s92
      %s93 = sphi 0, %s90
      %s94 = sphi 0, %s93
      %s110 = sphi 0, %s94
    $region4: #{tpu_custom_call.1} parent=1 // loop_header_branch
      %15 = sbr.rel (%p13) target = $region8
    $region5: #{tpu_custom_call.1} parent=1 // loop_body
      %s17 = ssub.s32 %s12, 1
      %s18 = ssub.s32 %s12, 2
      %s19 = sadd.s32 %s12, 1
      %s20 = ssub.s32 %s12, %s19
      %p21 = scmp.eq.s32.totalorder %s20, 0
      %s23 = sadd.s32 %s22, 1
      %s24 = scalar_select %p21, %s22, %s23
      %p27 = pneg %p21
      %p28 = scmp.eq.s32.totalorder %s12, 1
      %p29 = por %p27, %p28
      %p30 = scmp.ne.s32.totalorder %s22, %s25
      %p31 = scmp.eq.s32.totalorder %s12, 0
      %p32 = por %p30, %p31
      %p33 = scmp.ne.s32.totalorder %s22, %s25
      %p34 = scmp.eq.s32.totalorder %s17, 1
      %p35 = por %p33, %p34
      %p36 = scmp.ne.s32.totalorder %s25, %s26
      %p37 = scmp.eq.s32.totalorder %s17, 0
      %p38 = por %p36, %p37
      %p39 = scmp.ne.s32.totalorder %s25, %s26
      %p40 = scmp.eq.s32.totalorder %s18, 1
      %p41 = por %p39, %p40
      %p43 = scmp.ne.s32.totalorder %s26, %s42
      %p44 = scmp.eq.s32.totalorder %s18, 0
      %p45 = por %p43, %p44
      %s47 = sadd.s32 %s46, 1
      %p50 = scmp.eq.s32.totalorder %s12, 1
      %p51 = scmp.ne.s32.totalorder %s46, %s48
      %p52 = scmp.eq.s32.totalorder %s12, 0
      %p53 = por %p51, %p52
      %p54 = scmp.ne.s32.totalorder %s46, %s48
      %p55 = scmp.eq.s32.totalorder %s17, 1
      %p56 = por %p54, %p55
      %p57 = scmp.ne.s32.totalorder %s48, %s49
      %p58 = scmp.eq.s32.totalorder %s17, 0
      %p59 = por %p57, %p58
      %p60 = scmp.ne.s32.totalorder %s48, %s49
      %p61 = scmp.eq.s32.totalorder %s18, 1
      %p62 = por %p60, %p61
      %p64 = scmp.ne.s32.totalorder %s49, %s63
      %p65 = scmp.eq.s32.totalorder %s18, 0
      %p66 = por %p64, %p65
      %s68 = sadd.s32 %s67, 1
      %p71 = scmp.eq.s32.totalorder %s12, 1
      %p72 = scmp.ne.s32.totalorder %s67, %s69
      %p73 = scmp.eq.s32.totalorder %s12, 0
      %p74 = por %p72, %p73
      %p75 = scmp.ne.s32.totalorder %s67, %s69
      %p76 = scmp.eq.s32.totalorder %s17, 1
      %p77 = por %p75, %p76
      %p78 = scmp.ne.s32.totalorder %s69, %s70
      %p79 = scmp.eq.s32.totalorder %s17, 0
      %p80 = por %p78, %p79
      %p81 = scmp.ne.s32.totalorder %s69, %s70
      %p82 = scmp.eq.s32.totalorder %s18, 1
      %p83 = por %p81, %p82
      %p85 = scmp.ne.s32.totalorder %s70, %s84
      %p86 = scmp.eq.s32.totalorder %s18, 0
      %p87 = por %p85, %p86
      %s88 = ssub.s32 %s12, %s19
      %p89 = scmp.eq.s32.totalorder %s88, 0
      %s91 = sadd.s32 %s90, 1
      %s92 = scalar_select %p89, %s90, %s91
      %p95 = pneg %p89
      %p96 = scmp.eq.s32.totalorder %s12, 1
      %p97 = por %p95, %p96
      %p98 = scmp.ne.s32.totalorder %s90, %s93
      %p99 = scmp.eq.s32.totalorder %s12, 0
      %p100 = por %p98, %p99
      %p101 = scmp.ne.s32.totalorder %s90, %s93
      %p102 = scmp.eq.s32.totalorder %s17, 1
      %p103 = por %p101, %p102
      %p104 = scmp.ne.s32.totalorder %s93, %s94
      %p105 = scmp.eq.s32.totalorder %s17, 0
      %p106 = por %p104, %p105
      %p107 = scmp.ne.s32.totalorder %s93, %s94
      %p108 = scmp.eq.s32.totalorder %s18, 1
      %p109 = por %p107, %p108
      %p111 = scmp.ne.s32.totalorder %s94, %s110
      %p112 = scmp.eq.s32.totalorder %s18, 0
      %p113 = por %p111, %p112
      %p114 = scmp.le.s32.totalorder 1, %s12
      %p115 = scmp.lt.s32.totalorder %s12, 3
      %p116 = pnand %p114, %p115
      %p117 = pneg %p116
      // Predicated region
      $region9: #{tpu_custom_call.1} parent=5 // pred_check
        _
      $region10: #{tpu_custom_call.1} parent=5 // pred_check_branch
        %119 = sbr.rel (%p116) target = $region12
      $region11: #{tpu_custom_call.1} parent=5 // pred_region
        %s120 = ssub.s32 %s12, 1
        // Predicated region
        $region13: #{tpu_custom_call.1} parent=11 // pred_check
          %p121 = pneg %p59
        $region14: #{tpu_custom_call.1} parent=11 // pred_check_branch
          %123 = sbr.rel (%p121) target = $region16
        $region15: #{tpu_custom_call.1} parent=11 // pred_region
          _
        $region16: #{tpu_custom_call.1} parent=11 // pred_fallthru
          _
        // Predicated region
        $region17: #{tpu_custom_call.1} parent=11 // pred_check
          %p124 = pneg %p80
        $region18: #{tpu_custom_call.1} parent=11 // pred_check_branch
          %126 = sbr.rel (%p124) target = $region20
        $region19: #{tpu_custom_call.1} parent=11 // pred_region
          _
        $region20: #{tpu_custom_call.1} parent=11 // pred_fallthru
          _
      $region12: #{tpu_custom_call.1} parent=5 // pred_fallthru
        _
      %p127 = scmp.lt.s32.totalorder %s12, 2
      // Predicated region
      $region21: #{tpu_custom_call.1} parent=5 // pred_check
        %p128 = pneg %p127
      $region22: #{tpu_custom_call.1} parent=5 // pred_check_branch
        %130 = sbr.rel (%p128) target = $region24
      $region23: #{tpu_custom_call.1} parent=5 // pred_region
        // Predicated region
        $region25: #{tpu_custom_call.1} parent=23 // pred_check
          %p131 = pneg %p32
        $region26: #{tpu_custom_call.1} parent=23 // pred_check_branch
          %133 = sbr.rel (%p131) target = $region28
        $region27: #{tpu_custom_call.1} parent=23 // pred_region
          %p134 = scmp.lt.s32.totalorder %s12, 1
          %s135 = scalar_select %p134, %s12, 1
          %s136 = smul.addr %s135, 41
          %s137 = smul.addr %s136, 8
          %s138 = scalar_lea.vmem %s0, %s137
        $region28: #{tpu_custom_call.1} parent=23 // pred_fallthru
          _
      $region24: #{tpu_custom_call.1} parent=5 // pred_fallthru
        _
      %p139 = scmp.le.s32.totalorder 1, %s12
      %p140 = scmp.lt.s32.totalorder %s12, 3
      %p141 = pnand %p139, %p140
      %p142 = pneg %p141
      // Predicated region
      $region29: #{tpu_custom_call.1} parent=5 // pred_check
        _
      $region30: #{tpu_custom_call.1} parent=5 // pred_check_branch
        %144 = sbr.rel (%p141) target = $region32
      $region31: #{tpu_custom_call.1} parent=5 // pred_region
        %s145 = ssub.s32 %s12, 1
        %p146 = scmp.lt.s32.totalorder %s17, 1
        %s147 = scalar_select %p146, %s17, 1
        %s148 = smul.addr %s147, 41
        %s149 = smul.addr %s148, 8
        %s150 = scalar_lea.vmem %s0, %s149
        %p151 = pneg %p38
        %p152 = pneg %p35
        %p153 = pneg %p59
        %p154 = pneg %p56
        %p155 = pneg %p80
        %p156 = pneg %p77
        %p157 = pneg %p106
        %p158 = pneg %p103
        %s159 = sand.u32 %s93, 1
        %s160 = scalar_lea.sflag [#allocation3], %s159
        %s161 = sand.u32 %s93, 1
        %s162 = smul.addr %s161, 288
        %s163 = scalar_lea.vmem [#allocation2], %s162
        %p164 = scmp.lt.s32.totalorder %s17, 1
        %s165 = scalar_select %p164, %s17, 1
        %s166 = smul.addr %s165, 41
        %s167 = smul.addr %s166, 8
        %s168 = scalar_lea.vmem %s0, %s167
        %s169 = smul.u32 36, %s17
        %v170 = vld [vmem:[%s168] sm:$0xff]
        %v171 = vld [vmem:[%s168 + $0x8] sm:$0xff]
        %v172 = vld [vmem:[%s168 + $0x10] sm:$0xff]
        %v173 = vld [vmem:[%s168 + $0x18] sm:$0xff]
        %v174 = vld [vmem:[%s168 + $0x20] sm:$0xff]
        %v175 = vld [vmem:[%s168 + $0x28] sm:$0xff]
        %v176 = vld [vmem:[%s168 + $0x30] sm:$0xff]
        %v177 = vld [vmem:[%s168 + $0x38] sm:$0xff]
        %v178 = vld [vmem:[%s168 + $0x40] sm:$0xff]
        %v179 = vld [vmem:[%s168 + $0x48] sm:$0xff]
        %v180 = vld [vmem:[%s168 + $0x50] sm:$0xff]
        %v181 = vld [vmem:[%s168 + $0x58] sm:$0xff]
        %v182 = vld [vmem:[%s168 + $0x60] sm:$0xff]
        %v183 = vld [vmem:[%s168 + $0x68] sm:$0xff]
        %v184 = vld [vmem:[%s168 + $0x70] sm:$0xff]
        %v185 = vld [vmem:[%s168 + $0x78] sm:$0xff]
        %v186 = vld [vmem:[%s168 + $0x80] sm:$0xff]
        %v187 = vld [vmem:[%s168 + $0x88] sm:$0xff]
        %v188 = vld [vmem:[%s168 + $0x90] sm:$0xff]
        %v189 = vld [vmem:[%s168 + $0x98] sm:$0xff]
        %v190 = vld [vmem:[%s168 + $0xa0] sm:$0xff]
        %v191 = vld [vmem:[%s168 + $0xa8] sm:$0xff]
        %v192 = vld [vmem:[%s168 + $0xb0] sm:$0xff]
        %v193 = vld [vmem:[%s168 + $0xb8] sm:$0xff]
        %v194 = vld [vmem:[%s168 + $0xc0] sm:$0xff]
        %v195 = vld [vmem:[%s168 + $0xc8] sm:$0xff]
        %v196 = vld [vmem:[%s168 + $0xd0] sm:$0xff]
        %v197 = vld [vmem:[%s168 + $0xd8] sm:$0xff]
        %v198 = vld [vmem:[%s168 + $0xe0] sm:$0xff]
        %v199 = vld [vmem:[%s168 + $0xe8] sm:$0xff]
        %v200 = vld [vmem:[%s168 + $0xf0] sm:$0xff]
        %v201 = vld [vmem:[%s168 + $0xf8] sm:$0xff]
        %v202 = vld [vmem:[%s168 + $0x100] sm:$0xff]
        %v203 = vld [vmem:[%s168 + $0x108] sm:$0xff]
        %v204 = vld [vmem:[%s168 + $0x110] sm:$0xff]
        %v205 = vld [vmem:[%s168 + $0x118] sm:$0xff]
        %v206 = vld [vmem:[%s1] sm:$0xf]
        %v207 = vld [vmem:[%s168 + $0x1] sm:$0xff]
        %v208 = vld [vmem:[%s168 + $0x9] sm:$0xff]
        %v209 = vld [vmem:[%s168 + $0x11] sm:$0xff]
        %v210 = vld [vmem:[%s168 + $0x19] sm:$0xff]
        %v211 = vld [vmem:[%s168 + $0x21] sm:$0xff]
        %v212 = vld [vmem:[%s168 + $0x29] sm:$0xff]
        %v213 = vld [vmem:[%s168 + $0x31] sm:$0xff]
        %v214 = vld [vmem:[%s168 + $0x39] sm:$0xff]
        %v215 = vld [vmem:[%s168 + $0x41] sm:$0xff]
        %v216 = vld [vmem:[%s168 + $0x49] sm:$0xff]
        %v217 = vld [vmem:[%s168 + $0x51] sm:$0xff]
        %v218 = vld [vmem:[%s168 + $0x59] sm:$0xff]
        %v219 = vld [vmem:[%s168 + $0x61] sm:$0xff]
        %v220 = vld [vmem:[%s168 + $0x69] sm:$0xff]
        %v221 = vld [vmem:[%s168 + $0x71] sm:$0xff]
        %v222 = vld [vmem:[%s168 + $0x79] sm:$0xff]
        %v223 = vld [vmem:[%s168 + $0x81] sm:$0xff]
        %v224 = vld [vmem:[%s168 + $0x89] sm:$0xff]
        %v225 = vld [vmem:[%s168 + $0x91] sm:$0xff]
        %v226 = vld [vmem:[%s168 + $0x99] sm:$0xff]
        %v227 = vld [vmem:[%s168 + $0xa1] sm:$0xff]
        %v228 = vld [vmem:[%s168 + $0xa9] sm:$0xff]
        %v229 = vld [vmem:[%s168 + $0xb1] sm:$0xff]
        %v230 = vld [vmem:[%s168 + $0xb9] sm:$0xff]
        %v231 = vld [vmem:[%s168 + $0xc1] sm:$0xff]
        %v232 = vld [vmem:[%s168 + $0xc9] sm:$0xff]
        %v233 = vld [vmem:[%s168 + $0xd1] sm:$0xff]
        %v234 = vld [vmem:[%s168 + $0xd9] sm:$0xff]
        %v235 = vld [vmem:[%s168 + $0xe1] sm:$0xff]
        %v236 = vld [vmem:[%s168 + $0xe9] sm:$0xff]
        %v237 = vld [vmem:[%s168 + $0xf1] sm:$0xff]
        %v238 = vld [vmem:[%s168 + $0xf9] sm:$0xff]
        %v239 = vld [vmem:[%s168 + $0x101] sm:$0xff]
        %v240 = vld [vmem:[%s168 + $0x109] sm:$0xff]
        %v241 = vld [vmem:[%s168 + $0x111] sm:$0xff]
        %v242 = vld [vmem:[%s168 + $0x119] sm:$0xff]
        %s243 = scalar_lea.vmem %s1, 4
        %v244 = vld [vmem:[%s243] sm:$0xf]
        %vm245 = vcmask 31744
        %v247 = vsel %vm245, %v207, 0
        %v250 = vsel %vm245, %v208, 0
        %v253 = vsel %vm245, %v209, 0
        %v256 = vsel %vm245, %v210, 0
        %v259 = vsel %vm245, %v211, 0
        %v262 = vsel %vm245, %v212, 0
        %v265 = vsel %vm245, %v213, 0
        %v268 = vsel %vm245, %v214, 0
        %v271 = vsel %vm245, %v215, 0
        %v274 = vsel %vm245, %v216, 0
        %v277 = vsel %vm245, %v217, 0
        %v280 = vsel %vm245, %v218, 0
        %v283 = vsel %vm245, %v219, 0
        %v286 = vsel %vm245, %v220, 0
        %v289 = vsel %vm245, %v221, 0
        %v292 = vsel %vm245, %v222, 0
        %v295 = vsel %vm245, %v223, 0
        %v298 = vsel %vm245, %v224, 0
        %v301 = vsel %vm245, %v225, 0
        %v304 = vsel %vm245, %v226, 0
        %v307 = vsel %vm245, %v227, 0
        %v310 = vsel %vm245, %v228, 0
        %v313 = vsel %vm245, %v229, 0
        %v316 = vsel %vm245, %v230, 0
        %v319 = vsel %vm245, %v231, 0
        %v322 = vsel %vm245, %v232, 0
        %v325 = vsel %vm245, %v233, 0
        %v328 = vsel %vm245, %v234, 0
        %v331 = vsel %vm245, %v235, 0
        %v334 = vsel %vm245, %v236, 0
        %v337 = vsel %vm245, %v237, 0
        %v340 = vsel %vm245, %v238, 0
        %v343 = vsel %vm245, %v239, 0
        %v346 = vsel %vm245, %v240, 0
        %v349 = vsel %vm245, %v241, 0
        %v352 = vsel %vm245, %v242, 0
        %vm354 = vcmask 1043456
        %v356 = vsel %vm354, %v244, 0
        %358 = vmatprep.subr.mxu0 0.0
        %359 = vmatpush1.msra.mxu0 %v356
        %360 = vmatprep.subr.mxu0 0.0
        %361 = vmatpush1.msra.mxu0 0.0
        %362 = vmatprep.subr.mxu0 0.0
        %363 = vmatpush1.msra.mxu0 0.0
        %364 = vmatprep.subr.mxu0 0.0
        %365 = vmatpush1.msra.mxu0 0.0
        %366 = vmatprep.subr.mxu0 0.0
        %367 = vmatpush1.msra.mxu0 0.0
        %368 = vmatprep.subr.mxu0 0.0
        %369 = vmatpush1.msra.mxu0 0.0
        %370 = vmatprep.subr.mxu0 0.0
        %371 = vmatpush1.msra.mxu0 0.0
        %372 = vmatprep.subr.mxu0 0.0
        %373 = vmatpush1.msra.mxu0 0.0
        %374 = vmatprep.subr.mxu0 0.0
        %375 = vmatpush1.msra.mxu0 0.0
        %376 = vmatprep.subr.mxu0 0.0
        %377 = vmatpush1.msra.mxu0 0.0
        %378 = vmatprep.subr.mxu0 0.0
        %379 = vmatpush1.msra.mxu0 0.0
        %380 = vmatprep.subr.mxu0 0.0
        %381 = vmatpush1.msra.mxu0 0.0
        %382 = vmatprep.subr.mxu0 0.0
        %383 = vmatpush1.msra.mxu0 0.0
        %384 = vmatprep.subr.mxu0 0.0
        %385 = vmatpush1.msra.mxu0 0.0
        %386 = vmatprep.subr.mxu0 0.0
        %387 = vmatpush1.msra.mxu0 0.0
        %388 = vmatprep.subr.mxu0 0.0
        %389 = vmatpush1.msra.mxu0 0.0
        %390 = vmatprep.subr.mxu0 0.0
        %391 = vmatpush1.msra.mxu0 0.0
        %392 = vmatprep.subr.mxu0 0.0
        %393 = vmatpush1.msra.mxu0 0.0
        %394 = vmatprep.subr.mxu0 0.0
        %395 = vmatpush1.msra.mxu0 0.0
        %396 = vmatprep.subr.mxu0 0.0
        %397 = vmatpush1.msra.mxu0 0.0
        %398 = vmatprep.subr.mxu0 0.0
        %399 = vmatpush1.msra.mxu0 0.0
        %400 = vmatprep.subr.mxu0 0.0
        %401 = vmatpush1.msra.mxu0 0.0
        %402 = vmatprep.subr.mxu0 0.0
        %403 = vmatpush1.msra.mxu0 0.0
        %404 = vmatprep.subr.mxu0 0.0
        %405 = vmatpush1.msra.mxu0 0.0
        %406 = vmatprep.subr.mxu0 0.0
        %407 = vmatpush1.msra.mxu0 0.0
        %408 = vmatprep.subr.mxu0 0.0
        %409 = vmatpush1.msra.mxu0 0.0
        %410 = vmatprep.subr.mxu0 0.0
        %411 = vmatpush1.msra.mxu0 0.0
        %412 = vmatprep.subr.mxu0 0.0
        %413 = vmatpush1.msra.mxu0 0.0
        %414 = vmatprep.subr.mxu0 0.0
        %415 = vmatpush1.msra.mxu0 0.0
        %416 = vmatprep.subr.mxu0 0.0
        %417 = vmatpush1.msra.mxu0 0.0
        %418 = vmatprep.subr.mxu0 0.0
        %419 = vmatpush1.msra.mxu0 0.0
        %420 = vmatprep.subr.mxu0 0.0
        %421 = vmatpush1.msra.mxu0 0.0
        %422 = vmatprep.mubr.f32.mxu0 0.0
        %423 = vmatmul.mubr.f32.gmra.mrb[0].mxu0 %v247
        %v424 = vpop.f32.mrb[0].mxu0
        %v425 = vadd.f32 0.0, %v424
        %v426 = vpop.f32.mrb[0].mxu0
        %427 = vmatprep.mubr.f32.mxu0 0.0
        %428 = vmatmul.mubr.f32.gmra.mrb[0].mxu0 %v250
        %v429 = vpop.f32.mrb[0].mxu0
        %v430 = vadd.f32 0.0, %v429
        %v431 = vpop.f32.mrb[0].mxu0
        %432 = vmatprep.mubr.f32.mxu0 0.0
        %433 = vmatmul.mubr.f32.gmra.mrb[0].mxu0 %v253
        %v434 = vpop.f32.mrb[0].mxu0
        %v435 = vadd.f32 0.0, %v434
        %v436 = vpop.f32.mrb[0].mxu0
        %437 = vmatprep.mubr.f32.mxu0 0.0
        %438 = vmatmul.mubr.f32.gmra.mrb[0].mxu0 %v256
        %v439 = vpop.f32.mrb[0].mxu0
        %v440 = vadd.f32 0.0, %v439
        %v441 = vpop.f32.mrb[0].mxu0
        %442 = vmatprep.mubr.f32.mxu0 0.0
        %443 = vmatmul.mubr.f32.gmra.mrb[0].mxu0 %v259
        %v444 = vpop.f32.mrb[0].mxu0
        %v445 = vadd.f32 0.0, %v444
        %v446 = vpop.f32.mrb[0].mxu0
        %447 = vmatprep.mubr.f32.mxu0 0.0
        %448 = vmatmul.mubr.f32.gmra.mrb[0].mxu0 %v262
        %v449 = vpop.f32.mrb[0].mxu0
        %v450 = vadd.f32 0.0, %v449
        %v451 = vpop.f32.mrb[0].mxu0
        %452 = vmatprep.mubr.f32.mxu0 0.0
        %453 = vmatmul.mubr.f32.gmra.mrb[0].mxu0 %v265
        %v454 = vpop.f32.mrb[0].mxu0
        %v455 = vadd.f32 0.0, %v454
        %v456 = vpop.f32.mrb[0].mxu0
        %457 = vmatprep.mubr.f32.mxu0 0.0
        %458 = vmatmul.mubr.f32.gmra.mrb[0].mxu0 %v268
        %v459 = vpop.f32.mrb[0].mxu0
        %v460 = vadd.f32 0.0, %v459
        %v461 = vpop.f32.mrb[0].mxu0
        %462 = vmatprep.mubr.f32.mxu0 0.0
        %463 = vmatmul.mubr.f32.gmra.mrb[0].mxu0 %v271
        %v464 = vpop.f32.mrb[0].mxu0
        %v465 = vadd.f32 0.0, %v464
        %v466 = vpop.f32.mrb[0].mxu0
        %467 = vmatprep.mubr.f32.mxu0 0.0
        %468 = vmatmul.mubr.f32.gmra.mrb[0].mxu0 %v274
        %v469 = vpop.f32.mrb[0].mxu0
        %v470 = vadd.f32 0.0, %v469
        %v471 = vpop.f32.mrb[0].mxu0
        %472 = vmatprep.mubr.f32.mxu0 0.0
        %473 = vmatmul.mubr.f32.gmra.mrb[0].mxu0 %v277
        %v474 = vpop.f32.mrb[0].mxu0
        %v475 = vadd.f32 0.0, %v474
        %v476 = vpop.f32.mrb[0].mxu0
        %477 = vmatprep.mubr.f32.mxu0 0.0
        %478 = vmatmul.mubr.f32.gmra.mrb[0].mxu0 %v280
        %v479 = vpop.f32.mrb[0].mxu0
        %v480 = vadd.f32 0.0, %v479
        %v481 = vpop.f32.mrb[0].mxu0
        %482 = vmatprep.mubr.f32.mxu0 0.0
        %483 = vmatmul.mubr.f32.gmra.mrb[0].mxu0 %v283
        %v484 = vpop.f32.mrb[0].mxu0
        %v485 = vadd.f32 0.0, %v484
        %v486 = vpop.f32.mrb[0].mxu0
        %487 = vmatprep.mubr.f32.mxu0 0.0
        %488 = vmatmul.mubr.f32.gmra.mrb[0].mxu0 %v286
        %v489 = vpop.f32.mrb[0].mxu0
        %v490 = vadd.f32 0.0, %v489
        %v491 = vpop.f32.mrb[0].mxu0
        %492 = vmatprep.mubr.f32.mxu0 0.0
        %493 = vmatmul.mubr.f32.gmra.mrb[0].mxu0 %v289
        %v494 = vpop.f32.mrb[0].mxu0
        %v495 = vadd.f32 0.0, %v494
        %v496 = vpop.f32.mrb[0].mxu0
        %497 = vmatprep.mubr.f32.mxu0 0.0
        %498 = vmatmul.mubr.f32.gmra.mrb[0].mxu0 %v292
        %v499 = vpop.f32.mrb[0].mxu0
        %v500 = vadd.f32 0.0, %v499
        %v501 = vpop.f32.mrb[0].mxu0
        %502 = vmatprep.mubr.f32.mxu0 0.0
        %503 = vmatmul.mubr.f32.gmra.mrb[0].mxu0 %v295
        %v504 = vpop.f32.mrb[0].mxu0
        %v505 = vadd.f32 0.0, %v504
        %v506 = vpop.f32.mrb[0].mxu0
        %507 = vmatprep.mubr.f32.mxu0 0.0
        %508 = vmatmul.mubr.f32.gmra.mrb[0].mxu0 %v298
        %v509 = vpop.f32.mrb[0].mxu0
        %v510 = vadd.f32 0.0, %v509
        %v511 = vpop.f32.mrb[0].mxu0
        %512 = vmatprep.mubr.f32.mxu0 0.0
        %513 = vmatmul.mubr.f32.gmra.mrb[0].mxu0 %v301
        %v514 = vpop.f32.mrb[0].mxu0
        %v515 = vadd.f32 0.0, %v514
        %v516 = vpop.f32.mrb[0].mxu0
        %517 = vmatprep.mubr.f32.mxu0 0.0
        %518 = vmatmul.mubr.f32.gmra.mrb[0].mxu0 %v304
        %v519 = vpop.f32.mrb[0].mxu0
        %v520 = vadd.f32 0.0, %v519
        %v521 = vpop.f32.mrb[0].mxu0
        %522 = vmatprep.mubr.f32.mxu0 0.0
        %523 = vmatmul.mubr.f32.gmra.mrb[0].mxu0 %v307
        %v524 = vpop.f32.mrb[0].mxu0
        %v525 = vadd.f32 0.0, %v524
        %v526 = vpop.f32.mrb[0].mxu0
        %527 = vmatprep.mubr.f32.mxu0 0.0
        %528 = vmatmul.mubr.f32.gmra.mrb[0].mxu0 %v310
        %v529 = vpop.f32.mrb[0].mxu0
        %v530 = vadd.f32 0.0, %v529
        %v531 = vpop.f32.mrb[0].mxu0
        %532 = vmatprep.mubr.f32.mxu0 0.0
        %533 = vmatmul.mubr.f32.gmra.mrb[0].mxu0 %v313
        %v534 = vpop.f32.mrb[0].mxu0
        %v535 = vadd.f32 0.0, %v534
        %v536 = vpop.f32.mrb[0].mxu0
        %537 = vmatprep.mubr.f32.mxu0 0.0
        %538 = vmatmul.mubr.f32.gmra.mrb[0].mxu0 %v316
        %v539 = vpop.f32.mrb[0].mxu0
        %v540 = vadd.f32 0.0, %v539
        %v541 = vpop.f32.mrb[0].mxu0
        %542 = vmatprep.mubr.f32.mxu0 0.0
        %543 = vmatmul.mubr.f32.gmra.mrb[0].mxu0 %v319
        %v544 = vpop.f32.mrb[0].mxu0
        %v545 = vadd.f32 0.0, %v544
        %v546 = vpop.f32.mrb[0].mxu0
        %547 = vmatprep.mubr.f32.mxu0 0.0
        %548 = vmatmul.mubr.f32.gmra.mrb[0].mxu0 %v322
        %v549 = vpop.f32.mrb[0].mxu0
        %v550 = vadd.f32 0.0, %v549
        %v551 = vpop.f32.mrb[0].mxu0
        %552 = vmatprep.mubr.f32.mxu0 0.0
        %553 = vmatmul.mubr.f32.gmra.mrb[0].mxu0 %v325
        %v554 = vpop.f32.mrb[0].mxu0
        %v555 = vadd.f32 0.0, %v554
        %v556 = vpop.f32.mrb[0].mxu0
        %557 = vmatprep.mubr.f32.mxu0 0.0
        %558 = vmatmul.mubr.f32.gmra.mrb[0].mxu0 %v328
        %v559 = vpop.f32.mrb[0].mxu0
        %v560 = vadd.f32 0.0, %v559
        %v561 = vpop.f32.mrb[0].mxu0
        %562 = vmatprep.mubr.f32.mxu0 0.0
        %563 = vmatmul.mubr.f32.gmra.mrb[0].mxu0 %v331
        %v564 = vpop.f32.mrb[0].mxu0
        %v565 = vadd.f32 0.0, %v564
        %v566 = vpop.f32.mrb[0].mxu0
        %567 = vmatprep.mubr.f32.mxu0 0.0
        %568 = vmatmul.mubr.f32.gmra.mrb[0].mxu0 %v334
        %v569 = vpop.f32.mrb[0].mxu0
        %v570 = vadd.f32 0.0, %v569
        %v571 = vpop.f32.mrb[0].mxu0
        %572 = vmatprep.mubr.f32.mxu0 0.0
        %573 = vmatmul.mubr.f32.gmra.mrb[0].mxu0 %v337
        %v574 = vpop.f32.mrb[0].mxu0
        %v575 = vadd.f32 0.0, %v574
        %v576 = vpop.f32.mrb[0].mxu0
        %577 = vmatprep.mubr.f32.mxu0 0.0
        %578 = vmatmul.mubr.f32.gmra.mrb[0].mxu0 %v340
        %v579 = vpop.f32.mrb[0].mxu0
        %v580 = vadd.f32 0.0, %v579
        %v581 = vpop.f32.mrb[0].mxu0
        %582 = vmatprep.mubr.f32.mxu0 0.0
        %583 = vmatmul.mubr.f32.gmra.mrb[0].mxu0 %v343
        %v584 = vpop.f32.mrb[0].mxu0
        %v585 = vadd.f32 0.0, %v584
        %v586 = vpop.f32.mrb[0].mxu0
        %587 = vmatprep.mubr.f32.mxu0 0.0
        %588 = vmatmul.mubr.f32.gmra.mrb[0].mxu0 %v346
        %v589 = vpop.f32.mrb[0].mxu0
        %v590 = vadd.f32 0.0, %v589
        %v591 = vpop.f32.mrb[0].mxu0
        %592 = vmatprep.mubr.f32.mxu0 0.0
        %593 = vmatmul.mubr.f32.gmra.mrb[0].mxu0 %v349
        %v594 = vpop.f32.mrb[0].mxu0
        %v595 = vadd.f32 0.0, %v594
        %v596 = vpop.f32.mrb[0].mxu0
        %597 = vmatprep.mubr.f32.mxu0 0.0
        %598 = vmatmul.mubr.f32.gmra.mrb[0].mxu0 %v352
        %v599 = vpop.f32.mrb[0].mxu0
        %v600 = vadd.f32 0.0, %v599
        %v601 = vpop.f32.mrb[0].mxu0
        %602 = vdwg.mxu0
        %v604 = vsel %vm245, %v170, 0
        %v607 = vsel %vm245, %v171, 0
        %v610 = vsel %vm245, %v172, 0
        %v613 = vsel %vm245, %v173, 0
        %v616 = vsel %vm245, %v174, 0
        %v619 = vsel %vm245, %v175, 0
        %v622 = vsel %vm245, %v176, 0
        %v625 = vsel %vm245, %v177, 0
        %v628 = vsel %vm245, %v178, 0
        %v631 = vsel %vm245, %v179, 0
        %v634 = vsel %vm245, %v180, 0
        %v637 = vsel %vm245, %v181, 0
        %v640 = vsel %vm245, %v182, 0
        %v643 = vsel %vm245, %v183, 0
        %v646 = vsel %vm245, %v184, 0
        %v649 = vsel %vm245, %v185, 0
        %v652 = vsel %vm245, %v186, 0
        %v655 = vsel %vm245, %v187, 0
        %v658 = vsel %vm245, %v188, 0
        %v661 = vsel %vm245, %v189, 0
        %v664 = vsel %vm245, %v190, 0
        %v667 = vsel %vm245, %v191, 0
        %v670 = vsel %vm245, %v192, 0
        %v673 = vsel %vm245, %v193, 0
        %v676 = vsel %vm245, %v194, 0
        %v679 = vsel %vm245, %v195, 0
        %v682 = vsel %vm245, %v196, 0
        %v685 = vsel %vm245, %v197, 0
        %v688 = vsel %vm245, %v198, 0
        %v691 = vsel %vm245, %v199, 0
        %v694 = vsel %vm245, %v200, 0
        %v697 = vsel %vm245, %v201, 0
        %v700 = vsel %vm245, %v202, 0
        %v703 = vsel %vm245, %v203, 0
        %v706 = vsel %vm245, %v204, 0
        %v709 = vsel %vm245, %v205, 0
        %v712 = vsel %vm354, %v206, 0
        %714 = vmatprep.subr.mxu0 0.0
        %715 = vmatpush1.msra.mxu0 %v712
        %716 = vmatprep.subr.mxu0 0.0
        %717 = vmatpush1.msra.mxu0 0.0
        %718 = vmatprep.subr.mxu0 0.0
        %719 = vmatpush1.msra.mxu0 0.0
        %720 = vmatprep.subr.mxu0 0.0
        %721 = vmatpush1.msra.mxu0 0.0
        %722 = vmatprep.subr.mxu0 0.0
        %723 = vmatpush1.msra.mxu0 0.0
        %724 = vmatprep.subr.mxu0 0.0
        %725 = vmatpush1.msra.mxu0 0.0
        %726 = vmatprep.subr.mxu0 0.0
        %727 = vmatpush1.msra.mxu0 0.0
        %728 = vmatprep.subr.mxu0 0.0
        %729 = vmatpush1.msra.mxu0 0.0
        %730 = vmatprep.subr.mxu0 0.0
        %731 = vmatpush1.msra.mxu0 0.0
        %732 = vmatprep.subr.mxu0 0.0
        %733 = vmatpush1.msra.mxu0 0.0
        %734 = vmatprep.subr.mxu0 0.0
        %735 = vmatpush1.msra.mxu0 0.0
        %736 = vmatprep.subr.mxu0 0.0
        %737 = vmatpush1.msra.mxu0 0.0
        %738 = vmatprep.subr.mxu0 0.0
        %739 = vmatpush1.msra.mxu0 0.0
        %740 = vmatprep.subr.mxu0 0.0
        %741 = vmatpush1.msra.mxu0 0.0
        %742 = vmatprep.subr.mxu0 0.0
        %743 = vmatpush1.msra.mxu0 0.0
        %744 = vmatprep.subr.mxu0 0.0
        %745 = vmatpush1.msra.mxu0 0.0
        %746 = vmatprep.subr.mxu0 0.0
        %747 = vmatpush1.msra.mxu0 0.0
        %748 = vmatprep.subr.mxu0 0.0
        %749 = vmatpush1.msra.mxu0 0.0
        %750 = vmatprep.subr.mxu0 0.0
        %751 = vmatpush1.msra.mxu0 0.0
        %752 = vmatprep.subr.mxu0 0.0
        %753 = vmatpush1.msra.mxu0 0.0
        %754 = vmatprep.subr.mxu0 0.0
        %755 = vmatpush1.msra.mxu0 0.0
        %756 = vmatprep.subr.mxu0 0.0
        %757 = vmatpush1.msra.mxu0 0.0
        %758 = vmatprep.subr.mxu0 0.0
        %759 = vmatpush1.msra.mxu0 0.0
        %760 = vmatprep.subr.mxu0 0.0
        %761 = vmatpush1.msra.mxu0 0.0
        %762 = vmatprep.subr.mxu0 0.0
        %763 = vmatpush1.msra.mxu0 0.0
        %764 = vmatprep.subr.mxu0 0.0
        %765 = vmatpush1.msra.mxu0 0.0
        %766 = vmatprep.subr.mxu0 0.0
        %767 = vmatpush1.msra.mxu0 0.0
        %768 = vmatprep.subr.mxu0 0.0
        %769 = vmatpush1.msra.mxu0 0.0
        %770 = vmatprep.subr.mxu0 0.0
        %771 = vmatpush1.msra.mxu0 0.0
        %772 = vmatprep.subr.mxu0 0.0
        %773 = vmatpush1.msra.mxu0 0.0
        %774 = vmatprep.subr.mxu0 0.0
        %775 = vmatpush1.msra.mxu0 0.0
        %776 = vmatprep.subr.mxu0 0.0
        %777 = vmatpush1.msra.mxu0 0.0
        %778 = vmatprep.mubr.f32.mxu0 0.0
        %779 = vmatmul.mubr.f32.gmra.mrb[0].mxu0 %v604
        %v780 = vpop.f32.mrb[0].mxu0
        %v781 = vadd.f32 %v425, %v780
        %v782 = vpop.f32.mrb[0].mxu0
        %783 = vmatprep.mubr.f32.mxu0 0.0
        %784 = vmatmul.mubr.f32.gmra.mrb[0].mxu0 %v607
        %v785 = vpop.f32.mrb[0].mxu0
        %v786 = vadd.f32 %v430, %v785
        %v787 = vpop.f32.mrb[0].mxu0
        %788 = vmatprep.mubr.f32.mxu0 0.0
        %789 = vmatmul.mubr.f32.gmra.mrb[0].mxu0 %v610
        %v790 = vpop.f32.mrb[0].mxu0
        %v791 = vadd.f32 %v435, %v790
        %v792 = vpop.f32.mrb[0].mxu0
        %793 = vmatprep.mubr.f32.mxu0 0.0
        %794 = vmatmul.mubr.f32.gmra.mrb[0].mxu0 %v613
        %v795 = vpop.f32.mrb[0].mxu0
        %v796 = vadd.f32 %v440, %v795
        %v797 = vpop.f32.mrb[0].mxu0
        %798 = vmatprep.mubr.f32.mxu0 0.0
        %799 = vmatmul.mubr.f32.gmra.mrb[0].mxu0 %v616
        %v800 = vpop.f32.mrb[0].mxu0
        %v801 = vadd.f32 %v445, %v800
        %v802 = vpop.f32.mrb[0].mxu0
        %803 = vmatprep.mubr.f32.mxu0 0.0
        %804 = vmatmul.mubr.f32.gmra.mrb[0].mxu0 %v619
        %v805 = vpop.f32.mrb[0].mxu0
        %v806 = vadd.f32 %v450, %v805
        %v807 = vpop.f32.mrb[0].mxu0
        %808 = vmatprep.mubr.f32.mxu0 0.0
        %809 = vmatmul.mubr.f32.gmra.mrb[0].mxu0 %v622
        %v810 = vpop.f32.mrb[0].mxu0
        %v811 = vadd.f32 %v455, %v810
        %v812 = vpop.f32.mrb[0].mxu0
        %813 = vmatprep.mubr.f32.mxu0 0.0
        %814 = vmatmul.mubr.f32.gmra.mrb[0].mxu0 %v625
        %v815 = vpop.f32.mrb[0].mxu0
        %v816 = vadd.f32 %v460, %v815
        %v817 = vpop.f32.mrb[0].mxu0
        %818 = vmatprep.mubr.f32.mxu0 0.0
        %819 = vmatmul.mubr.f32.gmra.mrb[0].mxu0 %v628
        %v820 = vpop.f32.mrb[0].mxu0
        %v821 = vadd.f32 %v465, %v820
        %v822 = vpop.f32.mrb[0].mxu0
        %823 = vmatprep.mubr.f32.mxu0 0.0
        %824 = vmatmul.mubr.f32.gmra.mrb[0].mxu0 %v631
        %v825 = vpop.f32.mrb[0].mxu0
        %v826 = vadd.f32 %v470, %v825
        %v827 = vpop.f32.mrb[0].mxu0
        %828 = vmatprep.mubr.f32.mxu0 0.0
        %829 = vmatmul.mubr.f32.gmra.mrb[0].mxu0 %v634
        %v830 = vpop.f32.mrb[0].mxu0
        %v831 = vadd.f32 %v475, %v830
        %v832 = vpop.f32.mrb[0].mxu0
        %833 = vmatprep.mubr.f32.mxu0 0.0
        %834 = vmatmul.mubr.f32.gmra.mrb[0].mxu0 %v637
        %v835 = vpop.f32.mrb[0].mxu0
        %v836 = vadd.f32 %v480, %v835
        %v837 = vpop.f32.mrb[0].mxu0
        %838 = vmatprep.mubr.f32.mxu0 0.0
        %839 = vmatmul.mubr.f32.gmra.mrb[0].mxu0 %v640
        %v840 = vpop.f32.mrb[0].mxu0
        %v841 = vadd.f32 %v485, %v840
        %v842 = vpop.f32.mrb[0].mxu0
        %843 = vmatprep.mubr.f32.mxu0 0.0
        %844 = vmatmul.mubr.f32.gmra.mrb[0].mxu0 %v643
        %v845 = vpop.f32.mrb[0].mxu0
        %v846 = vadd.f32 %v490, %v845
        %v847 = vpop.f32.mrb[0].mxu0
        %848 = vmatprep.mubr.f32.mxu0 0.0
        %849 = vmatmul.mubr.f32.gmra.mrb[0].mxu0 %v646
        %v850 = vpop.f32.mrb[0].mxu0
        %v851 = vadd.f32 %v495, %v850
        %v852 = vpop.f32.mrb[0].mxu0
        %853 = vmatprep.mubr.f32.mxu0 0.0
        %854 = vmatmul.mubr.f32.gmra.mrb[0].mxu0 %v649
        %v855 = vpop.f32.mrb[0].mxu0
        %v856 = vadd.f32 %v500, %v855
        %v857 = vpop.f32.mrb[0].mxu0
        %858 = vmatprep.mubr.f32.mxu0 0.0
        %859 = vmatmul.mubr.f32.gmra.mrb[0].mxu0 %v652
        %v860 = vpop.f32.mrb[0].mxu0
        %v861 = vadd.f32 %v505, %v860
        %v862 = vpop.f32.mrb[0].mxu0
        %863 = vmatprep.mubr.f32.mxu0 0.0
        %864 = vmatmul.mubr.f32.gmra.mrb[0].mxu0 %v655
        %v865 = vpop.f32.mrb[0].mxu0
        %v866 = vadd.f32 %v510, %v865
        %v867 = vpop.f32.mrb[0].mxu0
        %868 = vmatprep.mubr.f32.mxu0 0.0
        %869 = vmatmul.mubr.f32.gmra.mrb[0].mxu0 %v658
        %v870 = vpop.f32.mrb[0].mxu0
        %v871 = vadd.f32 %v515, %v870
        %v872 = vpop.f32.mrb[0].mxu0
        %873 = vmatprep.mubr.f32.mxu0 0.0
        %874 = vmatmul.mubr.f32.gmra.mrb[0].mxu0 %v661
        %v875 = vpop.f32.mrb[0].mxu0
        %v876 = vadd.f32 %v520, %v875
        %v877 = vpop.f32.mrb[0].mxu0
        %878 = vmatprep.mubr.f32.mxu0 0.0
        %879 = vmatmul.mubr.f32.gmra.mrb[0].mxu0 %v664
        %v880 = vpop.f32.mrb[0].mxu0
        %v881 = vadd.f32 %v525, %v880
        %v882 = vpop.f32.mrb[0].mxu0
        %883 = vmatprep.mubr.f32.mxu0 0.0
        %884 = vmatmul.mubr.f32.gmra.mrb[0].mxu0 %v667
        %v885 = vpop.f32.mrb[0].mxu0
        %v886 = vadd.f32 %v530, %v885
        %v887 = vpop.f32.mrb[0].mxu0
        %888 = vmatprep.mubr.f32.mxu0 0.0
        %889 = vmatmul.mubr.f32.gmra.mrb[0].mxu0 %v670
        %v890 = vpop.f32.mrb[0].mxu0
        %v891 = vadd.f32 %v535, %v890
        %v892 = vpop.f32.mrb[0].mxu0
        %893 = vmatprep.mubr.f32.mxu0 0.0
        %894 = vmatmul.mubr.f32.gmra.mrb[0].mxu0 %v673
        %v895 = vpop.f32.mrb[0].mxu0
        %v896 = vadd.f32 %v540, %v895
        %v897 = vpop.f32.mrb[0].mxu0
        %898 = vmatprep.mubr.f32.mxu0 0.0
        %899 = vmatmul.mubr.f32.gmra.mrb[0].mxu0 %v676
        %v900 = vpop.f32.mrb[0].mxu0
        %v901 = vadd.f32 %v545, %v900
        %v902 = vpop.f32.mrb[0].mxu0
        %903 = vmatprep.mubr.f32.mxu0 0.0
        %904 = vmatmul.mubr.f32.gmra.mrb[0].mxu0 %v679
        %v905 = vpop.f32.mrb[0].mxu0
        %v906 = vadd.f32 %v550, %v905
        %v907 = vpop.f32.mrb[0].mxu0
        %908 = vmatprep.mubr.f32.mxu0 0.0
        %909 = vmatmul.mubr.f32.gmra.mrb[0].mxu0 %v682
        %v910 = vpop.f32.mrb[0].mxu0
        %v911 = vadd.f32 %v555, %v910
        %v912 = vpop.f32.mrb[0].mxu0
        %913 = vmatprep.mubr.f32.mxu0 0.0
        %914 = vmatmul.mubr.f32.gmra.mrb[0].mxu0 %v685
        %v915 = vpop.f32.mrb[0].mxu0
        %v916 = vadd.f32 %v560, %v915
        %v917 = vpop.f32.mrb[0].mxu0
        %918 = vmatprep.mubr.f32.mxu0 0.0
        %919 = vmatmul.mubr.f32.gmra.mrb[0].mxu0 %v688
        %v920 = vpop.f32.mrb[0].mxu0
        %v921 = vadd.f32 %v565, %v920
        %v922 = vpop.f32.mrb[0].mxu0
        %923 = vmatprep.mubr.f32.mxu0 0.0
        %924 = vmatmul.mubr.f32.gmra.mrb[0].mxu0 %v691
        %v925 = vpop.f32.mrb[0].mxu0
        %v926 = vadd.f32 %v570, %v925
        %v927 = vpop.f32.mrb[0].mxu0
        %928 = vmatprep.mubr.f32.mxu0 0.0
        %929 = vmatmul.mubr.f32.gmra.mrb[0].mxu0 %v694
        %v930 = vpop.f32.mrb[0].mxu0
        %v931 = vadd.f32 %v575, %v930
        %v932 = vpop.f32.mrb[0].mxu0
        %933 = vmatprep.mubr.f32.mxu0 0.0
        %934 = vmatmul.mubr.f32.gmra.mrb[0].mxu0 %v697
        %v935 = vpop.f32.mrb[0].mxu0
        %v936 = vadd.f32 %v580, %v935
        %v937 = vpop.f32.mrb[0].mxu0
        %938 = vmatprep.mubr.f32.mxu0 0.0
        %939 = vmatmul.mubr.f32.gmra.mrb[0].mxu0 %v700
        %v940 = vpop.f32.mrb[0].mxu0
        %v941 = vadd.f32 %v585, %v940
        %v942 = vpop.f32.mrb[0].mxu0
        %943 = vmatprep.mubr.f32.mxu0 0.0
        %944 = vmatmul.mubr.f32.gmra.mrb[0].mxu0 %v703
        %v945 = vpop.f32.mrb[0].mxu0
        %v946 = vadd.f32 %v590, %v945
        %v947 = vpop.f32.mrb[0].mxu0
        %948 = vmatprep.mubr.f32.mxu0 0.0
        %949 = vmatmul.mubr.f32.gmra.mrb[0].mxu0 %v706
        %v950 = vpop.f32.mrb[0].mxu0
        %v951 = vadd.f32 %v595, %v950
        %v952 = vpop.f32.mrb[0].mxu0
        %953 = vmatprep.mubr.f32.mxu0 0.0
        %954 = vmatmul.mubr.f32.gmra.mrb[0].mxu0 %v709
        %v955 = vpop.f32.mrb[0].mxu0
        %v956 = vadd.f32 %v600, %v955
        %v957 = vpop.f32.mrb[0].mxu0
        %958 = vdwg.mxu0
        %v959 = vld [vmem:[%s168 + $0x2] sm:$0xff]
        %v960 = vld [vmem:[%s168 + $0xa] sm:$0xff]
        %v961 = vld [vmem:[%s168 + $0x12] sm:$0xff]
        %v962 = vld [vmem:[%s168 + $0x1a] sm:$0xff]
        %v963 = vld [vmem:[%s168 + $0x22] sm:$0xff]
        %v964 = vld [vmem:[%s168 + $0x2a] sm:$0xff]
        %v965 = vld [vmem:[%s168 + $0x32] sm:$0xff]
        %v966 = vld [vmem:[%s168 + $0x3a] sm:$0xff]
        %v967 = vld [vmem:[%s168 + $0x42] sm:$0xff]
        %v968 = vld [vmem:[%s168 + $0x4a] sm:$0xff]
        %v969 = vld [vmem:[%s168 + $0x52] sm:$0xff]
        %v970 = vld [vmem:[%s168 + $0x5a] sm:$0xff]
        %v971 = vld [vmem:[%s168 + $0x62] sm:$0xff]
        %v972 = vld [vmem:[%s168 + $0x6a] sm:$0xff]
        %v973 = vld [vmem:[%s168 + $0x72] sm:$0xff]
        %v974 = vld [vmem:[%s168 + $0x7a] sm:$0xff]
        %v975 = vld [vmem:[%s168 + $0x82] sm:$0xff]
        %v976 = vld [vmem:[%s168 + $0x8a] sm:$0xff]
        %v977 = vld [vmem:[%s168 + $0x92] sm:$0xff]
        %v978 = vld [vmem:[%s168 + $0x9a] sm:$0xff]
        %v979 = vld [vmem:[%s168 + $0xa2] sm:$0xff]
        %v980 = vld [vmem:[%s168 + $0xaa] sm:$0xff]
        %v981 = vld [vmem:[%s168 + $0xb2] sm:$0xff]
        %v982 = vld [vmem:[%s168 + $0xba] sm:$0xff]
        %v983 = vld [vmem:[%s168 + $0xc2] sm:$0xff]
        %v984 = vld [vmem:[%s168 + $0xca] sm:$0xff]
        %v985 = vld [vmem:[%s168 + $0xd2] sm:$0xff]
        %v986 = vld [vmem:[%s168 + $0xda] sm:$0xff]
        %v987 = vld [vmem:[%s168 + $0xe2] sm:$0xff]
        %v988 = vld [vmem:[%s168 + $0xea] sm:$0xff]
        %v989 = vld [vmem:[%s168 + $0xf2] sm:$0xff]
        %v990 = vld [vmem:[%s168 + $0xfa] sm:$0xff]
        %v991 = vld [vmem:[%s168 + $0x102] sm:$0xff]
        %v992 = vld [vmem:[%s168 + $0x10a] sm:$0xff]
        %v993 = vld [vmem:[%s168 + $0x112] sm:$0xff]
        %v994 = vld [vmem:[%s168 + $0x11a] sm:$0xff]
        %s995 = scalar_lea.vmem %s1, 8
        %v996 = vld [vmem:[%s995] sm:$0xf]
        %v998 = vsel %vm245, %v959, 0
        %v1001 = vsel %vm245, %v960, 0
        %v1004 = vsel %vm245, %v961, 0
        %v1007 = vsel %vm245, %v962, 0
        %v1010 = vsel %vm245, %v963, 0
        %v1013 = vsel %vm245, %v964, 0
        %v1016 = vsel %vm245, %v965, 0
        %v1019 = vsel %vm245, %v966, 0
        %v1022 = vsel %vm245, %v967, 0
        %v1025 = vsel %vm245, %v968, 0
        %v1028 = vsel %vm245, %v969, 0
        %v1031 = vsel %vm245, %v970, 0
        %v1034 = vsel %vm245, %v971, 0
        %v1037 = vsel %vm245, %v972, 0
        %v1040 = vsel %vm245, %v973, 0
        %v1043 = vsel %vm245, %v974, 0
        %v1046 = vsel %vm245, %v975, 0
        %v1049 = vsel %vm245, %v976, 0
        %v1052 = vsel %vm245, %v977, 0
        %v1055 = vsel %vm245, %v978, 0
        %v1058 = vsel %vm245, %v979, 0
        %v1061 = vsel %vm245, %v980, 0
        %v1064 = vsel %vm245, %v981, 0
        %v1067 = vsel %vm245, %v982, 0
        %v1070 = vsel %vm245, %v983, 0
        %v1073 = vsel %vm245, %v984, 0
        %v1076 = vsel %vm245, %v985, 0
        %v1079 = vsel %vm245, %v986, 0
        %v1082 = vsel %vm245, %v987, 0
        %v1085 = vsel %vm245, %v988, 0
        %v1088 = vsel %vm245, %v989, 0
        %v1091 = vsel %vm245, %v990, 0
        %v1094 = vsel %vm245, %v991, 0
        %v1097 = vsel %vm245, %v992, 0
        %v1100 = vsel %vm245, %v993, 0
        %v1103 = vsel %vm245, %v994, 0
        %v1106 = vsel %vm354, %v996, 0
        %1108 = vmatprep.subr.mxu0 0.0
        %1109 = vmatpush1.msra.mxu0 %v1106
        %1110 = vmatprep.subr.mxu0 0.0
        %1111 = vmatpush1.msra.mxu0 0.0
        %1112 = vmatprep.subr.mxu0 0.0
        %1113 = vmatpush1.msra.mxu0 0.0
        %1114 = vmatprep.subr.mxu0 0.0
        %1115 = vmatpush1.msra.mxu0 0.0
        %1116 = vmatprep.subr.mxu0 0.0
        %1117 = vmatpush1.msra.mxu0 0.0
        %1118 = vmatprep.subr.mxu0 0.0
        %1119 = vmatpush1.msra.mxu0 0.0
        %1120 = vmatprep.subr.mxu0 0.0
        %1121 = vmatpush1.msra.mxu0 0.0
        %1122 = vmatprep.subr.mxu0 0.0
        %1123 = vmatpush1.msra.mxu0 0.0
        %1124 = vmatprep.subr.mxu0 0.0
        %1125 = vmatpush1.msra.mxu0 0.0
        %1126 = vmatprep.subr.mxu0 0.0
        %1127 = vmatpush1.msra.mxu0 0.0
        %1128 = vmatprep.subr.mxu0 0.0
        %1129 = vmatpush1.msra.mxu0 0.0
        %1130 = vmatprep.subr.mxu0 0.0
        %1131 = vmatpush1.msra.mxu0 0.0
        %1132 = vmatprep.subr.mxu0 0.0
        %1133 = vmatpush1.msra.mxu0 0.0
        %1134 = vmatprep.subr.mxu0 0.0
        %1135 = vmatpush1.msra.mxu0 0.0
        %1136 = vmatprep.subr.mxu0 0.0
        %1137 = vmatpush1.msra.mxu0 0.0
        %1138 = vmatprep.subr.mxu0 0.0
        %1139 = vmatpush1.msra.mxu0 0.0
        %1140 = vmatprep.subr.mxu0 0.0
        %1141 = vmatpush1.msra.mxu0 0.0
        %1142 = vmatprep.subr.mxu0 0.0
        %1143 = vmatpush1.msra.mxu0 0.0
        %1144 = vmatprep.subr.mxu0 0.0
        %1145 = vmatpush1.msra.mxu0 0.0
        %1146 = vmatprep.subr.mxu0 0.0
        %1147 = vmatpush1.msra.mxu0 0.0
        %1148 = vmatprep.subr.mxu0 0.0
        %1149 = vmatpush1.msra.mxu0 0.0
        %1150 = vmatprep.subr.mxu0 0.0
        %1151 = vmatpush1.msra.mxu0 0.0
        %1152 = vmatprep.subr.mxu0 0.0
        %1153 = vmatpush1.msra.mxu0 0.0
        %1154 = vmatprep.subr.mxu0 0.0
        %1155 = vmatpush1.msra.mxu0 0.0
        %1156 = vmatprep.subr.mxu0 0.0
        %1157 = vmatpush1.msra.mxu0 0.0
        %1158 = vmatprep.subr.mxu0 0.0
        %1159 = vmatpush1.msra.mxu0 0.0
        %1160 = vmatprep.subr.mxu0 0.0
        %1161 = vmatpush1.msra.mxu0 0.0
        %1162 = vmatprep.subr.mxu0 0.0
        %1163 = vmatpush1.msra.mxu0 0.0
        %1164 = vmatprep.subr.mxu0 0.0
        %1165 = vmatpush1.msra.mxu0 0.0
        %1166 = vmatprep.subr.mxu0 0.0
        %1167 = vmatpush1.msra.mxu0 0.0
        %1168 = vmatprep.subr.mxu0 0.0
        %1169 = vmatpush1.msra.mxu0 0.0
        %1170 = vmatprep.subr.mxu0 0.0
        %1171 = vmatpush1.msra.mxu0 0.0
        %1172 = vmatprep.mubr.f32.mxu0 0.0
        %1173 = vmatmul.mubr.f32.gmra.mrb[0].mxu0 %v998
        %v1174 = vpop.f32.mrb[0].mxu0
        %v1175 = vadd.f32 0.0, %v1174
        %v1176 = vpop.f32.mrb[0].mxu0
        %1177 = vmatprep.mubr.f32.mxu0 0.0
        %1178 = vmatmul.mubr.f32.gmra.mrb[0].mxu0 %v1001
        %v1179 = vpop.f32.mrb[0].mxu0
        %v1180 = vadd.f32 0.0, %v1179
        %v1181 = vpop.f32.mrb[0].mxu0
        %1182 = vmatprep.mubr.f32.mxu0 0.0
        %1183 = vmatmul.mubr.f32.gmra.mrb[0].mxu0 %v1004
        %v1184 = vpop.f32.mrb[0].mxu0
        %v1185 = vadd.f32 0.0, %v1184
        %v1186 = vpop.f32.mrb[0].mxu0
        %1187 = vmatprep.mubr.f32.mxu0 0.0
        %1188 = vmatmul.mubr.f32.gmra.mrb[0].mxu0 %v1007
        %v1189 = vpop.f32.mrb[0].mxu0
        %v1190 = vadd.f32 0.0, %v1189
        %v1191 = vpop.f32.mrb[0].mxu0
        %1192 = vmatprep.mubr.f32.mxu0 0.0
        %1193 = vmatmul.mubr.f32.gmra.mrb[0].mxu0 %v1010
        %v1194 = vpop.f32.mrb[0].mxu0
        %v1195 = vadd.f32 0.0, %v1194
        %v1196 = vpop.f32.mrb[0].mxu0
        %1197 = vmatprep.mubr.f32.mxu0 0.0
        %1198 = vmatmul.mubr.f32.gmra.mrb[0].mxu0 %v1013
        %v1199 = vpop.f32.mrb[0].mxu0
        %v1200 = vadd.f32 0.0, %v1199
        %v1201 = vpop.f32.mrb[0].mxu0
        %1202 = vmatprep.mubr.f32.mxu0 0.0
        %1203 = vmatmul.mubr.f32.gmra.mrb[0].mxu0 %v1016
        %v1204 = vpop.f32.mrb[0].mxu0
        %v1205 = vadd.f32 0.0, %v1204
        %v1206 = vpop.f32.mrb[0].mxu0
        %1207 = vmatprep.mubr.f32.mxu0 0.0
        %1208 = vmatmul.mubr.f32.gmra.mrb[0].mxu0 %v1019
        %v1209 = vpop.f32.mrb[0].mxu0
        %v1210 = vadd.f32 0.0, %v1209
        %v1211 = vpop.f32.mrb[0].mxu0
        %1212 = vmatprep.mubr.f32.mxu0 0.0
        %1213 = vmatmul.mubr.f32.gmra.mrb[0].mxu0 %v1022
        %v1214 = vpop.f32.mrb[0].mxu0
        %v1215 = vadd.f32 0.0, %v1214
        %v1216 = vpop.f32.mrb[0].mxu0
        %1217 = vmatprep.mubr.f32.mxu0 0.0
        %1218 = vmatmul.mubr.f32.gmra.mrb[0].mxu0 %v1025
        %v1219 = vpop.f32.mrb[0].mxu0
        %v1220 = vadd.f32 0.0, %v1219
        %v1221 = vpop.f32.mrb[0].mxu0
        %1222 = vmatprep.mubr.f32.mxu0 0.0
        %1223 = vmatmul.mubr.f32.gmra.mrb[0].mxu0 %v1028
        %v1224 = vpop.f32.mrb[0].mxu0
        %v1225 = vadd.f32 0.0, %v1224
        %v1226 = vpop.f32.mrb[0].mxu0
        %1227 = vmatprep.mubr.f32.mxu0 0.0
        %1228 = vmatmul.mubr.f32.gmra.mrb[0].mxu0 %v1031
        %v1229 = vpop.f32.mrb[0].mxu0
        %v1230 = vadd.f32 0.0, %v1229
        %v1231 = vpop.f32.mrb[0].mxu0
        %1232 = vmatprep.mubr.f32.mxu0 0.0
        %1233 = vmatmul.mubr.f32.gmra.mrb[0].mxu0 %v1034
        %v1234 = vpop.f32.mrb[0].mxu0
        %v1235 = vadd.f32 0.0, %v1234
        %v1236 = vpop.f32.mrb[0].mxu0
        %1237 = vmatprep.mubr.f32.mxu0 0.0
        %1238 = vmatmul.mubr.f32.gmra.mrb[0].mxu0 %v1037
        %v1239 = vpop.f32.mrb[0].mxu0
        %v1240 = vadd.f32 0.0, %v1239
        %v1241 = vpop.f32.mrb[0].mxu0
        %1242 = vmatprep.mubr.f32.mxu0 0.0
        %1243 = vmatmul.mubr.f32.gmra.mrb[0].mxu0 %v1040
        %v1244 = vpop.f32.mrb[0].mxu0
        %v1245 = vadd.f32 0.0, %v1244
        %v1246 = vpop.f32.mrb[0].mxu0
        %1247 = vmatprep.mubr.f32.mxu0 0.0
        %1248 = vmatmul.mubr.f32.gmra.mrb[0].mxu0 %v1043
        %v1249 = vpop.f32.mrb[0].mxu0
        %v1250 = vadd.f32 0.0, %v1249
        %v1251 = vpop.f32.mrb[0].mxu0
        %1252 = vmatprep.mubr.f32.mxu0 0.0
        %1253 = vmatmul.mubr.f32.gmra.mrb[0].mxu0 %v1046
        %v1254 = vpop.f32.mrb[0].mxu0
        %v1255 = vadd.f32 0.0, %v1254
        %v1256 = vpop.f32.mrb[0].mxu0
        %1257 = vmatprep.mubr.f32.mxu0 0.0
        %1258 = vmatmul.mubr.f32.gmra.mrb[0].mxu0 %v1049
        %v1259 = vpop.f32.mrb[0].mxu0
        %v1260 = vadd.f32 0.0, %v1259
        %v1261 = vpop.f32.mrb[0].mxu0
        %1262 = vmatprep.mubr.f32.mxu0 0.0
        %1263 = vmatmul.mubr.f32.gmra.mrb[0].mxu0 %v1052
        %v1264 = vpop.f32.mrb[0].mxu0
        %v1265 = vadd.f32 0.0, %v1264
        %v1266 = vpop.f32.mrb[0].mxu0
        %1267 = vmatprep.mubr.f32.mxu0 0.0
        %1268 = vmatmul.mubr.f32.gmra.mrb[0].mxu0 %v1055
        %v1269 = vpop.f32.mrb[0].mxu0
        %v1270 = vadd.f32 0.0, %v1269
        %v1271 = vpop.f32.mrb[0].mxu0
        %1272 = vmatprep.mubr.f32.mxu0 0.0
        %1273 = vmatmul.mubr.f32.gmra.mrb[0].mxu0 %v1058
        %v1274 = vpop.f32.mrb[0].mxu0
        %v1275 = vadd.f32 0.0, %v1274
        %v1276 = vpop.f32.mrb[0].mxu0
        %1277 = vmatprep.mubr.f32.mxu0 0.0
        %1278 = vmatmul.mubr.f32.gmra.mrb[0].mxu0 %v1061
        %v1279 = vpop.f32.mrb[0].mxu0
        %v1280 = vadd.f32 0.0, %v1279
        %v1281 = vpop.f32.mrb[0].mxu0
        %1282 = vmatprep.mubr.f32.mxu0 0.0
        %1283 = vmatmul.mubr.f32.gmra.mrb[0].mxu0 %v1064
        %v1284 = vpop.f32.mrb[0].mxu0
        %v1285 = vadd.f32 0.0, %v1284
        %v1286 = vpop.f32.mrb[0].mxu0
        %1287 = vmatprep.mubr.f32.mxu0 0.0
        %1288 = vmatmul.mubr.f32.gmra.mrb[0].mxu0 %v1067
        %v1289 = vpop.f32.mrb[0].mxu0
        %v1290 = vadd.f32 0.0, %v1289
        %v1291 = vpop.f32.mrb[0].mxu0
        %1292 = vmatprep.mubr.f32.mxu0 0.0
        %1293 = vmatmul.mubr.f32.gmra.mrb[0].mxu0 %v1070
        %v1294 = vpop.f32.mrb[0].mxu0
        %v1295 = vadd.f32 0.0, %v1294
        %v1296 = vpop.f32.mrb[0].mxu0
        %1297 = vmatprep.mubr.f32.mxu0 0.0
        %1298 = vmatmul.mubr.f32.gmra.mrb[0].mxu0 %v1073
        %v1299 = vpop.f32.mrb[0].mxu0
        %v1300 = vadd.f32 0.0, %v1299
        %v1301 = vpop.f32.mrb[0].mxu0
        %1302 = vmatprep.mubr.f32.mxu0 0.0
        %1303 = vmatmul.mubr.f32.gmra.mrb[0].mxu0 %v1076
        %v1304 = vpop.f32.mrb[0].mxu0
        %v1305 = vadd.f32 0.0, %v1304
        %v1306 = vpop.f32.mrb[0].mxu0
        %1307 = vmatprep.mubr.f32.mxu0 0.0
        %1308 = vmatmul.mubr.f32.gmra.mrb[0].mxu0 %v1079
        %v1309 = vpop.f32.mrb[0].mxu0
        %v1310 = vadd.f32 0.0, %v1309
        %v1311 = vpop.f32.mrb[0].mxu0
        %1312 = vmatprep.mubr.f32.mxu0 0.0
        %1313 = vmatmul.mubr.f32.gmra.mrb[0].mxu0 %v1082
        %v1314 = vpop.f32.mrb[0].mxu0
        %v1315 = vadd.f32 0.0, %v1314
        %v1316 = vpop.f32.mrb[0].mxu0
        %1317 = vmatprep.mubr.f32.mxu0 0.0
        %1318 = vmatmul.mubr.f32.gmra.mrb[0].mxu0 %v1085
        %v1319 = vpop.f32.mrb[0].mxu0
        %v1320 = vadd.f32 0.0, %v1319
        %v1321 = vpop.f32.mrb[0].mxu0
        %1322 = vmatprep.mubr.f32.mxu0 0.0
        %1323 = vmatmul.mubr.f32.gmra.mrb[0].mxu0 %v1088
        %v1324 = vpop.f32.mrb[0].mxu0
        %v1325 = vadd.f32 0.0, %v1324
        %v1326 = vpop.f32.mrb[0].mxu0
        %1327 = vmatprep.mubr.f32.mxu0 0.0
        %1328 = vmatmul.mubr.f32.gmra.mrb[0].mxu0 %v1091
        %v1329 = vpop.f32.mrb[0].mxu0
        %v1330 = vadd.f32 0.0, %v1329
        %v1331 = vpop.f32.mrb[0].mxu0
        %1332 = vmatprep.mubr.f32.mxu0 0.0
        %1333 = vmatmul.mubr.f32.gmra.mrb[0].mxu0 %v1094
        %v1334 = vpop.f32.mrb[0].mxu0
        %v1335 = vadd.f32 0.0, %v1334
        %v1336 = vpop.f32.mrb[0].mxu0
        %1337 = vmatprep.mubr.f32.mxu0 0.0
        %1338 = vmatmul.mubr.f32.gmra.mrb[0].mxu0 %v1097
        %v1339 = vpop.f32.mrb[0].mxu0
        %v1340 = vadd.f32 0.0, %v1339
        %v1341 = vpop.f32.mrb[0].mxu0
        %1342 = vmatprep.mubr.f32.mxu0 0.0
        %1343 = vmatmul.mubr.f32.gmra.mrb[0].mxu0 %v1100
        %v1344 = vpop.f32.mrb[0].mxu0
        %v1345 = vadd.f32 0.0, %v1344
        %v1346 = vpop.f32.mrb[0].mxu0
        %1347 = vmatprep.mubr.f32.mxu0 0.0
        %1348 = vmatmul.mubr.f32.gmra.mrb[0].mxu0 %v1103
        %v1349 = vpop.f32.mrb[0].mxu0
        %v1350 = vadd.f32 0.0, %v1349
        %v1351 = vpop.f32.mrb[0].mxu0
        %1352 = vdwg.mxu0
        %v1353 = vadd.f32 %v781, %v1175
        %v1354 = vadd.f32 %v786, %v1180
        %v1355 = vadd.f32 %v791, %v1185
        %v1356 = vadd.f32 %v796, %v1190
        %v1357 = vadd.f32 %v801, %v1195
        %v1358 = vadd.f32 %v806, %v1200
        %v1359 = vadd.f32 %v811, %v1205
        %v1360 = vadd.f32 %v816, %v1210
        %v1361 = vadd.f32 %v821, %v1215
        %v1362 = vadd.f32 %v826, %v1220
        %v1363 = vadd.f32 %v831, %v1225
        %v1364 = vadd.f32 %v836, %v1230
        %v1365 = vadd.f32 %v841, %v1235
        %v1366 = vadd.f32 %v846, %v1240
        %v1367 = vadd.f32 %v851, %v1245
        %v1368 = vadd.f32 %v856, %v1250
        %v1369 = vadd.f32 %v861, %v1255
        %v1370 = vadd.f32 %v866, %v1260
        %v1371 = vadd.f32 %v871, %v1265
        %v1372 = vadd.f32 %v876, %v1270
        %v1373 = vadd.f32 %v881, %v1275
        %v1374 = vadd.f32 %v886, %v1280
        %v1375 = vadd.f32 %v891, %v1285
        %v1376 = vadd.f32 %v896, %v1290
        %v1377 = vadd.f32 %v901, %v1295
        %v1378 = vadd.f32 %v906, %v1300
        %v1379 = vadd.f32 %v911, %v1305
        %v1380 = vadd.f32 %v916, %v1310
        %v1381 = vadd.f32 %v921, %v1315
        %v1382 = vadd.f32 %v926, %v1320
        %v1383 = vadd.f32 %v931, %v1325
        %v1384 = vadd.f32 %v936, %v1330
        %v1385 = vadd.f32 %v941, %v1335
        %v1386 = vadd.f32 %v946, %v1340
        %v1387 = vadd.f32 %v951, %v1345
        %v1388 = vadd.f32 %v956, %v1350
        %v1389 = vld [vmem:[%s168 + $0x12] sm:$0xff]
        %v1390 = vld [vmem:[%s168 + $0x1a] sm:$0xff]
        %v1391 = vld [vmem:[%s168 + $0x22] sm:$0xff]
        %v1392 = vld [vmem:[%s168 + $0x2a] sm:$0xff]
        %v1393 = vld [vmem:[%s168 + $0x32] sm:$0xff]
        %v1394 = vld [vmem:[%s168 + $0x3a] sm:$0xff]
        %v1395 = vld [vmem:[%s168 + $0x42] sm:$0xff]
        %v1396 = vld [vmem:[%s168 + $0x4a] sm:$0xff]
        %v1397 = vld [vmem:[%s168 + $0x52] sm:$0xff]
        %v1398 = vld [vmem:[%s168 + $0x5a] sm:$0xff]
        %v1399 = vld [vmem:[%s168 + $0x62] sm:$0xff]
        %v1400 = vld [vmem:[%s168 + $0x6a] sm:$0xff]
        %v1401 = vld [vmem:[%s168 + $0x72] sm:$0xff]
        %v1402 = vld [vmem:[%s168 + $0x7a] sm:$0xff]
        %v1403 = vld [vmem:[%s168 + $0x82] sm:$0xff]
        %v1404 = vld [vmem:[%s168 + $0x8a] sm:$0xff]
        %v1405 = vld [vmem:[%s168 + $0x92] sm:$0xff]
        %v1406 = vld [vmem:[%s168 + $0x9a] sm:$0xff]
        %v1407 = vld [vmem:[%s168 + $0xa2] sm:$0xff]
        %v1408 = vld [vmem:[%s168 + $0xaa] sm:$0xff]
        %v1409 = vld [vmem:[%s168 + $0xb2] sm:$0xff]
        %v1410 = vld [vmem:[%s168 + $0xba] sm:$0xff]
        %v1411 = vld [vmem:[%s168 + $0xc2] sm:$0xff]
        %v1412 = vld [vmem:[%s168 + $0xca] sm:$0xff]
        %v1413 = vld [vmem:[%s168 + $0xd2] sm:$0xff]
        %v1414 = vld [vmem:[%s168 + $0xda] sm:$0xff]
        %v1415 = vld [vmem:[%s168 + $0xe2] sm:$0xff]
        %v1416 = vld [vmem:[%s168 + $0xea] sm:$0xff]
        %v1417 = vld [vmem:[%s168 + $0xf2] sm:$0xff]
        %v1418 = vld [vmem:[%s168 + $0xfa] sm:$0xff]
        %v1419 = vld [vmem:[%s168 + $0x102] sm:$0xff]
        %v1420 = vld [vmem:[%s168 + $0x10a] sm:$0xff]
        %v1421 = vld [vmem:[%s168 + $0x112] sm:$0xff]
        %v1422 = vld [vmem:[%s168 + $0x11a] sm:$0xff]
        %v1423 = vld [vmem:[%s168 + $0x122] sm:$0xff]
        %v1424 = vld [vmem:[%s168 + $0x12a] sm:$0xff]
        %s1425 = scalar_lea.vmem %s1, 12
        %v1426 = vld [vmem:[%s1425] sm:$0xf]
        %v1428 = vsel %vm245, %v1389, 0
        %v1431 = vsel %vm245, %v1390, 0
        %v1434 = vsel %vm245, %v1391, 0
        %v1437 = vsel %vm245, %v1392, 0
        %v1440 = vsel %vm245, %v1393, 0
        %v1443 = vsel %vm245, %v1394, 0
        %v1446 = vsel %vm245, %v1395, 0
        %v1449 = vsel %vm245, %v1396, 0
        %v1452 = vsel %vm245, %v1397, 0
        %v1455 = vsel %vm245, %v1398, 0
        %v1458 = vsel %vm245, %v1399, 0
        %v1461 = vsel %vm245, %v1400, 0
        %v1464 = vsel %vm245, %v1401, 0
        %v1467 = vsel %vm245, %v1402, 0
        %v1470 = vsel %vm245, %v1403, 0
        %v1473 = vsel %vm245, %v1404, 0
        %v1476 = vsel %vm245, %v1405, 0
        %v1479 = vsel %vm245, %v1406, 0
        %v1482 = vsel %vm245, %v1407, 0
        %v1485 = vsel %vm245, %v1408, 0
        %v1488 = vsel %vm245, %v1409, 0
        %v1491 = vsel %vm245, %v1410, 0
        %v1494 = vsel %vm245, %v1411, 0
        %v1497 = vsel %vm245, %v1412, 0
        %v1500 = vsel %vm245, %v1413, 0
        %v1503 = vsel %vm245, %v1414, 0
        %v1506 = vsel %vm245, %v1415, 0
        %v1509 = vsel %vm245, %v1416, 0
        %v1512 = vsel %vm245, %v1417, 0
        %v1515 = vsel %vm245, %v1418, 0
        %v1518 = vsel %vm245, %v1419, 0
        %v1521 = vsel %vm245, %v1420, 0
        %v1524 = vsel %vm245, %v1421, 0
        %v1527 = vsel %vm245, %v1422, 0
        %v1530 = vsel %vm245, %v1423, 0
        %v1533 = vsel %vm245, %v1424, 0
        %v1536 = vsel %vm354, %v1426, 0
        %1538 = vmatprep.subr.mxu0 0.0
        %1539 = vmatpush1.msra.mxu0 %v1536
        %1540 = vmatprep.subr.mxu0 0.0
        %1541 = vmatpush1.msra.mxu0 0.0
        %1542 = vmatprep.subr.mxu0 0.0
        %1543 = vmatpush1.msra.mxu0 0.0
        %1544 = vmatprep.subr.mxu0 0.0
        %1545 = vmatpush1.msra.mxu0 0.0
        %1546 = vmatprep.subr.mxu0 0.0
        %1547 = vmatpush1.msra.mxu0 0.0
        %1548 = vmatprep.subr.mxu0 0.0
        %1549 = vmatpush1.msra.mxu0 0.0
        %1550 = vmatprep.subr.mxu0 0.0
        %1551 = vmatpush1.msra.mxu0 0.0
        %1552 = vmatprep.subr.mxu0 0.0
        %1553 = vmatpush1.msra.mxu0 0.0
        %1554 = vmatprep.subr.mxu0 0.0
        %1555 = vmatpush1.msra.mxu0 0.0
        %1556 = vmatprep.subr.mxu0 0.0
        %1557 = vmatpush1.msra.mxu0 0.0
        %1558 = vmatprep.subr.mxu0 0.0
        %1559 = vmatpush1.msra.mxu0 0.0
        %1560 = vmatprep.subr.mxu0 0.0
        %1561 = vmatpush1.msra.mxu0 0.0
        %1562 = vmatprep.subr.mxu0 0.0
        %1563 = vmatpush1.msra.mxu0 0.0
        %1564 = vmatprep.subr.mxu0 0.0
        %1565 = vmatpush1.msra.mxu0 0.0
        %1566 = vmatprep.subr.mxu0 0.0
        %1567 = vmatpush1.msra.mxu0 0.0
        %1568 = vmatprep.subr.mxu0 0.0
        %1569 = vmatpush1.msra.mxu0 0.0
        %1570 = vmatprep.subr.mxu0 0.0
        %1571 = vmatpush1.msra.mxu0 0.0
        %1572 = vmatprep.subr.mxu0 0.0
        %1573 = vmatpush1.msra.mxu0 0.0
        %1574 = vmatprep.subr.mxu0 0.0
        %1575 = vmatpush1.msra.mxu0 0.0
        %1576 = vmatprep.subr.mxu0 0.0
        %1577 = vmatpush1.msra.mxu0 0.0
        %1578 = vmatprep.subr.mxu0 0.0
        %1579 = vmatpush1.msra.mxu0 0.0
        %1580 = vmatprep.subr.mxu0 0.0
        %1581 = vmatpush1.msra.mxu0 0.0
        %1582 = vmatprep.subr.mxu0 0.0
        %1583 = vmatpush1.msra.mxu0 0.0
        %1584 = vmatprep.subr.mxu0 0.0
        %1585 = vmatpush1.msra.mxu0 0.0
        %1586 = vmatprep.subr.mxu0 0.0
        %1587 = vmatpush1.msra.mxu0 0.0
        %1588 = vmatprep.subr.mxu0 0.0
        %1589 = vmatpush1.msra.mxu0 0.0
        %1590 = vmatprep.subr.mxu0 0.0
        %1591 = vmatpush1.msra.mxu0 0.0
        %1592 = vmatprep.subr.mxu0 0.0
        %1593 = vmatpush1.msra.mxu0 0.0
        %1594 = vmatprep.subr.mxu0 0.0
        %1595 = vmatpush1.msra.mxu0 0.0
        %1596 = vmatprep.subr.mxu0 0.0
        %1597 = vmatpush1.msra.mxu0 0.0
        %1598 = vmatprep.subr.mxu0 0.0
        %1599 = vmatpush1.msra.mxu0 0.0
        %1600 = vmatprep.subr.mxu0 0.0
        %1601 = vmatpush1.msra.mxu0 0.0
        %1602 = vmatprep.mubr.f32.mxu0 0.0
        %1603 = vmatmul.mubr.f32.gmra.mrb[0].mxu0 %v1428
        %v1604 = vpop.f32.mrb[0].mxu0
        %v1605 = vadd.f32 0.0, %v1604
        %v1606 = vpop.f32.mrb[0].mxu0
        %1607 = vmatprep.mubr.f32.mxu0 0.0
        %1608 = vmatmul.mubr.f32.gmra.mrb[0].mxu0 %v1431
        %v1609 = vpop.f32.mrb[0].mxu0
        %v1610 = vadd.f32 0.0, %v1609
        %v1611 = vpop.f32.mrb[0].mxu0
        %1612 = vmatprep.mubr.f32.mxu0 0.0
        %1613 = vmatmul.mubr.f32.gmra.mrb[0].mxu0 %v1434
        %v1614 = vpop.f32.mrb[0].mxu0
        %v1615 = vadd.f32 0.0, %v1614
        %v1616 = vpop.f32.mrb[0].mxu0
        %1617 = vmatprep.mubr.f32.mxu0 0.0
        %1618 = vmatmul.mubr.f32.gmra.mrb[0].mxu0 %v1437
        %v1619 = vpop.f32.mrb[0].mxu0
        %v1620 = vadd.f32 0.0, %v1619
        %v1621 = vpop.f32.mrb[0].mxu0
        %1622 = vmatprep.mubr.f32.mxu0 0.0
        %1623 = vmatmul.mubr.f32.gmra.mrb[0].mxu0 %v1440
        %v1624 = vpop.f32.mrb[0].mxu0
        %v1625 = vadd.f32 0.0, %v1624
        %v1626 = vpop.f32.mrb[0].mxu0
        %1627 = vmatprep.mubr.f32.mxu0 0.0
        %1628 = vmatmul.mubr.f32.gmra.mrb[0].mxu0 %v1443
        %v1629 = vpop.f32.mrb[0].mxu0
        %v1630 = vadd.f32 0.0, %v1629
        %v1631 = vpop.f32.mrb[0].mxu0
        %1632 = vmatprep.mubr.f32.mxu0 0.0
        %1633 = vmatmul.mubr.f32.gmra.mrb[0].mxu0 %v1446
        %v1634 = vpop.f32.mrb[0].mxu0
        %v1635 = vadd.f32 0.0, %v1634
        %v1636 = vpop.f32.mrb[0].mxu0
        %1637 = vmatprep.mubr.f32.mxu0 0.0
        %1638 = vmatmul.mubr.f32.gmra.mrb[0].mxu0 %v1449
        %v1639 = vpop.f32.mrb[0].mxu0
        %v1640 = vadd.f32 0.0, %v1639
        %v1641 = vpop.f32.mrb[0].mxu0
        %1642 = vmatprep.mubr.f32.mxu0 0.0
        %1643 = vmatmul.mubr.f32.gmra.mrb[0].mxu0 %v1452
        %v1644 = vpop.f32.mrb[0].mxu0
        %v1645 = vadd.f32 0.0, %v1644
        %v1646 = vpop.f32.mrb[0].mxu0
        %1647 = vmatprep.mubr.f32.mxu0 0.0
        %1648 = vmatmul.mubr.f32.gmra.mrb[0].mxu0 %v1455
        %v1649 = vpop.f32.mrb[0].mxu0
        %v1650 = vadd.f32 0.0, %v1649
        %v1651 = vpop.f32.mrb[0].mxu0
        %1652 = vmatprep.mubr.f32.mxu0 0.0
        %1653 = vmatmul.mubr.f32.gmra.mrb[0].mxu0 %v1458
        %v1654 = vpop.f32.mrb[0].mxu0
        %v1655 = vadd.f32 0.0, %v1654
        %v1656 = vpop.f32.mrb[0].mxu0
        %1657 = vmatprep.mubr.f32.mxu0 0.0
        %1658 = vmatmul.mubr.f32.gmra.mrb[0].mxu0 %v1461
        %v1659 = vpop.f32.mrb[0].mxu0
        %v1660 = vadd.f32 0.0, %v1659
        %v1661 = vpop.f32.mrb[0].mxu0
        %1662 = vmatprep.mubr.f32.mxu0 0.0
        %1663 = vmatmul.mubr.f32.gmra.mrb[0].mxu0 %v1464
        %v1664 = vpop.f32.mrb[0].mxu0
        %v1665 = vadd.f32 0.0, %v1664
        %v1666 = vpop.f32.mrb[0].mxu0
        %1667 = vmatprep.mubr.f32.mxu0 0.0
        %1668 = vmatmul.mubr.f32.gmra.mrb[0].mxu0 %v1467
        %v1669 = vpop.f32.mrb[0].mxu0
        %v1670 = vadd.f32 0.0, %v1669
        %v1671 = vpop.f32.mrb[0].mxu0
        %1672 = vmatprep.mubr.f32.mxu0 0.0
        %1673 = vmatmul.mubr.f32.gmra.mrb[0].mxu0 %v1470
        %v1674 = vpop.f32.mrb[0].mxu0
        %v1675 = vadd.f32 0.0, %v1674
        %v1676 = vpop.f32.mrb[0].mxu0
        %1677 = vmatprep.mubr.f32.mxu0 0.0
        %1678 = vmatmul.mubr.f32.gmra.mrb[0].mxu0 %v1473
        %v1679 = vpop.f32.mrb[0].mxu0
        %v1680 = vadd.f32 0.0, %v1679
        %v1681 = vpop.f32.mrb[0].mxu0
        %1682 = vmatprep.mubr.f32.mxu0 0.0
        %1683 = vmatmul.mubr.f32.gmra.mrb[0].mxu0 %v1476
        %v1684 = vpop.f32.mrb[0].mxu0
        %v1685 = vadd.f32 0.0, %v1684
        %v1686 = vpop.f32.mrb[0].mxu0
        %1687 = vmatprep.mubr.f32.mxu0 0.0
        %1688 = vmatmul.mubr.f32.gmra.mrb[0].mxu0 %v1479
        %v1689 = vpop.f32.mrb[0].mxu0
        %v1690 = vadd.f32 0.0, %v1689
        %v1691 = vpop.f32.mrb[0].mxu0
        %1692 = vmatprep.mubr.f32.mxu0 0.0
        %1693 = vmatmul.mubr.f32.gmra.mrb[0].mxu0 %v1482
        %v1694 = vpop.f32.mrb[0].mxu0
        %v1695 = vadd.f32 0.0, %v1694
        %v1696 = vpop.f32.mrb[0].mxu0
        %1697 = vmatprep.mubr.f32.mxu0 0.0
        %1698 = vmatmul.mubr.f32.gmra.mrb[0].mxu0 %v1485
        %v1699 = vpop.f32.mrb[0].mxu0
        %v1700 = vadd.f32 0.0, %v1699
        %v1701 = vpop.f32.mrb[0].mxu0
        %1702 = vmatprep.mubr.f32.mxu0 0.0
        %1703 = vmatmul.mubr.f32.gmra.mrb[0].mxu0 %v1488
        %v1704 = vpop.f32.mrb[0].mxu0
        %v1705 = vadd.f32 0.0, %v1704
        %v1706 = vpop.f32.mrb[0].mxu0
        %1707 = vmatprep.mubr.f32.mxu0 0.0
        %1708 = vmatmul.mubr.f32.gmra.mrb[0].mxu0 %v1491
        %v1709 = vpop.f32.mrb[0].mxu0
        %v1710 = vadd.f32 0.0, %v1709
        %v1711 = vpop.f32.mrb[0].mxu0
        %1712 = vmatprep.mubr.f32.mxu0 0.0
        %1713 = vmatmul.mubr.f32.gmra.mrb[0].mxu0 %v1494
        %v1714 = vpop.f32.mrb[0].mxu0
        %v1715 = vadd.f32 0.0, %v1714
        %v1716 = vpop.f32.mrb[0].mxu0
        %1717 = vmatprep.mubr.f32.mxu0 0.0
        %1718 = vmatmul.mubr.f32.gmra.mrb[0].mxu0 %v1497
        %v1719 = vpop.f32.mrb[0].mxu0
        %v1720 = vadd.f32 0.0, %v1719
        %v1721 = vpop.f32.mrb[0].mxu0
        %1722 = vmatprep.mubr.f32.mxu0 0.0
        %1723 = vmatmul.mubr.f32.gmra.mrb[0].mxu0 %v1500
        %v1724 = vpop.f32.mrb[0].mxu0
        %v1725 = vadd.f32 0.0, %v1724
        %v1726 = vpop.f32.mrb[0].mxu0
        %1727 = vmatprep.mubr.f32.mxu0 0.0
        %1728 = vmatmul.mubr.f32.gmra.mrb[0].mxu0 %v1503
        %v1729 = vpop.f32.mrb[0].mxu0
        %v1730 = vadd.f32 0.0, %v1729
        %v1731 = vpop.f32.mrb[0].mxu0
        %1732 = vmatprep.mubr.f32.mxu0 0.0
        %1733 = vmatmul.mubr.f32.gmra.mrb[0].mxu0 %v1506
        %v1734 = vpop.f32.mrb[0].mxu0
        %v1735 = vadd.f32 0.0, %v1734
        %v1736 = vpop.f32.mrb[0].mxu0
        %1737 = vmatprep.mubr.f32.mxu0 0.0
        %1738 = vmatmul.mubr.f32.gmra.mrb[0].mxu0 %v1509
        %v1739 = vpop.f32.mrb[0].mxu0
        %v1740 = vadd.f32 0.0, %v1739
        %v1741 = vpop.f32.mrb[0].mxu0
        %1742 = vmatprep.mubr.f32.mxu0 0.0
        %1743 = vmatmul.mubr.f32.gmra.mrb[0].mxu0 %v1512
        %v1744 = vpop.f32.mrb[0].mxu0
        %v1745 = vadd.f32 0.0, %v1744
        %v1746 = vpop.f32.mrb[0].mxu0
        %1747 = vmatprep.mubr.f32.mxu0 0.0
        %1748 = vmatmul.mubr.f32.gmra.mrb[0].mxu0 %v1515
        %v1749 = vpop.f32.mrb[0].mxu0
        %v1750 = vadd.f32 0.0, %v1749
        %v1751 = vpop.f32.mrb[0].mxu0
        %1752 = vmatprep.mubr.f32.mxu0 0.0
        %1753 = vmatmul.mubr.f32.gmra.mrb[0].mxu0 %v1518
        %v1754 = vpop.f32.mrb[0].mxu0
        %v1755 = vadd.f32 0.0, %v1754
        %v1756 = vpop.f32.mrb[0].mxu0
        %1757 = vmatprep.mubr.f32.mxu0 0.0
        %1758 = vmatmul.mubr.f32.gmra.mrb[0].mxu0 %v1521
        %v1759 = vpop.f32.mrb[0].mxu0
        %v1760 = vadd.f32 0.0, %v1759
        %v1761 = vpop.f32.mrb[0].mxu0
        %1762 = vmatprep.mubr.f32.mxu0 0.0
        %1763 = vmatmul.mubr.f32.gmra.mrb[0].mxu0 %v1524
        %v1764 = vpop.f32.mrb[0].mxu0
        %v1765 = vadd.f32 0.0, %v1764
        %v1766 = vpop.f32.mrb[0].mxu0
        %1767 = vmatprep.mubr.f32.mxu0 0.0
        %1768 = vmatmul.mubr.f32.gmra.mrb[0].mxu0 %v1527
        %v1769 = vpop.f32.mrb[0].mxu0
        %v1770 = vadd.f32 0.0, %v1769
        %v1771 = vpop.f32.mrb[0].mxu0
        %1772 = vmatprep.mubr.f32.mxu0 0.0
        %1773 = vmatmul.mubr.f32.gmra.mrb[0].mxu0 %v1530
        %v1774 = vpop.f32.mrb[0].mxu0
        %v1775 = vadd.f32 0.0, %v1774
        %v1776 = vpop.f32.mrb[0].mxu0
        %1777 = vmatprep.mubr.f32.mxu0 0.0
        %1778 = vmatmul.mubr.f32.gmra.mrb[0].mxu0 %v1533
        %v1779 = vpop.f32.mrb[0].mxu0
        %v1780 = vadd.f32 0.0, %v1779
        %v1781 = vpop.f32.mrb[0].mxu0
        %1782 = vdwg.mxu0
        %v1783 = vadd.f32 %v1353, %v1605
        %v1784 = vadd.f32 %v1354, %v1610
        %v1785 = vadd.f32 %v1355, %v1615
        %v1786 = vadd.f32 %v1356, %v1620
        %v1787 = vadd.f32 %v1357, %v1625
        %v1788 = vadd.f32 %v1358, %v1630
        %v1789 = vadd.f32 %v1359, %v1635
        %v1790 = vadd.f32 %v1360, %v1640
        %v1791 = vadd.f32 %v1361, %v1645
        %v1792 = vadd.f32 %v1362, %v1650
        %v1793 = vadd.f32 %v1363, %v1655
        %v1794 = vadd.f32 %v1364, %v1660
        %v1795 = vadd.f32 %v1365, %v1665
        %v1796 = vadd.f32 %v1366, %v1670
        %v1797 = vadd.f32 %v1367, %v1675
        %v1798 = vadd.f32 %v1368, %v1680
        %v1799 = vadd.f32 %v1369, %v1685
        %v1800 = vadd.f32 %v1370, %v1690
        %v1801 = vadd.f32 %v1371, %v1695
        %v1802 = vadd.f32 %v1372, %v1700
        %v1803 = vadd.f32 %v1373, %v1705
        %v1804 = vadd.f32 %v1374, %v1710
        %v1805 = vadd.f32 %v1375, %v1715
        %v1806 = vadd.f32 %v1376, %v1720
        %v1807 = vadd.f32 %v1377, %v1725
        %v1808 = vadd.f32 %v1378, %v1730
        %v1809 = vadd.f32 %v1379, %v1735
        %v1810 = vadd.f32 %v1380, %v1740
        %v1811 = vadd.f32 %v1381, %v1745
        %v1812 = vadd.f32 %v1382, %v1750
        %v1813 = vadd.f32 %v1383, %v1755
        %v1814 = vadd.f32 %v1384, %v1760
        %v1815 = vadd.f32 %v1385, %v1765
        %v1816 = vadd.f32 %v1386, %v1770
        %v1817 = vadd.f32 %v1387, %v1775
        %v1818 = vadd.f32 %v1388, %v1780
        %v1819 = vld [vmem:[%s168 + $0x13] sm:$0xff]
        %v1820 = vld [vmem:[%s168 + $0x1b] sm:$0xff]
        %v1821 = vld [vmem:[%s168 + $0x23] sm:$0xff]
        %v1822 = vld [vmem:[%s168 + $0x2b] sm:$0xff]
        %v1823 = vld [vmem:[%s168 + $0x33] sm:$0xff]
        %v1824 = vld [vmem:[%s168 + $0x3b] sm:$0xff]
        %v1825 = vld [vmem:[%s168 + $0x43] sm:$0xff]
        %v1826 = vld [vmem:[%s168 + $0x4b] sm:$0xff]
        %v1827 = vld [vmem:[%s168 + $0x53] sm:$0xff]
        %v1828 = vld [vmem:[%s168 + $0x5b] sm:$0xff]
        %v1829 = vld [vmem:[%s168 + $0x63] sm:$0xff]
        %v1830 = vld [vmem:[%s168 + $0x6b] sm:$0xff]
        %v1831 = vld [vmem:[%s168 + $0x73] sm:$0xff]
        %v1832 = vld [vmem:[%s168 + $0x7b] sm:$0xff]
        %v1833 = vld [vmem:[%s168 + $0x83] sm:$0xff]
        %v1834 = vld [vmem:[%s168 + $0x8b] sm:$0xff]
        %v1835 = vld [vmem:[%s168 + $0x93] sm:$0xff]
        %v1836 = vld [vmem:[%s168 + $0x9b] sm:$0xff]
        %v1837 = vld [vmem:[%s168 + $0xa3] sm:$0xff]
        %v1838 = vld [vmem:[%s168 + $0xab] sm:$0xff]
        %v1839 = vld [vmem:[%s168 + $0xb3] sm:$0xff]
        %v1840 = vld [vmem:[%s168 + $0xbb] sm:$0xff]
        %v1841 = vld [vmem:[%s168 + $0xc3] sm:$0xff]
        %v1842 = vld [vmem:[%s168 + $0xcb] sm:$0xff]
        %v1843 = vld [vmem:[%s168 + $0xd3] sm:$0xff]
        %v1844 = vld [vmem:[%s168 + $0xdb] sm:$0xff]
        %v1845 = vld [vmem:[%s168 + $0xe3] sm:$0xff]
        %v1846 = vld [vmem:[%s168 + $0xeb] sm:$0xff]
        %v1847 = vld [vmem:[%s168 + $0xf3] sm:$0xff]
        %v1848 = vld [vmem:[%s168 + $0xfb] sm:$0xff]
        %v1849 = vld [vmem:[%s168 + $0x103] sm:$0xff]
        %v1850 = vld [vmem:[%s168 + $0x10b] sm:$0xff]
        %v1851 = vld [vmem:[%s168 + $0x113] sm:$0xff]
        %v1852 = vld [vmem:[%s168 + $0x11b] sm:$0xff]
        %v1853 = vld [vmem:[%s168 + $0x123] sm:$0xff]
        %v1854 = vld [vmem:[%s168 + $0x12b] sm:$0xff]
        %s1855 = scalar_lea.vmem %s1, 16
        %v1856 = vld [vmem:[%s1855] sm:$0xf]
        %v1858 = vsel %vm245, %v1819, 0
        %v1861 = vsel %vm245, %v1820, 0
        %v1864 = vsel %vm245, %v1821, 0
        %v1867 = vsel %vm245, %v1822, 0
        %v1870 = vsel %vm245, %v1823, 0
        %v1873 = vsel %vm245, %v1824, 0
        %v1876 = vsel %vm245, %v1825, 0
        %v1879 = vsel %vm245, %v1826, 0
        %v1882 = vsel %vm245, %v1827, 0
        %v1885 = vsel %vm245, %v1828, 0
        %v1888 = vsel %vm245, %v1829, 0
        %v1891 = vsel %vm245, %v1830, 0
        %v1894 = vsel %vm245, %v1831, 0
        %v1897 = vsel %vm245, %v1832, 0
        %v1900 = vsel %vm245, %v1833, 0
        %v1903 = vsel %vm245, %v1834, 0
        %v1906 = vsel %vm245, %v1835, 0
        %v1909 = vsel %vm245, %v1836, 0
        %v1912 = vsel %vm245, %v1837, 0
        %v1915 = vsel %vm245, %v1838, 0
        %v1918 = vsel %vm245, %v1839, 0
        %v1921 = vsel %vm245, %v1840, 0
        %v1924 = vsel %vm245, %v1841, 0
        %v1927 = vsel %vm245, %v1842, 0
        %v1930 = vsel %vm245, %v1843, 0
        %v1933 = vsel %vm245, %v1844, 0
        %v1936 = vsel %vm245, %v1845, 0
        %v1939 = vsel %vm245, %v1846, 0
        %v1942 = vsel %vm245, %v1847, 0
        %v1945 = vsel %vm245, %v1848, 0
        %v1948 = vsel %vm245, %v1849, 0
        %v1951 = vsel %vm245, %v1850, 0
        %v1954 = vsel %vm245, %v1851, 0
        %v1957 = vsel %vm245, %v1852, 0
        %v1960 = vsel %vm245, %v1853, 0
        %v1963 = vsel %vm245, %v1854, 0
        %v1966 = vsel %vm354, %v1856, 0
        %1968 = vmatprep.subr.mxu0 0.0
        %1969 = vmatpush1.msra.mxu0 %v1966
        %1970 = vmatprep.subr.mxu0 0.0
        %1971 = vmatpush1.msra.mxu0 0.0
        %1972 = vmatprep.subr.mxu0 0.0
        %1973 = vmatpush1.msra.mxu0 0.0
        %1974 = vmatprep.subr.mxu0 0.0
        %1975 = vmatpush1.msra.mxu0 0.0
        %1976 = vmatprep.subr.mxu0 0.0
        %1977 = vmatpush1.msra.mxu0 0.0
        %1978 = vmatprep.subr.mxu0 0.0
        %1979 = vmatpush1.msra.mxu0 0.0
        %1980 = vmatprep.subr.mxu0 0.0
        %1981 = vmatpush1.msra.mxu0 0.0
        %1982 = vmatprep.subr.mxu0 0.0
        %1983 = vmatpush1.msra.mxu0 0.0
        %1984 = vmatprep.subr.mxu0 0.0
        %1985 = vmatpush1.msra.mxu0 0.0
        %1986 = vmatprep.subr.mxu0 0.0
        %1987 = vmatpush1.msra.mxu0 0.0
        %1988 = vmatprep.subr.mxu0 0.0
        %1989 = vmatpush1.msra.mxu0 0.0
        %1990 = vmatprep.subr.mxu0 0.0
        %1991 = vmatpush1.msra.mxu0 0.0
        %1992 = vmatprep.subr.mxu0 0.0
        %1993 = vmatpush1.msra.mxu0 0.0
        %1994 = vmatprep.subr.mxu0 0.0
        %1995 = vmatpush1.msra.mxu0 0.0
        %1996 = vmatprep.subr.mxu0 0.0
        %1997 = vmatpush1.msra.mxu0 0.0
        %1998 = vmatprep.subr.mxu0 0.0
        %1999 = vmatpush1.msra.mxu0 0.0
        %2000 = vmatprep.subr.mxu0 0.0
        %2001 = vmatpush1.msra.mxu0 0.0
        %2002 = vmatprep.subr.mxu0 0.0
        %2003 = vmatpush1.msra.mxu0 0.0
        %2004 = vmatprep.subr.mxu0 0.0
        %2005 = vmatpush1.msra.mxu0 0.0
        %2006 = vmatprep.subr.mxu0 0.0
        %2007 = vmatpush1.msra.mxu0 0.0
        %2008 = vmatprep.subr.mxu0 0.0
        %2009 = vmatpush1.msra.mxu0 0.0
        %2010 = vmatprep.subr.mxu0 0.0
        %2011 = vmatpush1.msra.mxu0 0.0
        %2012 = vmatprep.subr.mxu0 0.0
        %2013 = vmatpush1.msra.mxu0 0.0
        %2014 = vmatprep.subr.mxu0 0.0
        %2015 = vmatpush1.msra.mxu0 0.0
        %2016 = vmatprep.subr.mxu0 0.0
        %2017 = vmatpush1.msra.mxu0 0.0
        %2018 = vmatprep.subr.mxu0 0.0
        %2019 = vmatpush1.msra.mxu0 0.0
        %2020 = vmatprep.subr.mxu0 0.0
        %2021 = vmatpush1.msra.mxu0 0.0
        %2022 = vmatprep.subr.mxu0 0.0
        %2023 = vmatpush1.msra.mxu0 0.0
        %2024 = vmatprep.subr.mxu0 0.0
        %2025 = vmatpush1.msra.mxu0 0.0
        %2026 = vmatprep.subr.mxu0 0.0
        %2027 = vmatpush1.msra.mxu0 0.0
        %2028 = vmatprep.subr.mxu0 0.0
        %2029 = vmatpush1.msra.mxu0 0.0
        %2030 = vmatprep.subr.mxu0 0.0
        %2031 = vmatpush1.msra.mxu0 0.0
        %2032 = vmatprep.mubr.f32.mxu0 0.0
        %2033 = vmatmul.mubr.f32.gmra.mrb[0].mxu0 %v1858
        %v2034 = vpop.f32.mrb[0].mxu0
        %v2035 = vadd.f32 0.0, %v2034
        %v2036 = vpop.f32.mrb[0].mxu0
        %2037 = vmatprep.mubr.f32.mxu0 0.0
        %2038 = vmatmul.mubr.f32.gmra.mrb[0].mxu0 %v1861
        %v2039 = vpop.f32.mrb[0].mxu0
        %v2040 = vadd.f32 0.0, %v2039
        %v2041 = vpop.f32.mrb[0].mxu0
        %2042 = vmatprep.mubr.f32.mxu0 0.0
        %2043 = vmatmul.mubr.f32.gmra.mrb[0].mxu0 %v1864
        %v2044 = vpop.f32.mrb[0].mxu0
        %v2045 = vadd.f32 0.0, %v2044
        %v2046 = vpop.f32.mrb[0].mxu0
        %2047 = vmatprep.mubr.f32.mxu0 0.0
        %2048 = vmatmul.mubr.f32.gmra.mrb[0].mxu0 %v1867
        %v2049 = vpop.f32.mrb[0].mxu0
        %v2050 = vadd.f32 0.0, %v2049
        %v2051 = vpop.f32.mrb[0].mxu0
        %2052 = vmatprep.mubr.f32.mxu0 0.0
        %2053 = vmatmul.mubr.f32.gmra.mrb[0].mxu0 %v1870
        %v2054 = vpop.f32.mrb[0].mxu0
        %v2055 = vadd.f32 0.0, %v2054
        %v2056 = vpop.f32.mrb[0].mxu0
        %2057 = vmatprep.mubr.f32.mxu0 0.0
        %2058 = vmatmul.mubr.f32.gmra.mrb[0].mxu0 %v1873
        %v2059 = vpop.f32.mrb[0].mxu0
        %v2060 = vadd.f32 0.0, %v2059
        %v2061 = vpop.f32.mrb[0].mxu0
        %2062 = vmatprep.mubr.f32.mxu0 0.0
        %2063 = vmatmul.mubr.f32.gmra.mrb[0].mxu0 %v1876
        %v2064 = vpop.f32.mrb[0].mxu0
        %v2065 = vadd.f32 0.0, %v2064
        %v2066 = vpop.f32.mrb[0].mxu0
        %2067 = vmatprep.mubr.f32.mxu0 0.0
        %2068 = vmatmul.mubr.f32.gmra.mrb[0].mxu0 %v1879
        %v2069 = vpop.f32.mrb[0].mxu0
        %v2070 = vadd.f32 0.0, %v2069
        %v2071 = vpop.f32.mrb[0].mxu0
        %2072 = vmatprep.mubr.f32.mxu0 0.0
        %2073 = vmatmul.mubr.f32.gmra.mrb[0].mxu0 %v1882
        %v2074 = vpop.f32.mrb[0].mxu0
        %v2075 = vadd.f32 0.0, %v2074
        %v2076 = vpop.f32.mrb[0].mxu0
        %2077 = vmatprep.mubr.f32.mxu0 0.0
        %2078 = vmatmul.mubr.f32.gmra.mrb[0].mxu0 %v1885
        %v2079 = vpop.f32.mrb[0].mxu0
        %v2080 = vadd.f32 0.0, %v2079
        %v2081 = vpop.f32.mrb[0].mxu0
        %2082 = vmatprep.mubr.f32.mxu0 0.0
        %2083 = vmatmul.mubr.f32.gmra.mrb[0].mxu0 %v1888
        %v2084 = vpop.f32.mrb[0].mxu0
        %v2085 = vadd.f32 0.0, %v2084
        %v2086 = vpop.f32.mrb[0].mxu0
        %2087 = vmatprep.mubr.f32.mxu0 0.0
        %2088 = vmatmul.mubr.f32.gmra.mrb[0].mxu0 %v1891
        %v2089 = vpop.f32.mrb[0].mxu0
        %v2090 = vadd.f32 0.0, %v2089
        %v2091 = vpop.f32.mrb[0].mxu0
        %2092 = vmatprep.mubr.f32.mxu0 0.0
        %2093 = vmatmul.mubr.f32.gmra.mrb[0].mxu0 %v1894
        %v2094 = vpop.f32.mrb[0].mxu0
        %v2095 = vadd.f32 0.0, %v2094
        %v2096 = vpop.f32.mrb[0].mxu0
        %2097 = vmatprep.mubr.f32.mxu0 0.0
        %2098 = vmatmul.mubr.f32.gmra.mrb[0].mxu0 %v1897
        %v2099 = vpop.f32.mrb[0].mxu0
        %v2100 = vadd.f32 0.0, %v2099
        %v2101 = vpop.f32.mrb[0].mxu0
        %2102 = vmatprep.mubr.f32.mxu0 0.0
        %2103 = vmatmul.mubr.f32.gmra.mrb[0].mxu0 %v1900
        %v2104 = vpop.f32.mrb[0].mxu0
        %v2105 = vadd.f32 0.0, %v2104
        %v2106 = vpop.f32.mrb[0].mxu0
        %2107 = vmatprep.mubr.f32.mxu0 0.0
        %2108 = vmatmul.mubr.f32.gmra.mrb[0].mxu0 %v1903
        %v2109 = vpop.f32.mrb[0].mxu0
        %v2110 = vadd.f32 0.0, %v2109
        %v2111 = vpop.f32.mrb[0].mxu0
        %2112 = vmatprep.mubr.f32.mxu0 0.0
        %2113 = vmatmul.mubr.f32.gmra.mrb[0].mxu0 %v1906
        %v2114 = vpop.f32.mrb[0].mxu0
        %v2115 = vadd.f32 0.0, %v2114
        %v2116 = vpop.f32.mrb[0].mxu0
        %2117 = vmatprep.mubr.f32.mxu0 0.0
        %2118 = vmatmul.mubr.f32.gmra.mrb[0].mxu0 %v1909
        %v2119 = vpop.f32.mrb[0].mxu0
        %v2120 = vadd.f32 0.0, %v2119
        %v2121 = vpop.f32.mrb[0].mxu0
        %2122 = vmatprep.mubr.f32.mxu0 0.0
        %2123 = vmatmul.mubr.f32.gmra.mrb[0].mxu0 %v1912
        %v2124 = vpop.f32.mrb[0].mxu0
        %v2125 = vadd.f32 0.0, %v2124
        %v2126 = vpop.f32.mrb[0].mxu0
        %2127 = vmatprep.mubr.f32.mxu0 0.0
        %2128 = vmatmul.mubr.f32.gmra.mrb[0].mxu0 %v1915
        %v2129 = vpop.f32.mrb[0].mxu0
        %v2130 = vadd.f32 0.0, %v2129
        %v2131 = vpop.f32.mrb[0].mxu0
        %2132 = vmatprep.mubr.f32.mxu0 0.0
        %2133 = vmatmul.mubr.f32.gmra.mrb[0].mxu0 %v1918
        %v2134 = vpop.f32.mrb[0].mxu0
        %v2135 = vadd.f32 0.0, %v2134
        %v2136 = vpop.f32.mrb[0].mxu0
        %2137 = vmatprep.mubr.f32.mxu0 0.0
        %2138 = vmatmul.mubr.f32.gmra.mrb[0].mxu0 %v1921
        %v2139 = vpop.f32.mrb[0].mxu0
        %v2140 = vadd.f32 0.0, %v2139
        %v2141 = vpop.f32.mrb[0].mxu0
        %2142 = vmatprep.mubr.f32.mxu0 0.0
        %2143 = vmatmul.mubr.f32.gmra.mrb[0].mxu0 %v1924
        %v2144 = vpop.f32.mrb[0].mxu0
        %v2145 = vadd.f32 0.0, %v2144
        %v2146 = vpop.f32.mrb[0].mxu0
        %2147 = vmatprep.mubr.f32.mxu0 0.0
        %2148 = vmatmul.mubr.f32.gmra.mrb[0].mxu0 %v1927
        %v2149 = vpop.f32.mrb[0].mxu0
        %v2150 = vadd.f32 0.0, %v2149
        %v2151 = vpop.f32.mrb[0].mxu0
        %2152 = vmatprep.mubr.f32.mxu0 0.0
        %2153 = vmatmul.mubr.f32.gmra.mrb[0].mxu0 %v1930
        %v2154 = vpop.f32.mrb[0].mxu0
        %v2155 = vadd.f32 0.0, %v2154
        %v2156 = vpop.f32.mrb[0].mxu0
        %2157 = vmatprep.mubr.f32.mxu0 0.0
        %2158 = vmatmul.mubr.f32.gmra.mrb[0].mxu0 %v1933
        %v2159 = vpop.f32.mrb[0].mxu0
        %v2160 = vadd.f32 0.0, %v2159
        %v2161 = vpop.f32.mrb[0].mxu0
        %2162 = vmatprep.mubr.f32.mxu0 0.0
        %2163 = vmatmul.mubr.f32.gmra.mrb[0].mxu0 %v1936
        %v2164 = vpop.f32.mrb[0].mxu0
        %v2165 = vadd.f32 0.0, %v2164
        %v2166 = vpop.f32.mrb[0].mxu0
        %2167 = vmatprep.mubr.f32.mxu0 0.0
        %2168 = vmatmul.mubr.f32.gmra.mrb[0].mxu0 %v1939
        %v2169 = vpop.f32.mrb[0].mxu0
        %v2170 = vadd.f32 0.0, %v2169
        %v2171 = vpop.f32.mrb[0].mxu0
        %2172 = vmatprep.mubr.f32.mxu0 0.0
        %2173 = vmatmul.mubr.f32.gmra.mrb[0].mxu0 %v1942
        %v2174 = vpop.f32.mrb[0].mxu0
        %v2175 = vadd.f32 0.0, %v2174
        %v2176 = vpop.f32.mrb[0].mxu0
        %2177 = vmatprep.mubr.f32.mxu0 0.0
        %2178 = vmatmul.mubr.f32.gmra.mrb[0].mxu0 %v1945
        %v2179 = vpop.f32.mrb[0].mxu0
        %v2180 = vadd.f32 0.0, %v2179
        %v2181 = vpop.f32.mrb[0].mxu0
        %2182 = vmatprep.mubr.f32.mxu0 0.0
        %2183 = vmatmul.mubr.f32.gmra.mrb[0].mxu0 %v1948
        %v2184 = vpop.f32.mrb[0].mxu0
        %v2185 = vadd.f32 0.0, %v2184
        %v2186 = vpop.f32.mrb[0].mxu0
        %2187 = vmatprep.mubr.f32.mxu0 0.0
        %2188 = vmatmul.mubr.f32.gmra.mrb[0].mxu0 %v1951
        %v2189 = vpop.f32.mrb[0].mxu0
        %v2190 = vadd.f32 0.0, %v2189
        %v2191 = vpop.f32.mrb[0].mxu0
        %2192 = vmatprep.mubr.f32.mxu0 0.0
        %2193 = vmatmul.mubr.f32.gmra.mrb[0].mxu0 %v1954
        %v2194 = vpop.f32.mrb[0].mxu0
        %v2195 = vadd.f32 0.0, %v2194
        %v2196 = vpop.f32.mrb[0].mxu0
        %2197 = vmatprep.mubr.f32.mxu0 0.0
        %2198 = vmatmul.mubr.f32.gmra.mrb[0].mxu0 %v1957
        %v2199 = vpop.f32.mrb[0].mxu0
        %v2200 = vadd.f32 0.0, %v2199
        %v2201 = vpop.f32.mrb[0].mxu0
        %2202 = vmatprep.mubr.f32.mxu0 0.0
        %2203 = vmatmul.mubr.f32.gmra.mrb[0].mxu0 %v1960
        %v2204 = vpop.f32.mrb[0].mxu0
        %v2205 = vadd.f32 0.0, %v2204
        %v2206 = vpop.f32.mrb[0].mxu0
        %2207 = vmatprep.mubr.f32.mxu0 0.0
        %2208 = vmatmul.mubr.f32.gmra.mrb[0].mxu0 %v1963
        %v2209 = vpop.f32.mrb[0].mxu0
        %v2210 = vadd.f32 0.0, %v2209
        %v2211 = vpop.f32.mrb[0].mxu0
        %2212 = vdwg.mxu0
        %v2213 = vadd.f32 %v1783, %v2035
        %v2214 = vadd.f32 %v1784, %v2040
        %v2215 = vadd.f32 %v1785, %v2045
        %v2216 = vadd.f32 %v1786, %v2050
        %v2217 = vadd.f32 %v1787, %v2055
        %v2218 = vadd.f32 %v1788, %v2060
        %v2219 = vadd.f32 %v1789, %v2065
        %v2220 = vadd.f32 %v1790, %v2070
        %v2221 = vadd.f32 %v1791, %v2075
        %v2222 = vadd.f32 %v1792, %v2080
        %v2223 = vadd.f32 %v1793, %v2085
        %v2224 = vadd.f32 %v1794, %v2090
        %v2225 = vadd.f32 %v1795, %v2095
        %v2226 = vadd.f32 %v1796, %v2100
        %v2227 = vadd.f32 %v1797, %v2105
        %v2228 = vadd.f32 %v1798, %v2110
        %v2229 = vadd.f32 %v1799, %v2115
        %v2230 = vadd.f32 %v1800, %v2120
        %v2231 = vadd.f32 %v1801, %v2125
        %v2232 = vadd.f32 %v1802, %v2130
        %v2233 = vadd.f32 %v1803, %v2135
        %v2234 = vadd.f32 %v1804, %v2140
        %v2235 = vadd.f32 %v1805, %v2145
        %v2236 = vadd.f32 %v1806, %v2150
        %v2237 = vadd.f32 %v1807, %v2155
        %v2238 = vadd.f32 %v1808, %v2160
        %v2239 = vadd.f32 %v1809, %v2165
        %v2240 = vadd.f32 %v1810, %v2170
        %v2241 = vadd.f32 %v1811, %v2175
        %v2242 = vadd.f32 %v1812, %v2180
        %v2243 = vadd.f32 %v1813, %v2185
        %v2244 = vadd.f32 %v1814, %v2190
        %v2245 = vadd.f32 %v1815, %v2195
        %v2246 = vadd.f32 %v1816, %v2200
        %v2247 = vadd.f32 %v1817, %v2205
        %v2248 = vadd.f32 %v1818, %v2210
        %v2249 = vld [vmem:[%s168 + $0x14] sm:$0xff]
        %v2250 = vld [vmem:[%s168 + $0x1c] sm:$0xff]
        %v2251 = vld [vmem:[%s168 + $0x24] sm:$0xff]
        %v2252 = vld [vmem:[%s168 + $0x2c] sm:$0xff]
        %v2253 = vld [vmem:[%s168 + $0x34] sm:$0xff]
        %v2254 = vld [vmem:[%s168 + $0x3c] sm:$0xff]
        %v2255 = vld [vmem:[%s168 + $0x44] sm:$0xff]
        %v2256 = vld [vmem:[%s168 + $0x4c] sm:$0xff]
        %v2257 = vld [vmem:[%s168 + $0x54] sm:$0xff]
        %v2258 = vld [vmem:[%s168 + $0x5c] sm:$0xff]
        %v2259 = vld [vmem:[%s168 + $0x64] sm:$0xff]
        %v2260 = vld [vmem:[%s168 + $0x6c] sm:$0xff]
        %v2261 = vld [vmem:[%s168 + $0x74] sm:$0xff]
        %v2262 = vld [vmem:[%s168 + $0x7c] sm:$0xff]
        %v2263 = vld [vmem:[%s168 + $0x84] sm:$0xff]
        %v2264 = vld [vmem:[%s168 + $0x8c] sm:$0xff]
        %v2265 = vld [vmem:[%s168 + $0x94] sm:$0xff]
        %v2266 = vld [vmem:[%s168 + $0x9c] sm:$0xff]
        %v2267 = vld [vmem:[%s168 + $0xa4] sm:$0xff]
        %v2268 = vld [vmem:[%s168 + $0xac] sm:$0xff]
        %v2269 = vld [vmem:[%s168 + $0xb4] sm:$0xff]
        %v2270 = vld [vmem:[%s168 + $0xbc] sm:$0xff]
        %v2271 = vld [vmem:[%s168 + $0xc4] sm:$0xff]
        %v2272 = vld [vmem:[%s168 + $0xcc] sm:$0xff]
        %v2273 = vld [vmem:[%s168 + $0xd4] sm:$0xff]
        %v2274 = vld [vmem:[%s168 + $0xdc] sm:$0xff]
        %v2275 = vld [vmem:[%s168 + $0xe4] sm:$0xff]
        %v2276 = vld [vmem:[%s168 + $0xec] sm:$0xff]
        %v2277 = vld [vmem:[%s168 + $0xf4] sm:$0xff]
        %v2278 = vld [vmem:[%s168 + $0xfc] sm:$0xff]
        %v2279 = vld [vmem:[%s168 + $0x104] sm:$0xff]
        %v2280 = vld [vmem:[%s168 + $0x10c] sm:$0xff]
        %v2281 = vld [vmem:[%s168 + $0x114] sm:$0xff]
        %v2282 = vld [vmem:[%s168 + $0x11c] sm:$0xff]
        %v2283 = vld [vmem:[%s168 + $0x124] sm:$0xff]
        %v2284 = vld [vmem:[%s168 + $0x12c] sm:$0xff]
        %s2285 = scalar_lea.vmem %s1, 20
        %v2286 = vld [vmem:[%s2285] sm:$0xf]
        %v2288 = vsel %vm245, %v2249, 0
        %v2291 = vsel %vm245, %v2250, 0
        %v2294 = vsel %vm245, %v2251, 0
        %v2297 = vsel %vm245, %v2252, 0
        %v2300 = vsel %vm245, %v2253, 0
        %v2303 = vsel %vm245, %v2254, 0
        %v2306 = vsel %vm245, %v2255, 0
        %v2309 = vsel %vm245, %v2256, 0
        %v2312 = vsel %vm245, %v2257, 0
        %v2315 = vsel %vm245, %v2258, 0
        %v2318 = vsel %vm245, %v2259, 0
        %v2321 = vsel %vm245, %v2260, 0
        %v2324 = vsel %vm245, %v2261, 0
        %v2327 = vsel %vm245, %v2262, 0
        %v2330 = vsel %vm245, %v2263, 0
        %v2333 = vsel %vm245, %v2264, 0
        %v2336 = vsel %vm245, %v2265, 0
        %v2339 = vsel %vm245, %v2266, 0
        %v2342 = vsel %vm245, %v2267, 0
        %v2345 = vsel %vm245, %v2268, 0
        %v2348 = vsel %vm245, %v2269, 0
        %v2351 = vsel %vm245, %v2270, 0
        %v2354 = vsel %vm245, %v2271, 0
        %v2357 = vsel %vm245, %v2272, 0
        %v2360 = vsel %vm245, %v2273, 0
        %v2363 = vsel %vm245, %v2274, 0
        %v2366 = vsel %vm245, %v2275, 0
        %v2369 = vsel %vm245, %v2276, 0
        %v2372 = vsel %vm245, %v2277, 0
        %v2375 = vsel %vm245, %v2278, 0
        %v2378 = vsel %vm245, %v2279, 0
        %v2381 = vsel %vm245, %v2280, 0
        %v2384 = vsel %vm245, %v2281, 0
        %v2387 = vsel %vm245, %v2282, 0
        %v2390 = vsel %vm245, %v2283, 0
        %v2393 = vsel %vm245, %v2284, 0
        %v2396 = vsel %vm354, %v2286, 0
        %2398 = vmatprep.subr.mxu0 0.0
        %2399 = vmatpush1.msra.mxu0 %v2396
        %2400 = vmatprep.subr.mxu0 0.0
        %2401 = vmatpush1.msra.mxu0 0.0
        %2402 = vmatprep.subr.mxu0 0.0
        %2403 = vmatpush1.msra.mxu0 0.0
        %2404 = vmatprep.subr.mxu0 0.0
        %2405 = vmatpush1.msra.mxu0 0.0
        %2406 = vmatprep.subr.mxu0 0.0
        %2407 = vmatpush1.msra.mxu0 0.0
        %2408 = vmatprep.subr.mxu0 0.0
        %2409 = vmatpush1.msra.mxu0 0.0
        %2410 = vmatprep.subr.mxu0 0.0
        %2411 = vmatpush1.msra.mxu0 0.0
        %2412 = vmatprep.subr.mxu0 0.0
        %2413 = vmatpush1.msra.mxu0 0.0
        %2414 = vmatprep.subr.mxu0 0.0
        %2415 = vmatpush1.msra.mxu0 0.0
        %2416 = vmatprep.subr.mxu0 0.0
        %2417 = vmatpush1.msra.mxu0 0.0
        %2418 = vmatprep.subr.mxu0 0.0
        %2419 = vmatpush1.msra.mxu0 0.0
        %2420 = vmatprep.subr.mxu0 0.0
        %2421 = vmatpush1.msra.mxu0 0.0
        %2422 = vmatprep.subr.mxu0 0.0
        %2423 = vmatpush1.msra.mxu0 0.0
        %2424 = vmatprep.subr.mxu0 0.0
        %2425 = vmatpush1.msra.mxu0 0.0
        %2426 = vmatprep.subr.mxu0 0.0
        %2427 = vmatpush1.msra.mxu0 0.0
        %2428 = vmatprep.subr.mxu0 0.0
        %2429 = vmatpush1.msra.mxu0 0.0
        %2430 = vmatprep.subr.mxu0 0.0
        %2431 = vmatpush1.msra.mxu0 0.0
        %2432 = vmatprep.subr.mxu0 0.0
        %2433 = vmatpush1.msra.mxu0 0.0
        %2434 = vmatprep.subr.mxu0 0.0
        %2435 = vmatpush1.msra.mxu0 0.0
        %2436 = vmatprep.subr.mxu0 0.0
        %2437 = vmatpush1.msra.mxu0 0.0
        %2438 = vmatprep.subr.mxu0 0.0
        %2439 = vmatpush1.msra.mxu0 0.0
        %2440 = vmatprep.subr.mxu0 0.0
        %2441 = vmatpush1.msra.mxu0 0.0
        %2442 = vmatprep.subr.mxu0 0.0
        %2443 = vmatpush1.msra.mxu0 0.0
        %2444 = vmatprep.subr.mxu0 0.0
        %2445 = vmatpush1.msra.mxu0 0.0
        %2446 = vmatprep.subr.mxu0 0.0
        %2447 = vmatpush1.msra.mxu0 0.0
        %2448 = vmatprep.subr.mxu0 0.0
        %2449 = vmatpush1.msra.mxu0 0.0
        %2450 = vmatprep.subr.mxu0 0.0
        %2451 = vmatpush1.msra.mxu0 0.0
        %2452 = vmatprep.subr.mxu0 0.0
        %2453 = vmatpush1.msra.mxu0 0.0
        %2454 = vmatprep.subr.mxu0 0.0
        %2455 = vmatpush1.msra.mxu0 0.0
        %2456 = vmatprep.subr.mxu0 0.0
        %2457 = vmatpush1.msra.mxu0 0.0
        %2458 = vmatprep.subr.mxu0 0.0
        %2459 = vmatpush1.msra.mxu0 0.0
        %2460 = vmatprep.subr.mxu0 0.0
        %2461 = vmatpush1.msra.mxu0 0.0
        %2462 = vmatprep.mubr.f32.mxu0 0.0
        %2463 = vmatmul.mubr.f32.gmra.mrb[0].mxu0 %v2288
        %v2464 = vpop.f32.mrb[0].mxu0
        %v2465 = vadd.f32 0.0, %v2464
        %v2466 = vpop.f32.mrb[0].mxu0
        %2467 = vmatprep.mubr.f32.mxu0 0.0
        %2468 = vmatmul.mubr.f32.gmra.mrb[0].mxu0 %v2291
        %v2469 = vpop.f32.mrb[0].mxu0
        %v2470 = vadd.f32 0.0, %v2469
        %v2471 = vpop.f32.mrb[0].mxu0
        %2472 = vmatprep.mubr.f32.mxu0 0.0
        %2473 = vmatmul.mubr.f32.gmra.mrb[0].mxu0 %v2294
        %v2474 = vpop.f32.mrb[0].mxu0
        %v2475 = vadd.f32 0.0, %v2474
        %v2476 = vpop.f32.mrb[0].mxu0
        %2477 = vmatprep.mubr.f32.mxu0 0.0
        %2478 = vmatmul.mubr.f32.gmra.mrb[0].mxu0 %v2297
        %v2479 = vpop.f32.mrb[0].mxu0
        %v2480 = vadd.f32 0.0, %v2479
        %v2481 = vpop.f32.mrb[0].mxu0
        %2482 = vmatprep.mubr.f32.mxu0 0.0
        %2483 = vmatmul.mubr.f32.gmra.mrb[0].mxu0 %v2300
        %v2484 = vpop.f32.mrb[0].mxu0
        %v2485 = vadd.f32 0.0, %v2484
        %v2486 = vpop.f32.mrb[0].mxu0
        %2487 = vmatprep.mubr.f32.mxu0 0.0
        %2488 = vmatmul.mubr.f32.gmra.mrb[0].mxu0 %v2303
        %v2489 = vpop.f32.mrb[0].mxu0
        %v2490 = vadd.f32 0.0, %v2489
        %v2491 = vpop.f32.mrb[0].mxu0
        %2492 = vmatprep.mubr.f32.mxu0 0.0
        %2493 = vmatmul.mubr.f32.gmra.mrb[0].mxu0 %v2306
        %v2494 = vpop.f32.mrb[0].mxu0
        %v2495 = vadd.f32 0.0, %v2494
        %v2496 = vpop.f32.mrb[0].mxu0
        %2497 = vmatprep.mubr.f32.mxu0 0.0
        %2498 = vmatmul.mubr.f32.gmra.mrb[0].mxu0 %v2309
        %v2499 = vpop.f32.mrb[0].mxu0
        %v2500 = vadd.f32 0.0, %v2499
        %v2501 = vpop.f32.mrb[0].mxu0
        %2502 = vmatprep.mubr.f32.mxu0 0.0
        %2503 = vmatmul.mubr.f32.gmra.mrb[0].mxu0 %v2312
        %v2504 = vpop.f32.mrb[0].mxu0
        %v2505 = vadd.f32 0.0, %v2504
        %v2506 = vpop.f32.mrb[0].mxu0
        %2507 = vmatprep.mubr.f32.mxu0 0.0
        %2508 = vmatmul.mubr.f32.gmra.mrb[0].mxu0 %v2315
        %v2509 = vpop.f32.mrb[0].mxu0
        %v2510 = vadd.f32 0.0, %v2509
        %v2511 = vpop.f32.mrb[0].mxu0
        %2512 = vmatprep.mubr.f32.mxu0 0.0
        %2513 = vmatmul.mubr.f32.gmra.mrb[0].mxu0 %v2318
        %v2514 = vpop.f32.mrb[0].mxu0
        %v2515 = vadd.f32 0.0, %v2514
        %v2516 = vpop.f32.mrb[0].mxu0
        %2517 = vmatprep.mubr.f32.mxu0 0.0
        %2518 = vmatmul.mubr.f32.gmra.mrb[0].mxu0 %v2321
        %v2519 = vpop.f32.mrb[0].mxu0
        %v2520 = vadd.f32 0.0, %v2519
        %v2521 = vpop.f32.mrb[0].mxu0
        %2522 = vmatprep.mubr.f32.mxu0 0.0
        %2523 = vmatmul.mubr.f32.gmra.mrb[0].mxu0 %v2324
        %v2524 = vpop.f32.mrb[0].mxu0
        %v2525 = vadd.f32 0.0, %v2524
        %v2526 = vpop.f32.mrb[0].mxu0
        %2527 = vmatprep.mubr.f32.mxu0 0.0
        %2528 = vmatmul.mubr.f32.gmra.mrb[0].mxu0 %v2327
        %v2529 = vpop.f32.mrb[0].mxu0
        %v2530 = vadd.f32 0.0, %v2529
        %v2531 = vpop.f32.mrb[0].mxu0
        %2532 = vmatprep.mubr.f32.mxu0 0.0
        %2533 = vmatmul.mubr.f32.gmra.mrb[0].mxu0 %v2330
        %v2534 = vpop.f32.mrb[0].mxu0
        %v2535 = vadd.f32 0.0, %v2534
        %v2536 = vpop.f32.mrb[0].mxu0
        %2537 = vmatprep.mubr.f32.mxu0 0.0
        %2538 = vmatmul.mubr.f32.gmra.mrb[0].mxu0 %v2333
        %v2539 = vpop.f32.mrb[0].mxu0
        %v2540 = vadd.f32 0.0, %v2539
        %v2541 = vpop.f32.mrb[0].mxu0
        %2542 = vmatprep.mubr.f32.mxu0 0.0
        %2543 = vmatmul.mubr.f32.gmra.mrb[0].mxu0 %v2336
        %v2544 = vpop.f32.mrb[0].mxu0
        %v2545 = vadd.f32 0.0, %v2544
        %v2546 = vpop.f32.mrb[0].mxu0
        %2547 = vmatprep.mubr.f32.mxu0 0.0
        %2548 = vmatmul.mubr.f32.gmra.mrb[0].mxu0 %v2339
        %v2549 = vpop.f32.mrb[0].mxu0
        %v2550 = vadd.f32 0.0, %v2549
        %v2551 = vpop.f32.mrb[0].mxu0
        %2552 = vmatprep.mubr.f32.mxu0 0.0
        %2553 = vmatmul.mubr.f32.gmra.mrb[0].mxu0 %v2342
        %v2554 = vpop.f32.mrb[0].mxu0
        %v2555 = vadd.f32 0.0, %v2554
        %v2556 = vpop.f32.mrb[0].mxu0
        %2557 = vmatprep.mubr.f32.mxu0 0.0
        %2558 = vmatmul.mubr.f32.gmra.mrb[0].mxu0 %v2345
        %v2559 = vpop.f32.mrb[0].mxu0
        %v2560 = vadd.f32 0.0, %v2559
        %v2561 = vpop.f32.mrb[0].mxu0
        %2562 = vmatprep.mubr.f32.mxu0 0.0
        %2563 = vmatmul.mubr.f32.gmra.mrb[0].mxu0 %v2348
        %v2564 = vpop.f32.mrb[0].mxu0
        %v2565 = vadd.f32 0.0, %v2564
        %v2566 = vpop.f32.mrb[0].mxu0
        %2567 = vmatprep.mubr.f32.mxu0 0.0
        %2568 = vmatmul.mubr.f32.gmra.mrb[0].mxu0 %v2351
        %v2569 = vpop.f32.mrb[0].mxu0
        %v2570 = vadd.f32 0.0, %v2569
        %v2571 = vpop.f32.mrb[0].mxu0
        %2572 = vmatprep.mubr.f32.mxu0 0.0
        %2573 = vmatmul.mubr.f32.gmra.mrb[0].mxu0 %v2354
        %v2574 = vpop.f32.mrb[0].mxu0
        %v2575 = vadd.f32 0.0, %v2574
        %v2576 = vpop.f32.mrb[0].mxu0
        %2577 = vmatprep.mubr.f32.mxu0 0.0
        %2578 = vmatmul.mubr.f32.gmra.mrb[0].mxu0 %v2357
        %v2579 = vpop.f32.mrb[0].mxu0
        %v2580 = vadd.f32 0.0, %v2579
        %v2581 = vpop.f32.mrb[0].mxu0
        %2582 = vmatprep.mubr.f32.mxu0 0.0
        %2583 = vmatmul.mubr.f32.gmra.mrb[0].mxu0 %v2360
        %v2584 = vpop.f32.mrb[0].mxu0
        %v2585 = vadd.f32 0.0, %v2584
        %v2586 = vpop.f32.mrb[0].mxu0
        %2587 = vmatprep.mubr.f32.mxu0 0.0
        %2588 = vmatmul.mubr.f32.gmra.mrb[0].mxu0 %v2363
        %v2589 = vpop.f32.mrb[0].mxu0
        %v2590 = vadd.f32 0.0, %v2589
        %v2591 = vpop.f32.mrb[0].mxu0
        %2592 = vmatprep.mubr.f32.mxu0 0.0
        %2593 = vmatmul.mubr.f32.gmra.mrb[0].mxu0 %v2366
        %v2594 = vpop.f32.mrb[0].mxu0
        %v2595 = vadd.f32 0.0, %v2594
        %v2596 = vpop.f32.mrb[0].mxu0
        %2597 = vmatprep.mubr.f32.mxu0 0.0
        %2598 = vmatmul.mubr.f32.gmra.mrb[0].mxu0 %v2369
        %v2599 = vpop.f32.mrb[0].mxu0
        %v2600 = vadd.f32 0.0, %v2599
        %v2601 = vpop.f32.mrb[0].mxu0
        %2602 = vmatprep.mubr.f32.mxu0 0.0
        %2603 = vmatmul.mubr.f32.gmra.mrb[0].mxu0 %v2372
        %v2604 = vpop.f32.mrb[0].mxu0
        %v2605 = vadd.f32 0.0, %v2604
        %v2606 = vpop.f32.mrb[0].mxu0
        %2607 = vmatprep.mubr.f32.mxu0 0.0
        %2608 = vmatmul.mubr.f32.gmra.mrb[0].mxu0 %v2375
        %v2609 = vpop.f32.mrb[0].mxu0
        %v2610 = vadd.f32 0.0, %v2609
        %v2611 = vpop.f32.mrb[0].mxu0
        %2612 = vmatprep.mubr.f32.mxu0 0.0
        %2613 = vmatmul.mubr.f32.gmra.mrb[0].mxu0 %v2378
        %v2614 = vpop.f32.mrb[0].mxu0
        %v2615 = vadd.f32 0.0, %v2614
        %v2616 = vpop.f32.mrb[0].mxu0
        %2617 = vmatprep.mubr.f32.mxu0 0.0
        %2618 = vmatmul.mubr.f32.gmra.mrb[0].mxu0 %v2381
        %v2619 = vpop.f32.mrb[0].mxu0
        %v2620 = vadd.f32 0.0, %v2619
        %v2621 = vpop.f32.mrb[0].mxu0
        %2622 = vmatprep.mubr.f32.mxu0 0.0
        %2623 = vmatmul.mubr.f32.gmra.mrb[0].mxu0 %v2384
        %v2624 = vpop.f32.mrb[0].mxu0
        %v2625 = vadd.f32 0.0, %v2624
        %v2626 = vpop.f32.mrb[0].mxu0
        %2627 = vmatprep.mubr.f32.mxu0 0.0
        %2628 = vmatmul.mubr.f32.gmra.mrb[0].mxu0 %v2387
        %v2629 = vpop.f32.mrb[0].mxu0
        %v2630 = vadd.f32 0.0, %v2629
        %v2631 = vpop.f32.mrb[0].mxu0
        %2632 = vmatprep.mubr.f32.mxu0 0.0
        %2633 = vmatmul.mubr.f32.gmra.mrb[0].mxu0 %v2390
        %v2634 = vpop.f32.mrb[0].mxu0
        %v2635 = vadd.f32 0.0, %v2634
        %v2636 = vpop.f32.mrb[0].mxu0
        %2637 = vmatprep.mubr.f32.mxu0 0.0
        %2638 = vmatmul.mubr.f32.gmra.mrb[0].mxu0 %v2393
        %v2639 = vpop.f32.mrb[0].mxu0
        %v2640 = vadd.f32 0.0, %v2639
        %v2641 = vpop.f32.mrb[0].mxu0
        %2642 = vdwg.mxu0
        %v2643 = vadd.f32 %v2213, %v2465
        %v2644 = vadd.f32 %v2214, %v2470
        %v2645 = vadd.f32 %v2215, %v2475
        %v2646 = vadd.f32 %v2216, %v2480
        %v2647 = vadd.f32 %v2217, %v2485
        %v2648 = vadd.f32 %v2218, %v2490
        %v2649 = vadd.f32 %v2219, %v2495
        %v2650 = vadd.f32 %v2220, %v2500
        %v2651 = vadd.f32 %v2221, %v2505
        %v2652 = vadd.f32 %v2222, %v2510
        %v2653 = vadd.f32 %v2223, %v2515
        %v2654 = vadd.f32 %v2224, %v2520
        %v2655 = vadd.f32 %v2225, %v2525
        %v2656 = vadd.f32 %v2226, %v2530
        %v2657 = vadd.f32 %v2227, %v2535
        %v2658 = vadd.f32 %v2228, %v2540
        %v2659 = vadd.f32 %v2229, %v2545
        %v2660 = vadd.f32 %v2230, %v2550
        %v2661 = vadd.f32 %v2231, %v2555
        %v2662 = vadd.f32 %v2232, %v2560
        %v2663 = vadd.f32 %v2233, %v2565
        %v2664 = vadd.f32 %v2234, %v2570
        %v2665 = vadd.f32 %v2235, %v2575
        %v2666 = vadd.f32 %v2236, %v2580
        %v2667 = vadd.f32 %v2237, %v2585
        %v2668 = vadd.f32 %v2238, %v2590
        %v2669 = vadd.f32 %v2239, %v2595
        %v2670 = vadd.f32 %v2240, %v2600
        %v2671 = vadd.f32 %v2241, %v2605
        %v2672 = vadd.f32 %v2242, %v2610
        %v2673 = vadd.f32 %v2243, %v2615
        %v2674 = vadd.f32 %v2244, %v2620
        %v2675 = vadd.f32 %v2245, %v2625
        %v2676 = vadd.f32 %v2246, %v2630
        %v2677 = vadd.f32 %v2247, %v2635
        %v2678 = vadd.f32 %v2248, %v2640
        %v2679 = vld [vmem:[%s168 + $0x24] sm:$0xff]
        %v2680 = vld [vmem:[%s168 + $0x2c] sm:$0xff]
        %v2681 = vld [vmem:[%s168 + $0x34] sm:$0xff]
        %v2682 = vld [vmem:[%s168 + $0x3c] sm:$0xff]
        %v2683 = vld [vmem:[%s168 + $0x44] sm:$0xff]
        %v2684 = vld [vmem:[%s168 + $0x4c] sm:$0xff]
        %v2685 = vld [vmem:[%s168 + $0x54] sm:$0xff]
        %v2686 = vld [vmem:[%s168 + $0x5c] sm:$0xff]
        %v2687 = vld [vmem:[%s168 + $0x64] sm:$0xff]
        %v2688 = vld [vmem:[%s168 + $0x6c] sm:$0xff]
        %v2689 = vld [vmem:[%s168 + $0x74] sm:$0xff]
        %v2690 = vld [vmem:[%s168 + $0x7c] sm:$0xff]
        %v2691 = vld [vmem:[%s168 + $0x84] sm:$0xff]
        %v2692 = vld [vmem:[%s168 + $0x8c] sm:$0xff]
        %v2693 = vld [vmem:[%s168 + $0x94] sm:$0xff]
        %v2694 = vld [vmem:[%s168 + $0x9c] sm:$0xff]
        %v2695 = vld [vmem:[%s168 + $0xa4] sm:$0xff]
        %v2696 = vld [vmem:[%s168 + $0xac] sm:$0xff]
        %v2697 = vld [vmem:[%s168 + $0xb4] sm:$0xff]
        %v2698 = vld [vmem:[%s168 + $0xbc] sm:$0xff]
        %v2699 = vld [vmem:[%s168 + $0xc4] sm:$0xff]
        %v2700 = vld [vmem:[%s168 + $0xcc] sm:$0xff]
        %v2701 = vld [vmem:[%s168 + $0xd4] sm:$0xff]
        %v2702 = vld [vmem:[%s168 + $0xdc] sm:$0xff]
        %v2703 = vld [vmem:[%s168 + $0xe4] sm:$0xff]
        %v2704 = vld [vmem:[%s168 + $0xec] sm:$0xff]
        %v2705 = vld [vmem:[%s168 + $0xf4] sm:$0xff]
        %v2706 = vld [vmem:[%s168 + $0xfc] sm:$0xff]
        %v2707 = vld [vmem:[%s168 + $0x104] sm:$0xff]
        %v2708 = vld [vmem:[%s168 + $0x10c] sm:$0xff]
        %v2709 = vld [vmem:[%s168 + $0x114] sm:$0xff]
        %v2710 = vld [vmem:[%s168 + $0x11c] sm:$0xff]
        %v2711 = vld [vmem:[%s168 + $0x124] sm:$0xff]
        %v2712 = vld [vmem:[%s168 + $0x12c] sm:$0xff]
        %v2713 = vld [vmem:[%s168 + $0x134] sm:$0xff]
        %v2714 = vld [vmem:[%s168 + $0x13c] sm:$0xff]
        %s2715 = scalar_lea.vmem %s1, 24
        %v2716 = vld [vmem:[%s2715] sm:$0xf]
        %v2718 = vsel %vm245, %v2679, 0
        %v2721 = vsel %vm245, %v2680, 0
        %v2724 = vsel %vm245, %v2681, 0
        %v2727 = vsel %vm245, %v2682, 0
        %v2730 = vsel %vm245, %v2683, 0
        %v2733 = vsel %vm245, %v2684, 0
        %v2736 = vsel %vm245, %v2685, 0
        %v2739 = vsel %vm245, %v2686, 0
        %v2742 = vsel %vm245, %v2687, 0
        %v2745 = vsel %vm245, %v2688, 0
        %v2748 = vsel %vm245, %v2689, 0
        %v2751 = vsel %vm245, %v2690, 0
        %v2754 = vsel %vm245, %v2691, 0
        %v2757 = vsel %vm245, %v2692, 0
        %v2760 = vsel %vm245, %v2693, 0
        %v2763 = vsel %vm245, %v2694, 0
        %v2766 = vsel %vm245, %v2695, 0
        %v2769 = vsel %vm245, %v2696, 0
        %v2772 = vsel %vm245, %v2697, 0
        %v2775 = vsel %vm245, %v2698, 0
        %v2778 = vsel %vm245, %v2699, 0
        %v2781 = vsel %vm245, %v2700, 0
        %v2784 = vsel %vm245, %v2701, 0
        %v2787 = vsel %vm245, %v2702, 0
        %v2790 = vsel %vm245, %v2703, 0
        %v2793 = vsel %vm245, %v2704, 0
        %v2796 = vsel %vm245, %v2705, 0
        %v2799 = vsel %vm245, %v2706, 0
        %v2802 = vsel %vm245, %v2707, 0
        %v2805 = vsel %vm245, %v2708, 0
        %v2808 = vsel %vm245, %v2709, 0
        %v2811 = vsel %vm245, %v2710, 0
        %v2814 = vsel %vm245, %v2711, 0
        %v2817 = vsel %vm245, %v2712, 0
        %v2820 = vsel %vm245, %v2713, 0
        %v2823 = vsel %vm245, %v2714, 0
        %v2826 = vsel %vm354, %v2716, 0
        %2828 = vmatprep.subr.mxu0 0.0
        %2829 = vmatpush1.msra.mxu0 %v2826
        %2830 = vmatprep.subr.mxu0 0.0
        %2831 = vmatpush1.msra.mxu0 0.0
        %2832 = vmatprep.subr.mxu0 0.0
        %2833 = vmatpush1.msra.mxu0 0.0
        %2834 = vmatprep.subr.mxu0 0.0
        %2835 = vmatpush1.msra.mxu0 0.0
        %2836 = vmatprep.subr.mxu0 0.0
        %2837 = vmatpush1.msra.mxu0 0.0
        %2838 = vmatprep.subr.mxu0 0.0
        %2839 = vmatpush1.msra.mxu0 0.0
        %2840 = vmatprep.subr.mxu0 0.0
        %2841 = vmatpush1.msra.mxu0 0.0
        %2842 = vmatprep.subr.mxu0 0.0
        %2843 = vmatpush1.msra.mxu0 0.0
        %2844 = vmatprep.subr.mxu0 0.0
        %2845 = vmatpush1.msra.mxu0 0.0
        %2846 = vmatprep.subr.mxu0 0.0
        %2847 = vmatpush1.msra.mxu0 0.0
        %2848 = vmatprep.subr.mxu0 0.0
        %2849 = vmatpush1.msra.mxu0 0.0
        %2850 = vmatprep.subr.mxu0 0.0
        %2851 = vmatpush1.msra.mxu0 0.0
        %2852 = vmatprep.subr.mxu0 0.0
        %2853 = vmatpush1.msra.mxu0 0.0
        %2854 = vmatprep.subr.mxu0 0.0
        %2855 = vmatpush1.msra.mxu0 0.0
        %2856 = vmatprep.subr.mxu0 0.0
        %2857 = vmatpush1.msra.mxu0 0.0
        %2858 = vmatprep.subr.mxu0 0.0
        %2859 = vmatpush1.msra.mxu0 0.0
        %2860 = vmatprep.subr.mxu0 0.0
        %2861 = vmatpush1.msra.mxu0 0.0
        %2862 = vmatprep.subr.mxu0 0.0
        %2863 = vmatpush1.msra.mxu0 0.0
        %2864 = vmatprep.subr.mxu0 0.0
        %2865 = vmatpush1.msra.mxu0 0.0
        %2866 = vmatprep.subr.mxu0 0.0
        %2867 = vmatpush1.msra.mxu0 0.0
        %2868 = vmatprep.subr.mxu0 0.0
        %2869 = vmatpush1.msra.mxu0 0.0
        %2870 = vmatprep.subr.mxu0 0.0
        %2871 = vmatpush1.msra.mxu0 0.0
        %2872 = vmatprep.subr.mxu0 0.0
        %2873 = vmatpush1.msra.mxu0 0.0
        %2874 = vmatprep.subr.mxu0 0.0
        %2875 = vmatpush1.msra.mxu0 0.0
        %2876 = vmatprep.subr.mxu0 0.0
        %2877 = vmatpush1.msra.mxu0 0.0
        %2878 = vmatprep.subr.mxu0 0.0
        %2879 = vmatpush1.msra.mxu0 0.0
        %2880 = vmatprep.subr.mxu0 0.0
        %2881 = vmatpush1.msra.mxu0 0.0
        %2882 = vmatprep.subr.mxu0 0.0
        %2883 = vmatpush1.msra.mxu0 0.0
        %2884 = vmatprep.subr.mxu0 0.0
        %2885 = vmatpush1.msra.mxu0 0.0
        %2886 = vmatprep.subr.mxu0 0.0
        %2887 = vmatpush1.msra.mxu0 0.0
        %2888 = vmatprep.subr.mxu0 0.0
        %2889 = vmatpush1.msra.mxu0 0.0
        %2890 = vmatprep.subr.mxu0 0.0
        %2891 = vmatpush1.msra.mxu0 0.0
        %2892 = vmatprep.mubr.f32.mxu0 0.0
        %2893 = vmatmul.mubr.f32.gmra.mrb[0].mxu0 %v2718
        %v2894 = vpop.f32.mrb[0].mxu0
        %v2895 = vadd.f32 0.0, %v2894
        %v2896 = vpop.f32.mrb[0].mxu0
        %2897 = vmatprep.mubr.f32.mxu0 0.0
        %2898 = vmatmul.mubr.f32.gmra.mrb[0].mxu0 %v2721
        %v2899 = vpop.f32.mrb[0].mxu0
        %v2900 = vadd.f32 0.0, %v2899
        %v2901 = vpop.f32.mrb[0].mxu0
        %2902 = vmatprep.mubr.f32.mxu0 0.0
        %2903 = vmatmul.mubr.f32.gmra.mrb[0].mxu0 %v2724
        %v2904 = vpop.f32.mrb[0].mxu0
        %v2905 = vadd.f32 0.0, %v2904
        %v2906 = vpop.f32.mrb[0].mxu0
        %2907 = vmatprep.mubr.f32.mxu0 0.0
        %2908 = vmatmul.mubr.f32.gmra.mrb[0].mxu0 %v2727
        %v2909 = vpop.f32.mrb[0].mxu0
        %v2910 = vadd.f32 0.0, %v2909
        %v2911 = vpop.f32.mrb[0].mxu0
        %2912 = vmatprep.mubr.f32.mxu0 0.0
        %2913 = vmatmul.mubr.f32.gmra.mrb[0].mxu0 %v2730
        %v2914 = vpop.f32.mrb[0].mxu0
        %v2915 = vadd.f32 0.0, %v2914
        %v2916 = vpop.f32.mrb[0].mxu0
        %2917 = vmatprep.mubr.f32.mxu0 0.0
        %2918 = vmatmul.mubr.f32.gmra.mrb[0].mxu0 %v2733
        %v2919 = vpop.f32.mrb[0].mxu0
        %v2920 = vadd.f32 0.0, %v2919
        %v2921 = vpop.f32.mrb[0].mxu0
        %2922 = vmatprep.mubr.f32.mxu0 0.0
        %2923 = vmatmul.mubr.f32.gmra.mrb[0].mxu0 %v2736
        %v2924 = vpop.f32.mrb[0].mxu0
        %v2925 = vadd.f32 0.0, %v2924
        %v2926 = vpop.f32.mrb[0].mxu0
        %2927 = vmatprep.mubr.f32.mxu0 0.0
        %2928 = vmatmul.mubr.f32.gmra.mrb[0].mxu0 %v2739
        %v2929 = vpop.f32.mrb[0].mxu0
        %v2930 = vadd.f32 0.0, %v2929
        %v2931 = vpop.f32.mrb[0].mxu0
        %2932 = vmatprep.mubr.f32.mxu0 0.0
        %2933 = vmatmul.mubr.f32.gmra.mrb[0].mxu0 %v2742
        %v2934 = vpop.f32.mrb[0].mxu0
        %v2935 = vadd.f32 0.0, %v2934
        %v2936 = vpop.f32.mrb[0].mxu0
        %2937 = vmatprep.mubr.f32.mxu0 0.0
        %2938 = vmatmul.mubr.f32.gmra.mrb[0].mxu0 %v2745
        %v2939 = vpop.f32.mrb[0].mxu0
        %v2940 = vadd.f32 0.0, %v2939
        %v2941 = vpop.f32.mrb[0].mxu0
        %2942 = vmatprep.mubr.f32.mxu0 0.0
        %2943 = vmatmul.mubr.f32.gmra.mrb[0].mxu0 %v2748
        %v2944 = vpop.f32.mrb[0].mxu0
        %v2945 = vadd.f32 0.0, %v2944
        %v2946 = vpop.f32.mrb[0].mxu0
        %2947 = vmatprep.mubr.f32.mxu0 0.0
        %2948 = vmatmul.mubr.f32.gmra.mrb[0].mxu0 %v2751
        %v2949 = vpop.f32.mrb[0].mxu0
        %v2950 = vadd.f32 0.0, %v2949
        %v2951 = vpop.f32.mrb[0].mxu0
        %2952 = vmatprep.mubr.f32.mxu0 0.0
        %2953 = vmatmul.mubr.f32.gmra.mrb[0].mxu0 %v2754
        %v2954 = vpop.f32.mrb[0].mxu0
        %v2955 = vadd.f32 0.0, %v2954
        %v2956 = vpop.f32.mrb[0].mxu0
        %2957 = vmatprep.mubr.f32.mxu0 0.0
        %2958 = vmatmul.mubr.f32.gmra.mrb[0].mxu0 %v2757
        %v2959 = vpop.f32.mrb[0].mxu0
        %v2960 = vadd.f32 0.0, %v2959
        %v2961 = vpop.f32.mrb[0].mxu0
        %2962 = vmatprep.mubr.f32.mxu0 0.0
        %2963 = vmatmul.mubr.f32.gmra.mrb[0].mxu0 %v2760
        %v2964 = vpop.f32.mrb[0].mxu0
        %v2965 = vadd.f32 0.0, %v2964
        %v2966 = vpop.f32.mrb[0].mxu0
        %2967 = vmatprep.mubr.f32.mxu0 0.0
        %2968 = vmatmul.mubr.f32.gmra.mrb[0].mxu0 %v2763
        %v2969 = vpop.f32.mrb[0].mxu0
        %v2970 = vadd.f32 0.0, %v2969
        %v2971 = vpop.f32.mrb[0].mxu0
        %2972 = vmatprep.mubr.f32.mxu0 0.0
        %2973 = vmatmul.mubr.f32.gmra.mrb[0].mxu0 %v2766
        %v2974 = vpop.f32.mrb[0].mxu0
        %v2975 = vadd.f32 0.0, %v2974
        %v2976 = vpop.f32.mrb[0].mxu0
        %2977 = vmatprep.mubr.f32.mxu0 0.0
        %2978 = vmatmul.mubr.f32.gmra.mrb[0].mxu0 %v2769
        %v2979 = vpop.f32.mrb[0].mxu0
        %v2980 = vadd.f32 0.0, %v2979
        %v2981 = vpop.f32.mrb[0].mxu0
        %2982 = vmatprep.mubr.f32.mxu0 0.0
        %2983 = vmatmul.mubr.f32.gmra.mrb[0].mxu0 %v2772
        %v2984 = vpop.f32.mrb[0].mxu0
        %v2985 = vadd.f32 0.0, %v2984
        %v2986 = vpop.f32.mrb[0].mxu0
        %2987 = vmatprep.mubr.f32.mxu0 0.0
        %2988 = vmatmul.mubr.f32.gmra.mrb[0].mxu0 %v2775
        %v2989 = vpop.f32.mrb[0].mxu0
        %v2990 = vadd.f32 0.0, %v2989
        %v2991 = vpop.f32.mrb[0].mxu0
        %2992 = vmatprep.mubr.f32.mxu0 0.0
        %2993 = vmatmul.mubr.f32.gmra.mrb[0].mxu0 %v2778
        %v2994 = vpop.f32.mrb[0].mxu0
        %v2995 = vadd.f32 0.0, %v2994
        %v2996 = vpop.f32.mrb[0].mxu0
        %2997 = vmatprep.mubr.f32.mxu0 0.0
        %2998 = vmatmul.mubr.f32.gmra.mrb[0].mxu0 %v2781
        %v2999 = vpop.f32.mrb[0].mxu0
        %v3000 = vadd.f32 0.0, %v2999
        %v3001 = vpop.f32.mrb[0].mxu0
        %3002 = vmatprep.mubr.f32.mxu0 0.0
        %3003 = vmatmul.mubr.f32.gmra.mrb[0].mxu0 %v2784
        %v3004 = vpop.f32.mrb[0].mxu0
        %v3005 = vadd.f32 0.0, %v3004
        %v3006 = vpop.f32.mrb[0].mxu0
        %3007 = vmatprep.mubr.f32.mxu0 0.0
        %3008 = vmatmul.mubr.f32.gmra.mrb[0].mxu0 %v2787
        %v3009 = vpop.f32.mrb[0].mxu0
        %v3010 = vadd.f32 0.0, %v3009
        %v3011 = vpop.f32.mrb[0].mxu0
        %3012 = vmatprep.mubr.f32.mxu0 0.0
        %3013 = vmatmul.mubr.f32.gmra.mrb[0].mxu0 %v2790
        %v3014 = vpop.f32.mrb[0].mxu0
        %v3015 = vadd.f32 0.0, %v3014
        %v3016 = vpop.f32.mrb[0].mxu0
        %3017 = vmatprep.mubr.f32.mxu0 0.0
        %3018 = vmatmul.mubr.f32.gmra.mrb[0].mxu0 %v2793
        %v3019 = vpop.f32.mrb[0].mxu0
        %v3020 = vadd.f32 0.0, %v3019
        %v3021 = vpop.f32.mrb[0].mxu0
        %3022 = vmatprep.mubr.f32.mxu0 0.0
        %3023 = vmatmul.mubr.f32.gmra.mrb[0].mxu0 %v2796
        %v3024 = vpop.f32.mrb[0].mxu0
        %v3025 = vadd.f32 0.0, %v3024
        %v3026 = vpop.f32.mrb[0].mxu0
        %3027 = vmatprep.mubr.f32.mxu0 0.0
        %3028 = vmatmul.mubr.f32.gmra.mrb[0].mxu0 %v2799
        %v3029 = vpop.f32.mrb[0].mxu0
        %v3030 = vadd.f32 0.0, %v3029
        %v3031 = vpop.f32.mrb[0].mxu0
        %3032 = vmatprep.mubr.f32.mxu0 0.0
        %3033 = vmatmul.mubr.f32.gmra.mrb[0].mxu0 %v2802
        %v3034 = vpop.f32.mrb[0].mxu0
        %v3035 = vadd.f32 0.0, %v3034
        %v3036 = vpop.f32.mrb[0].mxu0
        %3037 = vmatprep.mubr.f32.mxu0 0.0
        %3038 = vmatmul.mubr.f32.gmra.mrb[0].mxu0 %v2805
        %v3039 = vpop.f32.mrb[0].mxu0
        %v3040 = vadd.f32 0.0, %v3039
        %v3041 = vpop.f32.mrb[0].mxu0
        %3042 = vmatprep.mubr.f32.mxu0 0.0
        %3043 = vmatmul.mubr.f32.gmra.mrb[0].mxu0 %v2808
        %v3044 = vpop.f32.mrb[0].mxu0
        %v3045 = vadd.f32 0.0, %v3044
        %v3046 = vpop.f32.mrb[0].mxu0
        %3047 = vmatprep.mubr.f32.mxu0 0.0
        %3048 = vmatmul.mubr.f32.gmra.mrb[0].mxu0 %v2811
        %v3049 = vpop.f32.mrb[0].mxu0
        %v3050 = vadd.f32 0.0, %v3049
        %v3051 = vpop.f32.mrb[0].mxu0
        %3052 = vmatprep.mubr.f32.mxu0 0.0
        %3053 = vmatmul.mubr.f32.gmra.mrb[0].mxu0 %v2814
        %v3054 = vpop.f32.mrb[0].mxu0
        %v3055 = vadd.f32 0.0, %v3054
        %v3056 = vpop.f32.mrb[0].mxu0
        %3057 = vmatprep.mubr.f32.mxu0 0.0
        %3058 = vmatmul.mubr.f32.gmra.mrb[0].mxu0 %v2817
        %v3059 = vpop.f32.mrb[0].mxu0
        %v3060 = vadd.f32 0.0, %v3059
        %v3061 = vpop.f32.mrb[0].mxu0
        %3062 = vmatprep.mubr.f32.mxu0 0.0
        %3063 = vmatmul.mubr.f32.gmra.mrb[0].mxu0 %v2820
        %v3064 = vpop.f32.mrb[0].mxu0
        %v3065 = vadd.f32 0.0, %v3064
        %v3066 = vpop.f32.mrb[0].mxu0
        %3067 = vmatprep.mubr.f32.mxu0 0.0
        %3068 = vmatmul.mubr.f32.gmra.mrb[0].mxu0 %v2823
        %v3069 = vpop.f32.mrb[0].mxu0
        %v3070 = vadd.f32 0.0, %v3069
        %v3071 = vpop.f32.mrb[0].mxu0
        %3072 = vdwg.mxu0
        %v3073 = vadd.f32 %v2643, %v2895
        %v3074 = vadd.f32 %v2644, %v2900
        %v3075 = vadd.f32 %v2645, %v2905
        %v3076 = vadd.f32 %v2646, %v2910
        %v3077 = vadd.f32 %v2647, %v2915
        %v3078 = vadd.f32 %v2648, %v2920
        %v3079 = vadd.f32 %v2649, %v2925
        %v3080 = vadd.f32 %v2650, %v2930
        %v3081 = vadd.f32 %v2651, %v2935
        %v3082 = vadd.f32 %v2652, %v2940
        %v3083 = vadd.f32 %v2653, %v2945
        %v3084 = vadd.f32 %v2654, %v2950
        %v3085 = vadd.f32 %v2655, %v2955
        %v3086 = vadd.f32 %v2656, %v2960
        %v3087 = vadd.f32 %v2657, %v2965
        %v3088 = vadd.f32 %v2658, %v2970
        %v3089 = vadd.f32 %v2659, %v2975
        %v3090 = vadd.f32 %v2660, %v2980
        %v3091 = vadd.f32 %v2661, %v2985
        %v3092 = vadd.f32 %v2662, %v2990
        %v3093 = vadd.f32 %v2663, %v2995
        %v3094 = vadd.f32 %v2664, %v3000
        %v3095 = vadd.f32 %v2665, %v3005
        %v3096 = vadd.f32 %v2666, %v3010
        %v3097 = vadd.f32 %v2667, %v3015
        %v3098 = vadd.f32 %v2668, %v3020
        %v3099 = vadd.f32 %v2669, %v3025
        %v3100 = vadd.f32 %v2670, %v3030
        %v3101 = vadd.f32 %v2671, %v3035
        %v3102 = vadd.f32 %v2672, %v3040
        %v3103 = vadd.f32 %v2673, %v3045
        %v3104 = vadd.f32 %v2674, %v3050
        %v3105 = vadd.f32 %v2675, %v3055
        %v3106 = vadd.f32 %v2676, %v3060
        %v3107 = vadd.f32 %v2677, %v3065
        %v3108 = vadd.f32 %v2678, %v3070
        %v3109 = vld [vmem:[%s168 + $0x25] sm:$0xff]
        %v3110 = vld [vmem:[%s168 + $0x2d] sm:$0xff]
        %v3111 = vld [vmem:[%s168 + $0x35] sm:$0xff]
        %v3112 = vld [vmem:[%s168 + $0x3d] sm:$0xff]
        %v3113 = vld [vmem:[%s168 + $0x45] sm:$0xff]
        %v3114 = vld [vmem:[%s168 + $0x4d] sm:$0xff]
        %v3115 = vld [vmem:[%s168 + $0x55] sm:$0xff]
        %v3116 = vld [vmem:[%s168 + $0x5d] sm:$0xff]
        %v3117 = vld [vmem:[%s168 + $0x65] sm:$0xff]
        %v3118 = vld [vmem:[%s168 + $0x6d] sm:$0xff]
        %v3119 = vld [vmem:[%s168 + $0x75] sm:$0xff]
        %v3120 = vld [vmem:[%s168 + $0x7d] sm:$0xff]
        %v3121 = vld [vmem:[%s168 + $0x85] sm:$0xff]
        %v3122 = vld [vmem:[%s168 + $0x8d] sm:$0xff]
        %v3123 = vld [vmem:[%s168 + $0x95] sm:$0xff]
        %v3124 = vld [vmem:[%s168 + $0x9d] sm:$0xff]
        %v3125 = vld [vmem:[%s168 + $0xa5] sm:$0xff]
        %v3126 = vld [vmem:[%s168 + $0xad] sm:$0xff]
        %v3127 = vld [vmem:[%s168 + $0xb5] sm:$0xff]
        %v3128 = vld [vmem:[%s168 + $0xbd] sm:$0xff]
        %v3129 = vld [vmem:[%s168 + $0xc5] sm:$0xff]
        %v3130 = vld [vmem:[%s168 + $0xcd] sm:$0xff]
        %v3131 = vld [vmem:[%s168 + $0xd5] sm:$0xff]
        %v3132 = vld [vmem:[%s168 + $0xdd] sm:$0xff]
        %v3133 = vld [vmem:[%s168 + $0xe5] sm:$0xff]
        %v3134 = vld [vmem:[%s168 + $0xed] sm:$0xff]
        %v3135 = vld [vmem:[%s168 + $0xf5] sm:$0xff]
        %v3136 = vld [vmem:[%s168 + $0xfd] sm:$0xff]
        %v3137 = vld [vmem:[%s168 + $0x105] sm:$0xff]
        %v3138 = vld [vmem:[%s168 + $0x10d] sm:$0xff]
        %v3139 = vld [vmem:[%s168 + $0x115] sm:$0xff]
        %v3140 = vld [vmem:[%s168 + $0x11d] sm:$0xff]
        %v3141 = vld [vmem:[%s168 + $0x125] sm:$0xff]
        %v3142 = vld [vmem:[%s168 + $0x12d] sm:$0xff]
        %v3143 = vld [vmem:[%s168 + $0x135] sm:$0xff]
        %v3144 = vld [vmem:[%s168 + $0x13d] sm:$0xff]
        %s3145 = scalar_lea.vmem %s1, 28
        %v3146 = vld [vmem:[%s3145] sm:$0xf]
        %v3148 = vsel %vm245, %v3109, 0
        %v3151 = vsel %vm245, %v3110, 0
        %v3154 = vsel %vm245, %v3111, 0
        %v3157 = vsel %vm245, %v3112, 0
        %v3160 = vsel %vm245, %v3113, 0
        %v3163 = vsel %vm245, %v3114, 0
        %v3166 = vsel %vm245, %v3115, 0
        %v3169 = vsel %vm245, %v3116, 0
        %v3172 = vsel %vm245, %v3117, 0
        %v3175 = vsel %vm245, %v3118, 0
        %v3178 = vsel %vm245, %v3119, 0
        %v3181 = vsel %vm245, %v3120, 0
        %v3184 = vsel %vm245, %v3121, 0
        %v3187 = vsel %vm245, %v3122, 0
        %v3190 = vsel %vm245, %v3123, 0
        %v3193 = vsel %vm245, %v3124, 0
        %v3196 = vsel %vm245, %v3125, 0
        %v3199 = vsel %vm245, %v3126, 0
        %v3202 = vsel %vm245, %v3127, 0
        %v3205 = vsel %vm245, %v3128, 0
        %v3208 = vsel %vm245, %v3129, 0
        %v3211 = vsel %vm245, %v3130, 0
        %v3214 = vsel %vm245, %v3131, 0
        %v3217 = vsel %vm245, %v3132, 0
        %v3220 = vsel %vm245, %v3133, 0
        %v3223 = vsel %vm245, %v3134, 0
        %v3226 = vsel %vm245, %v3135, 0
        %v3229 = vsel %vm245, %v3136, 0
        %v3232 = vsel %vm245, %v3137, 0
        %v3235 = vsel %vm245, %v3138, 0
        %v3238 = vsel %vm245, %v3139, 0
        %v3241 = vsel %vm245, %v3140, 0
        %v3244 = vsel %vm245, %v3141, 0
        %v3247 = vsel %vm245, %v3142, 0
        %v3250 = vsel %vm245, %v3143, 0
        %v3253 = vsel %vm245, %v3144, 0
        %v3256 = vsel %vm354, %v3146, 0
        %3258 = vmatprep.subr.mxu0 0.0
        %3259 = vmatpush1.msra.mxu0 %v3256
        %3260 = vmatprep.subr.mxu0 0.0
        %3261 = vmatpush1.msra.mxu0 0.0
        %3262 = vmatprep.subr.mxu0 0.0
        %3263 = vmatpush1.msra.mxu0 0.0
        %3264 = vmatprep.subr.mxu0 0.0
        %3265 = vmatpush1.msra.mxu0 0.0
        %3266 = vmatprep.subr.mxu0 0.0
        %3267 = vmatpush1.msra.mxu0 0.0
        %3268 = vmatprep.subr.mxu0 0.0
        %3269 = vmatpush1.msra.mxu0 0.0
        %3270 = vmatprep.subr.mxu0 0.0
        %3271 = vmatpush1.msra.mxu0 0.0
        %3272 = vmatprep.subr.mxu0 0.0
        %3273 = vmatpush1.msra.mxu0 0.0
        %3274 = vmatprep.subr.mxu0 0.0
        %3275 = vmatpush1.msra.mxu0 0.0
        %3276 = vmatprep.subr.mxu0 0.0
        %3277 = vmatpush1.msra.mxu0 0.0
        %3278 = vmatprep.subr.mxu0 0.0
        %3279 = vmatpush1.msra.mxu0 0.0
        %3280 = vmatprep.subr.mxu0 0.0
        %3281 = vmatpush1.msra.mxu0 0.0
        %3282 = vmatprep.subr.mxu0 0.0
        %3283 = vmatpush1.msra.mxu0 0.0
        %3284 = vmatprep.subr.mxu0 0.0
        %3285 = vmatpush1.msra.mxu0 0.0
        %3286 = vmatprep.subr.mxu0 0.0
        %3287 = vmatpush1.msra.mxu0 0.0
        %3288 = vmatprep.subr.mxu0 0.0
        %3289 = vmatpush1.msra.mxu0 0.0
        %3290 = vmatprep.subr.mxu0 0.0
        %3291 = vmatpush1.msra.mxu0 0.0
        %3292 = vmatprep.subr.mxu0 0.0
        %3293 = vmatpush1.msra.mxu0 0.0
        %3294 = vmatprep.subr.mxu0 0.0
        %3295 = vmatpush1.msra.mxu0 0.0
        %3296 = vmatprep.subr.mxu0 0.0
        %3297 = vmatpush1.msra.mxu0 0.0
        %3298 = vmatprep.subr.mxu0 0.0
        %3299 = vmatpush1.msra.mxu0 0.0
        %3300 = vmatprep.subr.mxu0 0.0
        %3301 = vmatpush1.msra.mxu0 0.0
        %3302 = vmatprep.subr.mxu0 0.0
        %3303 = vmatpush1.msra.mxu0 0.0
        %3304 = vmatprep.subr.mxu0 0.0
        %3305 = vmatpush1.msra.mxu0 0.0
        %3306 = vmatprep.subr.mxu0 0.0
        %3307 = vmatpush1.msra.mxu0 0.0
        %3308 = vmatprep.subr.mxu0 0.0
        %3309 = vmatpush1.msra.mxu0 0.0
        %3310 = vmatprep.subr.mxu0 0.0
        %3311 = vmatpush1.msra.mxu0 0.0
        %3312 = vmatprep.subr.mxu0 0.0
        %3313 = vmatpush1.msra.mxu0 0.0
        %3314 = vmatprep.subr.mxu0 0.0
        %3315 = vmatpush1.msra.mxu0 0.0
        %3316 = vmatprep.subr.mxu0 0.0
        %3317 = vmatpush1.msra.mxu0 0.0
        %3318 = vmatprep.subr.mxu0 0.0
        %3319 = vmatpush1.msra.mxu0 0.0
        %3320 = vmatprep.subr.mxu0 0.0
        %3321 = vmatpush1.msra.mxu0 0.0
        %3322 = vmatprep.mubr.f32.mxu0 0.0
        %3323 = vmatmul.mubr.f32.gmra.mrb[0].mxu0 %v3148
        %v3324 = vpop.f32.mrb[0].mxu0
        %v3325 = vadd.f32 0.0, %v3324
        %v3326 = vpop.f32.mrb[0].mxu0
        %3327 = vmatprep.mubr.f32.mxu0 0.0
        %3328 = vmatmul.mubr.f32.gmra.mrb[0].mxu0 %v3151
        %v3329 = vpop.f32.mrb[0].mxu0
        %v3330 = vadd.f32 0.0, %v3329
        %v3331 = vpop.f32.mrb[0].mxu0
        %3332 = vmatprep.mubr.f32.mxu0 0.0
        %3333 = vmatmul.mubr.f32.gmra.mrb[0].mxu0 %v3154
        %v3334 = vpop.f32.mrb[0].mxu0
        %v3335 = vadd.f32 0.0, %v3334
        %v3336 = vpop.f32.mrb[0].mxu0
        %3337 = vmatprep.mubr.f32.mxu0 0.0
        %3338 = vmatmul.mubr.f32.gmra.mrb[0].mxu0 %v3157
        %v3339 = vpop.f32.mrb[0].mxu0
        %v3340 = vadd.f32 0.0, %v3339
        %v3341 = vpop.f32.mrb[0].mxu0
        %3342 = vmatprep.mubr.f32.mxu0 0.0
        %3343 = vmatmul.mubr.f32.gmra.mrb[0].mxu0 %v3160
        %v3344 = vpop.f32.mrb[0].mxu0
        %v3345 = vadd.f32 0.0, %v3344
        %v3346 = vpop.f32.mrb[0].mxu0
        %3347 = vmatprep.mubr.f32.mxu0 0.0
        %3348 = vmatmul.mubr.f32.gmra.mrb[0].mxu0 %v3163
        %v3349 = vpop.f32.mrb[0].mxu0
        %v3350 = vadd.f32 0.0, %v3349
        %v3351 = vpop.f32.mrb[0].mxu0
        %3352 = vmatprep.mubr.f32.mxu0 0.0
        %3353 = vmatmul.mubr.f32.gmra.mrb[0].mxu0 %v3166
        %v3354 = vpop.f32.mrb[0].mxu0
        %v3355 = vadd.f32 0.0, %v3354
        %v3356 = vpop.f32.mrb[0].mxu0
        %3357 = vmatprep.mubr.f32.mxu0 0.0
        %3358 = vmatmul.mubr.f32.gmra.mrb[0].mxu0 %v3169
        %v3359 = vpop.f32.mrb[0].mxu0
        %v3360 = vadd.f32 0.0, %v3359
        %v3361 = vpop.f32.mrb[0].mxu0
        %3362 = vmatprep.mubr.f32.mxu0 0.0
        %3363 = vmatmul.mubr.f32.gmra.mrb[0].mxu0 %v3172
        %v3364 = vpop.f32.mrb[0].mxu0
        %v3365 = vadd.f32 0.0, %v3364
        %v3366 = vpop.f32.mrb[0].mxu0
        %3367 = vmatprep.mubr.f32.mxu0 0.0
        %3368 = vmatmul.mubr.f32.gmra.mrb[0].mxu0 %v3175
        %v3369 = vpop.f32.mrb[0].mxu0
        %v3370 = vadd.f32 0.0, %v3369
        %v3371 = vpop.f32.mrb[0].mxu0
        %3372 = vmatprep.mubr.f32.mxu0 0.0
        %3373 = vmatmul.mubr.f32.gmra.mrb[0].mxu0 %v3178
        %v3374 = vpop.f32.mrb[0].mxu0
        %v3375 = vadd.f32 0.0, %v3374
        %v3376 = vpop.f32.mrb[0].mxu0
        %3377 = vmatprep.mubr.f32.mxu0 0.0
        %3378 = vmatmul.mubr.f32.gmra.mrb[0].mxu0 %v3181
        %v3379 = vpop.f32.mrb[0].mxu0
        %v3380 = vadd.f32 0.0, %v3379
        %v3381 = vpop.f32.mrb[0].mxu0
        %3382 = vmatprep.mubr.f32.mxu0 0.0
        %3383 = vmatmul.mubr.f32.gmra.mrb[0].mxu0 %v3184
        %v3384 = vpop.f32.mrb[0].mxu0
        %v3385 = vadd.f32 0.0, %v3384
        %v3386 = vpop.f32.mrb[0].mxu0
        %3387 = vmatprep.mubr.f32.mxu0 0.0
        %3388 = vmatmul.mubr.f32.gmra.mrb[0].mxu0 %v3187
        %v3389 = vpop.f32.mrb[0].mxu0
        %v3390 = vadd.f32 0.0, %v3389
        %v3391 = vpop.f32.mrb[0].mxu0
        %3392 = vmatprep.mubr.f32.mxu0 0.0
        %3393 = vmatmul.mubr.f32.gmra.mrb[0].mxu0 %v3190
        %v3394 = vpop.f32.mrb[0].mxu0
        %v3395 = vadd.f32 0.0, %v3394
        %v3396 = vpop.f32.mrb[0].mxu0
        %3397 = vmatprep.mubr.f32.mxu0 0.0
        %3398 = vmatmul.mubr.f32.gmra.mrb[0].mxu0 %v3193
        %v3399 = vpop.f32.mrb[0].mxu0
        %v3400 = vadd.f32 0.0, %v3399
        %v3401 = vpop.f32.mrb[0].mxu0
        %3402 = vmatprep.mubr.f32.mxu0 0.0
        %3403 = vmatmul.mubr.f32.gmra.mrb[0].mxu0 %v3196
        %v3404 = vpop.f32.mrb[0].mxu0
        %v3405 = vadd.f32 0.0, %v3404
        %v3406 = vpop.f32.mrb[0].mxu0
        %3407 = vmatprep.mubr.f32.mxu0 0.0
        %3408 = vmatmul.mubr.f32.gmra.mrb[0].mxu0 %v3199
        %v3409 = vpop.f32.mrb[0].mxu0
        %v3410 = vadd.f32 0.0, %v3409
        %v3411 = vpop.f32.mrb[0].mxu0
        %3412 = vmatprep.mubr.f32.mxu0 0.0
        %3413 = vmatmul.mubr.f32.gmra.mrb[0].mxu0 %v3202
        %v3414 = vpop.f32.mrb[0].mxu0
        %v3415 = vadd.f32 0.0, %v3414
        %v3416 = vpop.f32.mrb[0].mxu0
        %3417 = vmatprep.mubr.f32.mxu0 0.0
        %3418 = vmatmul.mubr.f32.gmra.mrb[0].mxu0 %v3205
        %v3419 = vpop.f32.mrb[0].mxu0
        %v3420 = vadd.f32 0.0, %v3419
        %v3421 = vpop.f32.mrb[0].mxu0
        %3422 = vmatprep.mubr.f32.mxu0 0.0
        %3423 = vmatmul.mubr.f32.gmra.mrb[0].mxu0 %v3208
        %v3424 = vpop.f32.mrb[0].mxu0
        %v3425 = vadd.f32 0.0, %v3424
        %v3426 = vpop.f32.mrb[0].mxu0
        %3427 = vmatprep.mubr.f32.mxu0 0.0
        %3428 = vmatmul.mubr.f32.gmra.mrb[0].mxu0 %v3211
        %v3429 = vpop.f32.mrb[0].mxu0
        %v3430 = vadd.f32 0.0, %v3429
        %v3431 = vpop.f32.mrb[0].mxu0
        %3432 = vmatprep.mubr.f32.mxu0 0.0
        %3433 = vmatmul.mubr.f32.gmra.mrb[0].mxu0 %v3214
        %v3434 = vpop.f32.mrb[0].mxu0
        %v3435 = vadd.f32 0.0, %v3434
        %v3436 = vpop.f32.mrb[0].mxu0
        %3437 = vmatprep.mubr.f32.mxu0 0.0
        %3438 = vmatmul.mubr.f32.gmra.mrb[0].mxu0 %v3217
        %v3439 = vpop.f32.mrb[0].mxu0
        %v3440 = vadd.f32 0.0, %v3439
        %v3441 = vpop.f32.mrb[0].mxu0
        %3442 = vmatprep.mubr.f32.mxu0 0.0
        %3443 = vmatmul.mubr.f32.gmra.mrb[0].mxu0 %v3220
        %v3444 = vpop.f32.mrb[0].mxu0
        %v3445 = vadd.f32 0.0, %v3444
        %v3446 = vpop.f32.mrb[0].mxu0
        %3447 = vmatprep.mubr.f32.mxu0 0.0
        %3448 = vmatmul.mubr.f32.gmra.mrb[0].mxu0 %v3223
        %v3449 = vpop.f32.mrb[0].mxu0
        %v3450 = vadd.f32 0.0, %v3449
        %v3451 = vpop.f32.mrb[0].mxu0
        %3452 = vmatprep.mubr.f32.mxu0 0.0
        %3453 = vmatmul.mubr.f32.gmra.mrb[0].mxu0 %v3226
        %v3454 = vpop.f32.mrb[0].mxu0
        %v3455 = vadd.f32 0.0, %v3454
        %v3456 = vpop.f32.mrb[0].mxu0
        %3457 = vmatprep.mubr.f32.mxu0 0.0
        %3458 = vmatmul.mubr.f32.gmra.mrb[0].mxu0 %v3229
        %v3459 = vpop.f32.mrb[0].mxu0
        %v3460 = vadd.f32 0.0, %v3459
        %v3461 = vpop.f32.mrb[0].mxu0
        %3462 = vmatprep.mubr.f32.mxu0 0.0
        %3463 = vmatmul.mubr.f32.gmra.mrb[0].mxu0 %v3232
        %v3464 = vpop.f32.mrb[0].mxu0
        %v3465 = vadd.f32 0.0, %v3464
        %v3466 = vpop.f32.mrb[0].mxu0
        %3467 = vmatprep.mubr.f32.mxu0 0.0
        %3468 = vmatmul.mubr.f32.gmra.mrb[0].mxu0 %v3235
        %v3469 = vpop.f32.mrb[0].mxu0
        %v3470 = vadd.f32 0.0, %v3469
        %v3471 = vpop.f32.mrb[0].mxu0
        %3472 = vmatprep.mubr.f32.mxu0 0.0
        %3473 = vmatmul.mubr.f32.gmra.mrb[0].mxu0 %v3238
        %v3474 = vpop.f32.mrb[0].mxu0
        %v3475 = vadd.f32 0.0, %v3474
        %v3476 = vpop.f32.mrb[0].mxu0
        %3477 = vmatprep.mubr.f32.mxu0 0.0
        %3478 = vmatmul.mubr.f32.gmra.mrb[0].mxu0 %v3241
        %v3479 = vpop.f32.mrb[0].mxu0
        %v3480 = vadd.f32 0.0, %v3479
        %v3481 = vpop.f32.mrb[0].mxu0
        %3482 = vmatprep.mubr.f32.mxu0 0.0
        %3483 = vmatmul.mubr.f32.gmra.mrb[0].mxu0 %v3244
        %v3484 = vpop.f32.mrb[0].mxu0
        %v3485 = vadd.f32 0.0, %v3484
        %v3486 = vpop.f32.mrb[0].mxu0
        %3487 = vmatprep.mubr.f32.mxu0 0.0
        %3488 = vmatmul.mubr.f32.gmra.mrb[0].mxu0 %v3247
        %v3489 = vpop.f32.mrb[0].mxu0
        %v3490 = vadd.f32 0.0, %v3489
        %v3491 = vpop.f32.mrb[0].mxu0
        %3492 = vmatprep.mubr.f32.mxu0 0.0
        %3493 = vmatmul.mubr.f32.gmra.mrb[0].mxu0 %v3250
        %v3494 = vpop.f32.mrb[0].mxu0
        %v3495 = vadd.f32 0.0, %v3494
        %v3496 = vpop.f32.mrb[0].mxu0
        %3497 = vmatprep.mubr.f32.mxu0 0.0
        %3498 = vmatmul.mubr.f32.gmra.mrb[0].mxu0 %v3253
        %v3499 = vpop.f32.mrb[0].mxu0
        %v3500 = vadd.f32 0.0, %v3499
        %v3501 = vpop.f32.mrb[0].mxu0
        %3502 = vdwg.mxu0
        %v3503 = vadd.f32 %v3073, %v3325
        %v3504 = vadd.f32 %v3074, %v3330
        %v3505 = vadd.f32 %v3075, %v3335
        %v3506 = vadd.f32 %v3076, %v3340
        %v3507 = vadd.f32 %v3077, %v3345
        %v3508 = vadd.f32 %v3078, %v3350
        %v3509 = vadd.f32 %v3079, %v3355
        %v3510 = vadd.f32 %v3080, %v3360
        %v3511 = vadd.f32 %v3081, %v3365
        %v3512 = vadd.f32 %v3082, %v3370
        %v3513 = vadd.f32 %v3083, %v3375
        %v3514 = vadd.f32 %v3084, %v3380
        %v3515 = vadd.f32 %v3085, %v3385
        %v3516 = vadd.f32 %v3086, %v3390
        %v3517 = vadd.f32 %v3087, %v3395
        %v3518 = vadd.f32 %v3088, %v3400
        %v3519 = vadd.f32 %v3089, %v3405
        %v3520 = vadd.f32 %v3090, %v3410
        %v3521 = vadd.f32 %v3091, %v3415
        %v3522 = vadd.f32 %v3092, %v3420
        %v3523 = vadd.f32 %v3093, %v3425
        %v3524 = vadd.f32 %v3094, %v3430
        %v3525 = vadd.f32 %v3095, %v3435
        %v3526 = vadd.f32 %v3096, %v3440
        %v3527 = vadd.f32 %v3097, %v3445
        %v3528 = vadd.f32 %v3098, %v3450
        %v3529 = vadd.f32 %v3099, %v3455
        %v3530 = vadd.f32 %v3100, %v3460
        %v3531 = vadd.f32 %v3101, %v3465
        %v3532 = vadd.f32 %v3102, %v3470
        %v3533 = vadd.f32 %v3103, %v3475
        %v3534 = vadd.f32 %v3104, %v3480
        %v3535 = vadd.f32 %v3105, %v3485
        %v3536 = vadd.f32 %v3106, %v3490
        %v3537 = vadd.f32 %v3107, %v3495
        %v3538 = vadd.f32 %v3108, %v3500
        %v3539 = vld [vmem:[%s168 + $0x26] sm:$0xff]
        %v3540 = vld [vmem:[%s168 + $0x2e] sm:$0xff]
        %v3541 = vld [vmem:[%s168 + $0x36] sm:$0xff]
        %v3542 = vld [vmem:[%s168 + $0x3e] sm:$0xff]
        %v3543 = vld [vmem:[%s168 + $0x46] sm:$0xff]
        %v3544 = vld [vmem:[%s168 + $0x4e] sm:$0xff]
        %v3545 = vld [vmem:[%s168 + $0x56] sm:$0xff]
        %v3546 = vld [vmem:[%s168 + $0x5e] sm:$0xff]
        %v3547 = vld [vmem:[%s168 + $0x66] sm:$0xff]
        %v3548 = vld [vmem:[%s168 + $0x6e] sm:$0xff]
        %v3549 = vld [vmem:[%s168 + $0x76] sm:$0xff]
        %v3550 = vld [vmem:[%s168 + $0x7e] sm:$0xff]
        %v3551 = vld [vmem:[%s168 + $0x86] sm:$0xff]
        %v3552 = vld [vmem:[%s168 + $0x8e] sm:$0xff]
        %v3553 = vld [vmem:[%s168 + $0x96] sm:$0xff]
        %v3554 = vld [vmem:[%s168 + $0x9e] sm:$0xff]
        %v3555 = vld [vmem:[%s168 + $0xa6] sm:$0xff]
        %v3556 = vld [vmem:[%s168 + $0xae] sm:$0xff]
        %v3557 = vld [vmem:[%s168 + $0xb6] sm:$0xff]
        %v3558 = vld [vmem:[%s168 + $0xbe] sm:$0xff]
        %v3559 = vld [vmem:[%s168 + $0xc6] sm:$0xff]
        %v3560 = vld [vmem:[%s168 + $0xce] sm:$0xff]
        %v3561 = vld [vmem:[%s168 + $0xd6] sm:$0xff]
        %v3562 = vld [vmem:[%s168 + $0xde] sm:$0xff]
        %v3563 = vld [vmem:[%s168 + $0xe6] sm:$0xff]
        %v3564 = vld [vmem:[%s168 + $0xee] sm:$0xff]
        %v3565 = vld [vmem:[%s168 + $0xf6] sm:$0xff]
        %v3566 = vld [vmem:[%s168 + $0xfe] sm:$0xff]
        %v3567 = vld [vmem:[%s168 + $0x106] sm:$0xff]
        %v3568 = vld [vmem:[%s168 + $0x10e] sm:$0xff]
        %v3569 = vld [vmem:[%s168 + $0x116] sm:$0xff]
        %v3570 = vld [vmem:[%s168 + $0x11e] sm:$0xff]
        %v3571 = vld [vmem:[%s168 + $0x126] sm:$0xff]
        %v3572 = vld [vmem:[%s168 + $0x12e] sm:$0xff]
        %v3573 = vld [vmem:[%s168 + $0x136] sm:$0xff]
        %v3574 = vld [vmem:[%s168 + $0x13e] sm:$0xff]
        %s3575 = scalar_lea.vmem %s1, 32
        %v3576 = vld [vmem:[%s3575] sm:$0xf]
        %v3578 = vsel %vm245, %v3539, 0
        %v3581 = vsel %vm245, %v3540, 0
        %v3584 = vsel %vm245, %v3541, 0
        %v3587 = vsel %vm245, %v3542, 0
        %v3590 = vsel %vm245, %v3543, 0
        %v3593 = vsel %vm245, %v3544, 0
        %v3596 = vsel %vm245, %v3545, 0
        %v3599 = vsel %vm245, %v3546, 0
        %v3602 = vsel %vm245, %v3547, 0
        %v3605 = vsel %vm245, %v3548, 0
        %v3608 = vsel %vm245, %v3549, 0
        %v3611 = vsel %vm245, %v3550, 0
        %v3614 = vsel %vm245, %v3551, 0
        %v3617 = vsel %vm245, %v3552, 0
        %v3620 = vsel %vm245, %v3553, 0
        %v3623 = vsel %vm245, %v3554, 0
        %v3626 = vsel %vm245, %v3555, 0
        %v3629 = vsel %vm245, %v3556, 0
        %v3632 = vsel %vm245, %v3557, 0
        %v3635 = vsel %vm245, %v3558, 0
        %v3638 = vsel %vm245, %v3559, 0
        %v3641 = vsel %vm245, %v3560, 0
        %v3644 = vsel %vm245, %v3561, 0
        %v3647 = vsel %vm245, %v3562, 0
        %v3650 = vsel %vm245, %v3563, 0
        %v3653 = vsel %vm245, %v3564, 0
        %v3656 = vsel %vm245, %v3565, 0
        %v3659 = vsel %vm245, %v3566, 0
        %v3662 = vsel %vm245, %v3567, 0
        %v3665 = vsel %vm245, %v3568, 0
        %v3668 = vsel %vm245, %v3569, 0
        %v3671 = vsel %vm245, %v3570, 0
        %v3674 = vsel %vm245, %v3571, 0
        %v3677 = vsel %vm245, %v3572, 0
        %v3680 = vsel %vm245, %v3573, 0
        %v3683 = vsel %vm245, %v3574, 0
        %v3686 = vsel %vm354, %v3576, 0
        %3688 = vmatprep.subr.mxu0 0.0
        %3689 = vmatpush1.msra.mxu0 %v3686
        %3690 = vmatprep.subr.mxu0 0.0
        %3691 = vmatpush1.msra.mxu0 0.0
        %3692 = vmatprep.subr.mxu0 0.0
        %3693 = vmatpush1.msra.mxu0 0.0
        %3694 = vmatprep.subr.mxu0 0.0
        %3695 = vmatpush1.msra.mxu0 0.0
        %3696 = vmatprep.subr.mxu0 0.0
        %3697 = vmatpush1.msra.mxu0 0.0
        %3698 = vmatprep.subr.mxu0 0.0
        %3699 = vmatpush1.msra.mxu0 0.0
        %3700 = vmatprep.subr.mxu0 0.0
        %3701 = vmatpush1.msra.mxu0 0.0
        %3702 = vmatprep.subr.mxu0 0.0
        %3703 = vmatpush1.msra.mxu0 0.0
        %3704 = vmatprep.subr.mxu0 0.0
        %3705 = vmatpush1.msra.mxu0 0.0
        %3706 = vmatprep.subr.mxu0 0.0
        %3707 = vmatpush1.msra.mxu0 0.0
        %3708 = vmatprep.subr.mxu0 0.0
        %3709 = vmatpush1.msra.mxu0 0.0
        %3710 = vmatprep.subr.mxu0 0.0
        %3711 = vmatpush1.msra.mxu0 0.0
        %3712 = vmatprep.subr.mxu0 0.0
        %3713 = vmatpush1.msra.mxu0 0.0
        %3714 = vmatprep.subr.mxu0 0.0
        %3715 = vmatpush1.msra.mxu0 0.0
        %3716 = vmatprep.subr.mxu0 0.0
        %3717 = vmatpush1.msra.mxu0 0.0
        %3718 = vmatprep.subr.mxu0 0.0
        %3719 = vmatpush1.msra.mxu0 0.0
        %3720 = vmatprep.subr.mxu0 0.0
        %3721 = vmatpush1.msra.mxu0 0.0
        %3722 = vmatprep.subr.mxu0 0.0
        %3723 = vmatpush1.msra.mxu0 0.0
        %3724 = vmatprep.subr.mxu0 0.0
        %3725 = vmatpush1.msra.mxu0 0.0
        %3726 = vmatprep.subr.mxu0 0.0
        %3727 = vmatpush1.msra.mxu0 0.0
        %3728 = vmatprep.subr.mxu0 0.0
        %3729 = vmatpush1.msra.mxu0 0.0
        %3730 = vmatprep.subr.mxu0 0.0
        %3731 = vmatpush1.msra.mxu0 0.0
        %3732 = vmatprep.subr.mxu0 0.0
        %3733 = vmatpush1.msra.mxu0 0.0
        %3734 = vmatprep.subr.mxu0 0.0
        %3735 = vmatpush1.msra.mxu0 0.0
        %3736 = vmatprep.subr.mxu0 0.0
        %3737 = vmatpush1.msra.mxu0 0.0
        %3738 = vmatprep.subr.mxu0 0.0
        %3739 = vmatpush1.msra.mxu0 0.0
        %3740 = vmatprep.subr.mxu0 0.0
        %3741 = vmatpush1.msra.mxu0 0.0
        %3742 = vmatprep.subr.mxu0 0.0
        %3743 = vmatpush1.msra.mxu0 0.0
        %3744 = vmatprep.subr.mxu0 0.0
        %3745 = vmatpush1.msra.mxu0 0.0
        %3746 = vmatprep.subr.mxu0 0.0
        %3747 = vmatpush1.msra.mxu0 0.0
        %3748 = vmatprep.subr.mxu0 0.0
        %3749 = vmatpush1.msra.mxu0 0.0
        %3750 = vmatprep.subr.mxu0 0.0
        %3751 = vmatpush1.msra.mxu0 0.0
        %3752 = vmatprep.mubr.f32.mxu0 0.0
        %3753 = vmatmul.mubr.f32.gmra.mrb[0].mxu0 %v3578
        %v3754 = vpop.f32.mrb[0].mxu0
        %v3755 = vadd.f32 0.0, %v3754
        %v3756 = vpop.f32.mrb[0].mxu0
        %3757 = vmatprep.mubr.f32.mxu0 0.0
        %3758 = vmatmul.mubr.f32.gmra.mrb[0].mxu0 %v3581
        %v3759 = vpop.f32.mrb[0].mxu0
        %v3760 = vadd.f32 0.0, %v3759
        %v3761 = vpop.f32.mrb[0].mxu0
        %3762 = vmatprep.mubr.f32.mxu0 0.0
        %3763 = vmatmul.mubr.f32.gmra.mrb[0].mxu0 %v3584
        %v3764 = vpop.f32.mrb[0].mxu0
        %v3765 = vadd.f32 0.0, %v3764
        %v3766 = vpop.f32.mrb[0].mxu0
        %3767 = vmatprep.mubr.f32.mxu0 0.0
        %3768 = vmatmul.mubr.f32.gmra.mrb[0].mxu0 %v3587
        %v3769 = vpop.f32.mrb[0].mxu0
        %v3770 = vadd.f32 0.0, %v3769
        %v3771 = vpop.f32.mrb[0].mxu0
        %3772 = vmatprep.mubr.f32.mxu0 0.0
        %3773 = vmatmul.mubr.f32.gmra.mrb[0].mxu0 %v3590
        %v3774 = vpop.f32.mrb[0].mxu0
        %v3775 = vadd.f32 0.0, %v3774
        %v3776 = vpop.f32.mrb[0].mxu0
        %3777 = vmatprep.mubr.f32.mxu0 0.0
        %3778 = vmatmul.mubr.f32.gmra.mrb[0].mxu0 %v3593
        %v3779 = vpop.f32.mrb[0].mxu0
        %v3780 = vadd.f32 0.0, %v3779
        %v3781 = vpop.f32.mrb[0].mxu0
        %3782 = vmatprep.mubr.f32.mxu0 0.0
        %3783 = vmatmul.mubr.f32.gmra.mrb[0].mxu0 %v3596
        %v3784 = vpop.f32.mrb[0].mxu0
        %v3785 = vadd.f32 0.0, %v3784
        %v3786 = vpop.f32.mrb[0].mxu0
        %3787 = vmatprep.mubr.f32.mxu0 0.0
        %3788 = vmatmul.mubr.f32.gmra.mrb[0].mxu0 %v3599
        %v3789 = vpop.f32.mrb[0].mxu0
        %v3790 = vadd.f32 0.0, %v3789
        %v3791 = vpop.f32.mrb[0].mxu0
        %3792 = vmatprep.mubr.f32.mxu0 0.0
        %3793 = vmatmul.mubr.f32.gmra.mrb[0].mxu0 %v3602
        %v3794 = vpop.f32.mrb[0].mxu0
        %v3795 = vadd.f32 0.0, %v3794
        %v3796 = vpop.f32.mrb[0].mxu0
        %3797 = vmatprep.mubr.f32.mxu0 0.0
        %3798 = vmatmul.mubr.f32.gmra.mrb[0].mxu0 %v3605
        %v3799 = vpop.f32.mrb[0].mxu0
        %v3800 = vadd.f32 0.0, %v3799
        %v3801 = vpop.f32.mrb[0].mxu0
        %3802 = vmatprep.mubr.f32.mxu0 0.0
        %3803 = vmatmul.mubr.f32.gmra.mrb[0].mxu0 %v3608
        %v3804 = vpop.f32.mrb[0].mxu0
        %v3805 = vadd.f32 0.0, %v3804
        %v3806 = vpop.f32.mrb[0].mxu0
        %3807 = vmatprep.mubr.f32.mxu0 0.0
        %3808 = vmatmul.mubr.f32.gmra.mrb[0].mxu0 %v3611
        %v3809 = vpop.f32.mrb[0].mxu0
        %v3810 = vadd.f32 0.0, %v3809
        %v3811 = vpop.f32.mrb[0].mxu0
        %3812 = vmatprep.mubr.f32.mxu0 0.0
        %3813 = vmatmul.mubr.f32.gmra.mrb[0].mxu0 %v3614
        %v3814 = vpop.f32.mrb[0].mxu0
        %v3815 = vadd.f32 0.0, %v3814
        %v3816 = vpop.f32.mrb[0].mxu0
        %3817 = vmatprep.mubr.f32.mxu0 0.0
        %3818 = vmatmul.mubr.f32.gmra.mrb[0].mxu0 %v3617
        %v3819 = vpop.f32.mrb[0].mxu0
        %v3820 = vadd.f32 0.0, %v3819
        %v3821 = vpop.f32.mrb[0].mxu0
        %3822 = vmatprep.mubr.f32.mxu0 0.0
        %3823 = vmatmul.mubr.f32.gmra.mrb[0].mxu0 %v3620
        %v3824 = vpop.f32.mrb[0].mxu0
        %v3825 = vadd.f32 0.0, %v3824
        %v3826 = vpop.f32.mrb[0].mxu0
        %3827 = vmatprep.mubr.f32.mxu0 0.0
        %3828 = vmatmul.mubr.f32.gmra.mrb[0].mxu0 %v3623
        %v3829 = vpop.f32.mrb[0].mxu0
        %v3830 = vadd.f32 0.0, %v3829
        %v3831 = vpop.f32.mrb[0].mxu0
        %3832 = vmatprep.mubr.f32.mxu0 0.0
        %3833 = vmatmul.mubr.f32.gmra.mrb[0].mxu0 %v3626
        %v3834 = vpop.f32.mrb[0].mxu0
        %v3835 = vadd.f32 0.0, %v3834
        %v3836 = vpop.f32.mrb[0].mxu0
        %3837 = vmatprep.mubr.f32.mxu0 0.0
        %3838 = vmatmul.mubr.f32.gmra.mrb[0].mxu0 %v3629
        %v3839 = vpop.f32.mrb[0].mxu0
        %v3840 = vadd.f32 0.0, %v3839
        %v3841 = vpop.f32.mrb[0].mxu0
        %3842 = vmatprep.mubr.f32.mxu0 0.0
        %3843 = vmatmul.mubr.f32.gmra.mrb[0].mxu0 %v3632
        %v3844 = vpop.f32.mrb[0].mxu0
        %v3845 = vadd.f32 0.0, %v3844
        %v3846 = vpop.f32.mrb[0].mxu0
        %3847 = vmatprep.mubr.f32.mxu0 0.0
        %3848 = vmatmul.mubr.f32.gmra.mrb[0].mxu0 %v3635
        %v3849 = vpop.f32.mrb[0].mxu0
        %v3850 = vadd.f32 0.0, %v3849
        %v3851 = vpop.f32.mrb[0].mxu0
        %3852 = vmatprep.mubr.f32.mxu0 0.0
        %3853 = vmatmul.mubr.f32.gmra.mrb[0].mxu0 %v3638
        %v3854 = vpop.f32.mrb[0].mxu0
        %v3855 = vadd.f32 0.0, %v3854
        %v3856 = vpop.f32.mrb[0].mxu0
        %3857 = vmatprep.mubr.f32.mxu0 0.0
        %3858 = vmatmul.mubr.f32.gmra.mrb[0].mxu0 %v3641
        %v3859 = vpop.f32.mrb[0].mxu0
        %v3860 = vadd.f32 0.0, %v3859
        %v3861 = vpop.f32.mrb[0].mxu0
        %3862 = vmatprep.mubr.f32.mxu0 0.0
        %3863 = vmatmul.mubr.f32.gmra.mrb[0].mxu0 %v3644
        %v3864 = vpop.f32.mrb[0].mxu0
        %v3865 = vadd.f32 0.0, %v3864
        %v3866 = vpop.f32.mrb[0].mxu0
        %3867 = vmatprep.mubr.f32.mxu0 0.0
        %3868 = vmatmul.mubr.f32.gmra.mrb[0].mxu0 %v3647
        %v3869 = vpop.f32.mrb[0].mxu0
        %v3870 = vadd.f32 0.0, %v3869
        %v3871 = vpop.f32.mrb[0].mxu0
        %3872 = vmatprep.mubr.f32.mxu0 0.0
        %3873 = vmatmul.mubr.f32.gmra.mrb[0].mxu0 %v3650
        %v3874 = vpop.f32.mrb[0].mxu0
        %v3875 = vadd.f32 0.0, %v3874
        %v3876 = vpop.f32.mrb[0].mxu0
        %3877 = vmatprep.mubr.f32.mxu0 0.0
        %3878 = vmatmul.mubr.f32.gmra.mrb[0].mxu0 %v3653
        %v3879 = vpop.f32.mrb[0].mxu0
        %v3880 = vadd.f32 0.0, %v3879
        %v3881 = vpop.f32.mrb[0].mxu0
        %3882 = vmatprep.mubr.f32.mxu0 0.0
        %3883 = vmatmul.mubr.f32.gmra.mrb[0].mxu0 %v3656
        %v3884 = vpop.f32.mrb[0].mxu0
        %v3885 = vadd.f32 0.0, %v3884
        %v3886 = vpop.f32.mrb[0].mxu0
        %3887 = vmatprep.mubr.f32.mxu0 0.0
        %3888 = vmatmul.mubr.f32.gmra.mrb[0].mxu0 %v3659
        %v3889 = vpop.f32.mrb[0].mxu0
        %v3890 = vadd.f32 0.0, %v3889
        %v3891 = vpop.f32.mrb[0].mxu0
        %3892 = vmatprep.mubr.f32.mxu0 0.0
        %3893 = vmatmul.mubr.f32.gmra.mrb[0].mxu0 %v3662
        %v3894 = vpop.f32.mrb[0].mxu0
        %v3895 = vadd.f32 0.0, %v3894
        %v3896 = vpop.f32.mrb[0].mxu0
        %3897 = vmatprep.mubr.f32.mxu0 0.0
        %3898 = vmatmul.mubr.f32.gmra.mrb[0].mxu0 %v3665
        %v3899 = vpop.f32.mrb[0].mxu0
        %v3900 = vadd.f32 0.0, %v3899
        %v3901 = vpop.f32.mrb[0].mxu0
        %3902 = vmatprep.mubr.f32.mxu0 0.0
        %3903 = vmatmul.mubr.f32.gmra.mrb[0].mxu0 %v3668
        %v3904 = vpop.f32.mrb[0].mxu0
        %v3905 = vadd.f32 0.0, %v3904
        %v3906 = vpop.f32.mrb[0].mxu0
        %3907 = vmatprep.mubr.f32.mxu0 0.0
        %3908 = vmatmul.mubr.f32.gmra.mrb[0].mxu0 %v3671
        %v3909 = vpop.f32.mrb[0].mxu0
        %v3910 = vadd.f32 0.0, %v3909
        %v3911 = vpop.f32.mrb[0].mxu0
        %3912 = vmatprep.mubr.f32.mxu0 0.0
        %3913 = vmatmul.mubr.f32.gmra.mrb[0].mxu0 %v3674
        %v3914 = vpop.f32.mrb[0].mxu0
        %v3915 = vadd.f32 0.0, %v3914
        %v3916 = vpop.f32.mrb[0].mxu0
        %3917 = vmatprep.mubr.f32.mxu0 0.0
        %3918 = vmatmul.mubr.f32.gmra.mrb[0].mxu0 %v3677
        %v3919 = vpop.f32.mrb[0].mxu0
        %v3920 = vadd.f32 0.0, %v3919
        %v3921 = vpop.f32.mrb[0].mxu0
        %3922 = vmatprep.mubr.f32.mxu0 0.0
        %3923 = vmatmul.mubr.f32.gmra.mrb[0].mxu0 %v3680
        %v3924 = vpop.f32.mrb[0].mxu0
        %v3925 = vadd.f32 0.0, %v3924
        %v3926 = vpop.f32.mrb[0].mxu0
        %3927 = vmatprep.mubr.f32.mxu0 0.0
        %3928 = vmatmul.mubr.f32.gmra.mrb[0].mxu0 %v3683
        %v3929 = vpop.f32.mrb[0].mxu0
        %v3930 = vadd.f32 0.0, %v3929
        %v3931 = vpop.f32.mrb[0].mxu0
        %3932 = vdwg.mxu0
        %v3933 = vadd.f32 %v3503, %v3755
        %v3934 = vadd.f32 %v3504, %v3760
        %v3935 = vadd.f32 %v3505, %v3765
        %v3936 = vadd.f32 %v3506, %v3770
        %v3937 = vadd.f32 %v3507, %v3775
        %v3938 = vadd.f32 %v3508, %v3780
        %v3939 = vadd.f32 %v3509, %v3785
        %v3940 = vadd.f32 %v3510, %v3790
        %v3941 = vadd.f32 %v3511, %v3795
        %v3942 = vadd.f32 %v3512, %v3800
        %v3943 = vadd.f32 %v3513, %v3805
        %v3944 = vadd.f32 %v3514, %v3810
        %v3945 = vadd.f32 %v3515, %v3815
        %v3946 = vadd.f32 %v3516, %v3820
        %v3947 = vadd.f32 %v3517, %v3825
        %v3948 = vadd.f32 %v3518, %v3830
        %v3949 = vadd.f32 %v3519, %v3835
        %v3950 = vadd.f32 %v3520, %v3840
        %v3951 = vadd.f32 %v3521, %v3845
        %v3952 = vadd.f32 %v3522, %v3850
        %v3953 = vadd.f32 %v3523, %v3855
        %v3954 = vadd.f32 %v3524, %v3860
        %v3955 = vadd.f32 %v3525, %v3865
        %v3956 = vadd.f32 %v3526, %v3870
        %v3957 = vadd.f32 %v3527, %v3875
        %v3958 = vadd.f32 %v3528, %v3880
        %v3959 = vadd.f32 %v3529, %v3885
        %v3960 = vadd.f32 %v3530, %v3890
        %v3961 = vadd.f32 %v3531, %v3895
        %v3962 = vadd.f32 %v3532, %v3900
        %v3963 = vadd.f32 %v3533, %v3905
        %v3964 = vadd.f32 %v3534, %v3910
        %v3965 = vadd.f32 %v3535, %v3915
        %v3966 = vadd.f32 %v3536, %v3920
        %v3967 = vadd.f32 %v3537, %v3925
        %v3968 = vadd.f32 %v3538, %v3930
        %v3969 = vld [vmem:[%s2] sm:$0x1]
        %v3971 = vlaneseq
        %v3972 = vshrl.u32 %v3971, 7
        %v3973 = vsub.s32 0, %v3972
        %v3974 = vrot.slane %v3969, %v3973
        %v3976 = vadd.f32 %v3933, %v3974
        %v3977 = vadd.f32 %v3934, %v3974
        %v3978 = vadd.f32 %v3935, %v3974
        %v3979 = vadd.f32 %v3936, %v3974
        %v3980 = vadd.f32 %v3937, %v3974
        %v3981 = vadd.f32 %v3938, %v3974
        %v3982 = vadd.f32 %v3939, %v3974
        %v3983 = vadd.f32 %v3940, %v3974
        %v3984 = vadd.f32 %v3941, %v3974
        %v3985 = vadd.f32 %v3942, %v3974
        %v3986 = vadd.f32 %v3943, %v3974
        %v3987 = vadd.f32 %v3944, %v3974
        %v3988 = vadd.f32 %v3945, %v3974
        %v3989 = vadd.f32 %v3946, %v3974
        %v3990 = vadd.f32 %v3947, %v3974
        %v3991 = vadd.f32 %v3948, %v3974
        %v3992 = vadd.f32 %v3949, %v3974
        %v3993 = vadd.f32 %v3950, %v3974
        %v3994 = vadd.f32 %v3951, %v3974
        %v3995 = vadd.f32 %v3952, %v3974
        %v3996 = vadd.f32 %v3953, %v3974
        %v3997 = vadd.f32 %v3954, %v3974
        %v3998 = vadd.f32 %v3955, %v3974
        %v3999 = vadd.f32 %v3956, %v3974
        %v4000 = vadd.f32 %v3957, %v3974
        %v4001 = vadd.f32 %v3958, %v3974
        %v4002 = vadd.f32 %v3959, %v3974
        %v4003 = vadd.f32 %v3960, %v3974
        %v4004 = vadd.f32 %v3961, %v3974
        %v4005 = vadd.f32 %v3962, %v3974
        %v4006 = vadd.f32 %v3963, %v3974
        %v4007 = vadd.f32 %v3964, %v3974
        %v4008 = vadd.f32 %v3965, %v3974
        %v4009 = vadd.f32 %v3966, %v3974
        %v4010 = vadd.f32 %v3967, %v3974
        %v4011 = vadd.f32 %v3968, %v3974
        %v4012 = vmax.f32 %v3976, 0.0
        %v4013 = vmax.f32 %v3977, 0.0
        %v4014 = vmax.f32 %v3978, 0.0
        %v4015 = vmax.f32 %v3979, 0.0
        %v4016 = vmax.f32 %v3980, 0.0
        %v4017 = vmax.f32 %v3981, 0.0
        %v4018 = vmax.f32 %v3982, 0.0
        %v4019 = vmax.f32 %v3983, 0.0
        %v4020 = vmax.f32 %v3984, 0.0
        %v4021 = vmax.f32 %v3985, 0.0
        %v4022 = vmax.f32 %v3986, 0.0
        %v4023 = vmax.f32 %v3987, 0.0
        %v4024 = vmax.f32 %v3988, 0.0
        %v4025 = vmax.f32 %v3989, 0.0
        %v4026 = vmax.f32 %v3990, 0.0
        %v4027 = vmax.f32 %v3991, 0.0
        %v4028 = vmax.f32 %v3992, 0.0
        %v4029 = vmax.f32 %v3993, 0.0
        %v4030 = vmax.f32 %v3994, 0.0
        %v4031 = vmax.f32 %v3995, 0.0
        %v4032 = vmax.f32 %v3996, 0.0
        %v4033 = vmax.f32 %v3997, 0.0
        %v4034 = vmax.f32 %v3998, 0.0
        %v4035 = vmax.f32 %v3999, 0.0
        %v4036 = vmax.f32 %v4000, 0.0
        %v4037 = vmax.f32 %v4001, 0.0
        %v4038 = vmax.f32 %v4002, 0.0
        %v4039 = vmax.f32 %v4003, 0.0
        %v4040 = vmax.f32 %v4004, 0.0
        %v4041 = vmax.f32 %v4005, 0.0
        %v4042 = vmax.f32 %v4006, 0.0
        %v4043 = vmax.f32 %v4007, 0.0
        %v4044 = vmax.f32 %v4008, 0.0
        %v4045 = vmax.f32 %v4009, 0.0
        %v4046 = vmax.f32 %v4010, 0.0
        %v4047 = vmax.f32 %v4011, 0.0
        %4048 = vst [vmem:[%s163] sm:$0xff] %v4012
        %4049 = vst [vmem:[%s163 + $0x8] sm:$0xff] %v4013
        %4050 = vst [vmem:[%s163 + $0x10] sm:$0xff] %v4014
        %4051 = vst [vmem:[%s163 + $0x18] sm:$0xff] %v4015
        %4052 = vst [vmem:[%s163 + $0x20] sm:$0xff] %v4016
        %4053 = vst [vmem:[%s163 + $0x28] sm:$0xff] %v4017
        %4054 = vst [vmem:[%s163 + $0x30] sm:$0xff] %v4018
        %4055 = vst [vmem:[%s163 + $0x38] sm:$0xff] %v4019
        %4056 = vst [vmem:[%s163 + $0x40] sm:$0xff] %v4020
        %4057 = vst [vmem:[%s163 + $0x48] sm:$0xff] %v4021
        %4058 = vst [vmem:[%s163 + $0x50] sm:$0xff] %v4022
        %4059 = vst [vmem:[%s163 + $0x58] sm:$0xff] %v4023
        %4060 = vst [vmem:[%s163 + $0x60] sm:$0xff] %v4024
        %4061 = vst [vmem:[%s163 + $0x68] sm:$0xff] %v4025
        %4062 = vst [vmem:[%s163 + $0x70] sm:$0xff] %v4026
        %4063 = vst [vmem:[%s163 + $0x78] sm:$0xff] %v4027
        %4064 = vst [vmem:[%s163 + $0x80] sm:$0xff] %v4028
        %4065 = vst [vmem:[%s163 + $0x88] sm:$0xff] %v4029
        %4066 = vst [vmem:[%s163 + $0x90] sm:$0xff] %v4030
        %4067 = vst [vmem:[%s163 + $0x98] sm:$0xff] %v4031
        %4068 = vst [vmem:[%s163 + $0xa0] sm:$0xff] %v4032
        %4069 = vst [vmem:[%s163 + $0xa8] sm:$0xff] %v4033
        %4070 = vst [vmem:[%s163 + $0xb0] sm:$0xff] %v4034
        %4071 = vst [vmem:[%s163 + $0xb8] sm:$0xff] %v4035
        %4072 = vst [vmem:[%s163 + $0xc0] sm:$0xff] %v4036
        %4073 = vst [vmem:[%s163 + $0xc8] sm:$0xff] %v4037
        %4074 = vst [vmem:[%s163 + $0xd0] sm:$0xff] %v4038
        %4075 = vst [vmem:[%s163 + $0xd8] sm:$0xff] %v4039
        %4076 = vst [vmem:[%s163 + $0xe0] sm:$0xff] %v4040
        %4077 = vst [vmem:[%s163 + $0xe8] sm:$0xff] %v4041
        %4078 = vst [vmem:[%s163 + $0xf0] sm:$0xff] %v4042
        %4079 = vst [vmem:[%s163 + $0xf8] sm:$0xff] %v4043
        %4080 = vst [vmem:[%s163 + $0x100] sm:$0xff] %v4044
        %4081 = vst [vmem:[%s163 + $0x108] sm:$0xff] %v4045
        %4082 = vst [vmem:[%s163 + $0x110] sm:$0xff] %v4046
        %4083 = vst [vmem:[%s163 + $0x118] sm:$0xff] %v4047
        %s4084 = sand.u32 %s93, 1
        %s4085 = scalar_lea.sflag [#allocation3], %s4084
        %s4086 = sand.u32 %s93, 1
        %s4087 = smul.addr %s4086, 288
        %s4088 = scalar_lea.vmem [#allocation2], %s4087
        // Predicated region
        $region33: #{tpu_custom_call.1} parent=31 // pred_check
          %p4089 = pneg %p103
        $region34: #{tpu_custom_call.1} parent=31 // pred_check_branch
          %4091 = sbr.rel (%p4089) target = $region36
        $region35: #{tpu_custom_call.1} parent=31 // pred_region
          %s4092 = smul.u32 36, %s17
          %s4094 = ssub.s32 4608, 4608
          %4095 = vsyncadd %s4085, %s4094
          %s4096 = smul.addr %s4092, 128
          %s4097 = scalar_lea.hbm %s3, %s4096
          %s4098 = sshll.u32 %s4088, 4
          %s4099 = int_to_ptr.vmem [resolvable:$true] %s4098
          %4104 = dma.vmem_to_hbm [thread:$0]  %s4099, 4608, %s4097, %s4085, 128, 128, 8
        $region36: #{tpu_custom_call.1} parent=31 // pred_fallthru
          _
      $region32: #{tpu_custom_call.1} parent=5 // pred_fallthru
        _
      %p4105 = scmp.le.s32.totalorder 2, %s12
      // Predicated region
      $region37: #{tpu_custom_call.1} parent=5 // pred_check
        %p4106 = pneg %p4105
      $region38: #{tpu_custom_call.1} parent=5 // pred_check_branch
        %4108 = sbr.rel (%p4106) target = $region40
      $region39: #{tpu_custom_call.1} parent=5 // pred_region
        %s4109 = ssub.s32 %s12, 2
        // Predicated region
        $region41: #{tpu_custom_call.1} parent=39 // pred_check
          %p4110 = pneg %p109
        $region42: #{tpu_custom_call.1} parent=39 // pred_check_branch
          %4112 = sbr.rel (%p4110) target = $region44
        $region43: #{tpu_custom_call.1} parent=39 // pred_region
          %s4113 = sand.u32 %s94, 1
          %s4114 = scalar_lea.sflag [#allocation3], %s4113
          %s4115 = sand.u32 %s94, 1
          %s4116 = smul.addr %s4115, 288
          %s4117 = scalar_lea.vmem [#allocation2], %s4116
          %4118 = dma.done %s4114, 4608
        $region44: #{tpu_custom_call.1} parent=39 // pred_fallthru
          _
      $region40: #{tpu_custom_call.1} parent=5 // pred_fallthru
        _
    $region6: #{tpu_custom_call.1} parent=1 // loop_footer
      %s16 = sadd.s32 1, %s12
    $region7: #{tpu_custom_call.1} parent=1 // loop_footer_branch
      %11 = sbr.rel target = $region3
    $region8: #{tpu_custom_call.1} parent=1 // loop_exit
      _
    %4119 = vsyncpa [#allocation3], 1
    %s4120 = scalar_lea.sflag [#allocation3], 1
    %4121 = vsyncpa %s4120, 1

</llo_original>
